<compile_context>
chip_gen: v5e
topology: v5e:2x2
jax: 0.10.0
libtpu: 0.0.40
codegen_flags: <defaults>
</compile_context>

<pallas_src>
import jax
import jax.numpy as jnp
from jax.experimental import pallas as pl
from jax.experimental.pallas import tpu as pltpu


def _round_up(x, m):
    return (x + m - 1) // m * m


def _pick_batch_tile(n, hw, target_m=256):
    """Largest divisor bt of n with bt*hw <= target_m, preferring to keep at
    least two grid steps (v7x has 2 TensorCores) when the batch allows it."""
    cands = [bt for bt in range(1, n + 1) if n % bt == 0 and bt * hw <= target_m]
    if not cands:
        return 1
    bt = max(cands)
    if n // bt < 2:
        smaller = [c for c in cands if n // c >= 2]
        if smaller:
            bt = max(smaller)
    return bt


# ---------------------------------------------------------------------------
# Fused Pallas kernel: grouped conv (in-kernel im2col) + split attention
# ---------------------------------------------------------------------------

def _make_fused_kernel(radix, card, kh, kw, dh, dw, ho, wo, bt, in_pad, cpg):
    G = radix * card
    hw = ho * wo
    CP = card * cpg
    inv_hw = 1.0 / float(hw)            # hoisted constant
    bf16 = jnp.bfloat16

    def kernel(x_ref, w_ref, b_ref, w1_ref, b1_ref, w2_ref, b2_ref,
               out_ref, patches_ref, feat_ref):
        # x_ref      : (bt, G, Hp, Wp, in_pad)      bf16 (padded input, grouped)
        # w_ref      : (G, kh*kw*in_pad, cpg)       bf16 (im2col-packed weights)
        # b_ref      : (G, 1, cpg)                  f32
        # w1_ref     : (CP, IP)                     bf16 (block-diagonal fc1)
        # b1_ref     : (1, IP)                      f32
        # w2_ref     : (IP, card*radix*cpg)         bf16 (block-diagonal fc2)
        # b2_ref     : (1, card*radix*cpg)          f32
        # out_ref    : (bt, hw, CP)                 bf16
        # patches_ref: (bt*hw, kh*kw*in_pad)        bf16 scratch (im2col, reused)
        # feat_ref   : (G, bt*hw, cpg)              bf16 scratch (ReLU'd conv)

        gap_sums = [None] * card
        for g in range(G):
            # ---- im2col into VMEM scratch (lane-dense, tile-aligned) -------
            for b in range(bt):
                for ki in range(kh):
                    for kj in range(kw):
                        tap = ki * kw + kj
                        patch = x_ref[b, g,
                                      ki * dh:ki * dh + ho,
                                      kj * dw:kj * dw + wo, :]
                        patches_ref[b * hw:(b + 1) * hw,
                                    tap * in_pad:(tap + 1) * in_pad] = (
                            patch.reshape(hw, in_pad))

            # ---- single (bt*hw, kh*kw*in_pad)@(kh*kw*in_pad, cpg) matmul ---
            conv = jnp.dot(patches_ref[...], w_ref[g],
                           preferred_element_type=jnp.float32)
            feat = jnp.maximum(conv + b_ref[g], 0.0)          # (M, cpg) f32
            feat_ref[g] = feat.astype(bf16)

            # ---- register-resident radix-sum feeding the GAP ----------------
            per_sample = jnp.sum(feat.reshape(bt, hw, cpg), axis=1)  # (bt,cpg)
            c = g % card
            gap_sums[c] = per_sample if gap_sums[c] is None \
                else gap_sums[c] + per_sample

        gap = gap_sums[0] if card == 1 else jnp.concatenate(gap_sums, axis=-1)
        gap = gap * inv_hw                                     # (bt, CP) f32

        # ---- fc1 (grouped 1x1 as block-diag matmul) + ReLU, then fc2 --------
        h = jnp.dot(gap.astype(bf16), w1_ref[...],
                    preferred_element_type=jnp.float32)
        h = jnp.maximum(h + b1_ref[...], 0.0)                  # (bt, IP)
        a = jnp.dot(h.astype(bf16), w2_ref[...],
                    preferred_element_type=jnp.float32)
        a = a + b2_ref[...]                          # (bt, card*radix*cpg) f32

        # ---- rSoftMax --------------------------------------------------------
        if radix > 1:
            # fc2 output column layout is (card, radix, cpg); gather per radix
            logits = []
            for r in range(radix):
                cols = [a[:, (c * radix + r) * cpg:(c * radix + r + 1) * cpg]
                        for c in range(card)]
                logits.append(cols[0] if card == 1
                              else jnp.concatenate(cols, axis=-1))   # (bt, CP)
            m = logits[0]
            for p in logits[1:]:
                m = jnp.maximum(m, p)
            es = [jnp.exp(p - m) for p in logits]
            denom = es[0]
            for e in es[1:]:
                denom = denom + e
            inv = pl.reciprocal(denom, approx=True)             # EUP slot
            atts = [e * inv for e in es]
        else:
            atts = [pl.reciprocal(1.0 + jnp.exp(-a), approx=True)]   # sigmoid

        # ---- weighted sum of radix splits (per sample: bounded live ranges) -
        for b in range(bt):
            acc_out = None
            for r in range(radix):
                blocks = [feat_ref[r * card + c, b * hw:(b + 1) * hw, :]
                          for c in range(card)]
                fr = blocks[0] if card == 1 else jnp.concatenate(blocks, -1)
                term = atts[r][b:b + 1, :] * fr.astype(jnp.float32)
                acc_out = term if acc_out is None else acc_out + term
            out_ref[b] = acc_out.astype(out_ref.dtype)

    return kernel


# ---------------------------------------------------------------------------
# Wrapper: weight packing (lane padding, im2col layout, block-diag fc) + call
# ---------------------------------------------------------------------------

def splat_conv2d_forward(x_nchw, params, cfg, batch_tile=None):
    radix = cfg["radix"]
    card = cfg["groups"]
    channels = cfg["channels"]
    kh, kw = cfg["kernel_size"]
    sh, sw = cfg["stride"]
    dh, dw = cfg["dilation"]
    ph, pw = cfg["padding"]
    assert (sh, sw) == (1, 1), "TODO(synk): stride > 1 not implemented"

    N, cin, H, W = x_nchw.shape
    G = radix * card
    assert cin % G == 0 and channels % card == 0
    in_pg = cin // G
    chpg = channels // card                 # conv output channels per group
    inter = params["fc1_w"].shape[0]
    int_pg = inter // card

    ho = H + 2 * ph - dh * (kh - 1)         # stride 1
    wo = W + 2 * pw - dw * (kw - 1)
    hw = ho * wo
    Hp, Wp = H + 2 * ph, W + 2 * pw

    # lane-padded channel sizes (multiples of 128 -> dense vregs / matmuls)
    in_pad = _round_up(in_pg, 128)
    cpg = _round_up(chpg, 128)
    ipg = _round_up(int_pg, 128)
    CP = card * cpg
    IP = card * ipg
    RC = card * radix * cpg
    f32 = jnp.float32
    bf16 = jnp.bfloat16

    bt = batch_tile if batch_tile is not None else _pick_batch_tile(N, hw)
    assert N % bt == 0, "TODO(synk): pad the batch when N % batch_tile != 0"

    # ---- input: NCHW -> padded NHWC, grouped, lane-padded, bf16 ------------
    x_nhwc = jnp.transpose(x_nchw, (0, 2, 3, 1))
    x_pad = jnp.pad(x_nhwc, ((0, 0), (ph, ph), (pw, pw), (0, 0)))
    x_g = jnp.transpose(x_pad.reshape(N, Hp, Wp, G, in_pg),
                        (0, 3, 1, 2, 4))                 # (N, G, Hp, Wp, in_pg)
    x_g = jnp.pad(x_g, ((0, 0), (0, 0), (0, 0), (0, 0),
                        (0, in_pad - in_pg))).astype(bf16)

    # ---- conv weights packed for one im2col matmul per group ---------------
    w = params["conv_w"].reshape(G, chpg, in_pg, kh, kw)
    w = jnp.transpose(w, (0, 3, 4, 2, 1))                # (G, kh, kw, ipg, opg)
    w = jnp.pad(w, ((0, 0), (0, 0), (0, 0),
                    (0, in_pad - in_pg), (0, cpg - chpg)))
    w_packed = w.reshape(G, kh * kw * in_pad, cpg).astype(bf16)
    b_packed = jnp.pad(params["conv_b"].reshape(G, 1, chpg),
                       ((0, 0), (0, 0), (0, cpg - chpg))).astype(f32)

    # ---- fc1 / fc2: block-diagonal dense weights in padded channel space ---
    w1 = params["fc1_w"][:, :, 0, 0]        # (inter, channels // card)
    w2 = params["fc2_w"][:, :, 0, 0]        # (channels*radix, inter // card)
    W1 = jnp.zeros((CP, IP), f32)
    b1 = jnp.zeros((1, IP), f32)
    W2 = jnp.zeros((IP, RC), f32)
    b2 = jnp.zeros((1, RC), f32)
    for c in range(card):
        W1 = W1.at[c * cpg:c * cpg + chpg, c * ipg:c * ipg + int_pg].set(
            w1[c * int_pg:(c + 1) * int_pg, :].T)
        b1 = b1.at[0, c * ipg:c * ipg + int_pg].set(
            params["fc1_b"][c * int_pg:(c + 1) * int_pg])
        for r in range(radix):
            row0 = c * radix * chpg + r * chpg
            col0 = (c * radix + r) * cpg
            W2 = W2.at[c * ipg:c * ipg + int_pg, col0:col0 + chpg].set(
                w2[row0:row0 + chpg, :].T)
            b2 = b2.at[0, col0:col0 + chpg].set(
                params["fc2_b"][row0:row0 + chpg])
    W1 = W1.astype(bf16)
    W2 = W2.astype(bf16)

    kernel = _make_fused_kernel(radix, card, kh, kw, dh, dw, ho, wo, bt,
                                in_pad, cpg)

    out_pad = pl.pallas_call(
        kernel,
        out_shape=jax.ShapeDtypeStruct((N, hw, CP), bf16),
        grid_spec=pltpu.PrefetchScalarGridSpec(
            num_scalar_prefetch=0,
            grid=(N // bt,),
            in_specs=[
                pl.BlockSpec((bt, G, Hp, Wp, in_pad),
                             lambda n: (n, 0, 0, 0, 0)),
                pl.BlockSpec((G, kh * kw * in_pad, cpg), lambda n: (0, 0, 0)),
                pl.BlockSpec((G, 1, cpg), lambda n: (0, 0, 0)),
                pl.BlockSpec((CP, IP), lambda n: (0, 0)),
                pl.BlockSpec((1, IP), lambda n: (0, 0)),
                pl.BlockSpec((IP, RC), lambda n: (0, 0)),
                pl.BlockSpec((1, RC), lambda n: (0, 0)),
            ],
            out_specs=pl.BlockSpec((bt, hw, CP), lambda n: (n, 0, 0)),
            scratch_shapes=[
                pltpu.VMEM((bt * hw, kh * kw * in_pad), bf16),   # im2col
                pltpu.VMEM((G, bt * hw, cpg), bf16),             # feat
            ],
        ),
        compiler_params=pltpu.CompilerParams(
            dimension_semantics=("parallel",)),
    )(x_g, w_packed, b_packed, W1, b1, W2, b2)

    # drop channel padding, restore NCHW + f32 (single XLA epilogue pass)
    out = out_pad.reshape(N, hw, card, cpg)[:, :, :, :chpg]
    out = out.reshape(N, ho, wo, channels).astype(f32)
    return jnp.transpose(out, (0, 3, 1, 2))


# ---------------------------------------------------------------------------
# Pure-JAX f32 reference (valid for cardinality == 1, as used below)
# ---------------------------------------------------------------------------

def reference_forward(x, params, cfg):
    radix = cfg["radix"]
    channels = cfg["channels"]
    G = radix * cfg["groups"]
    y = jax.lax.conv_general_dilated(
        x, params["conv_w"], window_strides=cfg["stride"],
        padding=[(cfg["padding"][0],) * 2, (cfg["padding"][1],) * 2],
        rhs_dilation=cfg["dilation"], feature_group_count=G,
        dimension_numbers=("NCHW", "OIHW", "NCHW"))
    y = jnp.maximum(y + params["conv_b"][None, :, None, None], 0.0)
    N = x.shape[0]
    splits = [y[:, r * channels:(r + 1) * channels] for r in range(radix)]
    gap = sum(splits).mean(axis=(2, 3))                       # (N, channels)
    w1 = params["fc1_w"][:, :, 0, 0]
    w2 = params["fc2_w"][:, :, 0, 0]
    h = jnp.maximum(gap @ w1.T + params["fc1_b"], 0.0)
    a = h @ w2.T + params["fc2_b"]                            # (N, radix*C)
    att = jax.nn.softmax(a.reshape(N, radix, channels), axis=1)
    out = sum(att[:, r][:, :, None, None] * splits[r] for r in range(radix))
    return out


# ---------------------------------------------------------------------------

if __name__ == "__main__":
    cfg = dict(channels=160, kernel_size=(3, 3), stride=(1, 1),
               padding=(1, 1), dilation=(1, 1), groups=1, radix=2)
    in_channels = 160
    N, H, W = 4, 8, 8
    radix, card = cfg["radix"], cfg["groups"]
    G = radix * card
    inter = max(in_channels * radix // 4, 32)     # reduction_factor = 4

    key = jax.random.PRNGKey(0)
    ks = jax.random.split(key, 7)
    params = dict(
        conv_w=jax.random.normal(
            ks[0], (cfg["channels"] * radix, in_channels // G, 3, 3),
            jnp.float32) * 0.05,
        conv_b=jax.random.normal(
            ks[1], (cfg["channels"] * radix,), jnp.float32) * 0.05,
        fc1_w=jax.random.normal(
            ks[2], (inter, cfg["channels"] // card, 1, 1), jnp.float32) * 0.05,
        fc1_b=jax.random.normal(ks[3], (inter,), jnp.float32) * 0.05,
        fc2_w=jax.random.normal(
            ks[4], (cfg["channels"] * radix, inter // card, 1, 1),
            jnp.float32) * 0.05,
        fc2_b=jax.random.normal(
            ks[5], (cfg["channels"] * radix,), jnp.float32) * 0.05,
    )
    x = jax.random.normal(ks[6], (N, in_channels, H, W), jnp.float32)

    out = jax.block_until_ready(splat_conv2d_forward(x, params, cfg))
    ref = jax.block_until_ready(reference_forward(x, params, cfg))

    assert out.shape == (N, cfg["channels"], H, W), out.shape
    # bf16 matmuls / scratch / output + approx reciprocal -> loose tolerance
    assert jnp.allclose(out, ref, atol=3e-2, rtol=3e-2), \
        float(jnp.max(jnp.abs(out - ref)))
    print("KERNEL_OK")
</pallas_src>

<mosaic_0001>
module attributes {stable_mosaic.version = 11 : i64} {
  func.func @kernel(%arg0: i32, %arg1: memref<2x2x10x10x128xbf16, #tpu.memory_space<vmem>>, %arg2: memref<2x1152x256xbf16, #tpu.memory_space<vmem>>, %arg3: memref<2x1x256xf32, #tpu.memory_space<vmem>>, %arg4: memref<256x128xbf16, #tpu.memory_space<vmem>>, %arg5: memref<1x128xf32, #tpu.memory_space<vmem>>, %arg6: memref<128x512xbf16, #tpu.memory_space<vmem>>, %arg7: memref<1x512xf32, #tpu.memory_space<vmem>>, %arg8: memref<2x64x256xbf16, #tpu.memory_space<vmem>>, %arg9: memref<128x1152xbf16, #tpu.memory_space<vmem>>, %arg10: memref<2x128x256xbf16, #tpu.memory_space<vmem>>) attributes {dimension_semantics = [#tpu.dimension_semantics<parallel>], iteration_bounds = array<i64: 2>, scalar_prefetch = 0 : i64, scratch_operands = 2 : i64, tpu.core_type = #tpu.core_type<tc>, window_params = [{transform_indices = @transform_0, window_bounds = array<i64: 2, 2, 10, 10, 128>}, {pipeline_mode = #tpu.pipeline_mode<synchronous>, transform_indices = @transform_1, window_bounds = array<i64: 2, 1152, 256>}, {pipeline_mode = #tpu.pipeline_mode<synchronous>, transform_indices = @transform_2, window_bounds = array<i64: 2, 1, 256>}, {pipeline_mode = #tpu.pipeline_mode<synchronous>, transform_indices = @transform_3, window_bounds = array<i64: 256, 128>}, {pipeline_mode = #tpu.pipeline_mode<synchronous>, transform_indices = @transform_4, window_bounds = array<i64: 1, 128>}, {pipeline_mode = #tpu.pipeline_mode<synchronous>, transform_indices = @transform_5, window_bounds = array<i64: 128, 512>}, {pipeline_mode = #tpu.pipeline_mode<synchronous>, transform_indices = @transform_6, window_bounds = array<i64: 1, 512>}, {transform_indices = @transform_7, window_bounds = array<i64: 2, 64, 256>}]} {
    %c0 = arith.constant 0 : index
    %c0_0 = arith.constant 0 : index
    %c0_1 = arith.constant 0 : index
    %c0_2 = arith.constant 0 : index
    %c0_3 = arith.constant 0 : index
    %0 = vector.load %arg1[%c0, %c0_0, %c0_1, %c0_2, %c0_3] : memref<2x2x10x10x128xbf16, #tpu.memory_space<vmem>>, vector<1x1x8x8x128xbf16>
    %1 = vector.shape_cast %0 : vector<1x1x8x8x128xbf16> to vector<8x8x128xbf16>
    %2 = vector.shape_cast %1 : vector<8x8x128xbf16> to vector<64x128xbf16>
    %c0_4 = arith.constant 0 : index
    %c0_5 = arith.constant 0 : index
    %3 = vector.load %arg9[%c0_4, %c0_5] : memref<128x1152xbf16, #tpu.memory_space<vmem>>, vector<64x128xbf16>
    tpu.vector_store %arg9[%c0_4, %c0_5], %2 {strides = array<i32>} : memref<128x1152xbf16, #tpu.memory_space<vmem>>, vector<64x128xbf16>,
    %c0_6 = arith.constant 0 : index
    %c0_7 = arith.constant 0 : index
    %c0_8 = arith.constant 0 : index
    %c1 = arith.constant 1 : index
    %c0_9 = arith.constant 0 : index
    %4 = vector.load %arg1[%c0_6, %c0_7, %c0_8, %c1, %c0_9] : memref<2x2x10x10x128xbf16, #tpu.memory_space<vmem>>, vector<1x1x8x8x128xbf16>
    %5 = vector.shape_cast %4 : vector<1x1x8x8x128xbf16> to vector<8x8x128xbf16>
    %6 = vector.shape_cast %5 : vector<8x8x128xbf16> to vector<64x128xbf16>
    %c0_10 = arith.constant 0 : index
    %c128 = arith.constant 128 : index
    %7 = vector.load %arg9[%c0_10, %c128] : memref<128x1152xbf16, #tpu.memory_space<vmem>>, vector<64x128xbf16>
    tpu.vector_store %arg9[%c0_10, %c128], %6 {strides = array<i32>} : memref<128x1152xbf16, #tpu.memory_space<vmem>>, vector<64x128xbf16>,
    %c0_11 = arith.constant 0 : index
    %c0_12 = arith.constant 0 : index
    %c0_13 = arith.constant 0 : index
    %c2 = arith.constant 2 : index
    %c0_14 = arith.constant 0 : index
    %8 = vector.load %arg1[%c0_11, %c0_12, %c0_13, %c2, %c0_14] : memref<2x2x10x10x128xbf16, #tpu.memory_space<vmem>>, vector<1x1x8x8x128xbf16>
    %9 = vector.shape_cast %8 : vector<1x1x8x8x128xbf16> to vector<8x8x128xbf16>
    %10 = vector.shape_cast %9 : vector<8x8x128xbf16> to vector<64x128xbf16>
    %c0_15 = arith.constant 0 : index
    %c256 = arith.constant 256 : index
    %11 = vector.load %arg9[%c0_15, %c256] : memref<128x1152xbf16, #tpu.memory_space<vmem>>, vector<64x128xbf16>
    tpu.vector_store %arg9[%c0_15, %c256], %10 {strides = array<i32>} : memref<128x1152xbf16, #tpu.memory_space<vmem>>, vector<64x128xbf16>,
    %c0_16 = arith.constant 0 : index
    %c0_17 = arith.constant 0 : index
    %c1_18 = arith.constant 1 : index
    %c0_19 = arith.constant 0 : index
    %c0_20 = arith.constant 0 : index
    %12 = vector.load %arg1[%c0_16, %c0_17, %c1_18, %c0_19, %c0_20] : memref<2x2x10x10x128xbf16, #tpu.memory_space<vmem>>, vector<1x1x8x8x128xbf16>
    %13 = vector.shape_cast %12 : vector<1x1x8x8x128xbf16> to vector<8x8x128xbf16>
    %14 = vector.shape_cast %13 : vector<8x8x128xbf16> to vector<64x128xbf16>
    %c0_21 = arith.constant 0 : index
    %c384 = arith.constant 384 : index
    %15 = vector.load %arg9[%c0_21, %c384] : memref<128x1152xbf16, #tpu.memory_space<vmem>>, vector<64x128xbf16>
    tpu.vector_store %arg9[%c0_21, %c384], %14 {strides = array<i32>} : memref<128x1152xbf16, #tpu.memory_space<vmem>>, vector<64x128xbf16>,
    %c0_22 = arith.constant 0 : index
    %c0_23 = arith.constant 0 : index
    %c1_24 = arith.constant 1 : index
    %c1_25 = arith.constant 1 : index
    %c0_26 = arith.constant 0 : index
    %16 = vector.load %arg1[%c0_22, %c0_23, %c1_24, %c1_25, %c0_26] : memref<2x2x10x10x128xbf16, #tpu.memory_space<vmem>>, vector<1x1x8x8x128xbf16>
    %17 = vector.shape_cast %16 : vector<1x1x8x8x128xbf16> to vector<8x8x128xbf16>
    %18 = vector.shape_cast %17 : vector<8x8x128xbf16> to vector<64x128xbf16>
    %c0_27 = arith.constant 0 : index
    %c512 = arith.constant 512 : index
    %19 = vector.load %arg9[%c0_27, %c512] : memref<128x1152xbf16, #tpu.memory_space<vmem>>, vector<64x128xbf16>
    tpu.vector_store %arg9[%c0_27, %c512], %18 {strides = array<i32>} : memref<128x1152xbf16, #tpu.memory_space<vmem>>, vector<64x128xbf16>,
    %c0_28 = arith.constant 0 : index
    %c0_29 = arith.constant 0 : index
    %c1_30 = arith.constant 1 : index
    %c2_31 = arith.constant 2 : index
    %c0_32 = arith.constant 0 : index
    %20 = vector.load %arg1[%c0_28, %c0_29, %c1_30, %c2_31, %c0_32] : memref<2x2x10x10x128xbf16, #tpu.memory_space<vmem>>, vector<1x1x8x8x128xbf16>
    %21 = vector.shape_cast %20 : vector<1x1x8x8x128xbf16> to vector<8x8x128xbf16>
    %22 = vector.shape_cast %21 : vector<8x8x128xbf16> to vector<64x128xbf16>
    %c0_33 = arith.constant 0 : index
    %c640 = arith.constant 640 : index
    %23 = vector.load %arg9[%c0_33, %c640] : memref<128x1152xbf16, #tpu.memory_space<vmem>>, vector<64x128xbf16>
    tpu.vector_store %arg9[%c0_33, %c640], %22 {strides = array<i32>} : memref<128x1152xbf16, #tpu.memory_space<vmem>>, vector<64x128xbf16>,
    %c0_34 = arith.constant 0 : index
    %c0_35 = arith.constant 0 : index
    %c2_36 = arith.constant 2 : index
    %c0_37 = arith.constant 0 : index
    %c0_38 = arith.constant 0 : index
    %24 = vector.load %arg1[%c0_34, %c0_35, %c2_36, %c0_37, %c0_38] : memref<2x2x10x10x128xbf16, #tpu.memory_space<vmem>>, vector<1x1x8x8x128xbf16>
    %25 = vector.shape_cast %24 : vector<1x1x8x8x128xbf16> to vector<8x8x128xbf16>
    %26 = vector.shape_cast %25 : vector<8x8x128xbf16> to vector<64x128xbf16>
    %c0_39 = arith.constant 0 : index
    %c768 = arith.constant 768 : index
    %27 = vector.load %arg9[%c0_39, %c768] : memref<128x1152xbf16, #tpu.memory_space<vmem>>, vector<64x128xbf16>
    tpu.vector_store %arg9[%c0_39, %c768], %26 {strides = array<i32>} : memref<128x1152xbf16, #tpu.memory_space<vmem>>, vector<64x128xbf16>,
    %c0_40 = arith.constant 0 : index
    %c0_41 = arith.constant 0 : index
    %c2_42 = arith.constant 2 : index
    %c1_43 = arith.constant 1 : index
    %c0_44 = arith.constant 0 : index
    %28 = vector.load %arg1[%c0_40, %c0_41, %c2_42, %c1_43, %c0_44] : memref<2x2x10x10x128xbf16, #tpu.memory_space<vmem>>, vector<1x1x8x8x128xbf16>
    %29 = vector.shape_cast %28 : vector<1x1x8x8x128xbf16> to vector<8x8x128xbf16>
    %30 = vector.shape_cast %29 : vector<8x8x128xbf16> to vector<64x128xbf16>
    %c0_45 = arith.constant 0 : index
    %c896 = arith.constant 896 : index
    %31 = vector.load %arg9[%c0_45, %c896] : memref<128x1152xbf16, #tpu.memory_space<vmem>>, vector<64x128xbf16>
    tpu.vector_store %arg9[%c0_45, %c896], %30 {strides = array<i32>} : memref<128x1152xbf16, #tpu.memory_space<vmem>>, vector<64x128xbf16>,
    %c0_46 = arith.constant 0 : index
    %c0_47 = arith.constant 0 : index
    %c2_48 = arith.constant 2 : index
    %c2_49 = arith.constant 2 : index
    %c0_50 = arith.constant 0 : index
    %32 = vector.load %arg1[%c0_46, %c0_47, %c2_48, %c2_49, %c0_50] : memref<2x2x10x10x128xbf16, #tpu.memory_space<vmem>>, vector<1x1x8x8x128xbf16>
    %33 = vector.shape_cast %32 : vector<1x1x8x8x128xbf16> to vector<8x8x128xbf16>
    %34 = vector.shape_cast %33 : vector<8x8x128xbf16> to vector<64x128xbf16>
    %c0_51 = arith.constant 0 : index
    %c1024 = arith.constant 1024 : index
    %35 = vector.load %arg9[%c0_51, %c1024] : memref<128x1152xbf16, #tpu.memory_space<vmem>>, vector<64x128xbf16>
    tpu.vector_store %arg9[%c0_51, %c1024], %34 {strides = array<i32>} : memref<128x1152xbf16, #tpu.memory_space<vmem>>, vector<64x128xbf16>,
    %c1_52 = arith.constant 1 : index
    %c0_53 = arith.constant 0 : index
    %c0_54 = arith.constant 0 : index
    %c0_55 = arith.constant 0 : index
    %c0_56 = arith.constant 0 : index
    %36 = vector.load %arg1[%c1_52, %c0_53, %c0_54, %c0_55, %c0_56] : memref<2x2x10x10x128xbf16, #tpu.memory_space<vmem>>, vector<1x1x8x8x128xbf16>
    %37 = vector.shape_cast %36 : vector<1x1x8x8x128xbf16> to vector<8x8x128xbf16>
    %38 = vector.shape_cast %37 : vector<8x8x128xbf16> to vector<64x128xbf16>
    %c64 = arith.constant 64 : index
    %c0_57 = arith.constant 0 : index
    %39 = vector.load %arg9[%c64, %c0_57] : memref<128x1152xbf16, #tpu.memory_space<vmem>>, vector<64x128xbf16>
    tpu.vector_store %arg9[%c64, %c0_57], %38 {strides = array<i32>} : memref<128x1152xbf16, #tpu.memory_space<vmem>>, vector<64x128xbf16>,
    %c1_58 = arith.constant 1 : index
    %c0_59 = arith.constant 0 : index
    %c0_60 = arith.constant 0 : index
    %c1_61 = arith.constant 1 : index
    %c0_62 = arith.constant 0 : index
    %40 = vector.load %arg1[%c1_58, %c0_59, %c0_60, %c1_61, %c0_62] : memref<2x2x10x10x128xbf16, #tpu.memory_space<vmem>>, vector<1x1x8x8x128xbf16>
    %41 = vector.shape_cast %40 : vector<1x1x8x8x128xbf16> to vector<8x8x128xbf16>
    %42 = vector.shape_cast %41 : vector<8x8x128xbf16> to vector<64x128xbf16>
    %c64_63 = arith.constant 64 : index
    %c128_64 = arith.constant 128 : index
    %43 = vector.load %arg9[%c64_63, %c128_64] : memref<128x1152xbf16, #tpu.memory_space<vmem>>, vector<64x128xbf16>
    tpu.vector_store %arg9[%c64_63, %c128_64], %42 {strides = array<i32>} : memref<128x1152xbf16, #tpu.memory_space<vmem>>, vector<64x128xbf16>,
    %c1_65 = arith.constant 1 : index
    %c0_66 = arith.constant 0 : index
    %c0_67 = arith.constant 0 : index
    %c2_68 = arith.constant 2 : index
    %c0_69 = arith.constant 0 : index
    %44 = vector.load %arg1[%c1_65, %c0_66, %c0_67, %c2_68, %c0_69] : memref<2x2x10x10x128xbf16, #tpu.memory_space<vmem>>, vector<1x1x8x8x128xbf16>
    %45 = vector.shape_cast %44 : vector<1x1x8x8x128xbf16> to vector<8x8x128xbf16>
    %46 = vector.shape_cast %45 : vector<8x8x128xbf16> to vector<64x128xbf16>
    %c64_70 = arith.constant 64 : index
    %c256_71 = arith.constant 256 : index
    %47 = vector.load %arg9[%c64_70, %c256_71] : memref<128x1152xbf16, #tpu.memory_space<vmem>>, vector<64x128xbf16>
    tpu.vector_store %arg9[%c64_70, %c256_71], %46 {strides = array<i32>} : memref<128x1152xbf16, #tpu.memory_space<vmem>>, vector<64x128xbf16>,
    %c1_72 = arith.constant 1 : index
    %c0_73 = arith.constant 0 : index
    %c1_74 = arith.constant 1 : index
    %c0_75 = arith.constant 0 : index
    %c0_76 = arith.constant 0 : index
    %48 = vector.load %arg1[%c1_72, %c0_73, %c1_74, %c0_75, %c0_76] : memref<2x2x10x10x128xbf16, #tpu.memory_space<vmem>>, vector<1x1x8x8x128xbf16>
    %49 = vector.shape_cast %48 : vector<1x1x8x8x128xbf16> to vector<8x8x128xbf16>
    %50 = vector.shape_cast %49 : vector<8x8x128xbf16> to vector<64x128xbf16>
    %c64_77 = arith.constant 64 : index
    %c384_78 = arith.constant 384 : index
    %51 = vector.load %arg9[%c64_77, %c384_78] : memref<128x1152xbf16, #tpu.memory_space<vmem>>, vector<64x128xbf16>
    tpu.vector_store %arg9[%c64_77, %c384_78], %50 {strides = array<i32>} : memref<128x1152xbf16, #tpu.memory_space<vmem>>, vector<64x128xbf16>,
    %c1_79 = arith.constant 1 : index
    %c0_80 = arith.constant 0 : index
    %c1_81 = arith.constant 1 : index
    %c1_82 = arith.constant 1 : index
    %c0_83 = arith.constant 0 : index
    %52 = vector.load %arg1[%c1_79, %c0_80, %c1_81, %c1_82, %c0_83] : memref<2x2x10x10x128xbf16, #tpu.memory_space<vmem>>, vector<1x1x8x8x128xbf16>
    %53 = vector.shape_cast %52 : vector<1x1x8x8x128xbf16> to vector<8x8x128xbf16>
    %54 = vector.shape_cast %53 : vector<8x8x128xbf16> to vector<64x128xbf16>
    %c64_84 = arith.constant 64 : index
    %c512_85 = arith.constant 512 : index
    %55 = vector.load %arg9[%c64_84, %c512_85] : memref<128x1152xbf16, #tpu.memory_space<vmem>>, vector<64x128xbf16>
    tpu.vector_store %arg9[%c64_84, %c512_85], %54 {strides = array<i32>} : memref<128x1152xbf16, #tpu.memory_space<vmem>>, vector<64x128xbf16>,
    %c1_86 = arith.constant 1 : index
    %c0_87 = arith.constant 0 : index
    %c1_88 = arith.constant 1 : index
    %c2_89 = arith.constant 2 : index
    %c0_90 = arith.constant 0 : index
    %56 = vector.load %arg1[%c1_86, %c0_87, %c1_88, %c2_89, %c0_90] : memref<2x2x10x10x128xbf16, #tpu.memory_space<vmem>>, vector<1x1x8x8x128xbf16>
    %57 = vector.shape_cast %56 : vector<1x1x8x8x128xbf16> to vector<8x8x128xbf16>
    %58 = vector.shape_cast %57 : vector<8x8x128xbf16> to vector<64x128xbf16>
    %c64_91 = arith.constant 64 : index
    %c640_92 = arith.constant 640 : index
    %59 = vector.load %arg9[%c64_91, %c640_92] : memref<128x1152xbf16, #tpu.memory_space<vmem>>, vector<64x128xbf16>
    tpu.vector_store %arg9[%c64_91, %c640_92], %58 {strides = array<i32>} : memref<128x1152xbf16, #tpu.memory_space<vmem>>, vector<64x128xbf16>,
    %c1_93 = arith.constant 1 : index
    %c0_94 = arith.constant 0 : index
    %c2_95 = arith.constant 2 : index
    %c0_96 = arith.constant 0 : index
    %c0_97 = arith.constant 0 : index
    %60 = vector.load %arg1[%c1_93, %c0_94, %c2_95, %c0_96, %c0_97] : memref<2x2x10x10x128xbf16, #tpu.memory_space<vmem>>, vector<1x1x8x8x128xbf16>
    %61 = vector.shape_cast %60 : vector<1x1x8x8x128xbf16> to vector<8x8x128xbf16>
    %62 = vector.shape_cast %61 : vector<8x8x128xbf16> to vector<64x128xbf16>
    %c64_98 = arith.constant 64 : index
    %c768_99 = arith.constant 768 : index
    %63 = vector.load %arg9[%c64_98, %c768_99] : memref<128x1152xbf16, #tpu.memory_space<vmem>>, vector<64x128xbf16>
    tpu.vector_store %arg9[%c64_98, %c768_99], %62 {strides = array<i32>} : memref<128x1152xbf16, #tpu.memory_space<vmem>>, vector<64x128xbf16>,
    %c1_100 = arith.constant 1 : index
    %c0_101 = arith.constant 0 : index
    %c2_102 = arith.constant 2 : index
    %c1_103 = arith.constant 1 : index
    %c0_104 = arith.constant 0 : index
    %64 = vector.load %arg1[%c1_100, %c0_101, %c2_102, %c1_103, %c0_104] : memref<2x2x10x10x128xbf16, #tpu.memory_space<vmem>>, vector<1x1x8x8x128xbf16>
    %65 = vector.shape_cast %64 : vector<1x1x8x8x128xbf16> to vector<8x8x128xbf16>
    %66 = vector.shape_cast %65 : vector<8x8x128xbf16> to vector<64x128xbf16>
    %c64_105 = arith.constant 64 : index
    %c896_106 = arith.constant 896 : index
    %67 = vector.load %arg9[%c64_105, %c896_106] : memref<128x1152xbf16, #tpu.memory_space<vmem>>, vector<64x128xbf16>
    tpu.vector_store %arg9[%c64_105, %c896_106], %66 {strides = array<i32>} : memref<128x1152xbf16, #tpu.memory_space<vmem>>, vector<64x128xbf16>,
    %c1_107 = arith.constant 1 : index
    %c0_108 = arith.constant 0 : index
    %c2_109 = arith.constant 2 : index
    %c2_110 = arith.constant 2 : index
    %c0_111 = arith.constant 0 : index
    %68 = vector.load %arg1[%c1_107, %c0_108, %c2_109, %c2_110, %c0_111] : memref<2x2x10x10x128xbf16, #tpu.memory_space<vmem>>, vector<1x1x8x8x128xbf16>
    %69 = vector.shape_cast %68 : vector<1x1x8x8x128xbf16> to vector<8x8x128xbf16>
    %70 = vector.shape_cast %69 : vector<8x8x128xbf16> to vector<64x128xbf16>
    %c64_112 = arith.constant 64 : index
    %c1024_113 = arith.constant 1024 : index
    %71 = vector.load %arg9[%c64_112, %c1024_113] : memref<128x1152xbf16, #tpu.memory_space<vmem>>, vector<64x128xbf16>
    tpu.vector_store %arg9[%c64_112, %c1024_113], %70 {strides = array<i32>} : memref<128x1152xbf16, #tpu.memory_space<vmem>>, vector<64x128xbf16>,
    %c0_114 = arith.constant 0 : index
    %c0_115 = arith.constant 0 : index
    %72 = vector.load %arg9[%c0_114, %c0_115] : memref<128x1152xbf16, #tpu.memory_space<vmem>>, vector<128x1152xbf16>
    %c0_116 = arith.constant 0 : index
    %c0_117 = arith.constant 0 : index
    %c0_118 = arith.constant 0 : index
    %73 = vector.load %arg2[%c0_116, %c0_117, %c0_118] : memref<2x1152x256xbf16, #tpu.memory_space<vmem>>, vector<1x1152x256xbf16>
    %74 = vector.shape_cast %73 : vector<1x1152x256xbf16> to vector<1152x256xbf16>
    %cst = arith.constant dense<0.000000e+00> : vector<128x256xf32>
    %75 = tpu.matmul %72, %74, %cst {dimension_numbers = #tpu.dot_dimension_numbers<[1], [0], [0], [1], [0, 0, 1, 1], [], []>} : vector<128x1152xbf16>, vector<1152x256xbf16>, vector<128x256xf32> -> vector<128x256xf32>
    %c0_119 = arith.constant 0 : index
    %c0_120 = arith.constant 0 : index
    %c0_121 = arith.constant 0 : index
    %76 = vector.load %arg3[%c0_119, %c0_120, %c0_121] : memref<2x1x256xf32, #tpu.memory_space<vmem>>, vector<1x1x256xf32>
    %77 = vector.shape_cast %76 : vector<1x1x256xf32> to vector<1x256xf32>
    %78 = vector.broadcast %77 : vector<1x256xf32> to vector<128x256xf32>
    %79 = arith.addf %75, %78 : vector<128x256xf32>
    %cst_122 = arith.constant 0.000000e+00 : f32
    %80 = vector.broadcast %cst_122 : f32 to vector<128x256xf32>
    %81 = arith.maximumf %79, %80 : vector<128x256xf32>
    %82 = arith.truncf %81 : vector<128x256xf32> to vector<128x256xbf16>
    %c0_123 = arith.constant 0 : index
    %c0_124 = arith.constant 0 : index
    %c0_125 = arith.constant 0 : index
    %83 = vector.load %arg10[%c0_123, %c0_124, %c0_125] : memref<2x128x256xbf16, #tpu.memory_space<vmem>>, vector<1x128x256xbf16>
    %84 = vector.shape_cast %83 : vector<1x128x256xbf16> to vector<128x256xbf16>
    %85 = vector.shape_cast %82 : vector<128x256xbf16> to vector<1x128x256xbf16>
    tpu.vector_store %arg10[%c0_123, %c0_124, %c0_125], %85 {strides = array<i32>} : memref<2x128x256xbf16, #tpu.memory_space<vmem>>, vector<1x128x256xbf16>,
    %86 = vector.shape_cast %81 : vector<128x256xf32> to vector<2x64x256xf32>
    %cst_126 = arith.constant dense<0.000000e+00> : vector<2x256xf32>
    %87 = vector.multi_reduction <add>, %86, %cst_126 [1] : vector<2x64x256xf32> to vector<2x256xf32>
    %c0_127 = arith.constant 0 : index
    %c1_128 = arith.constant 1 : index
    %c0_129 = arith.constant 0 : index
    %c0_130 = arith.constant 0 : index
    %c0_131 = arith.constant 0 : index
    %88 = vector.load %arg1[%c0_127, %c1_128, %c0_129, %c0_130, %c0_131] : memref<2x2x10x10x128xbf16, #tpu.memory_space<vmem>>, vector<1x1x8x8x128xbf16>
    %89 = vector.shape_cast %88 : vector<1x1x8x8x128xbf16> to vector<8x8x128xbf16>
    %90 = vector.shape_cast %89 : vector<8x8x128xbf16> to vector<64x128xbf16>
    %c0_132 = arith.constant 0 : index
    %c0_133 = arith.constant 0 : index
    %91 = vector.load %arg9[%c0_132, %c0_133] : memref<128x1152xbf16, #tpu.memory_space<vmem>>, vector<64x128xbf16>
    tpu.vector_store %arg9[%c0_132, %c0_133], %90 {strides = array<i32>} : memref<128x1152xbf16, #tpu.memory_space<vmem>>, vector<64x128xbf16>,
    %c0_134 = arith.constant 0 : index
    %c1_135 = arith.constant 1 : index
    %c0_136 = arith.constant 0 : index
    %c1_137 = arith.constant 1 : index
    %c0_138 = arith.constant 0 : index
    %92 = vector.load %arg1[%c0_134, %c1_135, %c0_136, %c1_137, %c0_138] : memref<2x2x10x10x128xbf16, #tpu.memory_space<vmem>>, vector<1x1x8x8x128xbf16>
    %93 = vector.shape_cast %92 : vector<1x1x8x8x128xbf16> to vector<8x8x128xbf16>
    %94 = vector.shape_cast %93 : vector<8x8x128xbf16> to vector<64x128xbf16>
    %c0_139 = arith.constant 0 : index
    %c128_140 = arith.constant 128 : index
    %95 = vector.load %arg9[%c0_139, %c128_140] : memref<128x1152xbf16, #tpu.memory_space<vmem>>, vector<64x128xbf16>
    tpu.vector_store %arg9[%c0_139, %c128_140], %94 {strides = array<i32>} : memref<128x1152xbf16, #tpu.memory_space<vmem>>, vector<64x128xbf16>,
    %c0_141 = arith.constant 0 : index
    %c1_142 = arith.constant 1 : index
    %c0_143 = arith.constant 0 : index
    %c2_144 = arith.constant 2 : index
    %c0_145 = arith.constant 0 : index
    %96 = vector.load %arg1[%c0_141, %c1_142, %c0_143, %c2_144, %c0_145] : memref<2x2x10x10x128xbf16, #tpu.memory_space<vmem>>, vector<1x1x8x8x128xbf16>
    %97 = vector.shape_cast %96 : vector<1x1x8x8x128xbf16> to vector<8x8x128xbf16>
    %98 = vector.shape_cast %97 : vector<8x8x128xbf16> to vector<64x128xbf16>
    %c0_146 = arith.constant 0 : index
    %c256_147 = arith.constant 256 : index
    %99 = vector.load %arg9[%c0_146, %c256_147] : memref<128x1152xbf16, #tpu.memory_space<vmem>>, vector<64x128xbf16>
    tpu.vector_store %arg9[%c0_146, %c256_147], %98 {strides = array<i32>} : memref<128x1152xbf16, #tpu.memory_space<vmem>>, vector<64x128xbf16>,
    %c0_148 = arith.constant 0 : index
    %c1_149 = arith.constant 1 : index
    %c1_150 = arith.constant 1 : index
    %c0_151 = arith.constant 0 : index
    %c0_152 = arith.constant 0 : index
    %100 = vector.load %arg1[%c0_148, %c1_149, %c1_150, %c0_151, %c0_152] : memref<2x2x10x10x128xbf16, #tpu.memory_space<vmem>>, vector<1x1x8x8x128xbf16>
    %101 = vector.shape_cast %100 : vector<1x1x8x8x128xbf16> to vector<8x8x128xbf16>
    %102 = vector.shape_cast %101 : vector<8x8x128xbf16> to vector<64x128xbf16>
    %c0_153 = arith.constant 0 : index
    %c384_154 = arith.constant 384 : index
    %103 = vector.load %arg9[%c0_153, %c384_154] : memref<128x1152xbf16, #tpu.memory_space<vmem>>, vector<64x128xbf16>
    tpu.vector_store %arg9[%c0_153, %c384_154], %102 {strides = array<i32>} : memref<128x1152xbf16, #tpu.memory_space<vmem>>, vector<64x128xbf16>,
    %c0_155 = arith.constant 0 : index
    %c1_156 = arith.constant 1 : index
    %c1_157 = arith.constant 1 : index
    %c1_158 = arith.constant 1 : index
    %c0_159 = arith.constant 0 : index
    %104 = vector.load %arg1[%c0_155, %c1_156, %c1_157, %c1_158, %c0_159] : memref<2x2x10x10x128xbf16, #tpu.memory_space<vmem>>, vector<1x1x8x8x128xbf16>
    %105 = vector.shape_cast %104 : vector<1x1x8x8x128xbf16> to vector<8x8x128xbf16>
    %106 = vector.shape_cast %105 : vector<8x8x128xbf16> to vector<64x128xbf16>
    %c0_160 = arith.constant 0 : index
    %c512_161 = arith.constant 512 : index
    %107 = vector.load %arg9[%c0_160, %c512_161] : memref<128x1152xbf16, #tpu.memory_space<vmem>>, vector<64x128xbf16>
    tpu.vector_store %arg9[%c0_160, %c512_161], %106 {strides = array<i32>} : memref<128x1152xbf16, #tpu.memory_space<vmem>>, vector<64x128xbf16>,
    %c0_162 = arith.constant 0 : index
    %c1_163 = arith.constant 1 : index
    %c1_164 = arith.constant 1 : index
    %c2_165 = arith.constant 2 : index
    %c0_166 = arith.constant 0 : index
    %108 = vector.load %arg1[%c0_162, %c1_163, %c1_164, %c2_165, %c0_166] : memref<2x2x10x10x128xbf16, #tpu.memory_space<vmem>>, vector<1x1x8x8x128xbf16>
    %109 = vector.shape_cast %108 : vector<1x1x8x8x128xbf16> to vector<8x8x128xbf16>
    %110 = vector.shape_cast %109 : vector<8x8x128xbf16> to vector<64x128xbf16>
    %c0_167 = arith.constant 0 : index
    %c640_168 = arith.constant 640 : index
    %111 = vector.load %arg9[%c0_167, %c640_168] : memref<128x1152xbf16, #tpu.memory_space<vmem>>, vector<64x128xbf16>
    tpu.vector_store %arg9[%c0_167, %c640_168], %110 {strides = array<i32>} : memref<128x1152xbf16, #tpu.memory_space<vmem>>, vector<64x128xbf16>,
    %c0_169 = arith.constant 0 : index
    %c1_170 = arith.constant 1 : index
    %c2_171 = arith.constant 2 : index
    %c0_172 = arith.constant 0 : index
    %c0_173 = arith.constant 0 : index
    %112 = vector.load %arg1[%c0_169, %c1_170, %c2_171, %c0_172, %c0_173] : memref<2x2x10x10x128xbf16, #tpu.memory_space<vmem>>, vector<1x1x8x8x128xbf16>
    %113 = vector.shape_cast %112 : vector<1x1x8x8x128xbf16> to vector<8x8x128xbf16>
    %114 = vector.shape_cast %113 : vector<8x8x128xbf16> to vector<64x128xbf16>
    %c0_174 = arith.constant 0 : index
    %c768_175 = arith.constant 768 : index
    %115 = vector.load %arg9[%c0_174, %c768_175] : memref<128x1152xbf16, #tpu.memory_space<vmem>>, vector<64x128xbf16>
    tpu.vector_store %arg9[%c0_174, %c768_175], %114 {strides = array<i32>} : memref<128x1152xbf16, #tpu.memory_space<vmem>>, vector<64x128xbf16>,
    %c0_176 = arith.constant 0 : index
    %c1_177 = arith.constant 1 : index
    %c2_178 = arith.constant 2 : index
    %c1_179 = arith.constant 1 : index
    %c0_180 = arith.constant 0 : index
    %116 = vector.load %arg1[%c0_176, %c1_177, %c2_178, %c1_179, %c0_180] : memref<2x2x10x10x128xbf16, #tpu.memory_space<vmem>>, vector<1x1x8x8x128xbf16>
    %117 = vector.shape_cast %116 : vector<1x1x8x8x128xbf16> to vector<8x8x128xbf16>
    %118 = vector.shape_cast %117 : vector<8x8x128xbf16> to vector<64x128xbf16>
    %c0_181 = arith.constant 0 : index
    %c896_182 = arith.constant 896 : index
    %119 = vector.load %arg9[%c0_181, %c896_182] : memref<128x1152xbf16, #tpu.memory_space<vmem>>, vector<64x128xbf16>
    tpu.vector_store %arg9[%c0_181, %c896_182], %118 {strides = array<i32>} : memref<128x1152xbf16, #tpu.memory_space<vmem>>, vector<64x128xbf16>,
    %c0_183 = arith.constant 0 : index
    %c1_184 = arith.constant 1 : index
    %c2_185 = arith.constant 2 : index
    %c2_186 = arith.constant 2 : index
    %c0_187 = arith.constant 0 : index
    %120 = vector.load %arg1[%c0_183, %c1_184, %c2_185, %c2_186, %c0_187] : memref<2x2x10x10x128xbf16, #tpu.memory_space<vmem>>, vector<1x1x8x8x128xbf16>
    %121 = vector.shape_cast %120 : vector<1x1x8x8x128xbf16> to vector<8x8x128xbf16>
    %122 = vector.shape_cast %121 : vector<8x8x128xbf16> to vector<64x128xbf16>
    %c0_188 = arith.constant 0 : index
    %c1024_189 = arith.constant 1024 : index
    %123 = vector.load %arg9[%c0_188, %c1024_189] : memref<128x1152xbf16, #tpu.memory_space<vmem>>, vector<64x128xbf16>
    tpu.vector_store %arg9[%c0_188, %c1024_189], %122 {strides = array<i32>} : memref<128x1152xbf16, #tpu.memory_space<vmem>>, vector<64x128xbf16>,
    %c1_190 = arith.constant 1 : index
    %c1_191 = arith.constant 1 : index
    %c0_192 = arith.constant 0 : index
    %c0_193 = arith.constant 0 : index
    %c0_194 = arith.constant 0 : index
    %124 = vector.load %arg1[%c1_190, %c1_191, %c0_192, %c0_193, %c0_194] : memref<2x2x10x10x128xbf16, #tpu.memory_space<vmem>>, vector<1x1x8x8x128xbf16>
    %125 = vector.shape_cast %124 : vector<1x1x8x8x128xbf16> to vector<8x8x128xbf16>
    %126 = vector.shape_cast %125 : vector<8x8x128xbf16> to vector<64x128xbf16>
    %c64_195 = arith.constant 64 : index
    %c0_196 = arith.constant 0 : index
    %127 = vector.load %arg9[%c64_195, %c0_196] : memref<128x1152xbf16, #tpu.memory_space<vmem>>, vector<64x128xbf16>
    tpu.vector_store %arg9[%c64_195, %c0_196], %126 {strides = array<i32>} : memref<128x1152xbf16, #tpu.memory_space<vmem>>, vector<64x128xbf16>,
    %c1_197 = arith.constant 1 : index
    %c1_198 = arith.constant 1 : index
    %c0_199 = arith.constant 0 : index
    %c1_200 = arith.constant 1 : index
    %c0_201 = arith.constant 0 : index
    %128 = vector.load %arg1[%c1_197, %c1_198, %c0_199, %c1_200, %c0_201] : memref<2x2x10x10x128xbf16, #tpu.memory_space<vmem>>, vector<1x1x8x8x128xbf16>
    %129 = vector.shape_cast %128 : vector<1x1x8x8x128xbf16> to vector<8x8x128xbf16>
    %130 = vector.shape_cast %129 : vector<8x8x128xbf16> to vector<64x128xbf16>
    %c64_202 = arith.constant 64 : index
    %c128_203 = arith.constant 128 : index
    %131 = vector.load %arg9[%c64_202, %c128_203] : memref<128x1152xbf16, #tpu.memory_space<vmem>>, vector<64x128xbf16>
    tpu.vector_store %arg9[%c64_202, %c128_203], %130 {strides = array<i32>} : memref<128x1152xbf16, #tpu.memory_space<vmem>>, vector<64x128xbf16>,
    %c1_204 = arith.constant 1 : index
    %c1_205 = arith.constant 1 : index
    %c0_206 = arith.constant 0 : index
    %c2_207 = arith.constant 2 : index
    %c0_208 = arith.constant 0 : index
    %132 = vector.load %arg1[%c1_204, %c1_205, %c0_206, %c2_207, %c0_208] : memref<2x2x10x10x128xbf16, #tpu.memory_space<vmem>>, vector<1x1x8x8x128xbf16>
    %133 = vector.shape_cast %132 : vector<1x1x8x8x128xbf16> to vector<8x8x128xbf16>
    %134 = vector.shape_cast %133 : vector<8x8x128xbf16> to vector<64x128xbf16>
    %c64_209 = arith.constant 64 : index
    %c256_210 = arith.constant 256 : index
    %135 = vector.load %arg9[%c64_209, %c256_210] : memref<128x1152xbf16, #tpu.memory_space<vmem>>, vector<64x128xbf16>
    tpu.vector_store %arg9[%c64_209, %c256_210], %134 {strides = array<i32>} : memref<128x1152xbf16, #tpu.memory_space<vmem>>, vector<64x128xbf16>,
    %c1_211 = arith.constant 1 : index
    %c1_212 = arith.constant 1 : index
    %c1_213 = arith.constant 1 : index
    %c0_214 = arith.constant 0 : index
    %c0_215 = arith.constant 0 : index
    %136 = vector.load %arg1[%c1_211, %c1_212, %c1_213, %c0_214, %c0_215] : memref<2x2x10x10x128xbf16, #tpu.memory_space<vmem>>, vector<1x1x8x8x128xbf16>
    %137 = vector.shape_cast %136 : vector<1x1x8x8x128xbf16> to vector<8x8x128xbf16>
    %138 = vector.shape_cast %137 : vector<8x8x128xbf16> to vector<64x128xbf16>
    %c64_216 = arith.constant 64 : index
    %c384_217 = arith.constant 384 : index
    %139 = vector.load %arg9[%c64_216, %c384_217] : memref<128x1152xbf16, #tpu.memory_space<vmem>>, vector<64x128xbf16>
    tpu.vector_store %arg9[%c64_216, %c384_217], %138 {strides = array<i32>} : memref<128x1152xbf16, #tpu.memory_space<vmem>>, vector<64x128xbf16>,
    %c1_218 = arith.constant 1 : index
    %c1_219 = arith.constant 1 : index
    %c1_220 = arith.constant 1 : index
    %c1_221 = arith.constant 1 : index
    %c0_222 = arith.constant 0 : index
    %140 = vector.load %arg1[%c1_218, %c1_219, %c1_220, %c1_221, %c0_222] : memref<2x2x10x10x128xbf16, #tpu.memory_space<vmem>>, vector<1x1x8x8x128xbf16>
    %141 = vector.shape_cast %140 : vector<1x1x8x8x128xbf16> to vector<8x8x128xbf16>
    %142 = vector.shape_cast %141 : vector<8x8x128xbf16> to vector<64x128xbf16>
    %c64_223 = arith.constant 64 : index
    %c512_224 = arith.constant 512 : index
    %143 = vector.load %arg9[%c64_223, %c512_224] : memref<128x1152xbf16, #tpu.memory_space<vmem>>, vector<64x128xbf16>
    tpu.vector_store %arg9[%c64_223, %c512_224], %142 {strides = array<i32>} : memref<128x1152xbf16, #tpu.memory_space<vmem>>, vector<64x128xbf16>,
    %c1_225 = arith.constant 1 : index
    %c1_226 = arith.constant 1 : index
    %c1_227 = arith.constant 1 : index
    %c2_228 = arith.constant 2 : index
    %c0_229 = arith.constant 0 : index
    %144 = vector.load %arg1[%c1_225, %c1_226, %c1_227, %c2_228, %c0_229] : memref<2x2x10x10x128xbf16, #tpu.memory_space<vmem>>, vector<1x1x8x8x128xbf16>
    %145 = vector.shape_cast %144 : vector<1x1x8x8x128xbf16> to vector<8x8x128xbf16>
    %146 = vector.shape_cast %145 : vector<8x8x128xbf16> to vector<64x128xbf16>
    %c64_230 = arith.constant 64 : index
    %c640_231 = arith.constant 640 : index
    %147 = vector.load %arg9[%c64_230, %c640_231] : memref<128x1152xbf16, #tpu.memory_space<vmem>>, vector<64x128xbf16>
    tpu.vector_store %arg9[%c64_230, %c640_231], %146 {strides = array<i32>} : memref<128x1152xbf16, #tpu.memory_space<vmem>>, vector<64x128xbf16>,
    %c1_232 = arith.constant 1 : index
    %c1_233 = arith.constant 1 : index
    %c2_234 = arith.constant 2 : index
    %c0_235 = arith.constant 0 : index
    %c0_236 = arith.constant 0 : index
    %148 = vector.load %arg1[%c1_232, %c1_233, %c2_234, %c0_235, %c0_236] : memref<2x2x10x10x128xbf16, #tpu.memory_space<vmem>>, vector<1x1x8x8x128xbf16>
    %149 = vector.shape_cast %148 : vector<1x1x8x8x128xbf16> to vector<8x8x128xbf16>
    %150 = vector.shape_cast %149 : vector<8x8x128xbf16> to vector<64x128xbf16>
    %c64_237 = arith.constant 64 : index
    %c768_238 = arith.constant 768 : index
    %151 = vector.load %arg9[%c64_237, %c768_238] : memref<128x1152xbf16, #tpu.memory_space<vmem>>, vector<64x128xbf16>
    tpu.vector_store %arg9[%c64_237, %c768_238], %150 {strides = array<i32>} : memref<128x1152xbf16, #tpu.memory_space<vmem>>, vector<64x128xbf16>,
    %c1_239 = arith.constant 1 : index
    %c1_240 = arith.constant 1 : index
    %c2_241 = arith.constant 2 : index
    %c1_242 = arith.constant 1 : index
    %c0_243 = arith.constant 0 : index
    %152 = vector.load %arg1[%c1_239, %c1_240, %c2_241, %c1_242, %c0_243] : memref<2x2x10x10x128xbf16, #tpu.memory_space<vmem>>, vector<1x1x8x8x128xbf16>
    %153 = vector.shape_cast %152 : vector<1x1x8x8x128xbf16> to vector<8x8x128xbf16>
    %154 = vector.shape_cast %153 : vector<8x8x128xbf16> to vector<64x128xbf16>
    %c64_244 = arith.constant 64 : index
    %c896_245 = arith.constant 896 : index
    %155 = vector.load %arg9[%c64_244, %c896_245] : memref<128x1152xbf16, #tpu.memory_space<vmem>>, vector<64x128xbf16>
    tpu.vector_store %arg9[%c64_244, %c896_245], %154 {strides = array<i32>} : memref<128x1152xbf16, #tpu.memory_space<vmem>>, vector<64x128xbf16>,
    %c1_246 = arith.constant 1 : index
    %c1_247 = arith.constant 1 : index
    %c2_248 = arith.constant 2 : index
    %c2_249 = arith.constant 2 : index
    %c0_250 = arith.constant 0 : index
    %156 = vector.load %arg1[%c1_246, %c1_247, %c2_248, %c2_249, %c0_250] : memref<2x2x10x10x128xbf16, #tpu.memory_space<vmem>>, vector<1x1x8x8x128xbf16>
    %157 = vector.shape_cast %156 : vector<1x1x8x8x128xbf16> to vector<8x8x128xbf16>
    %158 = vector.shape_cast %157 : vector<8x8x128xbf16> to vector<64x128xbf16>
    %c64_251 = arith.constant 64 : index
    %c1024_252 = arith.constant 1024 : index
    %159 = vector.load %arg9[%c64_251, %c1024_252] : memref<128x1152xbf16, #tpu.memory_space<vmem>>, vector<64x128xbf16>
    tpu.vector_store %arg9[%c64_251, %c1024_252], %158 {strides = array<i32>} : memref<128x1152xbf16, #tpu.memory_space<vmem>>, vector<64x128xbf16>,
    %c0_253 = arith.constant 0 : index
    %c0_254 = arith.constant 0 : index
    %160 = vector.load %arg9[%c0_253, %c0_254] : memref<128x1152xbf16, #tpu.memory_space<vmem>>, vector<128x1152xbf16>
    %c1_255 = arith.constant 1 : index
    %c0_256 = arith.constant 0 : index
    %c0_257 = arith.constant 0 : index
    %161 = vector.load %arg2[%c1_255, %c0_256, %c0_257] : memref<2x1152x256xbf16, #tpu.memory_space<vmem>>, vector<1x1152x256xbf16>
    %162 = vector.shape_cast %161 : vector<1x1152x256xbf16> to vector<1152x256xbf16>
    %cst_258 = arith.constant dense<0.000000e+00> : vector<128x256xf32>
    %163 = tpu.matmul %160, %162, %cst_258 {dimension_numbers = #tpu.dot_dimension_numbers<[1], [0], [0], [1], [0, 0, 1, 1], [], []>} : vector<128x1152xbf16>, vector<1152x256xbf16>, vector<128x256xf32> -> vector<128x256xf32>
    %c1_259 = arith.constant 1 : index
    %c0_260 = arith.constant 0 : index
    %c0_261 = arith.constant 0 : index
    %164 = vector.load %arg3[%c1_259, %c0_260, %c0_261] : memref<2x1x256xf32, #tpu.memory_space<vmem>>, vector<1x1x256xf32>
    %165 = vector.shape_cast %164 : vector<1x1x256xf32> to vector<1x256xf32>
    %166 = vector.broadcast %165 : vector<1x256xf32> to vector<128x256xf32>
    %167 = arith.addf %163, %166 : vector<128x256xf32>
    %cst_262 = arith.constant 0.000000e+00 : f32
    %168 = vector.broadcast %cst_262 : f32 to vector<128x256xf32>
    %169 = arith.maximumf %167, %168 : vector<128x256xf32>
    %170 = arith.truncf %169 : vector<128x256xf32> to vector<128x256xbf16>
    %c1_263 = arith.constant 1 : index
    %c0_264 = arith.constant 0 : index
    %c0_265 = arith.constant 0 : index
    %171 = vector.load %arg10[%c1_263, %c0_264, %c0_265] : memref<2x128x256xbf16, #tpu.memory_space<vmem>>, vector<1x128x256xbf16>
    %172 = vector.shape_cast %171 : vector<1x128x256xbf16> to vector<128x256xbf16>
    %173 = vector.shape_cast %170 : vector<128x256xbf16> to vector<1x128x256xbf16>
    tpu.vector_store %arg10[%c1_263, %c0_264, %c0_265], %173 {strides = array<i32>} : memref<2x128x256xbf16, #tpu.memory_space<vmem>>, vector<1x128x256xbf16>,
    %174 = vector.shape_cast %169 : vector<128x256xf32> to vector<2x64x256xf32>
    %cst_266 = arith.constant dense<0.000000e+00> : vector<2x256xf32>
    %175 = vector.multi_reduction <add>, %174, %cst_266 [1] : vector<2x64x256xf32> to vector<2x256xf32>
    %176 = arith.addf %87, %175 : vector<2x256xf32>
    %cst_267 = arith.constant 1.562500e-02 : f32
    %177 = vector.broadcast %cst_267 : f32 to vector<2x256xf32>
    %178 = arith.mulf %176, %177 : vector<2x256xf32>
    %179 = arith.truncf %178 : vector<2x256xf32> to vector<2x256xbf16>
    %c0_268 = arith.constant 0 : index
    %c0_269 = arith.constant 0 : index
    %180 = vector.load %arg4[%c0_268, %c0_269] : memref<256x128xbf16, #tpu.memory_space<vmem>>, vector<256x128xbf16>
    %cst_270 = arith.constant dense<0.000000e+00> : vector<2x128xf32>
    %181 = tpu.matmul %179, %180, %cst_270 {dimension_numbers = #tpu.dot_dimension_numbers<[1], [0], [0], [1], [0, 0, 1, 1], [], []>} : vector<2x256xbf16>, vector<256x128xbf16>, vector<2x128xf32> -> vector<2x128xf32>
    %c0_271 = arith.constant 0 : index
    %c0_272 = arith.constant 0 : index
    %182 = vector.load %arg5[%c0_271, %c0_272] : memref<1x128xf32, #tpu.memory_space<vmem>>, vector<1x128xf32>
    %183 = vector.broadcast %182 : vector<1x128xf32> to vector<2x128xf32>
    %184 = arith.addf %181, %183 : vector<2x128xf32>
    %cst_273 = arith.constant 0.000000e+00 : f32
    %185 = vector.broadcast %cst_273 : f32 to vector<2x128xf32>
    %186 = arith.maximumf %184, %185 : vector<2x128xf32>
    %187 = arith.truncf %186 : vector<2x128xf32> to vector<2x128xbf16>
    %c0_274 = arith.constant 0 : index
    %c0_275 = arith.constant 0 : index
    %188 = vector.load %arg6[%c0_274, %c0_275] : memref<128x512xbf16, #tpu.memory_space<vmem>>, vector<128x512xbf16>
    %cst_276 = arith.constant dense<0.000000e+00> : vector<2x512xf32>
    %189 = tpu.matmul %187, %188, %cst_276 {dimension_numbers = #tpu.dot_dimension_numbers<[1], [0], [0], [1], [0, 0, 1, 1], [], []>} : vector<2x128xbf16>, vector<128x512xbf16>, vector<2x512xf32> -> vector<2x512xf32>
    %c0_277 = arith.constant 0 : index
    %c0_278 = arith.constant 0 : index
    %190 = vector.load %arg7[%c0_277, %c0_278] : memref<1x512xf32, #tpu.memory_space<vmem>>, vector<1x512xf32>
    %191 = vector.broadcast %190 : vector<1x512xf32> to vector<2x512xf32>
    %192 = arith.addf %189, %191 : vector<2x512xf32>
    %193 = vector.extract_strided_slice %192 {offsets = [0, 0], sizes = [2, 256], strides = [1, 1]} : vector<2x512xf32> to vector<2x256xf32>
    %194 = vector.extract_strided_slice %192 {offsets = [0, 256], sizes = [2, 256], strides = [1, 1]} : vector<2x512xf32> to vector<2x256xf32>
    %195 = arith.maximumf %193, %194 : vector<2x256xf32>
    %196 = arith.subf %193, %195 : vector<2x256xf32>
    %197 = math.exp %196 : vector<2x256xf32>
    %198 = arith.subf %194, %195 : vector<2x256xf32>
    %199 = math.exp %198 : vector<2x256xf32>
    %200 = arith.addf %197, %199 : vector<2x256xf32>
    %201 = tpu.reciprocal %200 {approx = true} : vector<2x256xf32> -> vector<2x256xf32>
    %202 = arith.mulf %197, %201 : vector<2x256xf32>
    %203 = arith.mulf %199, %201 : vector<2x256xf32>
    %c0_279 = arith.constant 0 : index
    %c0_280 = arith.constant 0 : index
    %c0_281 = arith.constant 0 : index
    %204 = vector.load %arg10[%c0_279, %c0_280, %c0_281] : memref<2x128x256xbf16, #tpu.memory_space<vmem>>, vector<1x64x256xbf16>
    %205 = vector.shape_cast %204 : vector<1x64x256xbf16> to vector<64x256xbf16>
    %206 = vector.extract_strided_slice %202 {offsets = [0, 0], sizes = [1, 256], strides = [1, 1]} : vector<2x256xf32> to vector<1x256xf32>
    %207 = arith.extf %205 : vector<64x256xbf16> to vector<64x256xf32>
    %208 = vector.broadcast %206 : vector<1x256xf32> to vector<64x256xf32>
    %209 = arith.mulf %208, %207 : vector<64x256xf32>
    %c1_282 = arith.constant 1 : index
    %c0_283 = arith.constant 0 : index
    %c0_284 = arith.constant 0 : index
    %210 = vector.load %arg10[%c1_282, %c0_283, %c0_284] : memref<2x128x256xbf16, #tpu.memory_space<vmem>>, vector<1x64x256xbf16>
    %211 = vector.shape_cast %210 : vector<1x64x256xbf16> to vector<64x256xbf16>
    %212 = vector.extract_strided_slice %203 {offsets = [0, 0], sizes = [1, 256], strides = [1, 1]} : vector<2x256xf32> to vector<1x256xf32>
    %213 = arith.extf %211 : vector<64x256xbf16> to vector<64x256xf32>
    %214 = vector.broadcast %212 : vector<1x256xf32> to vector<64x256xf32>
    %215 = arith.mulf %214, %213 : vector<64x256xf32>
    %216 = arith.addf %209, %215 : vector<64x256xf32>
    %217 = arith.truncf %216 : vector<64x256xf32> to vector<64x256xbf16>
    %c0_285 = arith.constant 0 : index
    %c0_286 = arith.constant 0 : index
    %c0_287 = arith.constant 0 : index
    %218 = vector.load %arg8[%c0_285, %c0_286, %c0_287] : memref<2x64x256xbf16, #tpu.memory_space<vmem>>, vector<1x64x256xbf16>
    %219 = vector.shape_cast %218 : vector<1x64x256xbf16> to vector<64x256xbf16>
    %220 = vector.shape_cast %217 : vector<64x256xbf16> to vector<1x64x256xbf16>
    tpu.vector_store %arg8[%c0_285, %c0_286, %c0_287], %220 {strides = array<i32>} : memref<2x64x256xbf16, #tpu.memory_space<vmem>>, vector<1x64x256xbf16>,
    %c0_288 = arith.constant 0 : index
    %c64_289 = arith.constant 64 : index
    %c0_290 = arith.constant 0 : index
    %221 = vector.load %arg10[%c0_288, %c64_289, %c0_290] : memref<2x128x256xbf16, #tpu.memory_space<vmem>>, vector<1x64x256xbf16>
    %222 = vector.shape_cast %221 : vector<1x64x256xbf16> to vector<64x256xbf16>
    %223 = vector.extract_strided_slice %202 {offsets = [1, 0], sizes = [1, 256], strides = [1, 1]} : vector<2x256xf32> to vector<1x256xf32>
    %224 = arith.extf %222 : vector<64x256xbf16> to vector<64x256xf32>
    %225 = vector.broadcast %223 : vector<1x256xf32> to vector<64x256xf32>
    %226 = arith.mulf %225, %224 : vector<64x256xf32>
    %c1_291 = arith.constant 1 : index
    %c64_292 = arith.constant 64 : index
    %c0_293 = arith.constant 0 : index
    %227 = vector.load %arg10[%c1_291, %c64_292, %c0_293] : memref<2x128x256xbf16, #tpu.memory_space<vmem>>, vector<1x64x256xbf16>
    %228 = vector.shape_cast %227 : vector<1x64x256xbf16> to vector<64x256xbf16>
    %229 = vector.extract_strided_slice %203 {offsets = [1, 0], sizes = [1, 256], strides = [1, 1]} : vector<2x256xf32> to vector<1x256xf32>
    %230 = arith.extf %228 : vector<64x256xbf16> to vector<64x256xf32>
    %231 = vector.broadcast %229 : vector<1x256xf32> to vector<64x256xf32>
    %232 = arith.mulf %231, %230 : vector<64x256xf32>
    %233 = arith.addf %226, %232 : vector<64x256xf32>
    %234 = arith.truncf %233 : vector<64x256xf32> to vector<64x256xbf16>
    %c1_294 = arith.constant 1 : index
    %c0_295 = arith.constant 0 : index
    %c0_296 = arith.constant 0 : index
    %235 = vector.load %arg8[%c1_294, %c0_295, %c0_296] : memref<2x64x256xbf16, #tpu.memory_space<vmem>>, vector<1x64x256xbf16>
    %236 = vector.shape_cast %235 : vector<1x64x256xbf16> to vector<64x256xbf16>
    %237 = vector.shape_cast %234 : vector<64x256xbf16> to vector<1x64x256xbf16>
    tpu.vector_store %arg8[%c1_294, %c0_295, %c0_296], %237 {strides = array<i32>} : memref<2x64x256xbf16, #tpu.memory_space<vmem>>, vector<1x64x256xbf16>,
    return
  }
  func.func @transform_0(%arg0: i32) -> (i32, i32, i32, i32, i32) {
    %c0_i32 = arith.constant 0 : i32
    %c0_i32_0 = arith.constant 0 : i32
    %c0_i32_1 = arith.constant 0 : i32
    %c0_i32_2 = arith.constant 0 : i32
    %c0_i32_3 = arith.constant 0 : i32
    return %arg0, %c0_i32, %c0_i32_0, %c0_i32_1, %c0_i32_2 : i32, i32, i32, i32, i32
  }
  func.func @transform_1(%arg0: i32) -> (i32, i32, i32) {
    %c0_i32 = arith.constant 0 : i32
    %c0_i32_0 = arith.constant 0 : i32
    %c0_i32_1 = arith.constant 0 : i32
    %c0_i32_2 = arith.constant 0 : i32
    return %c0_i32, %c0_i32_0, %c0_i32_1 : i32, i32, i32
  }
  func.func @transform_2(%arg0: i32) -> (i32, i32, i32) {
    %c0_i32 = arith.constant 0 : i32
    %c0_i32_0 = arith.constant 0 : i32
    %c0_i32_1 = arith.constant 0 : i32
    %c0_i32_2 = arith.constant 0 : i32
    return %c0_i32, %c0_i32_0, %c0_i32_1 : i32, i32, i32
  }
  func.func @transform_3(%arg0: i32) -> (i32, i32) {
    %c0_i32 = arith.constant 0 : i32
    %c0_i32_0 = arith.constant 0 : i32
    %c0_i32_1 = arith.constant 0 : i32
    return %c0_i32, %c0_i32_0 : i32, i32
  }
  func.func @transform_4(%arg0: i32) -> (i32, i32) {
    %c0_i32 = arith.constant 0 : i32
    %c0_i32_0 = arith.constant 0 : i32
    %c0_i32_1 = arith.constant 0 : i32
    return %c0_i32, %c0_i32_0 : i32, i32
  }
  func.func @transform_5(%arg0: i32) -> (i32, i32) {
    %c0_i32 = arith.constant 0 : i32
    %c0_i32_0 = arith.constant 0 : i32
    %c0_i32_1 = arith.constant 0 : i32
    return %c0_i32, %c0_i32_0 : i32, i32
  }
  func.func @transform_6(%arg0: i32) -> (i32, i32) {
    %c0_i32 = arith.constant 0 : i32
    %c0_i32_0 = arith.constant 0 : i32
    %c0_i32_1 = arith.constant 0 : i32
    return %c0_i32, %c0_i32_0 : i32, i32
  }
  func.func @transform_7(%arg0: i32) -> (i32, i32, i32) {
    %c0_i32 = arith.constant 0 : i32
    %c0_i32_0 = arith.constant 0 : i32
    %c0_i32_1 = arith.constant 0 : i32
    return %arg0, %c0_i32, %c0_i32_0 : i32, i32, i32
  }
}

</mosaic_0001>

<llo_original>
// kernel: tpu_custom_call.1
$region0: #{tpu_custom_call.1}
  #allocation0 [shape = 'u32[]', space=smem, size = 0x4, offset = 0x4, fixed_abs, tag = 'smem constant byte address 0x4 - core index']
  #allocation1 [shape = 'u32[72,128]{1,0:T(1,128)}', space=vmem, size = 0x9000, scoped, tag = 'internal scratch']
  #allocation2 [shape = 'bf16[128,1152]{1,0:T(8,128)(2,1)}', space=vmem, size = 0x48000, scoped, tag = 'scratch operand']
  #allocation3 [shape = 'bf16[2,128,256]{2,1,0:T(8,128)(2,1)}', space=vmem, size = 0x20000, scoped, tag = 'scratch operand']
  %s0 = inlined_call_operand.vmem [shape: bf16[4,2,10,10,128], index: 0, kind: input, shape index: {}]
  %s1 = inlined_call_operand.hbm [shape: bf16[2,1152,256], index: 1, kind: input, shape index: {}]
  %s2 = inlined_call_operand.hbm [shape: f32[2,1,256], index: 2, kind: input, shape index: {}]
  %s3 = inlined_call_operand.hbm [shape: bf16[256,128], index: 3, kind: input, shape index: {}]
  %s4 = inlined_call_operand.hbm [shape: f32[1,128], index: 4, kind: input, shape index: {}]
  %s5 = inlined_call_operand.hbm [shape: bf16[128,512], index: 5, kind: input, shape index: {}]
  %s6 = inlined_call_operand.hbm [shape: f32[1,512], index: 6, kind: input, shape index: {}]
  %s7 = inlined_call_operand.hbm [shape: bf16[4,64,256], index: 7, kind: output, shape index: {}]
  %s8 = sld [smem:[#allocation0]]
  $region85: #{tpu_custom_call.1} parent=0
    _
  %s10 = ssub.s32 1, %s8
  %s11 = scalar_select 0, %s10, %s8
  $region1: #{tpu_custom_call.1} parent=0
    #allocation4 [shape = 'u8[1179648]{0}', space=vmem, size = 0x120000, scoped, tag = 'input window, operand 1, single buffered']
    #allocation5 [shape = 's32[2]{0}', space=sflag, size = 0x8, scoped, tag = 'scoped memory for tpu_custom_call.1']
    #allocation6 [shape = 's32[2]{0}', space=sflag, size = 0x8, scoped, tag = 'scoped memory for tpu_custom_call.1']
    #allocation7 [shape = 'u8[2048]{0}', space=vmem, size = 0x800, scoped, tag = 'input window, operand 2, single buffered']
    #allocation8 [shape = 's32[1]{0}', space=sflag, size = 0x4, scoped, tag = 'scoped memory for tpu_custom_call.1']
    #allocation9 [shape = 'u8[65536]{0}', space=vmem, size = 0x10000, scoped, tag = 'input window, operand 3, single buffered']
    #allocation10 [shape = 'u8[512]{0}', space=vmem, size = 0x400, scoped, tag = 'input window, operand 4, single buffered']
    #allocation11 [shape = 's32[1]{0}', space=sflag, size = 0x4, scoped, tag = 'scoped memory for tpu_custom_call.1']
    #allocation12 [shape = 'u8[131072]{0}', space=vmem, size = 0x20000, scoped, tag = 'input window, operand 5, single buffered']
    #allocation13 [shape = 'u8[2048]{0}', space=vmem, size = 0x800, scoped, tag = 'input window, operand 6, single buffered']
    #allocation14 [shape = 's32[1]{0}', space=sflag, size = 0x4, scoped, tag = 'scoped memory for tpu_custom_call.1']
    #allocation15 [shape = 'u8[131072]{0}', space=vmem, size = 0x20000, scoped, tag = 'output window, operand 0']
    %12 = vsyncpa [#allocation5], 0
    %13 = vsyncpa [#allocation8], 0
    %14 = vsyncpa [#allocation11], 0
    %15 = vsyncpa [#allocation14], 0
    %16 = vsyncpa [#allocation6], 0
    %s17 = scalar_lea.sflag [#allocation6], 1
    %18 = vsyncpa %s17, 0
    loop: start=0, step=1, limit=4
    $region2: #{tpu_custom_call.1} parent=1 // loop_pre_header
      _
    $region3: #{tpu_custom_call.1} parent=1 // loop_header
      %s20 = sphi 0, %s24
      %p21 = scmp.ge.s32.totalorder %s20, 4
      %s30 = sphi 0, %s32
      %s33 = sphi 0, %s30
      %s34 = sphi 0, %s33
      %s50 = sphi 0, %s34
      %s54 = sphi 0, %s54
      %s56 = sphi 0, %s54
      %s57 = sphi 0, %s56
      %s71 = sphi 0, %s57
      %s75 = sphi 0, %s75
      %s77 = sphi 0, %s75
      %s78 = sphi 0, %s77
      %s92 = sphi 0, %s78
      %s96 = sphi 0, %s96
      %s98 = sphi 0, %s96
      %s99 = sphi 0, %s98
      %s113 = sphi 0, %s99
      %s117 = sphi 0, %s117
      %s119 = sphi 0, %s117
      %s120 = sphi 0, %s119
      %s134 = sphi 0, %s120
      %s138 = sphi 0, %s138
      %s140 = sphi 0, %s138
      %s141 = sphi 0, %s140
      %s155 = sphi 0, %s141
      %s159 = sphi 0, %s159
      %s161 = sphi 0, %s159
      %s162 = sphi 0, %s161
      %s176 = sphi 0, %s162
      %s182 = sphi 0, %s184
      %s185 = sphi 0, %s182
      %s186 = sphi 0, %s185
      %s202 = sphi 0, %s186
    $region4: #{tpu_custom_call.1} parent=1 // loop_header_branch
      %23 = sbr.rel (%p21) target = $region8
    $region5: #{tpu_custom_call.1} parent=1 // loop_body
      %s25 = ssub.s32 %s20, 1
      %s26 = ssub.s32 %s20, 2
      %s27 = sadd.s32 %s20, 1
      %s28 = ssub.s32 %s20, %s27
      %p29 = scmp.eq.s32.totalorder %s28, 0
      %s31 = sadd.s32 %s30, 1
      %s32 = scalar_select %p29, %s30, %s31
      %p35 = pneg %p29
      %p36 = scmp.eq.s32.totalorder %s20, 1
      %p37 = por %p35, %p36
      %p38 = scmp.ne.s32.totalorder %s30, %s33
      %p39 = scmp.eq.s32.totalorder %s20, 0
      %p40 = por %p38, %p39
      %p41 = scmp.ne.s32.totalorder %s30, %s33
      %p42 = scmp.eq.s32.totalorder %s25, 1
      %p43 = por %p41, %p42
      %p44 = scmp.ne.s32.totalorder %s33, %s34
      %p45 = scmp.eq.s32.totalorder %s25, 0
      %p46 = por %p44, %p45
      %p47 = scmp.ne.s32.totalorder %s33, %s34
      %p48 = scmp.eq.s32.totalorder %s26, 1
      %p49 = por %p47, %p48
      %p51 = scmp.ne.s32.totalorder %s34, %s50
      %p52 = scmp.eq.s32.totalorder %s26, 0
      %p53 = por %p51, %p52
      %s55 = sadd.s32 %s54, 1
      %p58 = scmp.eq.s32.totalorder %s20, 1
      %p59 = scmp.ne.s32.totalorder %s54, %s56
      %p60 = scmp.eq.s32.totalorder %s20, 0
      %p61 = por %p59, %p60
      %p62 = scmp.ne.s32.totalorder %s54, %s56
      %p63 = scmp.eq.s32.totalorder %s25, 1
      %p64 = por %p62, %p63
      %p65 = scmp.ne.s32.totalorder %s56, %s57
      %p66 = scmp.eq.s32.totalorder %s25, 0
      %p67 = por %p65, %p66
      %p68 = scmp.ne.s32.totalorder %s56, %s57
      %p69 = scmp.eq.s32.totalorder %s26, 1
      %p70 = por %p68, %p69
      %p72 = scmp.ne.s32.totalorder %s57, %s71
      %p73 = scmp.eq.s32.totalorder %s26, 0
      %p74 = por %p72, %p73
      %s76 = sadd.s32 %s75, 1
      %p79 = scmp.eq.s32.totalorder %s20, 1
      %p80 = scmp.ne.s32.totalorder %s75, %s77
      %p81 = scmp.eq.s32.totalorder %s20, 0
      %p82 = por %p80, %p81
      %p83 = scmp.ne.s32.totalorder %s75, %s77
      %p84 = scmp.eq.s32.totalorder %s25, 1
      %p85 = por %p83, %p84
      %p86 = scmp.ne.s32.totalorder %s77, %s78
      %p87 = scmp.eq.s32.totalorder %s25, 0
      %p88 = por %p86, %p87
      %p89 = scmp.ne.s32.totalorder %s77, %s78
      %p90 = scmp.eq.s32.totalorder %s26, 1
      %p91 = por %p89, %p90
      %p93 = scmp.ne.s32.totalorder %s78, %s92
      %p94 = scmp.eq.s32.totalorder %s26, 0
      %p95 = por %p93, %p94
      %s97 = sadd.s32 %s96, 1
      %p100 = scmp.eq.s32.totalorder %s20, 1
      %p101 = scmp.ne.s32.totalorder %s96, %s98
      %p102 = scmp.eq.s32.totalorder %s20, 0
      %p103 = por %p101, %p102
      %p104 = scmp.ne.s32.totalorder %s96, %s98
      %p105 = scmp.eq.s32.totalorder %s25, 1
      %p106 = por %p104, %p105
      %p107 = scmp.ne.s32.totalorder %s98, %s99
      %p108 = scmp.eq.s32.totalorder %s25, 0
      %p109 = por %p107, %p108
      %p110 = scmp.ne.s32.totalorder %s98, %s99
      %p111 = scmp.eq.s32.totalorder %s26, 1
      %p112 = por %p110, %p111
      %p114 = scmp.ne.s32.totalorder %s99, %s113
      %p115 = scmp.eq.s32.totalorder %s26, 0
      %p116 = por %p114, %p115
      %s118 = sadd.s32 %s117, 1
      %p121 = scmp.eq.s32.totalorder %s20, 1
      %p122 = scmp.ne.s32.totalorder %s117, %s119
      %p123 = scmp.eq.s32.totalorder %s20, 0
      %p124 = por %p122, %p123
      %p125 = scmp.ne.s32.totalorder %s117, %s119
      %p126 = scmp.eq.s32.totalorder %s25, 1
      %p127 = por %p125, %p126
      %p128 = scmp.ne.s32.totalorder %s119, %s120
      %p129 = scmp.eq.s32.totalorder %s25, 0
      %p130 = por %p128, %p129
      %p131 = scmp.ne.s32.totalorder %s119, %s120
      %p132 = scmp.eq.s32.totalorder %s26, 1
      %p133 = por %p131, %p132
      %p135 = scmp.ne.s32.totalorder %s120, %s134
      %p136 = scmp.eq.s32.totalorder %s26, 0
      %p137 = por %p135, %p136
      %s139 = sadd.s32 %s138, 1
      %p142 = scmp.eq.s32.totalorder %s20, 1
      %p143 = scmp.ne.s32.totalorder %s138, %s140
      %p144 = scmp.eq.s32.totalorder %s20, 0
      %p145 = por %p143, %p144
      %p146 = scmp.ne.s32.totalorder %s138, %s140
      %p147 = scmp.eq.s32.totalorder %s25, 1
      %p148 = por %p146, %p147
      %p149 = scmp.ne.s32.totalorder %s140, %s141
      %p150 = scmp.eq.s32.totalorder %s25, 0
      %p151 = por %p149, %p150
      %p152 = scmp.ne.s32.totalorder %s140, %s141
      %p153 = scmp.eq.s32.totalorder %s26, 1
      %p154 = por %p152, %p153
      %p156 = scmp.ne.s32.totalorder %s141, %s155
      %p157 = scmp.eq.s32.totalorder %s26, 0
      %p158 = por %p156, %p157
      %s160 = sadd.s32 %s159, 1
      %p163 = scmp.eq.s32.totalorder %s20, 1
      %p164 = scmp.ne.s32.totalorder %s159, %s161
      %p165 = scmp.eq.s32.totalorder %s20, 0
      %p166 = por %p164, %p165
      %p167 = scmp.ne.s32.totalorder %s159, %s161
      %p168 = scmp.eq.s32.totalorder %s25, 1
      %p169 = por %p167, %p168
      %p170 = scmp.ne.s32.totalorder %s161, %s162
      %p171 = scmp.eq.s32.totalorder %s25, 0
      %p172 = por %p170, %p171
      %p173 = scmp.ne.s32.totalorder %s161, %s162
      %p174 = scmp.eq.s32.totalorder %s26, 1
      %p175 = por %p173, %p174
      %p177 = scmp.ne.s32.totalorder %s162, %s176
      %p178 = scmp.eq.s32.totalorder %s26, 0
      %p179 = por %p177, %p178
      %s180 = ssub.s32 %s20, %s27
      %p181 = scmp.eq.s32.totalorder %s180, 0
      %s183 = sadd.s32 %s182, 1
      %s184 = scalar_select %p181, %s182, %s183
      %p187 = pneg %p181
      %p188 = scmp.eq.s32.totalorder %s20, 1
      %p189 = por %p187, %p188
      %p190 = scmp.ne.s32.totalorder %s182, %s185
      %p191 = scmp.eq.s32.totalorder %s20, 0
      %p192 = por %p190, %p191
      %p193 = scmp.ne.s32.totalorder %s182, %s185
      %p194 = scmp.eq.s32.totalorder %s25, 1
      %p195 = por %p193, %p194
      %p196 = scmp.ne.s32.totalorder %s185, %s186
      %p197 = scmp.eq.s32.totalorder %s25, 0
      %p198 = por %p196, %p197
      %p199 = scmp.ne.s32.totalorder %s185, %s186
      %p200 = scmp.eq.s32.totalorder %s26, 1
      %p201 = por %p199, %p200
      %p203 = scmp.ne.s32.totalorder %s186, %s202
      %p204 = scmp.eq.s32.totalorder %s26, 0
      %p205 = por %p203, %p204
      %p206 = scmp.le.s32.totalorder 1, %s20
      %p207 = scmp.lt.s32.totalorder %s20, 3
      %p208 = pnand %p206, %p207
      %p209 = pneg %p208
      // Predicated region
      $region9: #{tpu_custom_call.1} parent=5 // pred_check
        _
      $region10: #{tpu_custom_call.1} parent=5 // pred_check_branch
        %211 = sbr.rel (%p208) target = $region12
      $region11: #{tpu_custom_call.1} parent=5 // pred_region
        %s212 = ssub.s32 %s20, 1
        // Predicated region
        $region13: #{tpu_custom_call.1} parent=11 // pred_check
          %p213 = pneg %p67
        $region14: #{tpu_custom_call.1} parent=11 // pred_check_branch
          %215 = sbr.rel (%p213) target = $region16
        $region15: #{tpu_custom_call.1} parent=11 // pred_region
          %217 = vsyncadd [#allocation5], 0
          %s218 = sshll.u32 %s1, 4
          %s219 = int_to_ptr.hbm [resolvable:$true] %s218
          %s220 = sshll.u32 [#allocation4], 4
          %s221 = int_to_ptr.vmem [resolvable:$true] %s220
          %226 = dma.hbm_to_vmem [thread:$0]  %s219, 36864, %s221, [#allocation5], 128, 128, 8
        $region16: #{tpu_custom_call.1} parent=11 // pred_fallthru
          _
        // Predicated region
        $region17: #{tpu_custom_call.1} parent=11 // pred_check
          %p227 = pneg %p88
        $region18: #{tpu_custom_call.1} parent=11 // pred_check_branch
          %229 = sbr.rel (%p227) target = $region20
        $region19: #{tpu_custom_call.1} parent=11 // pred_region
          %231 = vsyncadd [#allocation8], 0
          %s232 = sshll.u32 %s2, 4
          %s233 = int_to_ptr.hbm [resolvable:$true] %s232
          %s234 = sshll.u32 [#allocation7], 4
          %s235 = int_to_ptr.vmem [resolvable:$true] %s234
          %240 = dma.hbm_to_vmem [thread:$0]  %s233, 64, %s235, [#allocation8], 32, 32, 2
        $region20: #{tpu_custom_call.1} parent=11 // pred_fallthru
          _
        // Predicated region
        $region21: #{tpu_custom_call.1} parent=11 // pred_check
          %p241 = pneg %p109
        $region22: #{tpu_custom_call.1} parent=11 // pred_check_branch
          %243 = sbr.rel (%p241) target = $region24
        $region23: #{tpu_custom_call.1} parent=11 // pred_region
          %245 = vsyncadd [#allocation8], 0
          %s246 = sshll.u32 %s3, 4
          %s247 = int_to_ptr.hbm [resolvable:$true] %s246
          %s248 = sshll.u32 [#allocation9], 4
          %s249 = int_to_ptr.vmem [resolvable:$true] %s248
          %254 = dma.hbm_to_vmem [thread:$0]  %s247, 2048, %s249, [#allocation8], 64, 64, 4
        $region24: #{tpu_custom_call.1} parent=11 // pred_fallthru
          _
        // Predicated region
        $region25: #{tpu_custom_call.1} parent=11 // pred_check
          %p255 = pneg %p130
        $region26: #{tpu_custom_call.1} parent=11 // pred_check_branch
          %257 = sbr.rel (%p255) target = $region28
        $region27: #{tpu_custom_call.1} parent=11 // pred_region
          %259 = vsyncadd [#allocation11], 0
          %s261 = sshll.u32 %s4, 4
          %s262 = int_to_ptr.hbm [resolvable:$true] %s261
          %s263 = sshll.u32 [#allocation10], 4
          %s264 = int_to_ptr.vmem [resolvable:$true] %s263
          %266 = dma.hbm_to_vmem [thread:$0]  %s262, 16, %s264, [#allocation11]
        $region28: #{tpu_custom_call.1} parent=11 // pred_fallthru
          _
        // Predicated region
        $region29: #{tpu_custom_call.1} parent=11 // pred_check
          %p267 = pneg %p151
        $region30: #{tpu_custom_call.1} parent=11 // pred_check_branch
          %269 = sbr.rel (%p267) target = $region32
        $region31: #{tpu_custom_call.1} parent=11 // pred_region
          %271 = vsyncadd [#allocation11], 0
          %s272 = sshll.u32 %s5, 4
          %s273 = int_to_ptr.hbm [resolvable:$true] %s272
          %s274 = sshll.u32 [#allocation12], 4
          %s275 = int_to_ptr.vmem [resolvable:$true] %s274
          %280 = dma.hbm_to_vmem [thread:$0]  %s273, 4096, %s275, [#allocation11], 256, 256, 16
        $region32: #{tpu_custom_call.1} parent=11 // pred_fallthru
          _
        // Predicated region
        $region33: #{tpu_custom_call.1} parent=11 // pred_check
          %p281 = pneg %p172
        $region34: #{tpu_custom_call.1} parent=11 // pred_check_branch
          %283 = sbr.rel (%p281) target = $region36
        $region35: #{tpu_custom_call.1} parent=11 // pred_region
          %285 = vsyncadd [#allocation14], 0
          %s287 = sshll.u32 %s6, 4
          %s288 = int_to_ptr.hbm [resolvable:$true] %s287
          %s289 = sshll.u32 [#allocation13], 4
          %s290 = int_to_ptr.vmem [resolvable:$true] %s289
          %292 = dma.hbm_to_vmem [thread:$0]  %s288, 64, %s290, [#allocation14]
        $region36: #{tpu_custom_call.1} parent=11 // pred_fallthru
          _
      $region12: #{tpu_custom_call.1} parent=5 // pred_fallthru
        _
      %p293 = scmp.lt.s32.totalorder %s20, 2
      // Predicated region
      $region37: #{tpu_custom_call.1} parent=5 // pred_check
        %p294 = pneg %p293
      $region38: #{tpu_custom_call.1} parent=5 // pred_check_branch
        %296 = sbr.rel (%p294) target = $region40
      $region39: #{tpu_custom_call.1} parent=5 // pred_region
        // Predicated region
        $region41: #{tpu_custom_call.1} parent=39 // pred_check
          %p297 = pneg %p40
        $region42: #{tpu_custom_call.1} parent=39 // pred_check_branch
          %299 = sbr.rel (%p297) target = $region44
        $region43: #{tpu_custom_call.1} parent=39 // pred_region
          %s300 = smul.u32 2, %s20
          %p301 = scmp.lt.s32.totalorder %s300, 3
          %s302 = scalar_select %p301, %s300, 3
          %s303 = smul.addr %s302, 40
          %s304 = smul.addr %s303, 4
          %s305 = scalar_lea.vmem %s0, %s304
          %s306 = smul.u32 2, %s20
        $region44: #{tpu_custom_call.1} parent=39 // pred_fallthru
          _
      $region40: #{tpu_custom_call.1} parent=5 // pred_fallthru
        _
      %p307 = scmp.le.s32.totalorder 1, %s20
      %p308 = scmp.lt.s32.totalorder %s20, 3
      %p309 = pnand %p307, %p308
      %p310 = pneg %p309
      // Predicated region
      $region45: #{tpu_custom_call.1} parent=5 // pred_check
        _
      $region46: #{tpu_custom_call.1} parent=5 // pred_check_branch
        %312 = sbr.rel (%p309) target = $region48
      $region47: #{tpu_custom_call.1} parent=5 // pred_region
        %s313 = ssub.s32 %s20, 1
        // Predicated region
        $region49: #{tpu_custom_call.1} parent=47 // pred_check
          %p314 = pneg %p67
        $region50: #{tpu_custom_call.1} parent=47 // pred_check_branch
          %316 = sbr.rel (%p314) target = $region52
        $region51: #{tpu_custom_call.1} parent=47 // pred_region
          %318 = dma.done [#allocation5], 36864
        $region52: #{tpu_custom_call.1} parent=47 // pred_fallthru
          _
        // Predicated region
        $region53: #{tpu_custom_call.1} parent=47 // pred_check
          %p319 = pneg %p88
        $region54: #{tpu_custom_call.1} parent=47 // pred_check_branch
          %321 = sbr.rel (%p319) target = $region56
        $region55: #{tpu_custom_call.1} parent=47 // pred_region
          %323 = dma.done [#allocation8], 64
        $region56: #{tpu_custom_call.1} parent=47 // pred_fallthru
          _
        // Predicated region
        $region57: #{tpu_custom_call.1} parent=47 // pred_check
          %p324 = pneg %p109
        $region58: #{tpu_custom_call.1} parent=47 // pred_check_branch
          %326 = sbr.rel (%p324) target = $region60
        $region59: #{tpu_custom_call.1} parent=47 // pred_region
          %328 = dma.done [#allocation8], 2048
        $region60: #{tpu_custom_call.1} parent=47 // pred_fallthru
          _
        // Predicated region
        $region61: #{tpu_custom_call.1} parent=47 // pred_check
          %p329 = pneg %p130
        $region62: #{tpu_custom_call.1} parent=47 // pred_check_branch
          %331 = sbr.rel (%p329) target = $region64
        $region63: #{tpu_custom_call.1} parent=47 // pred_region
          %333 = dma.done [#allocation11], 16
        $region64: #{tpu_custom_call.1} parent=47 // pred_fallthru
          _
        // Predicated region
        $region65: #{tpu_custom_call.1} parent=47 // pred_check
          %p334 = pneg %p151
        $region66: #{tpu_custom_call.1} parent=47 // pred_check_branch
          %336 = sbr.rel (%p334) target = $region68
        $region67: #{tpu_custom_call.1} parent=47 // pred_region
          %338 = dma.done [#allocation11], 4096
        $region68: #{tpu_custom_call.1} parent=47 // pred_fallthru
          _
        // Predicated region
        $region69: #{tpu_custom_call.1} parent=47 // pred_check
          %p339 = pneg %p172
        $region70: #{tpu_custom_call.1} parent=47 // pred_check_branch
          %341 = sbr.rel (%p339) target = $region72
        $region71: #{tpu_custom_call.1} parent=47 // pred_region
          %343 = dma.done [#allocation14], 64
        $region72: #{tpu_custom_call.1} parent=47 // pred_fallthru
          _
        %s344 = smul.u32 2, %s25
        %p345 = scmp.lt.s32.totalorder %s344, 3
        %s346 = scalar_select %p345, %s344, 3
        %s347 = smul.addr %s346, 40
        %s348 = smul.addr %s347, 4
        %s349 = scalar_lea.vmem %s0, %s348
        %p350 = pneg %p46
        %p351 = pneg %p43
        %p352 = pneg %p67
        %p353 = pneg %p64
        %p354 = pneg %p88
        %p355 = pneg %p85
        %p356 = pneg %p109
        %p357 = pneg %p106
        %p358 = pneg %p130
        %p359 = pneg %p127
        %p360 = pneg %p151
        %p361 = pneg %p148
        %p362 = pneg %p172
        %p363 = pneg %p169
        %p364 = pneg %p198
        %p365 = pneg %p195
        %s366 = sand.u32 %s185, 1
        %s367 = scalar_lea.sflag [#allocation6], %s366
        %s368 = sand.u32 %s185, 1
        %s369 = smul.addr %s368, 128
        %s370 = scalar_lea.vmem [#allocation15], %s369
        %s371 = smul.u32 2, %s25
        %p372 = scmp.lt.s32.totalorder %s371, 3
        %s373 = scalar_select %p372, %s371, 3
        %s374 = smul.addr %s373, 40
        %s375 = smul.addr %s374, 4
        %s376 = scalar_lea.vmem %s0, %s375
        %s377 = smul.u32 2, %s25
        %s378 = smul.u32 2, %s25
        %v379 = vld [vmem:[%s376] sm:$0xf]
        %v380 = vld [vmem:[%s376 + $0x8] sm:$0xf]
        %v381 = vld [vmem:[%s376 + $0x10] sm:$0xf]
        %v382 = vld [vmem:[%s376 + $0x18] sm:$0xf]
        %v383 = vld [vmem:[%s376 + $0x20] sm:$0xf]
        %v384 = vld [vmem:[%s376 + $0x28] sm:$0xf]
        %v385 = vld [vmem:[%s376 + $0x30] sm:$0xf]
        %v386 = vld [vmem:[%s376 + $0x38] sm:$0xf]
        %387 = vst [vmem:[#allocation2] sm:$0xf] %v379
        %388 = vst [vmem:[#allocation2 + $0x24] sm:$0xf] %v380
        %389 = vst [vmem:[#allocation2 + $0x48] sm:$0xf] %v381
        %390 = vst [vmem:[#allocation2 + $0x6c] sm:$0xf] %v382
        %391 = vst [vmem:[#allocation2 + $0x90] sm:$0xf] %v383
        %392 = vst [vmem:[#allocation2 + $0xb4] sm:$0xf] %v384
        %393 = vst [vmem:[#allocation2 + $0xd8] sm:$0xf] %v385
        %394 = vst [vmem:[#allocation2 + $0xfc] sm:$0xf] %v386
        %v395 = vld [vmem:[%s376] sm:$0xf]
        %v396 = vld [vmem:[%s376 + $0x4] sm:$0x1]
        %v397 = vld [vmem:[%s376 + $0x8] sm:$0xf]
        %v398 = vld [vmem:[%s376 + $0xc] sm:$0x1]
        %v399 = vld [vmem:[%s376 + $0x10] sm:$0xf]
        %v400 = vld [vmem:[%s376 + $0x14] sm:$0x1]
        %v401 = vld [vmem:[%s376 + $0x18] sm:$0xf]
        %v402 = vld [vmem:[%s376 + $0x1c] sm:$0x1]
        %v403 = vld [vmem:[%s376 + $0x20] sm:$0xf]
        %v404 = vld [vmem:[%s376 + $0x24] sm:$0x1]
        %v405 = vld [vmem:[%s376 + $0x28] sm:$0xf]
        %v406 = vld [vmem:[%s376 + $0x2c] sm:$0x1]
        %v407 = vld [vmem:[%s376 + $0x30] sm:$0xf]
        %v408 = vld [vmem:[%s376 + $0x34] sm:$0x1]
        %v409 = vld [vmem:[%s376 + $0x38] sm:$0xf]
        %v410 = vld [vmem:[%s376 + $0x3c] sm:$0x1]
        %vm411 = vsmask.f32 3328
        %vm412 = vsmask.f32 7440
        %vm413 = vmor %vm411, %vm412
        %v415 = vshrl.u32 %v395, 16
        %v417 = vrot.slane %v415, 4
        %v418 = vshll.u32 %v395, 16
        %v420 = vrot.slane %v418, 5
        %v421 = vor.u32 %v417, %v420
        %v422 = vrot.slane %v421, 4
        %v424 = vshll.u32 %v396, 16
        %v426 = vrot.slane %v424, 5
        %v427 = vsel %vm413, %v422, %v426
        %v429 = vshrl.u32 %v397, 16
        %v431 = vrot.slane %v429, 4
        %v432 = vshll.u32 %v397, 16
        %v434 = vrot.slane %v432, 5
        %v435 = vor.u32 %v431, %v434
        %v436 = vrot.slane %v435, 4
        %v438 = vshll.u32 %v398, 16
        %v440 = vrot.slane %v438, 5
        %v441 = vsel %vm413, %v436, %v440
        %v443 = vshrl.u32 %v399, 16
        %v445 = vrot.slane %v443, 4
        %v446 = vshll.u32 %v399, 16
        %v448 = vrot.slane %v446, 5
        %v449 = vor.u32 %v445, %v448
        %v450 = vrot.slane %v449, 4
        %v452 = vshll.u32 %v400, 16
        %v454 = vrot.slane %v452, 5
        %v455 = vsel %vm413, %v450, %v454
        %v457 = vshrl.u32 %v401, 16
        %v459 = vrot.slane %v457, 4
        %v460 = vshll.u32 %v401, 16
        %v462 = vrot.slane %v460, 5
        %v463 = vor.u32 %v459, %v462
        %v464 = vrot.slane %v463, 4
        %v466 = vshll.u32 %v402, 16
        %v468 = vrot.slane %v466, 5
        %v469 = vsel %vm413, %v464, %v468
        %v471 = vshrl.u32 %v403, 16
        %v473 = vrot.slane %v471, 4
        %v474 = vshll.u32 %v403, 16
        %v476 = vrot.slane %v474, 5
        %v477 = vor.u32 %v473, %v476
        %v478 = vrot.slane %v477, 4
        %v480 = vshll.u32 %v404, 16
        %v482 = vrot.slane %v480, 5
        %v483 = vsel %vm413, %v478, %v482
        %v485 = vshrl.u32 %v405, 16
        %v487 = vrot.slane %v485, 4
        %v488 = vshll.u32 %v405, 16
        %v490 = vrot.slane %v488, 5
        %v491 = vor.u32 %v487, %v490
        %v492 = vrot.slane %v491, 4
        %v494 = vshll.u32 %v406, 16
        %v496 = vrot.slane %v494, 5
        %v497 = vsel %vm413, %v492, %v496
        %v499 = vshrl.u32 %v407, 16
        %v501 = vrot.slane %v499, 4
        %v502 = vshll.u32 %v407, 16
        %v504 = vrot.slane %v502, 5
        %v505 = vor.u32 %v501, %v504
        %v506 = vrot.slane %v505, 4
        %v508 = vshll.u32 %v408, 16
        %v510 = vrot.slane %v508, 5
        %v511 = vsel %vm413, %v506, %v510
        %v513 = vshrl.u32 %v409, 16
        %v515 = vrot.slane %v513, 4
        %v516 = vshll.u32 %v409, 16
        %v518 = vrot.slane %v516, 5
        %v519 = vor.u32 %v515, %v518
        %v520 = vrot.slane %v519, 4
        %v522 = vshll.u32 %v410, 16
        %v524 = vrot.slane %v522, 5
        %v525 = vsel %vm413, %v520, %v524
        %534 = vst [vmem:[#allocation2 + $0x4] sm:$0xf] %v427
        %535 = vst [vmem:[#allocation2 + $0x28] sm:$0xf] %v441
        %536 = vst [vmem:[#allocation2 + $0x4c] sm:$0xf] %v455
        %537 = vst [vmem:[#allocation2 + $0x70] sm:$0xf] %v469
        %538 = vst [vmem:[#allocation2 + $0x94] sm:$0xf] %v483
        %539 = vst [vmem:[#allocation2 + $0xb8] sm:$0xf] %v497
        %540 = vst [vmem:[#allocation2 + $0xdc] sm:$0xf] %v511
        %541 = vst [vmem:[#allocation2 + $0x100] sm:$0xf] %v525
        %v542 = vld [vmem:[%s376] sm:$0xe]
        %v543 = vld [vmem:[%s376 + $0x4] sm:$0x1]
        %v544 = vld [vmem:[%s376 + $0x8] sm:$0xe]
        %v545 = vld [vmem:[%s376 + $0xc] sm:$0x1]
        %v546 = vld [vmem:[%s376 + $0x10] sm:$0xe]
        %v547 = vld [vmem:[%s376 + $0x14] sm:$0x1]
        %v548 = vld [vmem:[%s376 + $0x18] sm:$0xe]
        %v549 = vld [vmem:[%s376 + $0x1c] sm:$0x1]
        %v550 = vld [vmem:[%s376 + $0x20] sm:$0xe]
        %v551 = vld [vmem:[%s376 + $0x24] sm:$0x1]
        %v552 = vld [vmem:[%s376 + $0x28] sm:$0xe]
        %v553 = vld [vmem:[%s376 + $0x2c] sm:$0x1]
        %v554 = vld [vmem:[%s376 + $0x30] sm:$0xe]
        %v555 = vld [vmem:[%s376 + $0x34] sm:$0x1]
        %v556 = vld [vmem:[%s376 + $0x38] sm:$0xe]
        %v557 = vld [vmem:[%s376 + $0x3c] sm:$0x1]
        %vm574 = vcmask 1042432
        %vm575 = vcmask 1046532
        %vm576 = vmor %vm574, %vm575
        %v577 = vrot.slane %v542, 5
        %v578 = vrot.slane %v577, 4
        %v579 = vrot.slane %v543, 5
        %v580 = vsel %vm576, %v578, %v579
        %v581 = vrot.slane %v544, 5
        %v582 = vrot.slane %v581, 4
        %v583 = vrot.slane %v545, 5
        %v584 = vsel %vm576, %v582, %v583
        %v585 = vrot.slane %v546, 5
        %v586 = vrot.slane %v585, 4
        %v587 = vrot.slane %v547, 5
        %v588 = vsel %vm576, %v586, %v587
        %v589 = vrot.slane %v548, 5
        %v590 = vrot.slane %v589, 4
        %v591 = vrot.slane %v549, 5
        %v592 = vsel %vm576, %v590, %v591
        %v593 = vrot.slane %v550, 5
        %v594 = vrot.slane %v593, 4
        %v595 = vrot.slane %v551, 5
        %v596 = vsel %vm576, %v594, %v595
        %v597 = vrot.slane %v552, 5
        %v598 = vrot.slane %v597, 4
        %v599 = vrot.slane %v553, 5
        %v600 = vsel %vm576, %v598, %v599
        %v601 = vrot.slane %v554, 5
        %v602 = vrot.slane %v601, 4
        %v603 = vrot.slane %v555, 5
        %v604 = vsel %vm576, %v602, %v603
        %v605 = vrot.slane %v556, 5
        %v606 = vrot.slane %v605, 4
        %v607 = vrot.slane %v557, 5
        %v608 = vsel %vm576, %v606, %v607
        %617 = vst [vmem:[#allocation2 + $0x8] sm:$0xf] %v580
        %618 = vst [vmem:[#allocation2 + $0x2c] sm:$0xf] %v584
        %619 = vst [vmem:[#allocation2 + $0x50] sm:$0xf] %v588
        %620 = vst [vmem:[#allocation2 + $0x74] sm:$0xf] %v592
        %621 = vst [vmem:[#allocation2 + $0x98] sm:$0xf] %v596
        %622 = vst [vmem:[#allocation2 + $0xbc] sm:$0xf] %v600
        %623 = vst [vmem:[#allocation2 + $0xe0] sm:$0xf] %v604
        %624 = vst [vmem:[#allocation2 + $0x104] sm:$0xf] %v608
        %s625 = scalar_lea.vmem %s376, 8
        %v626 = vld [vmem:[%s625] sm:$0xf]
        %v627 = vld [vmem:[%s625 + $0x8] sm:$0xf]
        %v628 = vld [vmem:[%s625 + $0x10] sm:$0xf]
        %v629 = vld [vmem:[%s625 + $0x18] sm:$0xf]
        %v630 = vld [vmem:[%s625 + $0x20] sm:$0xf]
        %v631 = vld [vmem:[%s625 + $0x28] sm:$0xf]
        %v632 = vld [vmem:[%s625 + $0x30] sm:$0xf]
        %v633 = vld [vmem:[%s625 + $0x38] sm:$0xf]
        %634 = vst [vmem:[#allocation2 + $0xc] sm:$0xf] %v626
        %635 = vst [vmem:[#allocation2 + $0x30] sm:$0xf] %v627
        %636 = vst [vmem:[#allocation2 + $0x54] sm:$0xf] %v628
        %637 = vst [vmem:[#allocation2 + $0x78] sm:$0xf] %v629
        %638 = vst [vmem:[#allocation2 + $0x9c] sm:$0xf] %v630
        %639 = vst [vmem:[#allocation2 + $0xc0] sm:$0xf] %v631
        %640 = vst [vmem:[#allocation2 + $0xe4] sm:$0xf] %v632
        %641 = vst [vmem:[#allocation2 + $0x108] sm:$0xf] %v633
        %v642 = vld [vmem:[%s625] sm:$0xf]
        %v643 = vld [vmem:[%s625 + $0x4] sm:$0x1]
        %v644 = vld [vmem:[%s625 + $0x8] sm:$0xf]
        %v645 = vld [vmem:[%s625 + $0xc] sm:$0x1]
        %v646 = vld [vmem:[%s625 + $0x10] sm:$0xf]
        %v647 = vld [vmem:[%s625 + $0x14] sm:$0x1]
        %v648 = vld [vmem:[%s625 + $0x18] sm:$0xf]
        %v649 = vld [vmem:[%s625 + $0x1c] sm:$0x1]
        %v650 = vld [vmem:[%s625 + $0x20] sm:$0xf]
        %v651 = vld [vmem:[%s625 + $0x24] sm:$0x1]
        %v652 = vld [vmem:[%s625 + $0x28] sm:$0xf]
        %v653 = vld [vmem:[%s625 + $0x2c] sm:$0x1]
        %v654 = vld [vmem:[%s625 + $0x30] sm:$0xf]
        %v655 = vld [vmem:[%s625 + $0x34] sm:$0x1]
        %v656 = vld [vmem:[%s625 + $0x38] sm:$0xf]
        %v657 = vld [vmem:[%s625 + $0x3c] sm:$0x1]
        %v659 = vshrl.u32 %v642, 16
        %v661 = vrot.slane %v659, 4
        %v662 = vshll.u32 %v642, 16
        %v664 = vrot.slane %v662, 5
        %v665 = vor.u32 %v661, %v664
        %v666 = vrot.slane %v665, 4
        %v668 = vshll.u32 %v643, 16
        %v670 = vrot.slane %v668, 5
        %v671 = vsel %vm413, %v666, %v670
        %v673 = vshrl.u32 %v644, 16
        %v675 = vrot.slane %v673, 4
        %v676 = vshll.u32 %v644, 16
        %v678 = vrot.slane %v676, 5
        %v679 = vor.u32 %v675, %v678
        %v680 = vrot.slane %v679, 4
        %v682 = vshll.u32 %v645, 16
        %v684 = vrot.slane %v682, 5
        %v685 = vsel %vm413, %v680, %v684
        %v687 = vshrl.u32 %v646, 16
        %v689 = vrot.slane %v687, 4
        %v690 = vshll.u32 %v646, 16
        %v692 = vrot.slane %v690, 5
        %v693 = vor.u32 %v689, %v692
        %v694 = vrot.slane %v693, 4
        %v696 = vshll.u32 %v647, 16
        %v698 = vrot.slane %v696, 5
        %v699 = vsel %vm413, %v694, %v698
        %v701 = vshrl.u32 %v648, 16
        %v703 = vrot.slane %v701, 4
        %v704 = vshll.u32 %v648, 16
        %v706 = vrot.slane %v704, 5
        %v707 = vor.u32 %v703, %v706
        %v708 = vrot.slane %v707, 4
        %v710 = vshll.u32 %v649, 16
        %v712 = vrot.slane %v710, 5
        %v713 = vsel %vm413, %v708, %v712
        %v715 = vshrl.u32 %v650, 16
        %v717 = vrot.slane %v715, 4
        %v718 = vshll.u32 %v650, 16
        %v720 = vrot.slane %v718, 5
        %v721 = vor.u32 %v717, %v720
        %v722 = vrot.slane %v721, 4
        %v724 = vshll.u32 %v651, 16
        %v726 = vrot.slane %v724, 5
        %v727 = vsel %vm413, %v722, %v726
        %v729 = vshrl.u32 %v652, 16
        %v731 = vrot.slane %v729, 4
        %v732 = vshll.u32 %v652, 16
        %v734 = vrot.slane %v732, 5
        %v735 = vor.u32 %v731, %v734
        %v736 = vrot.slane %v735, 4
        %v738 = vshll.u32 %v653, 16
        %v740 = vrot.slane %v738, 5
        %v741 = vsel %vm413, %v736, %v740
        %v743 = vshrl.u32 %v654, 16
        %v745 = vrot.slane %v743, 4
        %v746 = vshll.u32 %v654, 16
        %v748 = vrot.slane %v746, 5
        %v749 = vor.u32 %v745, %v748
        %v750 = vrot.slane %v749, 4
        %v752 = vshll.u32 %v655, 16
        %v754 = vrot.slane %v752, 5
        %v755 = vsel %vm413, %v750, %v754
        %v757 = vshrl.u32 %v656, 16
        %v759 = vrot.slane %v757, 4
        %v760 = vshll.u32 %v656, 16
        %v762 = vrot.slane %v760, 5
        %v763 = vor.u32 %v759, %v762
        %v764 = vrot.slane %v763, 4
        %v766 = vshll.u32 %v657, 16
        %v768 = vrot.slane %v766, 5
        %v769 = vsel %vm413, %v764, %v768
        %778 = vst [vmem:[#allocation2 + $0x10] sm:$0xf] %v671
        %779 = vst [vmem:[#allocation2 + $0x34] sm:$0xf] %v685
        %780 = vst [vmem:[#allocation2 + $0x58] sm:$0xf] %v699
        %781 = vst [vmem:[#allocation2 + $0x7c] sm:$0xf] %v713
        %782 = vst [vmem:[#allocation2 + $0xa0] sm:$0xf] %v727
        %783 = vst [vmem:[#allocation2 + $0xc4] sm:$0xf] %v741
        %784 = vst [vmem:[#allocation2 + $0xe8] sm:$0xf] %v755
        %785 = vst [vmem:[#allocation2 + $0x10c] sm:$0xf] %v769
        %v786 = vld [vmem:[%s625] sm:$0xe]
        %v787 = vld [vmem:[%s625 + $0x4] sm:$0x1]
        %v788 = vld [vmem:[%s625 + $0x8] sm:$0xe]
        %v789 = vld [vmem:[%s625 + $0xc] sm:$0x1]
        %v790 = vld [vmem:[%s625 + $0x10] sm:$0xe]
        %v791 = vld [vmem:[%s625 + $0x14] sm:$0x1]
        %v792 = vld [vmem:[%s625 + $0x18] sm:$0xe]
        %v793 = vld [vmem:[%s625 + $0x1c] sm:$0x1]
        %v794 = vld [vmem:[%s625 + $0x20] sm:$0xe]
        %v795 = vld [vmem:[%s625 + $0x24] sm:$0x1]
        %v796 = vld [vmem:[%s625 + $0x28] sm:$0xe]
        %v797 = vld [vmem:[%s625 + $0x2c] sm:$0x1]
        %v798 = vld [vmem:[%s625 + $0x30] sm:$0xe]
        %v799 = vld [vmem:[%s625 + $0x34] sm:$0x1]
        %v800 = vld [vmem:[%s625 + $0x38] sm:$0xe]
        %v801 = vld [vmem:[%s625 + $0x3c] sm:$0x1]
        %v818 = vrot.slane %v786, 5
        %v819 = vrot.slane %v818, 4
        %v820 = vrot.slane %v787, 5
        %v821 = vsel %vm576, %v819, %v820
        %v822 = vrot.slane %v788, 5
        %v823 = vrot.slane %v822, 4
        %v824 = vrot.slane %v789, 5
        %v825 = vsel %vm576, %v823, %v824
        %v826 = vrot.slane %v790, 5
        %v827 = vrot.slane %v826, 4
        %v828 = vrot.slane %v791, 5
        %v829 = vsel %vm576, %v827, %v828
        %v830 = vrot.slane %v792, 5
        %v831 = vrot.slane %v830, 4
        %v832 = vrot.slane %v793, 5
        %v833 = vsel %vm576, %v831, %v832
        %v834 = vrot.slane %v794, 5
        %v835 = vrot.slane %v834, 4
        %v836 = vrot.slane %v795, 5
        %v837 = vsel %vm576, %v835, %v836
        %v838 = vrot.slane %v796, 5
        %v839 = vrot.slane %v838, 4
        %v840 = vrot.slane %v797, 5
        %v841 = vsel %vm576, %v839, %v840
        %v842 = vrot.slane %v798, 5
        %v843 = vrot.slane %v842, 4
        %v844 = vrot.slane %v799, 5
        %v845 = vsel %vm576, %v843, %v844
        %v846 = vrot.slane %v800, 5
        %v847 = vrot.slane %v846, 4
        %v848 = vrot.slane %v801, 5
        %v849 = vsel %vm576, %v847, %v848
        %858 = vst [vmem:[#allocation2 + $0x14] sm:$0xf] %v821
        %859 = vst [vmem:[#allocation2 + $0x38] sm:$0xf] %v825
        %860 = vst [vmem:[#allocation2 + $0x5c] sm:$0xf] %v829
        %861 = vst [vmem:[#allocation2 + $0x80] sm:$0xf] %v833
        %862 = vst [vmem:[#allocation2 + $0xa4] sm:$0xf] %v837
        %863 = vst [vmem:[#allocation2 + $0xc8] sm:$0xf] %v841
        %864 = vst [vmem:[#allocation2 + $0xec] sm:$0xf] %v845
        %865 = vst [vmem:[#allocation2 + $0x110] sm:$0xf] %v849
        %s866 = scalar_lea.vmem %s376, 16
        %v867 = vld [vmem:[%s866] sm:$0xf]
        %v868 = vld [vmem:[%s866 + $0x8] sm:$0xf]
        %v869 = vld [vmem:[%s866 + $0x10] sm:$0xf]
        %v870 = vld [vmem:[%s866 + $0x18] sm:$0xf]
        %v871 = vld [vmem:[%s866 + $0x20] sm:$0xf]
        %v872 = vld [vmem:[%s866 + $0x28] sm:$0xf]
        %v873 = vld [vmem:[%s866 + $0x30] sm:$0xf]
        %v874 = vld [vmem:[%s866 + $0x38] sm:$0xf]
        %875 = vst [vmem:[#allocation2 + $0x18] sm:$0xf] %v867
        %876 = vst [vmem:[#allocation2 + $0x3c] sm:$0xf] %v868
        %877 = vst [vmem:[#allocation2 + $0x60] sm:$0xf] %v869
        %878 = vst [vmem:[#allocation2 + $0x84] sm:$0xf] %v870
        %879 = vst [vmem:[#allocation2 + $0xa8] sm:$0xf] %v871
        %880 = vst [vmem:[#allocation2 + $0xcc] sm:$0xf] %v872
        %881 = vst [vmem:[#allocation2 + $0xf0] sm:$0xf] %v873
        %882 = vst [vmem:[#allocation2 + $0x114] sm:$0xf] %v874
        %v883 = vld [vmem:[%s866] sm:$0xf]
        %v884 = vld [vmem:[%s866 + $0x4] sm:$0x1]
        %v885 = vld [vmem:[%s866 + $0x8] sm:$0xf]
        %v886 = vld [vmem:[%s866 + $0xc] sm:$0x1]
        %v887 = vld [vmem:[%s866 + $0x10] sm:$0xf]
        %v888 = vld [vmem:[%s866 + $0x14] sm:$0x1]
        %v889 = vld [vmem:[%s866 + $0x18] sm:$0xf]
        %v890 = vld [vmem:[%s866 + $0x1c] sm:$0x1]
        %v891 = vld [vmem:[%s866 + $0x20] sm:$0xf]
        %v892 = vld [vmem:[%s866 + $0x24] sm:$0x1]
        %v893 = vld [vmem:[%s866 + $0x28] sm:$0xf]
        %v894 = vld [vmem:[%s866 + $0x2c] sm:$0x1]
        %v895 = vld [vmem:[%s866 + $0x30] sm:$0xf]
        %v896 = vld [vmem:[%s866 + $0x34] sm:$0x1]
        %v897 = vld [vmem:[%s866 + $0x38] sm:$0xf]
        %v898 = vld [vmem:[%s866 + $0x3c] sm:$0x1]
        %v900 = vshrl.u32 %v883, 16
        %v902 = vrot.slane %v900, 4
        %v903 = vshll.u32 %v883, 16
        %v905 = vrot.slane %v903, 5
        %v906 = vor.u32 %v902, %v905
        %v907 = vrot.slane %v906, 4
        %v909 = vshll.u32 %v884, 16
        %v911 = vrot.slane %v909, 5
        %v912 = vsel %vm413, %v907, %v911
        %v914 = vshrl.u32 %v885, 16
        %v916 = vrot.slane %v914, 4
        %v917 = vshll.u32 %v885, 16
        %v919 = vrot.slane %v917, 5
        %v920 = vor.u32 %v916, %v919
        %v921 = vrot.slane %v920, 4
        %v923 = vshll.u32 %v886, 16
        %v925 = vrot.slane %v923, 5
        %v926 = vsel %vm413, %v921, %v925
        %v928 = vshrl.u32 %v887, 16
        %v930 = vrot.slane %v928, 4
        %v931 = vshll.u32 %v887, 16
        %v933 = vrot.slane %v931, 5
        %v934 = vor.u32 %v930, %v933
        %v935 = vrot.slane %v934, 4
        %v937 = vshll.u32 %v888, 16
        %v939 = vrot.slane %v937, 5
        %v940 = vsel %vm413, %v935, %v939
        %v942 = vshrl.u32 %v889, 16
        %v944 = vrot.slane %v942, 4
        %v945 = vshll.u32 %v889, 16
        %v947 = vrot.slane %v945, 5
        %v948 = vor.u32 %v944, %v947
        %v949 = vrot.slane %v948, 4
        %v951 = vshll.u32 %v890, 16
        %v953 = vrot.slane %v951, 5
        %v954 = vsel %vm413, %v949, %v953
        %v956 = vshrl.u32 %v891, 16
        %v958 = vrot.slane %v956, 4
        %v959 = vshll.u32 %v891, 16
        %v961 = vrot.slane %v959, 5
        %v962 = vor.u32 %v958, %v961
        %v963 = vrot.slane %v962, 4
        %v965 = vshll.u32 %v892, 16
        %v967 = vrot.slane %v965, 5
        %v968 = vsel %vm413, %v963, %v967
        %v970 = vshrl.u32 %v893, 16
        %v972 = vrot.slane %v970, 4
        %v973 = vshll.u32 %v893, 16
        %v975 = vrot.slane %v973, 5
        %v976 = vor.u32 %v972, %v975
        %v977 = vrot.slane %v976, 4
        %v979 = vshll.u32 %v894, 16
        %v981 = vrot.slane %v979, 5
        %v982 = vsel %vm413, %v977, %v981
        %v984 = vshrl.u32 %v895, 16
        %v986 = vrot.slane %v984, 4
        %v987 = vshll.u32 %v895, 16
        %v989 = vrot.slane %v987, 5
        %v990 = vor.u32 %v986, %v989
        %v991 = vrot.slane %v990, 4
        %v993 = vshll.u32 %v896, 16
        %v995 = vrot.slane %v993, 5
        %v996 = vsel %vm413, %v991, %v995
        %v998 = vshrl.u32 %v897, 16
        %v1000 = vrot.slane %v998, 4
        %v1001 = vshll.u32 %v897, 16
        %v1003 = vrot.slane %v1001, 5
        %v1004 = vor.u32 %v1000, %v1003
        %v1005 = vrot.slane %v1004, 4
        %v1007 = vshll.u32 %v898, 16
        %v1009 = vrot.slane %v1007, 5
        %v1010 = vsel %vm413, %v1005, %v1009
        %1019 = vst [vmem:[#allocation2 + $0x1c] sm:$0xf] %v912
        %1020 = vst [vmem:[#allocation2 + $0x40] sm:$0xf] %v926
        %1021 = vst [vmem:[#allocation2 + $0x64] sm:$0xf] %v940
        %1022 = vst [vmem:[#allocation2 + $0x88] sm:$0xf] %v954
        %1023 = vst [vmem:[#allocation2 + $0xac] sm:$0xf] %v968
        %1024 = vst [vmem:[#allocation2 + $0xd0] sm:$0xf] %v982
        %1025 = vst [vmem:[#allocation2 + $0xf4] sm:$0xf] %v996
        %1026 = vst [vmem:[#allocation2 + $0x118] sm:$0xf] %v1010
        %v1027 = vld [vmem:[%s866] sm:$0xe]
        %v1028 = vld [vmem:[%s866 + $0x4] sm:$0x1]
        %v1029 = vld [vmem:[%s866 + $0x8] sm:$0xe]
        %v1030 = vld [vmem:[%s866 + $0xc] sm:$0x1]
        %v1031 = vld [vmem:[%s866 + $0x10] sm:$0xe]
        %v1032 = vld [vmem:[%s866 + $0x14] sm:$0x1]
        %v1033 = vld [vmem:[%s866 + $0x18] sm:$0xe]
        %v1034 = vld [vmem:[%s866 + $0x1c] sm:$0x1]
        %v1035 = vld [vmem:[%s866 + $0x20] sm:$0xe]
        %v1036 = vld [vmem:[%s866 + $0x24] sm:$0x1]
        %v1037 = vld [vmem:[%s866 + $0x28] sm:$0xe]
        %v1038 = vld [vmem:[%s866 + $0x2c] sm:$0x1]
        %v1039 = vld [vmem:[%s866 + $0x30] sm:$0xe]
        %v1040 = vld [vmem:[%s866 + $0x34] sm:$0x1]
        %v1041 = vld [vmem:[%s866 + $0x38] sm:$0xe]
        %v1042 = vld [vmem:[%s866 + $0x3c] sm:$0x1]
        %v1059 = vrot.slane %v1027, 5
        %v1060 = vrot.slane %v1059, 4
        %v1061 = vrot.slane %v1028, 5
        %v1062 = vsel %vm576, %v1060, %v1061
        %v1063 = vrot.slane %v1029, 5
        %v1064 = vrot.slane %v1063, 4
        %v1065 = vrot.slane %v1030, 5
        %v1066 = vsel %vm576, %v1064, %v1065
        %v1067 = vrot.slane %v1031, 5
        %v1068 = vrot.slane %v1067, 4
        %v1069 = vrot.slane %v1032, 5
        %v1070 = vsel %vm576, %v1068, %v1069
        %v1071 = vrot.slane %v1033, 5
        %v1072 = vrot.slane %v1071, 4
        %v1073 = vrot.slane %v1034, 5
        %v1074 = vsel %vm576, %v1072, %v1073
        %v1075 = vrot.slane %v1035, 5
        %v1076 = vrot.slane %v1075, 4
        %v1077 = vrot.slane %v1036, 5
        %v1078 = vsel %vm576, %v1076, %v1077
        %v1079 = vrot.slane %v1037, 5
        %v1080 = vrot.slane %v1079, 4
        %v1081 = vrot.slane %v1038, 5
        %v1082 = vsel %vm576, %v1080, %v1081
        %v1083 = vrot.slane %v1039, 5
        %v1084 = vrot.slane %v1083, 4
        %v1085 = vrot.slane %v1040, 5
        %v1086 = vsel %vm576, %v1084, %v1085
        %v1087 = vrot.slane %v1041, 5
        %v1088 = vrot.slane %v1087, 4
        %v1089 = vrot.slane %v1042, 5
        %v1090 = vsel %vm576, %v1088, %v1089
        %1099 = vst [vmem:[#allocation2 + $0x20] sm:$0xf] %v1062
        %1100 = vst [vmem:[#allocation2 + $0x44] sm:$0xf] %v1066
        %1101 = vst [vmem:[#allocation2 + $0x68] sm:$0xf] %v1070
        %1102 = vst [vmem:[#allocation2 + $0x8c] sm:$0xf] %v1074
        %1103 = vst [vmem:[#allocation2 + $0xb0] sm:$0xf] %v1078
        %1104 = vst [vmem:[#allocation2 + $0xd4] sm:$0xf] %v1082
        %1105 = vst [vmem:[#allocation2 + $0xf8] sm:$0xf] %v1086
        %1106 = vst [vmem:[#allocation2 + $0x11c] sm:$0xf] %v1090
        %s1107 = scalar_lea.vmem %s376, 160
        %v1108 = vld [vmem:[%s1107] sm:$0xf]
        %v1109 = vld [vmem:[%s1107 + $0x8] sm:$0xf]
        %v1110 = vld [vmem:[%s1107 + $0x10] sm:$0xf]
        %v1111 = vld [vmem:[%s1107 + $0x18] sm:$0xf]
        %v1112 = vld [vmem:[%s1107 + $0x20] sm:$0xf]
        %v1113 = vld [vmem:[%s1107 + $0x28] sm:$0xf]
        %v1114 = vld [vmem:[%s1107 + $0x30] sm:$0xf]
        %v1115 = vld [vmem:[%s1107 + $0x38] sm:$0xf]
        %1116 = vst [vmem:[#allocation2 + $0x120] sm:$0xf] %v1108
        %1117 = vst [vmem:[#allocation2 + $0x144] sm:$0xf] %v1109
        %1118 = vst [vmem:[#allocation2 + $0x168] sm:$0xf] %v1110
        %1119 = vst [vmem:[#allocation2 + $0x18c] sm:$0xf] %v1111
        %1120 = vst [vmem:[#allocation2 + $0x1b0] sm:$0xf] %v1112
        %1121 = vst [vmem:[#allocation2 + $0x1d4] sm:$0xf] %v1113
        %1122 = vst [vmem:[#allocation2 + $0x1f8] sm:$0xf] %v1114
        %1123 = vst [vmem:[#allocation2 + $0x21c] sm:$0xf] %v1115
        %v1124 = vld [vmem:[%s1107] sm:$0xf]
        %v1125 = vld [vmem:[%s1107 + $0x4] sm:$0x1]
        %v1126 = vld [vmem:[%s1107 + $0x8] sm:$0xf]
        %v1127 = vld [vmem:[%s1107 + $0xc] sm:$0x1]
        %v1128 = vld [vmem:[%s1107 + $0x10] sm:$0xf]
        %v1129 = vld [vmem:[%s1107 + $0x14] sm:$0x1]
        %v1130 = vld [vmem:[%s1107 + $0x18] sm:$0xf]
        %v1131 = vld [vmem:[%s1107 + $0x1c] sm:$0x1]
        %v1132 = vld [vmem:[%s1107 + $0x20] sm:$0xf]
        %v1133 = vld [vmem:[%s1107 + $0x24] sm:$0x1]
        %v1134 = vld [vmem:[%s1107 + $0x28] sm:$0xf]
        %v1135 = vld [vmem:[%s1107 + $0x2c] sm:$0x1]
        %v1136 = vld [vmem:[%s1107 + $0x30] sm:$0xf]
        %v1137 = vld [vmem:[%s1107 + $0x34] sm:$0x1]
        %v1138 = vld [vmem:[%s1107 + $0x38] sm:$0xf]
        %v1139 = vld [vmem:[%s1107 + $0x3c] sm:$0x1]
        %v1141 = vshrl.u32 %v1124, 16
        %v1143 = vrot.slane %v1141, 4
        %v1144 = vshll.u32 %v1124, 16
        %v1146 = vrot.slane %v1144, 5
        %v1147 = vor.u32 %v1143, %v1146
        %v1148 = vrot.slane %v1147, 4
        %v1150 = vshll.u32 %v1125, 16
        %v1152 = vrot.slane %v1150, 5
        %v1153 = vsel %vm413, %v1148, %v1152
        %v1155 = vshrl.u32 %v1126, 16
        %v1157 = vrot.slane %v1155, 4
        %v1158 = vshll.u32 %v1126, 16
        %v1160 = vrot.slane %v1158, 5
        %v1161 = vor.u32 %v1157, %v1160
        %v1162 = vrot.slane %v1161, 4
        %v1164 = vshll.u32 %v1127, 16
        %v1166 = vrot.slane %v1164, 5
        %v1167 = vsel %vm413, %v1162, %v1166
        %v1169 = vshrl.u32 %v1128, 16
        %v1171 = vrot.slane %v1169, 4
        %v1172 = vshll.u32 %v1128, 16
        %v1174 = vrot.slane %v1172, 5
        %v1175 = vor.u32 %v1171, %v1174
        %v1176 = vrot.slane %v1175, 4
        %v1178 = vshll.u32 %v1129, 16
        %v1180 = vrot.slane %v1178, 5
        %v1181 = vsel %vm413, %v1176, %v1180
        %v1183 = vshrl.u32 %v1130, 16
        %v1185 = vrot.slane %v1183, 4
        %v1186 = vshll.u32 %v1130, 16
        %v1188 = vrot.slane %v1186, 5
        %v1189 = vor.u32 %v1185, %v1188
        %v1190 = vrot.slane %v1189, 4
        %v1192 = vshll.u32 %v1131, 16
        %v1194 = vrot.slane %v1192, 5
        %v1195 = vsel %vm413, %v1190, %v1194
        %v1197 = vshrl.u32 %v1132, 16
        %v1199 = vrot.slane %v1197, 4
        %v1200 = vshll.u32 %v1132, 16
        %v1202 = vrot.slane %v1200, 5
        %v1203 = vor.u32 %v1199, %v1202
        %v1204 = vrot.slane %v1203, 4
        %v1206 = vshll.u32 %v1133, 16
        %v1208 = vrot.slane %v1206, 5
        %v1209 = vsel %vm413, %v1204, %v1208
        %v1211 = vshrl.u32 %v1134, 16
        %v1213 = vrot.slane %v1211, 4
        %v1214 = vshll.u32 %v1134, 16
        %v1216 = vrot.slane %v1214, 5
        %v1217 = vor.u32 %v1213, %v1216
        %v1218 = vrot.slane %v1217, 4
        %v1220 = vshll.u32 %v1135, 16
        %v1222 = vrot.slane %v1220, 5
        %v1223 = vsel %vm413, %v1218, %v1222
        %v1225 = vshrl.u32 %v1136, 16
        %v1227 = vrot.slane %v1225, 4
        %v1228 = vshll.u32 %v1136, 16
        %v1230 = vrot.slane %v1228, 5
        %v1231 = vor.u32 %v1227, %v1230
        %v1232 = vrot.slane %v1231, 4
        %v1234 = vshll.u32 %v1137, 16
        %v1236 = vrot.slane %v1234, 5
        %v1237 = vsel %vm413, %v1232, %v1236
        %v1239 = vshrl.u32 %v1138, 16
        %v1241 = vrot.slane %v1239, 4
        %v1242 = vshll.u32 %v1138, 16
        %v1244 = vrot.slane %v1242, 5
        %v1245 = vor.u32 %v1241, %v1244
        %v1246 = vrot.slane %v1245, 4
        %v1248 = vshll.u32 %v1139, 16
        %v1250 = vrot.slane %v1248, 5
        %v1251 = vsel %vm413, %v1246, %v1250
        %1260 = vst [vmem:[#allocation2 + $0x124] sm:$0xf] %v1153
        %1261 = vst [vmem:[#allocation2 + $0x148] sm:$0xf] %v1167
        %1262 = vst [vmem:[#allocation2 + $0x16c] sm:$0xf] %v1181
        %1263 = vst [vmem:[#allocation2 + $0x190] sm:$0xf] %v1195
        %1264 = vst [vmem:[#allocation2 + $0x1b4] sm:$0xf] %v1209
        %1265 = vst [vmem:[#allocation2 + $0x1d8] sm:$0xf] %v1223
        %1266 = vst [vmem:[#allocation2 + $0x1fc] sm:$0xf] %v1237
        %1267 = vst [vmem:[#allocation2 + $0x220] sm:$0xf] %v1251
        %v1268 = vld [vmem:[%s1107] sm:$0xe]
        %v1269 = vld [vmem:[%s1107 + $0x4] sm:$0x1]
        %v1270 = vld [vmem:[%s1107 + $0x8] sm:$0xe]
        %v1271 = vld [vmem:[%s1107 + $0xc] sm:$0x1]
        %v1272 = vld [vmem:[%s1107 + $0x10] sm:$0xe]
        %v1273 = vld [vmem:[%s1107 + $0x14] sm:$0x1]
        %v1274 = vld [vmem:[%s1107 + $0x18] sm:$0xe]
        %v1275 = vld [vmem:[%s1107 + $0x1c] sm:$0x1]
        %v1276 = vld [vmem:[%s1107 + $0x20] sm:$0xe]
        %v1277 = vld [vmem:[%s1107 + $0x24] sm:$0x1]
        %v1278 = vld [vmem:[%s1107 + $0x28] sm:$0xe]
        %v1279 = vld [vmem:[%s1107 + $0x2c] sm:$0x1]
        %v1280 = vld [vmem:[%s1107 + $0x30] sm:$0xe]
        %v1281 = vld [vmem:[%s1107 + $0x34] sm:$0x1]
        %v1282 = vld [vmem:[%s1107 + $0x38] sm:$0xe]
        %v1283 = vld [vmem:[%s1107 + $0x3c] sm:$0x1]
        %v1300 = vrot.slane %v1268, 5
        %v1301 = vrot.slane %v1300, 4
        %v1302 = vrot.slane %v1269, 5
        %v1303 = vsel %vm576, %v1301, %v1302
        %v1304 = vrot.slane %v1270, 5
        %v1305 = vrot.slane %v1304, 4
        %v1306 = vrot.slane %v1271, 5
        %v1307 = vsel %vm576, %v1305, %v1306
        %v1308 = vrot.slane %v1272, 5
        %v1309 = vrot.slane %v1308, 4
        %v1310 = vrot.slane %v1273, 5
        %v1311 = vsel %vm576, %v1309, %v1310
        %v1312 = vrot.slane %v1274, 5
        %v1313 = vrot.slane %v1312, 4
        %v1314 = vrot.slane %v1275, 5
        %v1315 = vsel %vm576, %v1313, %v1314
        %v1316 = vrot.slane %v1276, 5
        %v1317 = vrot.slane %v1316, 4
        %v1318 = vrot.slane %v1277, 5
        %v1319 = vsel %vm576, %v1317, %v1318
        %v1320 = vrot.slane %v1278, 5
        %v1321 = vrot.slane %v1320, 4
        %v1322 = vrot.slane %v1279, 5
        %v1323 = vsel %vm576, %v1321, %v1322
        %v1324 = vrot.slane %v1280, 5
        %v1325 = vrot.slane %v1324, 4
        %v1326 = vrot.slane %v1281, 5
        %v1327 = vsel %vm576, %v1325, %v1326
        %v1328 = vrot.slane %v1282, 5
        %v1329 = vrot.slane %v1328, 4
        %v1330 = vrot.slane %v1283, 5
        %v1331 = vsel %vm576, %v1329, %v1330
        %1340 = vst [vmem:[#allocation2 + $0x128] sm:$0xf] %v1303
        %1341 = vst [vmem:[#allocation2 + $0x14c] sm:$0xf] %v1307
        %1342 = vst [vmem:[#allocation2 + $0x170] sm:$0xf] %v1311
        %1343 = vst [vmem:[#allocation2 + $0x194] sm:$0xf] %v1315
        %1344 = vst [vmem:[#allocation2 + $0x1b8] sm:$0xf] %v1319
        %1345 = vst [vmem:[#allocation2 + $0x1dc] sm:$0xf] %v1323
        %1346 = vst [vmem:[#allocation2 + $0x200] sm:$0xf] %v1327
        %1347 = vst [vmem:[#allocation2 + $0x224] sm:$0xf] %v1331
        %s1348 = scalar_lea.vmem %s376, 168
        %v1349 = vld [vmem:[%s1348] sm:$0xf]
        %v1350 = vld [vmem:[%s1348 + $0x8] sm:$0xf]
        %v1351 = vld [vmem:[%s1348 + $0x10] sm:$0xf]
        %v1352 = vld [vmem:[%s1348 + $0x18] sm:$0xf]
        %v1353 = vld [vmem:[%s1348 + $0x20] sm:$0xf]
        %v1354 = vld [vmem:[%s1348 + $0x28] sm:$0xf]
        %v1355 = vld [vmem:[%s1348 + $0x30] sm:$0xf]
        %v1356 = vld [vmem:[%s1348 + $0x38] sm:$0xf]
        %1357 = vst [vmem:[#allocation2 + $0x12c] sm:$0xf] %v1349
        %1358 = vst [vmem:[#allocation2 + $0x150] sm:$0xf] %v1350
        %1359 = vst [vmem:[#allocation2 + $0x174] sm:$0xf] %v1351
        %1360 = vst [vmem:[#allocation2 + $0x198] sm:$0xf] %v1352
        %1361 = vst [vmem:[#allocation2 + $0x1bc] sm:$0xf] %v1353
        %1362 = vst [vmem:[#allocation2 + $0x1e0] sm:$0xf] %v1354
        %1363 = vst [vmem:[#allocation2 + $0x204] sm:$0xf] %v1355
        %1364 = vst [vmem:[#allocation2 + $0x228] sm:$0xf] %v1356
        %v1365 = vld [vmem:[%s1348] sm:$0xf]
        %v1366 = vld [vmem:[%s1348 + $0x4] sm:$0x1]
        %v1367 = vld [vmem:[%s1348 + $0x8] sm:$0xf]
        %v1368 = vld [vmem:[%s1348 + $0xc] sm:$0x1]
        %v1369 = vld [vmem:[%s1348 + $0x10] sm:$0xf]
        %v1370 = vld [vmem:[%s1348 + $0x14] sm:$0x1]
        %v1371 = vld [vmem:[%s1348 + $0x18] sm:$0xf]
        %v1372 = vld [vmem:[%s1348 + $0x1c] sm:$0x1]
        %v1373 = vld [vmem:[%s1348 + $0x20] sm:$0xf]
        %v1374 = vld [vmem:[%s1348 + $0x24] sm:$0x1]
        %v1375 = vld [vmem:[%s1348 + $0x28] sm:$0xf]
        %v1376 = vld [vmem:[%s1348 + $0x2c] sm:$0x1]
        %v1377 = vld [vmem:[%s1348 + $0x30] sm:$0xf]
        %v1378 = vld [vmem:[%s1348 + $0x34] sm:$0x1]
        %v1379 = vld [vmem:[%s1348 + $0x38] sm:$0xf]
        %v1380 = vld [vmem:[%s1348 + $0x3c] sm:$0x1]
        %v1382 = vshrl.u32 %v1365, 16
        %v1384 = vrot.slane %v1382, 4
        %v1385 = vshll.u32 %v1365, 16
        %v1387 = vrot.slane %v1385, 5
        %v1388 = vor.u32 %v1384, %v1387
        %v1389 = vrot.slane %v1388, 4
        %v1391 = vshll.u32 %v1366, 16
        %v1393 = vrot.slane %v1391, 5
        %v1394 = vsel %vm413, %v1389, %v1393
        %v1396 = vshrl.u32 %v1367, 16
        %v1398 = vrot.slane %v1396, 4
        %v1399 = vshll.u32 %v1367, 16
        %v1401 = vrot.slane %v1399, 5
        %v1402 = vor.u32 %v1398, %v1401
        %v1403 = vrot.slane %v1402, 4
        %v1405 = vshll.u32 %v1368, 16
        %v1407 = vrot.slane %v1405, 5
        %v1408 = vsel %vm413, %v1403, %v1407
        %v1410 = vshrl.u32 %v1369, 16
        %v1412 = vrot.slane %v1410, 4
        %v1413 = vshll.u32 %v1369, 16
        %v1415 = vrot.slane %v1413, 5
        %v1416 = vor.u32 %v1412, %v1415
        %v1417 = vrot.slane %v1416, 4
        %v1419 = vshll.u32 %v1370, 16
        %v1421 = vrot.slane %v1419, 5
        %v1422 = vsel %vm413, %v1417, %v1421
        %v1424 = vshrl.u32 %v1371, 16
        %v1426 = vrot.slane %v1424, 4
        %v1427 = vshll.u32 %v1371, 16
        %v1429 = vrot.slane %v1427, 5
        %v1430 = vor.u32 %v1426, %v1429
        %v1431 = vrot.slane %v1430, 4
        %v1433 = vshll.u32 %v1372, 16
        %v1435 = vrot.slane %v1433, 5
        %v1436 = vsel %vm413, %v1431, %v1435
        %v1438 = vshrl.u32 %v1373, 16
        %v1440 = vrot.slane %v1438, 4
        %v1441 = vshll.u32 %v1373, 16
        %v1443 = vrot.slane %v1441, 5
        %v1444 = vor.u32 %v1440, %v1443
        %v1445 = vrot.slane %v1444, 4
        %v1447 = vshll.u32 %v1374, 16
        %v1449 = vrot.slane %v1447, 5
        %v1450 = vsel %vm413, %v1445, %v1449
        %v1452 = vshrl.u32 %v1375, 16
        %v1454 = vrot.slane %v1452, 4
        %v1455 = vshll.u32 %v1375, 16
        %v1457 = vrot.slane %v1455, 5
        %v1458 = vor.u32 %v1454, %v1457
        %v1459 = vrot.slane %v1458, 4
        %v1461 = vshll.u32 %v1376, 16
        %v1463 = vrot.slane %v1461, 5
        %v1464 = vsel %vm413, %v1459, %v1463
        %v1466 = vshrl.u32 %v1377, 16
        %v1468 = vrot.slane %v1466, 4
        %v1469 = vshll.u32 %v1377, 16
        %v1471 = vrot.slane %v1469, 5
        %v1472 = vor.u32 %v1468, %v1471
        %v1473 = vrot.slane %v1472, 4
        %v1475 = vshll.u32 %v1378, 16
        %v1477 = vrot.slane %v1475, 5
        %v1478 = vsel %vm413, %v1473, %v1477
        %v1480 = vshrl.u32 %v1379, 16
        %v1482 = vrot.slane %v1480, 4
        %v1483 = vshll.u32 %v1379, 16
        %v1485 = vrot.slane %v1483, 5
        %v1486 = vor.u32 %v1482, %v1485
        %v1487 = vrot.slane %v1486, 4
        %v1489 = vshll.u32 %v1380, 16
        %v1491 = vrot.slane %v1489, 5
        %v1492 = vsel %vm413, %v1487, %v1491
        %1501 = vst [vmem:[#allocation2 + $0x130] sm:$0xf] %v1394
        %1502 = vst [vmem:[#allocation2 + $0x154] sm:$0xf] %v1408
        %1503 = vst [vmem:[#allocation2 + $0x178] sm:$0xf] %v1422
        %1504 = vst [vmem:[#allocation2 + $0x19c] sm:$0xf] %v1436
        %1505 = vst [vmem:[#allocation2 + $0x1c0] sm:$0xf] %v1450
        %1506 = vst [vmem:[#allocation2 + $0x1e4] sm:$0xf] %v1464
        %1507 = vst [vmem:[#allocation2 + $0x208] sm:$0xf] %v1478
        %1508 = vst [vmem:[#allocation2 + $0x22c] sm:$0xf] %v1492
        %v1509 = vld [vmem:[%s1348] sm:$0xe]
        %v1510 = vld [vmem:[%s1348 + $0x4] sm:$0x1]
        %v1511 = vld [vmem:[%s1348 + $0x8] sm:$0xe]
        %v1512 = vld [vmem:[%s1348 + $0xc] sm:$0x1]
        %v1513 = vld [vmem:[%s1348 + $0x10] sm:$0xe]
        %v1514 = vld [vmem:[%s1348 + $0x14] sm:$0x1]
        %v1515 = vld [vmem:[%s1348 + $0x18] sm:$0xe]
        %v1516 = vld [vmem:[%s1348 + $0x1c] sm:$0x1]
        %v1517 = vld [vmem:[%s1348 + $0x20] sm:$0xe]
        %v1518 = vld [vmem:[%s1348 + $0x24] sm:$0x1]
        %v1519 = vld [vmem:[%s1348 + $0x28] sm:$0xe]
        %v1520 = vld [vmem:[%s1348 + $0x2c] sm:$0x1]
        %v1521 = vld [vmem:[%s1348 + $0x30] sm:$0xe]
        %v1522 = vld [vmem:[%s1348 + $0x34] sm:$0x1]
        %v1523 = vld [vmem:[%s1348 + $0x38] sm:$0xe]
        %v1524 = vld [vmem:[%s1348 + $0x3c] sm:$0x1]
        %v1541 = vrot.slane %v1509, 5
        %v1542 = vrot.slane %v1541, 4
        %v1543 = vrot.slane %v1510, 5
        %v1544 = vsel %vm576, %v1542, %v1543
        %v1545 = vrot.slane %v1511, 5
        %v1546 = vrot.slane %v1545, 4
        %v1547 = vrot.slane %v1512, 5
        %v1548 = vsel %vm576, %v1546, %v1547
        %v1549 = vrot.slane %v1513, 5
        %v1550 = vrot.slane %v1549, 4
        %v1551 = vrot.slane %v1514, 5
        %v1552 = vsel %vm576, %v1550, %v1551
        %v1553 = vrot.slane %v1515, 5
        %v1554 = vrot.slane %v1553, 4
        %v1555 = vrot.slane %v1516, 5
        %v1556 = vsel %vm576, %v1554, %v1555
        %v1557 = vrot.slane %v1517, 5
        %v1558 = vrot.slane %v1557, 4
        %v1559 = vrot.slane %v1518, 5
        %v1560 = vsel %vm576, %v1558, %v1559
        %v1561 = vrot.slane %v1519, 5
        %v1562 = vrot.slane %v1561, 4
        %v1563 = vrot.slane %v1520, 5
        %v1564 = vsel %vm576, %v1562, %v1563
        %v1565 = vrot.slane %v1521, 5
        %v1566 = vrot.slane %v1565, 4
        %v1567 = vrot.slane %v1522, 5
        %v1568 = vsel %vm576, %v1566, %v1567
        %v1569 = vrot.slane %v1523, 5
        %v1570 = vrot.slane %v1569, 4
        %v1571 = vrot.slane %v1524, 5
        %v1572 = vsel %vm576, %v1570, %v1571
        %1581 = vst [vmem:[#allocation2 + $0x134] sm:$0xf] %v1544
        %1582 = vst [vmem:[#allocation2 + $0x158] sm:$0xf] %v1548
        %1583 = vst [vmem:[#allocation2 + $0x17c] sm:$0xf] %v1552
        %1584 = vst [vmem:[#allocation2 + $0x1a0] sm:$0xf] %v1556
        %1585 = vst [vmem:[#allocation2 + $0x1c4] sm:$0xf] %v1560
        %1586 = vst [vmem:[#allocation2 + $0x1e8] sm:$0xf] %v1564
        %1587 = vst [vmem:[#allocation2 + $0x20c] sm:$0xf] %v1568
        %1588 = vst [vmem:[#allocation2 + $0x230] sm:$0xf] %v1572
        %s1589 = scalar_lea.vmem %s376, 176
        %v1590 = vld [vmem:[%s1589] sm:$0xf]
        %v1591 = vld [vmem:[%s1589 + $0x8] sm:$0xf]
        %v1592 = vld [vmem:[%s1589 + $0x10] sm:$0xf]
        %v1593 = vld [vmem:[%s1589 + $0x18] sm:$0xf]
        %v1594 = vld [vmem:[%s1589 + $0x20] sm:$0xf]
        %v1595 = vld [vmem:[%s1589 + $0x28] sm:$0xf]
        %v1596 = vld [vmem:[%s1589 + $0x30] sm:$0xf]
        %v1597 = vld [vmem:[%s1589 + $0x38] sm:$0xf]
        %1598 = vst [vmem:[#allocation2 + $0x138] sm:$0xf] %v1590
        %1599 = vst [vmem:[#allocation2 + $0x15c] sm:$0xf] %v1591
        %1600 = vst [vmem:[#allocation2 + $0x180] sm:$0xf] %v1592
        %1601 = vst [vmem:[#allocation2 + $0x1a4] sm:$0xf] %v1593
        %1602 = vst [vmem:[#allocation2 + $0x1c8] sm:$0xf] %v1594
        %1603 = vst [vmem:[#allocation2 + $0x1ec] sm:$0xf] %v1595
        %1604 = vst [vmem:[#allocation2 + $0x210] sm:$0xf] %v1596
        %1605 = vst [vmem:[#allocation2 + $0x234] sm:$0xf] %v1597
        %v1606 = vld [vmem:[%s1589] sm:$0xf]
        %v1607 = vld [vmem:[%s1589 + $0x4] sm:$0x1]
        %v1608 = vld [vmem:[%s1589 + $0x8] sm:$0xf]
        %v1609 = vld [vmem:[%s1589 + $0xc] sm:$0x1]
        %v1610 = vld [vmem:[%s1589 + $0x10] sm:$0xf]
        %v1611 = vld [vmem:[%s1589 + $0x14] sm:$0x1]
        %v1612 = vld [vmem:[%s1589 + $0x18] sm:$0xf]
        %v1613 = vld [vmem:[%s1589 + $0x1c] sm:$0x1]
        %v1614 = vld [vmem:[%s1589 + $0x20] sm:$0xf]
        %v1615 = vld [vmem:[%s1589 + $0x24] sm:$0x1]
        %v1616 = vld [vmem:[%s1589 + $0x28] sm:$0xf]
        %v1617 = vld [vmem:[%s1589 + $0x2c] sm:$0x1]
        %v1618 = vld [vmem:[%s1589 + $0x30] sm:$0xf]
        %v1619 = vld [vmem:[%s1589 + $0x34] sm:$0x1]
        %v1620 = vld [vmem:[%s1589 + $0x38] sm:$0xf]
        %v1621 = vld [vmem:[%s1589 + $0x3c] sm:$0x1]
        %v1623 = vshrl.u32 %v1606, 16
        %v1625 = vrot.slane %v1623, 4
        %v1626 = vshll.u32 %v1606, 16
        %v1628 = vrot.slane %v1626, 5
        %v1629 = vor.u32 %v1625, %v1628
        %v1630 = vrot.slane %v1629, 4
        %v1632 = vshll.u32 %v1607, 16
        %v1634 = vrot.slane %v1632, 5
        %v1635 = vsel %vm413, %v1630, %v1634
        %v1637 = vshrl.u32 %v1608, 16
        %v1639 = vrot.slane %v1637, 4
        %v1640 = vshll.u32 %v1608, 16
        %v1642 = vrot.slane %v1640, 5
        %v1643 = vor.u32 %v1639, %v1642
        %v1644 = vrot.slane %v1643, 4
        %v1646 = vshll.u32 %v1609, 16
        %v1648 = vrot.slane %v1646, 5
        %v1649 = vsel %vm413, %v1644, %v1648
        %v1651 = vshrl.u32 %v1610, 16
        %v1653 = vrot.slane %v1651, 4
        %v1654 = vshll.u32 %v1610, 16
        %v1656 = vrot.slane %v1654, 5
        %v1657 = vor.u32 %v1653, %v1656
        %v1658 = vrot.slane %v1657, 4
        %v1660 = vshll.u32 %v1611, 16
        %v1662 = vrot.slane %v1660, 5
        %v1663 = vsel %vm413, %v1658, %v1662
        %v1665 = vshrl.u32 %v1612, 16
        %v1667 = vrot.slane %v1665, 4
        %v1668 = vshll.u32 %v1612, 16
        %v1670 = vrot.slane %v1668, 5
        %v1671 = vor.u32 %v1667, %v1670
        %v1672 = vrot.slane %v1671, 4
        %v1674 = vshll.u32 %v1613, 16
        %v1676 = vrot.slane %v1674, 5
        %v1677 = vsel %vm413, %v1672, %v1676
        %v1679 = vshrl.u32 %v1614, 16
        %v1681 = vrot.slane %v1679, 4
        %v1682 = vshll.u32 %v1614, 16
        %v1684 = vrot.slane %v1682, 5
        %v1685 = vor.u32 %v1681, %v1684
        %v1686 = vrot.slane %v1685, 4
        %v1688 = vshll.u32 %v1615, 16
        %v1690 = vrot.slane %v1688, 5
        %v1691 = vsel %vm413, %v1686, %v1690
        %v1693 = vshrl.u32 %v1616, 16
        %v1695 = vrot.slane %v1693, 4
        %v1696 = vshll.u32 %v1616, 16
        %v1698 = vrot.slane %v1696, 5
        %v1699 = vor.u32 %v1695, %v1698
        %v1700 = vrot.slane %v1699, 4
        %v1702 = vshll.u32 %v1617, 16
        %v1704 = vrot.slane %v1702, 5
        %v1705 = vsel %vm413, %v1700, %v1704
        %v1707 = vshrl.u32 %v1618, 16
        %v1709 = vrot.slane %v1707, 4
        %v1710 = vshll.u32 %v1618, 16
        %v1712 = vrot.slane %v1710, 5
        %v1713 = vor.u32 %v1709, %v1712
        %v1714 = vrot.slane %v1713, 4
        %v1716 = vshll.u32 %v1619, 16
        %v1718 = vrot.slane %v1716, 5
        %v1719 = vsel %vm413, %v1714, %v1718
        %v1721 = vshrl.u32 %v1620, 16
        %v1723 = vrot.slane %v1721, 4
        %v1724 = vshll.u32 %v1620, 16
        %v1726 = vrot.slane %v1724, 5
        %v1727 = vor.u32 %v1723, %v1726
        %v1728 = vrot.slane %v1727, 4
        %v1730 = vshll.u32 %v1621, 16
        %v1732 = vrot.slane %v1730, 5
        %v1733 = vsel %vm413, %v1728, %v1732
        %1742 = vst [vmem:[#allocation2 + $0x13c] sm:$0xf] %v1635
        %1743 = vst [vmem:[#allocation2 + $0x160] sm:$0xf] %v1649
        %1744 = vst [vmem:[#allocation2 + $0x184] sm:$0xf] %v1663
        %1745 = vst [vmem:[#allocation2 + $0x1a8] sm:$0xf] %v1677
        %1746 = vst [vmem:[#allocation2 + $0x1cc] sm:$0xf] %v1691
        %1747 = vst [vmem:[#allocation2 + $0x1f0] sm:$0xf] %v1705
        %1748 = vst [vmem:[#allocation2 + $0x214] sm:$0xf] %v1719
        %1749 = vst [vmem:[#allocation2 + $0x238] sm:$0xf] %v1733
        %v1750 = vld [vmem:[%s1589] sm:$0xe]
        %v1751 = vld [vmem:[%s1589 + $0x4] sm:$0x1]
        %v1752 = vld [vmem:[%s1589 + $0x8] sm:$0xe]
        %v1753 = vld [vmem:[%s1589 + $0xc] sm:$0x1]
        %v1754 = vld [vmem:[%s1589 + $0x10] sm:$0xe]
        %v1755 = vld [vmem:[%s1589 + $0x14] sm:$0x1]
        %v1756 = vld [vmem:[%s1589 + $0x18] sm:$0xe]
        %v1757 = vld [vmem:[%s1589 + $0x1c] sm:$0x1]
        %v1758 = vld [vmem:[%s1589 + $0x20] sm:$0xe]
        %v1759 = vld [vmem:[%s1589 + $0x24] sm:$0x1]
        %v1760 = vld [vmem:[%s1589 + $0x28] sm:$0xe]
        %v1761 = vld [vmem:[%s1589 + $0x2c] sm:$0x1]
        %v1762 = vld [vmem:[%s1589 + $0x30] sm:$0xe]
        %v1763 = vld [vmem:[%s1589 + $0x34] sm:$0x1]
        %v1764 = vld [vmem:[%s1589 + $0x38] sm:$0xe]
        %v1765 = vld [vmem:[%s1589 + $0x3c] sm:$0x1]
        %v1782 = vrot.slane %v1750, 5
        %v1783 = vrot.slane %v1782, 4
        %v1784 = vrot.slane %v1751, 5
        %v1785 = vsel %vm576, %v1783, %v1784
        %v1786 = vrot.slane %v1752, 5
        %v1787 = vrot.slane %v1786, 4
        %v1788 = vrot.slane %v1753, 5
        %v1789 = vsel %vm576, %v1787, %v1788
        %v1790 = vrot.slane %v1754, 5
        %v1791 = vrot.slane %v1790, 4
        %v1792 = vrot.slane %v1755, 5
        %v1793 = vsel %vm576, %v1791, %v1792
        %v1794 = vrot.slane %v1756, 5
        %v1795 = vrot.slane %v1794, 4
        %v1796 = vrot.slane %v1757, 5
        %v1797 = vsel %vm576, %v1795, %v1796
        %v1798 = vrot.slane %v1758, 5
        %v1799 = vrot.slane %v1798, 4
        %v1800 = vrot.slane %v1759, 5
        %v1801 = vsel %vm576, %v1799, %v1800
        %v1802 = vrot.slane %v1760, 5
        %v1803 = vrot.slane %v1802, 4
        %v1804 = vrot.slane %v1761, 5
        %v1805 = vsel %vm576, %v1803, %v1804
        %v1806 = vrot.slane %v1762, 5
        %v1807 = vrot.slane %v1806, 4
        %v1808 = vrot.slane %v1763, 5
        %v1809 = vsel %vm576, %v1807, %v1808
        %v1810 = vrot.slane %v1764, 5
        %v1811 = vrot.slane %v1810, 4
        %v1812 = vrot.slane %v1765, 5
        %v1813 = vsel %vm576, %v1811, %v1812
        %1822 = vst [vmem:[#allocation2 + $0x140] sm:$0xf] %v1785
        %1823 = vst [vmem:[#allocation2 + $0x164] sm:$0xf] %v1789
        %1824 = vst [vmem:[#allocation2 + $0x188] sm:$0xf] %v1793
        %1825 = vst [vmem:[#allocation2 + $0x1ac] sm:$0xf] %v1797
        %1826 = vst [vmem:[#allocation2 + $0x1d0] sm:$0xf] %v1801
        %1827 = vst [vmem:[#allocation2 + $0x1f4] sm:$0xf] %v1805
        %1828 = vst [vmem:[#allocation2 + $0x218] sm:$0xf] %v1809
        %1829 = vst [vmem:[#allocation2 + $0x23c] sm:$0xf] %v1813
        %v1830 = vld [vmem:[#allocation2] sm:$0xff]
        %v1831 = vld [vmem:[#allocation2 + $0x8] sm:$0xff]
        %v1832 = vld [vmem:[#allocation2 + $0x10] sm:$0xff]
        %v1833 = vld [vmem:[#allocation2 + $0x18] sm:$0xff]
        %v1834 = vld [vmem:[#allocation2 + $0x20] sm:$0xf]
        %v1835 = vld [vmem:[#allocation2 + $0x24] sm:$0xff]
        %v1836 = vld [vmem:[#allocation2 + $0x2c] sm:$0xff]
        %v1837 = vld [vmem:[#allocation2 + $0x34] sm:$0xff]
        %v1838 = vld [vmem:[#allocation2 + $0x3c] sm:$0xff]
        %v1839 = vld [vmem:[#allocation2 + $0x44] sm:$0xf]
        %v1840 = vld [vmem:[#allocation2 + $0x48] sm:$0xff]
        %v1841 = vld [vmem:[#allocation2 + $0x50] sm:$0xff]
        %v1842 = vld [vmem:[#allocation2 + $0x58] sm:$0xff]
        %v1843 = vld [vmem:[#allocation2 + $0x60] sm:$0xff]
        %v1844 = vld [vmem:[#allocation2 + $0x68] sm:$0xf]
        %v1845 = vld [vmem:[#allocation2 + $0x6c] sm:$0xff]
        %v1846 = vld [vmem:[#allocation2 + $0x74] sm:$0xff]
        %v1847 = vld [vmem:[#allocation2 + $0x7c] sm:$0xff]
        %v1848 = vld [vmem:[#allocation2 + $0x84] sm:$0xff]
        %v1849 = vld [vmem:[#allocation2 + $0x8c] sm:$0xf]
        %v1850 = vld [vmem:[#allocation2 + $0x90] sm:$0xff]
        %v1851 = vld [vmem:[#allocation2 + $0x98] sm:$0xff]
        %v1852 = vld [vmem:[#allocation2 + $0xa0] sm:$0xff]
        %v1853 = vld [vmem:[#allocation2 + $0xa8] sm:$0xff]
        %v1854 = vld [vmem:[#allocation2 + $0xb0] sm:$0xf]
        %v1855 = vld [vmem:[#allocation2 + $0xb4] sm:$0xff]
        %v1856 = vld [vmem:[#allocation2 + $0xbc] sm:$0xff]
        %v1857 = vld [vmem:[#allocation2 + $0xc4] sm:$0xff]
        %v1858 = vld [vmem:[#allocation2 + $0xcc] sm:$0xff]
        %v1859 = vld [vmem:[#allocation2 + $0xd4] sm:$0xf]
        %v1860 = vld [vmem:[#allocation2 + $0xd8] sm:$0xff]
        %v1861 = vld [vmem:[#allocation2 + $0xe0] sm:$0xff]
        %v1862 = vld [vmem:[#allocation2 + $0xe8] sm:$0xff]
        %v1863 = vld [vmem:[#allocation2 + $0xf0] sm:$0xff]
        %v1864 = vld [vmem:[#allocation2 + $0xf8] sm:$0xf]
        %v1865 = vld [vmem:[#allocation2 + $0xfc] sm:$0xff]
        %v1866 = vld [vmem:[#allocation2 + $0x104] sm:$0xff]
        %v1867 = vld [vmem:[#allocation2 + $0x10c] sm:$0xff]
        %v1868 = vld [vmem:[#allocation2 + $0x114] sm:$0xff]
        %v1869 = vld [vmem:[#allocation2 + $0x11c] sm:$0xf]
        %v1870 = vld [vmem:[#allocation2 + $0x120] sm:$0xff]
        %v1871 = vld [vmem:[#allocation2 + $0x128] sm:$0xff]
        %v1872 = vld [vmem:[#allocation2 + $0x130] sm:$0xff]
        %v1873 = vld [vmem:[#allocation2 + $0x138] sm:$0xff]
        %v1874 = vld [vmem:[#allocation2 + $0x140] sm:$0xf]
        %v1875 = vld [vmem:[#allocation2 + $0x144] sm:$0xff]
        %v1876 = vld [vmem:[#allocation2 + $0x14c] sm:$0xff]
        %v1877 = vld [vmem:[#allocation2 + $0x154] sm:$0xff]
        %v1878 = vld [vmem:[#allocation2 + $0x15c] sm:$0xff]
        %v1879 = vld [vmem:[#allocation2 + $0x164] sm:$0xf]
        %v1880 = vld [vmem:[#allocation2 + $0x168] sm:$0xff]
        %v1881 = vld [vmem:[#allocation2 + $0x170] sm:$0xff]
        %v1882 = vld [vmem:[#allocation2 + $0x178] sm:$0xff]
        %v1883 = vld [vmem:[#allocation2 + $0x180] sm:$0xff]
        %v1884 = vld [vmem:[#allocation2 + $0x188] sm:$0xf]
        %v1885 = vld [vmem:[#allocation2 + $0x18c] sm:$0xff]
        %v1886 = vld [vmem:[#allocation2 + $0x194] sm:$0xff]
        %v1887 = vld [vmem:[#allocation2 + $0x19c] sm:$0xff]
        %v1888 = vld [vmem:[#allocation2 + $0x1a4] sm:$0xff]
        %v1889 = vld [vmem:[#allocation2 + $0x1ac] sm:$0xf]
        %v1890 = vld [vmem:[#allocation2 + $0x1b0] sm:$0xff]
        %v1891 = vld [vmem:[#allocation2 + $0x1b8] sm:$0xff]
        %v1892 = vld [vmem:[#allocation2 + $0x1c0] sm:$0xff]
        %v1893 = vld [vmem:[#allocation2 + $0x1c8] sm:$0xff]
        %v1894 = vld [vmem:[#allocation2 + $0x1d0] sm:$0xf]
        %v1895 = vld [vmem:[#allocation2 + $0x1d4] sm:$0xff]
        %v1896 = vld [vmem:[#allocation2 + $0x1dc] sm:$0xff]
        %v1897 = vld [vmem:[#allocation2 + $0x1e4] sm:$0xff]
        %v1898 = vld [vmem:[#allocation2 + $0x1ec] sm:$0xff]
        %v1899 = vld [vmem:[#allocation2 + $0x1f4] sm:$0xf]
        %v1900 = vld [vmem:[#allocation2 + $0x1f8] sm:$0xff]
        %v1901 = vld [vmem:[#allocation2 + $0x200] sm:$0xff]
        %v1902 = vld [vmem:[#allocation2 + $0x208] sm:$0xff]
        %v1903 = vld [vmem:[#allocation2 + $0x210] sm:$0xff]
        %v1904 = vld [vmem:[#allocation2 + $0x218] sm:$0xf]
        %v1905 = vld [vmem:[#allocation2 + $0x21c] sm:$0xff]
        %v1906 = vld [vmem:[#allocation2 + $0x224] sm:$0xff]
        %v1907 = vld [vmem:[#allocation2 + $0x22c] sm:$0xff]
        %v1908 = vld [vmem:[#allocation2 + $0x234] sm:$0xff]
        %v1909 = vld [vmem:[#allocation2 + $0x23c] sm:$0xf]
        %v1910 = vld [vmem:[#allocation4] sm:$0xff]
        %v1911 = vld [vmem:[#allocation4 + $0x8] sm:$0xff]
        %v1912 = vld [vmem:[#allocation4 + $0x10] sm:$0xff]
        %v1913 = vld [vmem:[#allocation4 + $0x18] sm:$0xff]
        %v1914 = vld [vmem:[#allocation4 + $0x20] sm:$0xff]
        %v1915 = vld [vmem:[#allocation4 + $0x28] sm:$0xff]
        %v1916 = vld [vmem:[#allocation4 + $0x30] sm:$0xff]
        %v1917 = vld [vmem:[#allocation4 + $0x38] sm:$0xff]
        %v1918 = vld [vmem:[#allocation4 + $0x40] sm:$0xff]
        %v1919 = vld [vmem:[#allocation4 + $0x48] sm:$0xff]
        %v1920 = vld [vmem:[#allocation4 + $0x50] sm:$0xff]
        %v1921 = vld [vmem:[#allocation4 + $0x58] sm:$0xff]
        %v1922 = vld [vmem:[#allocation4 + $0x60] sm:$0xff]
        %v1923 = vld [vmem:[#allocation4 + $0x68] sm:$0xff]
        %v1924 = vld [vmem:[#allocation4 + $0x70] sm:$0xff]
        %v1925 = vld [vmem:[#allocation4 + $0x78] sm:$0xff]
        %v1926 = vld [vmem:[#allocation4 + $0x80] sm:$0xff]
        %v1927 = vld [vmem:[#allocation4 + $0x88] sm:$0xff]
        %v1928 = vld [vmem:[#allocation4 + $0x90] sm:$0xff]
        %v1929 = vld [vmem:[#allocation4 + $0x98] sm:$0xff]
        %v1930 = vld [vmem:[#allocation4 + $0xa0] sm:$0xff]
        %v1931 = vld [vmem:[#allocation4 + $0xa8] sm:$0xff]
        %v1932 = vld [vmem:[#allocation4 + $0xb0] sm:$0xff]
        %v1933 = vld [vmem:[#allocation4 + $0xb8] sm:$0xff]
        %v1934 = vld [vmem:[#allocation4 + $0xc0] sm:$0xff]
        %v1935 = vld [vmem:[#allocation4 + $0xc8] sm:$0xff]
        %v1936 = vld [vmem:[#allocation4 + $0xd0] sm:$0xff]
        %v1937 = vld [vmem:[#allocation4 + $0xd8] sm:$0xff]
        %v1938 = vld [vmem:[#allocation4 + $0xe0] sm:$0xff]
        %v1939 = vld [vmem:[#allocation4 + $0xe8] sm:$0xff]
        %v1940 = vld [vmem:[#allocation4 + $0xf0] sm:$0xff]
        %v1941 = vld [vmem:[#allocation4 + $0xf8] sm:$0xff]
        %v1942 = vld [vmem:[#allocation4 + $0x100] sm:$0xff]
        %v1943 = vld [vmem:[#allocation4 + $0x108] sm:$0xff]
        %v1944 = vld [vmem:[#allocation4 + $0x110] sm:$0xff]
        %v1945 = vld [vmem:[#allocation4 + $0x118] sm:$0xff]
        %v1946 = vld [vmem:[#allocation4 + $0x120] sm:$0xff]
        %v1947 = vld [vmem:[#allocation4 + $0x128] sm:$0xff]
        %v1948 = vld [vmem:[#allocation4 + $0x130] sm:$0xff]
        %v1949 = vld [vmem:[#allocation4 + $0x138] sm:$0xff]
        %v1950 = vld [vmem:[#allocation4 + $0x140] sm:$0xff]
        %v1951 = vld [vmem:[#allocation4 + $0x148] sm:$0xff]
        %v1952 = vld [vmem:[#allocation4 + $0x150] sm:$0xff]
        %v1953 = vld [vmem:[#allocation4 + $0x158] sm:$0xff]
        %v1954 = vld [vmem:[#allocation4 + $0x160] sm:$0xff]
        %v1955 = vld [vmem:[#allocation4 + $0x168] sm:$0xff]
        %v1956 = vld [vmem:[#allocation4 + $0x170] sm:$0xff]
        %v1957 = vld [vmem:[#allocation4 + $0x178] sm:$0xff]
        %v1958 = vld [vmem:[#allocation4 + $0x180] sm:$0xff]
        %v1959 = vld [vmem:[#allocation4 + $0x188] sm:$0xff]
        %v1960 = vld [vmem:[#allocation4 + $0x190] sm:$0xff]
        %v1961 = vld [vmem:[#allocation4 + $0x198] sm:$0xff]
        %v1962 = vld [vmem:[#allocation4 + $0x1a0] sm:$0xff]
        %v1963 = vld [vmem:[#allocation4 + $0x1a8] sm:$0xff]
        %v1964 = vld [vmem:[#allocation4 + $0x1b0] sm:$0xff]
        %v1965 = vld [vmem:[#allocation4 + $0x1b8] sm:$0xff]
        %v1966 = vld [vmem:[#allocation4 + $0x1c0] sm:$0xff]
        %v1967 = vld [vmem:[#allocation4 + $0x1c8] sm:$0xff]
        %v1968 = vld [vmem:[#allocation4 + $0x1d0] sm:$0xff]
        %v1969 = vld [vmem:[#allocation4 + $0x1d8] sm:$0xff]
        %v1970 = vld [vmem:[#allocation4 + $0x1e0] sm:$0xff]
        %v1971 = vld [vmem:[#allocation4 + $0x1e8] sm:$0xff]
        %v1972 = vld [vmem:[#allocation4 + $0x1f0] sm:$0xff]
        %v1973 = vld [vmem:[#allocation4 + $0x1f8] sm:$0xff]
        %v1974 = vld [vmem:[#allocation4 + $0x200] sm:$0xff]
        %v1975 = vld [vmem:[#allocation4 + $0x208] sm:$0xff]
        %v1976 = vld [vmem:[#allocation4 + $0x210] sm:$0xff]
        %v1977 = vld [vmem:[#allocation4 + $0x218] sm:$0xff]
        %v1978 = vld [vmem:[#allocation4 + $0x220] sm:$0xff]
        %v1979 = vld [vmem:[#allocation4 + $0x228] sm:$0xff]
        %v1980 = vld [vmem:[#allocation4 + $0x230] sm:$0xff]
        %v1981 = vld [vmem:[#allocation4 + $0x238] sm:$0xff]
        %v1982 = vld [vmem:[#allocation4 + $0x240] sm:$0xff]
        %v1983 = vld [vmem:[#allocation4 + $0x248] sm:$0xff]
        %v1984 = vld [vmem:[#allocation4 + $0x250] sm:$0xff]
        %v1985 = vld [vmem:[#allocation4 + $0x258] sm:$0xff]
        %v1986 = vld [vmem:[#allocation4 + $0x260] sm:$0xff]
        %v1987 = vld [vmem:[#allocation4 + $0x268] sm:$0xff]
        %v1988 = vld [vmem:[#allocation4 + $0x270] sm:$0xff]
        %v1989 = vld [vmem:[#allocation4 + $0x278] sm:$0xff]
        %v1990 = vld [vmem:[#allocation4 + $0x280] sm:$0xff]
        %v1991 = vld [vmem:[#allocation4 + $0x288] sm:$0xff]
        %v1992 = vld [vmem:[#allocation4 + $0x290] sm:$0xff]
        %v1993 = vld [vmem:[#allocation4 + $0x298] sm:$0xff]
        %v1994 = vld [vmem:[#allocation4 + $0x2a0] sm:$0xff]
        %v1995 = vld [vmem:[#allocation4 + $0x2a8] sm:$0xff]
        %v1996 = vld [vmem:[#allocation4 + $0x2b0] sm:$0xff]
        %v1997 = vld [vmem:[#allocation4 + $0x2b8] sm:$0xff]
        %v1998 = vld [vmem:[#allocation4 + $0x2c0] sm:$0xff]
        %v1999 = vld [vmem:[#allocation4 + $0x2c8] sm:$0xff]
        %v2000 = vld [vmem:[#allocation4 + $0x2d0] sm:$0xff]
        %v2001 = vld [vmem:[#allocation4 + $0x2d8] sm:$0xff]
        %v2002 = vld [vmem:[#allocation4 + $0x2e0] sm:$0xff]
        %v2003 = vld [vmem:[#allocation4 + $0x2e8] sm:$0xff]
        %v2004 = vld [vmem:[#allocation4 + $0x2f0] sm:$0xff]
        %v2005 = vld [vmem:[#allocation4 + $0x2f8] sm:$0xff]
        %v2006 = vld [vmem:[#allocation4 + $0x300] sm:$0xff]
        %v2007 = vld [vmem:[#allocation4 + $0x308] sm:$0xff]
        %v2008 = vld [vmem:[#allocation4 + $0x310] sm:$0xff]
        %v2009 = vld [vmem:[#allocation4 + $0x318] sm:$0xff]
        %v2010 = vld [vmem:[#allocation4 + $0x320] sm:$0xff]
        %v2011 = vld [vmem:[#allocation4 + $0x328] sm:$0xff]
        %v2012 = vld [vmem:[#allocation4 + $0x330] sm:$0xff]
        %v2013 = vld [vmem:[#allocation4 + $0x338] sm:$0xff]
        %v2014 = vld [vmem:[#allocation4 + $0x340] sm:$0xff]
        %v2015 = vld [vmem:[#allocation4 + $0x348] sm:$0xff]
        %v2016 = vld [vmem:[#allocation4 + $0x350] sm:$0xff]
        %v2017 = vld [vmem:[#allocation4 + $0x358] sm:$0xff]
        %v2018 = vld [vmem:[#allocation4 + $0x360] sm:$0xff]
        %v2019 = vld [vmem:[#allocation4 + $0x368] sm:$0xff]
        %v2020 = vld [vmem:[#allocation4 + $0x370] sm:$0xff]
        %v2021 = vld [vmem:[#allocation4 + $0x378] sm:$0xff]
        %v2022 = vld [vmem:[#allocation4 + $0x380] sm:$0xff]
        %v2023 = vld [vmem:[#allocation4 + $0x388] sm:$0xff]
        %v2024 = vld [vmem:[#allocation4 + $0x390] sm:$0xff]
        %v2025 = vld [vmem:[#allocation4 + $0x398] sm:$0xff]
        %v2026 = vld [vmem:[#allocation4 + $0x3a0] sm:$0xff]
        %v2027 = vld [vmem:[#allocation4 + $0x3a8] sm:$0xff]
        %v2028 = vld [vmem:[#allocation4 + $0x3b0] sm:$0xff]
        %v2029 = vld [vmem:[#allocation4 + $0x3b8] sm:$0xff]
        %v2030 = vld [vmem:[#allocation4 + $0x3c0] sm:$0xff]
        %v2031 = vld [vmem:[#allocation4 + $0x3c8] sm:$0xff]
        %v2032 = vld [vmem:[#allocation4 + $0x3d0] sm:$0xff]
        %v2033 = vld [vmem:[#allocation4 + $0x3d8] sm:$0xff]
        %v2034 = vld [vmem:[#allocation4 + $0x3e0] sm:$0xff]
        %v2035 = vld [vmem:[#allocation4 + $0x3e8] sm:$0xff]
        %v2036 = vld [vmem:[#allocation4 + $0x3f0] sm:$0xff]
        %v2037 = vld [vmem:[#allocation4 + $0x3f8] sm:$0xff]
        %v2038 = vld [vmem:[#allocation4 + $0x400] sm:$0xff]
        %v2039 = vld [vmem:[#allocation4 + $0x408] sm:$0xff]
        %v2040 = vld [vmem:[#allocation4 + $0x410] sm:$0xff]
        %v2041 = vld [vmem:[#allocation4 + $0x418] sm:$0xff]
        %v2042 = vld [vmem:[#allocation4 + $0x420] sm:$0xff]
        %v2043 = vld [vmem:[#allocation4 + $0x428] sm:$0xff]
        %v2044 = vld [vmem:[#allocation4 + $0x430] sm:$0xff]
        %v2045 = vld [vmem:[#allocation4 + $0x438] sm:$0xff]
        %v2046 = vld [vmem:[#allocation4 + $0x440] sm:$0xff]
        %v2047 = vld [vmem:[#allocation4 + $0x448] sm:$0xff]
        %v2048 = vld [vmem:[#allocation4 + $0x450] sm:$0xff]
        %v2049 = vld [vmem:[#allocation4 + $0x458] sm:$0xff]
        %v2050 = vld [vmem:[#allocation4 + $0x460] sm:$0xff]
        %v2051 = vld [vmem:[#allocation4 + $0x468] sm:$0xff]
        %v2052 = vld [vmem:[#allocation4 + $0x470] sm:$0xff]
        %v2053 = vld [vmem:[#allocation4 + $0x478] sm:$0xff]
        %v2054 = vld [vmem:[#allocation7] sm:$0x3]
        %v2056 = vperm.slane %v2054, 0
        %v2057 = vperm.slane %v2054, 1
        %v2140 = vunpack.c.l.b16 %v1830
        %v2141 = vunpack.c.h.b16 %v1830
        %v2142 = vunpack.c.l.b16 %v1831
        %v2143 = vunpack.c.h.b16 %v1831
        %v2144 = vunpack.c.l.b16 %v1832
        %v2145 = vunpack.c.h.b16 %v1832
        %v2146 = vunpack.c.l.b16 %v1833
        %v2147 = vunpack.c.h.b16 %v1833
        %v2148 = vunpack.c.l.b16 %v1834
        %v2149 = vunpack.c.l.b16 %v1835
        %v2150 = vunpack.c.h.b16 %v1835
        %v2151 = vunpack.c.l.b16 %v1836
        %v2152 = vunpack.c.h.b16 %v1836
        %v2153 = vunpack.c.l.b16 %v1837
        %v2154 = vunpack.c.h.b16 %v1837
        %v2155 = vunpack.c.l.b16 %v1838
        %v2156 = vunpack.c.h.b16 %v1838
        %v2157 = vunpack.c.l.b16 %v1839
        %v2158 = vunpack.c.l.b16 %v1840
        %v2159 = vunpack.c.h.b16 %v1840
        %v2160 = vunpack.c.l.b16 %v1841
        %v2161 = vunpack.c.h.b16 %v1841
        %v2162 = vunpack.c.l.b16 %v1842
        %v2163 = vunpack.c.h.b16 %v1842
        %v2164 = vunpack.c.l.b16 %v1843
        %v2165 = vunpack.c.h.b16 %v1843
        %v2166 = vunpack.c.l.b16 %v1844
        %v2167 = vunpack.c.l.b16 %v1845
        %v2168 = vunpack.c.h.b16 %v1845
        %v2169 = vunpack.c.l.b16 %v1846
        %v2170 = vunpack.c.h.b16 %v1846
        %v2171 = vunpack.c.l.b16 %v1847
        %v2172 = vunpack.c.h.b16 %v1847
        %v2173 = vunpack.c.l.b16 %v1848
        %v2174 = vunpack.c.h.b16 %v1848
        %v2175 = vunpack.c.l.b16 %v1849
        %v2176 = vunpack.c.l.b16 %v1850
        %v2177 = vunpack.c.h.b16 %v1850
        %v2178 = vunpack.c.l.b16 %v1851
        %v2179 = vunpack.c.h.b16 %v1851
        %v2180 = vunpack.c.l.b16 %v1852
        %v2181 = vunpack.c.h.b16 %v1852
        %v2182 = vunpack.c.l.b16 %v1853
        %v2183 = vunpack.c.h.b16 %v1853
        %v2184 = vunpack.c.l.b16 %v1854
        %v2185 = vunpack.c.l.b16 %v1855
        %v2186 = vunpack.c.h.b16 %v1855
        %v2187 = vunpack.c.l.b16 %v1856
        %v2188 = vunpack.c.h.b16 %v1856
        %v2189 = vunpack.c.l.b16 %v1857
        %v2190 = vunpack.c.h.b16 %v1857
        %v2191 = vunpack.c.l.b16 %v1858
        %v2192 = vunpack.c.h.b16 %v1858
        %v2193 = vunpack.c.l.b16 %v1859
        %v2194 = vunpack.c.l.b16 %v1860
        %v2195 = vunpack.c.h.b16 %v1860
        %v2196 = vunpack.c.l.b16 %v1861
        %v2197 = vunpack.c.h.b16 %v1861
        %v2198 = vunpack.c.l.b16 %v1862
        %v2199 = vunpack.c.h.b16 %v1862
        %v2200 = vunpack.c.l.b16 %v1863
        %v2201 = vunpack.c.h.b16 %v1863
        %v2202 = vunpack.c.l.b16 %v1864
        %v2203 = vunpack.c.l.b16 %v1865
        %v2204 = vunpack.c.h.b16 %v1865
        %v2205 = vunpack.c.l.b16 %v1866
        %v2206 = vunpack.c.h.b16 %v1866
        %v2207 = vunpack.c.l.b16 %v1867
        %v2208 = vunpack.c.h.b16 %v1867
        %v2209 = vunpack.c.l.b16 %v1868
        %v2210 = vunpack.c.h.b16 %v1868
        %v2211 = vunpack.c.l.b16 %v1869
        %v2212 = vunpack.c.l.b16 %v1870
        %v2213 = vunpack.c.h.b16 %v1870
        %v2214 = vunpack.c.l.b16 %v1871
        %v2215 = vunpack.c.h.b16 %v1871
        %v2216 = vunpack.c.l.b16 %v1872
        %v2217 = vunpack.c.h.b16 %v1872
        %v2218 = vunpack.c.l.b16 %v1873
        %v2219 = vunpack.c.h.b16 %v1873
        %v2220 = vunpack.c.l.b16 %v1874
        %v2221 = vunpack.c.l.b16 %v1875
        %v2222 = vunpack.c.h.b16 %v1875
        %v2223 = vunpack.c.l.b16 %v1876
        %v2224 = vunpack.c.h.b16 %v1876
        %v2225 = vunpack.c.l.b16 %v1877
        %v2226 = vunpack.c.h.b16 %v1877
        %v2227 = vunpack.c.l.b16 %v1878
        %v2228 = vunpack.c.h.b16 %v1878
        %v2229 = vunpack.c.l.b16 %v1879
        %v2230 = vunpack.c.l.b16 %v1880
        %v2231 = vunpack.c.h.b16 %v1880
        %v2232 = vunpack.c.l.b16 %v1881
        %v2233 = vunpack.c.h.b16 %v1881
        %v2234 = vunpack.c.l.b16 %v1882
        %v2235 = vunpack.c.h.b16 %v1882
        %v2236 = vunpack.c.l.b16 %v1883
        %v2237 = vunpack.c.h.b16 %v1883
        %v2238 = vunpack.c.l.b16 %v1884
        %v2239 = vunpack.c.l.b16 %v1885
        %v2240 = vunpack.c.h.b16 %v1885
        %v2241 = vunpack.c.l.b16 %v1886
        %v2242 = vunpack.c.h.b16 %v1886
        %v2243 = vunpack.c.l.b16 %v1887
        %v2244 = vunpack.c.h.b16 %v1887
        %v2245 = vunpack.c.l.b16 %v1888
        %v2246 = vunpack.c.h.b16 %v1888
        %v2247 = vunpack.c.l.b16 %v1889
        %v2248 = vunpack.c.l.b16 %v1890
        %v2249 = vunpack.c.h.b16 %v1890
        %v2250 = vunpack.c.l.b16 %v1891
        %v2251 = vunpack.c.h.b16 %v1891
        %v2252 = vunpack.c.l.b16 %v1892
        %v2253 = vunpack.c.h.b16 %v1892
        %v2254 = vunpack.c.l.b16 %v1893
        %v2255 = vunpack.c.h.b16 %v1893
        %v2256 = vunpack.c.l.b16 %v1894
        %v2257 = vunpack.c.l.b16 %v1895
        %v2258 = vunpack.c.h.b16 %v1895
        %v2259 = vunpack.c.l.b16 %v1896
        %v2260 = vunpack.c.h.b16 %v1896
        %v2261 = vunpack.c.l.b16 %v1897
        %v2262 = vunpack.c.h.b16 %v1897
        %v2263 = vunpack.c.l.b16 %v1898
        %v2264 = vunpack.c.h.b16 %v1898
        %v2265 = vunpack.c.l.b16 %v1899
        %v2266 = vunpack.c.l.b16 %v1900
        %v2267 = vunpack.c.h.b16 %v1900
        %v2268 = vunpack.c.l.b16 %v1901
        %v2269 = vunpack.c.h.b16 %v1901
        %v2270 = vunpack.c.l.b16 %v1902
        %v2271 = vunpack.c.h.b16 %v1902
        %v2272 = vunpack.c.l.b16 %v1903
        %v2273 = vunpack.c.h.b16 %v1903
        %v2274 = vunpack.c.l.b16 %v1904
        %v2275 = vunpack.c.l.b16 %v1905
        %v2276 = vunpack.c.h.b16 %v1905
        %v2277 = vunpack.c.l.b16 %v1906
        %v2278 = vunpack.c.h.b16 %v1906
        %v2279 = vunpack.c.l.b16 %v1907
        %v2280 = vunpack.c.h.b16 %v1907
        %v2281 = vunpack.c.l.b16 %v1908
        %v2282 = vunpack.c.h.b16 %v1908
        %v2283 = vunpack.c.l.b16 %v1909
        %v2284 = vpack.c.b16 %v2149, %v2140
        %v2285 = vpack.c.b16 %v2150, %v2141
        %v2286 = vpack.c.b16 %v2151, %v2142
        %v2287 = vpack.c.b16 %v2152, %v2143
        %v2288 = vpack.c.b16 %v2153, %v2144
        %v2289 = vpack.c.b16 %v2154, %v2145
        %v2290 = vpack.c.b16 %v2155, %v2146
        %v2291 = vpack.c.b16 %v2156, %v2147
        %v2292 = vpack.c.b16 %v2157, %v2148
        %v2293 = vpack.c.b16 %v2167, %v2158
        %v2294 = vpack.c.b16 %v2168, %v2159
        %v2295 = vpack.c.b16 %v2169, %v2160
        %v2296 = vpack.c.b16 %v2170, %v2161
        %v2297 = vpack.c.b16 %v2171, %v2162
        %v2298 = vpack.c.b16 %v2172, %v2163
        %v2299 = vpack.c.b16 %v2173, %v2164
        %v2300 = vpack.c.b16 %v2174, %v2165
        %v2301 = vpack.c.b16 %v2175, %v2166
        %v2302 = vpack.c.b16 %v2185, %v2176
        %v2303 = vpack.c.b16 %v2186, %v2177
        %v2304 = vpack.c.b16 %v2187, %v2178
        %v2305 = vpack.c.b16 %v2188, %v2179
        %v2306 = vpack.c.b16 %v2189, %v2180
        %v2307 = vpack.c.b16 %v2190, %v2181
        %v2308 = vpack.c.b16 %v2191, %v2182
        %v2309 = vpack.c.b16 %v2192, %v2183
        %v2310 = vpack.c.b16 %v2193, %v2184
        %v2311 = vpack.c.b16 %v2203, %v2194
        %v2312 = vpack.c.b16 %v2204, %v2195
        %v2313 = vpack.c.b16 %v2205, %v2196
        %v2314 = vpack.c.b16 %v2206, %v2197
        %v2315 = vpack.c.b16 %v2207, %v2198
        %v2316 = vpack.c.b16 %v2208, %v2199
        %v2317 = vpack.c.b16 %v2209, %v2200
        %v2318 = vpack.c.b16 %v2210, %v2201
        %v2319 = vpack.c.b16 %v2211, %v2202
        %v2320 = vpack.c.b16 %v2221, %v2212
        %v2321 = vpack.c.b16 %v2222, %v2213
        %v2322 = vpack.c.b16 %v2223, %v2214
        %v2323 = vpack.c.b16 %v2224, %v2215
        %v2324 = vpack.c.b16 %v2225, %v2216
        %v2325 = vpack.c.b16 %v2226, %v2217
        %v2326 = vpack.c.b16 %v2227, %v2218
        %v2327 = vpack.c.b16 %v2228, %v2219
        %v2328 = vpack.c.b16 %v2229, %v2220
        %v2329 = vpack.c.b16 %v2239, %v2230
        %v2330 = vpack.c.b16 %v2240, %v2231
        %v2331 = vpack.c.b16 %v2241, %v2232
        %v2332 = vpack.c.b16 %v2242, %v2233
        %v2333 = vpack.c.b16 %v2243, %v2234
        %v2334 = vpack.c.b16 %v2244, %v2235
        %v2335 = vpack.c.b16 %v2245, %v2236
        %v2336 = vpack.c.b16 %v2246, %v2237
        %v2337 = vpack.c.b16 %v2247, %v2238
        %v2338 = vpack.c.b16 %v2257, %v2248
        %v2339 = vpack.c.b16 %v2258, %v2249
        %v2340 = vpack.c.b16 %v2259, %v2250
        %v2341 = vpack.c.b16 %v2260, %v2251
        %v2342 = vpack.c.b16 %v2261, %v2252
        %v2343 = vpack.c.b16 %v2262, %v2253
        %v2344 = vpack.c.b16 %v2263, %v2254
        %v2345 = vpack.c.b16 %v2264, %v2255
        %v2346 = vpack.c.b16 %v2265, %v2256
        %v2347 = vpack.c.b16 %v2275, %v2266
        %v2348 = vpack.c.b16 %v2276, %v2267
        %v2349 = vpack.c.b16 %v2277, %v2268
        %v2350 = vpack.c.b16 %v2278, %v2269
        %v2351 = vpack.c.b16 %v2279, %v2270
        %v2352 = vpack.c.b16 %v2280, %v2271
        %v2353 = vpack.c.b16 %v2281, %v2272
        %v2354 = vpack.c.b16 %v2282, %v2273
        %v2355 = vpack.c.b16 %v2283, %v2274
        %v2572 = vunpack.c.l.b16 %v1910
        %v2573 = vunpack.c.h.b16 %v1910
        %v2574 = vunpack.c.l.b16 %v1911
        %v2575 = vunpack.c.h.b16 %v1911
        %v2576 = vunpack.c.l.b16 %v1912
        %v2577 = vunpack.c.h.b16 %v1912
        %v2578 = vunpack.c.l.b16 %v1913
        %v2579 = vunpack.c.h.b16 %v1913
        %v2580 = vunpack.c.l.b16 %v1914
        %v2581 = vunpack.c.h.b16 %v1914
        %v2582 = vunpack.c.l.b16 %v1915
        %v2583 = vunpack.c.h.b16 %v1915
        %v2584 = vunpack.c.l.b16 %v1916
        %v2585 = vunpack.c.h.b16 %v1916
        %v2586 = vunpack.c.l.b16 %v1917
        %v2587 = vunpack.c.h.b16 %v1917
        %v2588 = vunpack.c.l.b16 %v1918
        %v2589 = vunpack.c.h.b16 %v1918
        %v2590 = vunpack.c.l.b16 %v1919
        %v2591 = vunpack.c.h.b16 %v1919
        %v2592 = vunpack.c.l.b16 %v1920
        %v2593 = vunpack.c.h.b16 %v1920
        %v2594 = vunpack.c.l.b16 %v1921
        %v2595 = vunpack.c.h.b16 %v1921
        %v2596 = vunpack.c.l.b16 %v1922
        %v2597 = vunpack.c.h.b16 %v1922
        %v2598 = vunpack.c.l.b16 %v1923
        %v2599 = vunpack.c.h.b16 %v1923
        %v2600 = vunpack.c.l.b16 %v1924
        %v2601 = vunpack.c.h.b16 %v1924
        %v2602 = vunpack.c.l.b16 %v1925
        %v2603 = vunpack.c.h.b16 %v1925
        %v2604 = vunpack.c.l.b16 %v1926
        %v2605 = vunpack.c.h.b16 %v1926
        %v2606 = vunpack.c.l.b16 %v1927
        %v2607 = vunpack.c.h.b16 %v1927
        %v2608 = vunpack.c.l.b16 %v1928
        %v2609 = vunpack.c.h.b16 %v1928
        %v2610 = vunpack.c.l.b16 %v1929
        %v2611 = vunpack.c.h.b16 %v1929
        %v2612 = vunpack.c.l.b16 %v1930
        %v2613 = vunpack.c.h.b16 %v1930
        %v2614 = vunpack.c.l.b16 %v1931
        %v2615 = vunpack.c.h.b16 %v1931
        %v2616 = vunpack.c.l.b16 %v1932
        %v2617 = vunpack.c.h.b16 %v1932
        %v2618 = vunpack.c.l.b16 %v1933
        %v2619 = vunpack.c.h.b16 %v1933
        %v2620 = vunpack.c.l.b16 %v1934
        %v2621 = vunpack.c.h.b16 %v1934
        %v2622 = vunpack.c.l.b16 %v1935
        %v2623 = vunpack.c.h.b16 %v1935
        %v2624 = vunpack.c.l.b16 %v1936
        %v2625 = vunpack.c.h.b16 %v1936
        %v2626 = vunpack.c.l.b16 %v1937
        %v2627 = vunpack.c.h.b16 %v1937
        %v2628 = vunpack.c.l.b16 %v1938
        %v2629 = vunpack.c.h.b16 %v1938
        %v2630 = vunpack.c.l.b16 %v1939
        %v2631 = vunpack.c.h.b16 %v1939
        %v2632 = vunpack.c.l.b16 %v1940
        %v2633 = vunpack.c.h.b16 %v1940
        %v2634 = vunpack.c.l.b16 %v1941
        %v2635 = vunpack.c.h.b16 %v1941
        %v2636 = vunpack.c.l.b16 %v1942
        %v2637 = vunpack.c.h.b16 %v1942
        %v2638 = vunpack.c.l.b16 %v1943
        %v2639 = vunpack.c.h.b16 %v1943
        %v2640 = vunpack.c.l.b16 %v1944
        %v2641 = vunpack.c.h.b16 %v1944
        %v2642 = vunpack.c.l.b16 %v1945
        %v2643 = vunpack.c.h.b16 %v1945
        %v2644 = vunpack.c.l.b16 %v1946
        %v2645 = vunpack.c.h.b16 %v1946
        %v2646 = vunpack.c.l.b16 %v1947
        %v2647 = vunpack.c.h.b16 %v1947
        %v2648 = vunpack.c.l.b16 %v1948
        %v2649 = vunpack.c.h.b16 %v1948
        %v2650 = vunpack.c.l.b16 %v1949
        %v2651 = vunpack.c.h.b16 %v1949
        %v2652 = vunpack.c.l.b16 %v1950
        %v2653 = vunpack.c.h.b16 %v1950
        %v2654 = vunpack.c.l.b16 %v1951
        %v2655 = vunpack.c.h.b16 %v1951
        %v2656 = vunpack.c.l.b16 %v1952
        %v2657 = vunpack.c.h.b16 %v1952
        %v2658 = vunpack.c.l.b16 %v1953
        %v2659 = vunpack.c.h.b16 %v1953
        %v2660 = vunpack.c.l.b16 %v1954
        %v2661 = vunpack.c.h.b16 %v1954
        %v2662 = vunpack.c.l.b16 %v1955
        %v2663 = vunpack.c.h.b16 %v1955
        %v2664 = vunpack.c.l.b16 %v1956
        %v2665 = vunpack.c.h.b16 %v1956
        %v2666 = vunpack.c.l.b16 %v1957
        %v2667 = vunpack.c.h.b16 %v1957
        %v2668 = vunpack.c.l.b16 %v1958
        %v2669 = vunpack.c.h.b16 %v1958
        %v2670 = vunpack.c.l.b16 %v1959
        %v2671 = vunpack.c.h.b16 %v1959
        %v2672 = vunpack.c.l.b16 %v1960
        %v2673 = vunpack.c.h.b16 %v1960
        %v2674 = vunpack.c.l.b16 %v1961
        %v2675 = vunpack.c.h.b16 %v1961
        %v2676 = vunpack.c.l.b16 %v1962
        %v2677 = vunpack.c.h.b16 %v1962
        %v2678 = vunpack.c.l.b16 %v1963
        %v2679 = vunpack.c.h.b16 %v1963
        %v2680 = vunpack.c.l.b16 %v1964
        %v2681 = vunpack.c.h.b16 %v1964
        %v2682 = vunpack.c.l.b16 %v1965
        %v2683 = vunpack.c.h.b16 %v1965
        %v2684 = vunpack.c.l.b16 %v1966
        %v2685 = vunpack.c.h.b16 %v1966
        %v2686 = vunpack.c.l.b16 %v1967
        %v2687 = vunpack.c.h.b16 %v1967
        %v2688 = vunpack.c.l.b16 %v1968
        %v2689 = vunpack.c.h.b16 %v1968
        %v2690 = vunpack.c.l.b16 %v1969
        %v2691 = vunpack.c.h.b16 %v1969
        %v2692 = vunpack.c.l.b16 %v1970
        %v2693 = vunpack.c.h.b16 %v1970
        %v2694 = vunpack.c.l.b16 %v1971
        %v2695 = vunpack.c.h.b16 %v1971
        %v2696 = vunpack.c.l.b16 %v1972
        %v2697 = vunpack.c.h.b16 %v1972
        %v2698 = vunpack.c.l.b16 %v1973
        %v2699 = vunpack.c.h.b16 %v1973
        %v2700 = vunpack.c.l.b16 %v1974
        %v2701 = vunpack.c.h.b16 %v1974
        %v2702 = vunpack.c.l.b16 %v1975
        %v2703 = vunpack.c.h.b16 %v1975
        %v2704 = vunpack.c.l.b16 %v1976
        %v2705 = vunpack.c.h.b16 %v1976
        %v2706 = vunpack.c.l.b16 %v1977
        %v2707 = vunpack.c.h.b16 %v1977
        %v2708 = vunpack.c.l.b16 %v1978
        %v2709 = vunpack.c.h.b16 %v1978
        %v2710 = vunpack.c.l.b16 %v1979
        %v2711 = vunpack.c.h.b16 %v1979
        %v2712 = vunpack.c.l.b16 %v1980
        %v2713 = vunpack.c.h.b16 %v1980
        %v2714 = vunpack.c.l.b16 %v1981
        %v2715 = vunpack.c.h.b16 %v1981
        %v2716 = vunpack.c.l.b16 %v1982
        %v2717 = vunpack.c.h.b16 %v1982
        %v2718 = vunpack.c.l.b16 %v1983
        %v2719 = vunpack.c.h.b16 %v1983
        %v2720 = vunpack.c.l.b16 %v1984
        %v2721 = vunpack.c.h.b16 %v1984
        %v2722 = vunpack.c.l.b16 %v1985
        %v2723 = vunpack.c.h.b16 %v1985
        %v2724 = vunpack.c.l.b16 %v1986
        %v2725 = vunpack.c.h.b16 %v1986
        %v2726 = vunpack.c.l.b16 %v1987
        %v2727 = vunpack.c.h.b16 %v1987
        %v2728 = vunpack.c.l.b16 %v1988
        %v2729 = vunpack.c.h.b16 %v1988
        %v2730 = vunpack.c.l.b16 %v1989
        %v2731 = vunpack.c.h.b16 %v1989
        %v2732 = vunpack.c.l.b16 %v1990
        %v2733 = vunpack.c.h.b16 %v1990
        %v2734 = vunpack.c.l.b16 %v1991
        %v2735 = vunpack.c.h.b16 %v1991
        %v2736 = vunpack.c.l.b16 %v1992
        %v2737 = vunpack.c.h.b16 %v1992
        %v2738 = vunpack.c.l.b16 %v1993
        %v2739 = vunpack.c.h.b16 %v1993
        %v2740 = vunpack.c.l.b16 %v1994
        %v2741 = vunpack.c.h.b16 %v1994
        %v2742 = vunpack.c.l.b16 %v1995
        %v2743 = vunpack.c.h.b16 %v1995
        %v2744 = vunpack.c.l.b16 %v1996
        %v2745 = vunpack.c.h.b16 %v1996
        %v2746 = vunpack.c.l.b16 %v1997
        %v2747 = vunpack.c.h.b16 %v1997
        %v2748 = vunpack.c.l.b16 %v1998
        %v2749 = vunpack.c.h.b16 %v1998
        %v2750 = vunpack.c.l.b16 %v1999
        %v2751 = vunpack.c.h.b16 %v1999
        %v2752 = vunpack.c.l.b16 %v2000
        %v2753 = vunpack.c.h.b16 %v2000
        %v2754 = vunpack.c.l.b16 %v2001
        %v2755 = vunpack.c.h.b16 %v2001
        %v2756 = vunpack.c.l.b16 %v2002
        %v2757 = vunpack.c.h.b16 %v2002
        %v2758 = vunpack.c.l.b16 %v2003
        %v2759 = vunpack.c.h.b16 %v2003
        %v2760 = vunpack.c.l.b16 %v2004
        %v2761 = vunpack.c.h.b16 %v2004
        %v2762 = vunpack.c.l.b16 %v2005
        %v2763 = vunpack.c.h.b16 %v2005
        %v2764 = vunpack.c.l.b16 %v2006
        %v2765 = vunpack.c.h.b16 %v2006
        %v2766 = vunpack.c.l.b16 %v2007
        %v2767 = vunpack.c.h.b16 %v2007
        %v2768 = vunpack.c.l.b16 %v2008
        %v2769 = vunpack.c.h.b16 %v2008
        %v2770 = vunpack.c.l.b16 %v2009
        %v2771 = vunpack.c.h.b16 %v2009
        %v2772 = vunpack.c.l.b16 %v2010
        %v2773 = vunpack.c.h.b16 %v2010
        %v2774 = vunpack.c.l.b16 %v2011
        %v2775 = vunpack.c.h.b16 %v2011
        %v2776 = vunpack.c.l.b16 %v2012
        %v2777 = vunpack.c.h.b16 %v2012
        %v2778 = vunpack.c.l.b16 %v2013
        %v2779 = vunpack.c.h.b16 %v2013
        %v2780 = vunpack.c.l.b16 %v2014
        %v2781 = vunpack.c.h.b16 %v2014
        %v2782 = vunpack.c.l.b16 %v2015
        %v2783 = vunpack.c.h.b16 %v2015
        %v2784 = vunpack.c.l.b16 %v2016
        %v2785 = vunpack.c.h.b16 %v2016
        %v2786 = vunpack.c.l.b16 %v2017
        %v2787 = vunpack.c.h.b16 %v2017
        %v2788 = vunpack.c.l.b16 %v2018
        %v2789 = vunpack.c.h.b16 %v2018
        %v2790 = vunpack.c.l.b16 %v2019
        %v2791 = vunpack.c.h.b16 %v2019
        %v2792 = vunpack.c.l.b16 %v2020
        %v2793 = vunpack.c.h.b16 %v2020
        %v2794 = vunpack.c.l.b16 %v2021
        %v2795 = vunpack.c.h.b16 %v2021
        %v2796 = vunpack.c.l.b16 %v2022
        %v2797 = vunpack.c.h.b16 %v2022
        %v2798 = vunpack.c.l.b16 %v2023
        %v2799 = vunpack.c.h.b16 %v2023
        %v2800 = vunpack.c.l.b16 %v2024
        %v2801 = vunpack.c.h.b16 %v2024
        %v2802 = vunpack.c.l.b16 %v2025
        %v2803 = vunpack.c.h.b16 %v2025
        %v2804 = vunpack.c.l.b16 %v2026
        %v2805 = vunpack.c.h.b16 %v2026
        %v2806 = vunpack.c.l.b16 %v2027
        %v2807 = vunpack.c.h.b16 %v2027
        %v2808 = vunpack.c.l.b16 %v2028
        %v2809 = vunpack.c.h.b16 %v2028
        %v2810 = vunpack.c.l.b16 %v2029
        %v2811 = vunpack.c.h.b16 %v2029
        %v2812 = vunpack.c.l.b16 %v2030
        %v2813 = vunpack.c.h.b16 %v2030
        %v2814 = vunpack.c.l.b16 %v2031
        %v2815 = vunpack.c.h.b16 %v2031
        %v2816 = vunpack.c.l.b16 %v2032
        %v2817 = vunpack.c.h.b16 %v2032
        %v2818 = vunpack.c.l.b16 %v2033
        %v2819 = vunpack.c.h.b16 %v2033
        %v2820 = vunpack.c.l.b16 %v2034
        %v2821 = vunpack.c.h.b16 %v2034
        %v2822 = vunpack.c.l.b16 %v2035
        %v2823 = vunpack.c.h.b16 %v2035
        %v2824 = vunpack.c.l.b16 %v2036
        %v2825 = vunpack.c.h.b16 %v2036
        %v2826 = vunpack.c.l.b16 %v2037
        %v2827 = vunpack.c.h.b16 %v2037
        %v2828 = vunpack.c.l.b16 %v2038
        %v2829 = vunpack.c.h.b16 %v2038
        %v2830 = vunpack.c.l.b16 %v2039
        %v2831 = vunpack.c.h.b16 %v2039
        %v2832 = vunpack.c.l.b16 %v2040
        %v2833 = vunpack.c.h.b16 %v2040
        %v2834 = vunpack.c.l.b16 %v2041
        %v2835 = vunpack.c.h.b16 %v2041
        %v2836 = vunpack.c.l.b16 %v2042
        %v2837 = vunpack.c.h.b16 %v2042
        %v2838 = vunpack.c.l.b16 %v2043
        %v2839 = vunpack.c.h.b16 %v2043
        %v2840 = vunpack.c.l.b16 %v2044
        %v2841 = vunpack.c.h.b16 %v2044
        %v2842 = vunpack.c.l.b16 %v2045
        %v2843 = vunpack.c.h.b16 %v2045
        %v2844 = vunpack.c.l.b16 %v2046
        %v2845 = vunpack.c.h.b16 %v2046
        %v2846 = vunpack.c.l.b16 %v2047
        %v2847 = vunpack.c.h.b16 %v2047
        %v2848 = vunpack.c.l.b16 %v2048
        %v2849 = vunpack.c.h.b16 %v2048
        %v2850 = vunpack.c.l.b16 %v2049
        %v2851 = vunpack.c.h.b16 %v2049
        %v2852 = vunpack.c.l.b16 %v2050
        %v2853 = vunpack.c.h.b16 %v2050
        %v2854 = vunpack.c.l.b16 %v2051
        %v2855 = vunpack.c.h.b16 %v2051
        %v2856 = vunpack.c.l.b16 %v2052
        %v2857 = vunpack.c.h.b16 %v2052
        %v2858 = vunpack.c.l.b16 %v2053
        %v2859 = vunpack.c.h.b16 %v2053
        %v2860 = vpack.c.b16 %v2574, %v2572
        %v2861 = vpack.c.b16 %v2575, %v2573
        %v2862 = vpack.c.b16 %v2578, %v2576
        %v2863 = vpack.c.b16 %v2579, %v2577
        %v2864 = vpack.c.b16 %v2582, %v2580
        %v2865 = vpack.c.b16 %v2583, %v2581
        %v2866 = vpack.c.b16 %v2586, %v2584
        %v2867 = vpack.c.b16 %v2587, %v2585
        %v2868 = vpack.c.b16 %v2590, %v2588
        %v2869 = vpack.c.b16 %v2591, %v2589
        %v2870 = vpack.c.b16 %v2594, %v2592
        %v2871 = vpack.c.b16 %v2595, %v2593
        %v2872 = vpack.c.b16 %v2598, %v2596
        %v2873 = vpack.c.b16 %v2599, %v2597
        %v2874 = vpack.c.b16 %v2602, %v2600
        %v2875 = vpack.c.b16 %v2603, %v2601
        %v2876 = vpack.c.b16 %v2606, %v2604
        %v2877 = vpack.c.b16 %v2607, %v2605
        %v2878 = vpack.c.b16 %v2610, %v2608
        %v2879 = vpack.c.b16 %v2611, %v2609
        %v2880 = vpack.c.b16 %v2614, %v2612
        %v2881 = vpack.c.b16 %v2615, %v2613
        %v2882 = vpack.c.b16 %v2618, %v2616
        %v2883 = vpack.c.b16 %v2619, %v2617
        %v2884 = vpack.c.b16 %v2622, %v2620
        %v2885 = vpack.c.b16 %v2623, %v2621
        %v2886 = vpack.c.b16 %v2626, %v2624
        %v2887 = vpack.c.b16 %v2627, %v2625
        %v2888 = vpack.c.b16 %v2630, %v2628
        %v2889 = vpack.c.b16 %v2631, %v2629
        %v2890 = vpack.c.b16 %v2634, %v2632
        %v2891 = vpack.c.b16 %v2635, %v2633
        %v2892 = vpack.c.b16 %v2638, %v2636
        %v2893 = vpack.c.b16 %v2639, %v2637
        %v2894 = vpack.c.b16 %v2642, %v2640
        %v2895 = vpack.c.b16 %v2643, %v2641
        %v2896 = vpack.c.b16 %v2646, %v2644
        %v2897 = vpack.c.b16 %v2647, %v2645
        %v2898 = vpack.c.b16 %v2650, %v2648
        %v2899 = vpack.c.b16 %v2651, %v2649
        %v2900 = vpack.c.b16 %v2654, %v2652
        %v2901 = vpack.c.b16 %v2655, %v2653
        %v2902 = vpack.c.b16 %v2658, %v2656
        %v2903 = vpack.c.b16 %v2659, %v2657
        %v2904 = vpack.c.b16 %v2662, %v2660
        %v2905 = vpack.c.b16 %v2663, %v2661
        %v2906 = vpack.c.b16 %v2666, %v2664
        %v2907 = vpack.c.b16 %v2667, %v2665
        %v2908 = vpack.c.b16 %v2670, %v2668
        %v2909 = vpack.c.b16 %v2671, %v2669
        %v2910 = vpack.c.b16 %v2674, %v2672
        %v2911 = vpack.c.b16 %v2675, %v2673
        %v2912 = vpack.c.b16 %v2678, %v2676
        %v2913 = vpack.c.b16 %v2679, %v2677
        %v2914 = vpack.c.b16 %v2682, %v2680
        %v2915 = vpack.c.b16 %v2683, %v2681
        %v2916 = vpack.c.b16 %v2686, %v2684
        %v2917 = vpack.c.b16 %v2687, %v2685
        %v2918 = vpack.c.b16 %v2690, %v2688
        %v2919 = vpack.c.b16 %v2691, %v2689
        %v2920 = vpack.c.b16 %v2694, %v2692
        %v2921 = vpack.c.b16 %v2695, %v2693
        %v2922 = vpack.c.b16 %v2698, %v2696
        %v2923 = vpack.c.b16 %v2699, %v2697
        %v2924 = vpack.c.b16 %v2702, %v2700
        %v2925 = vpack.c.b16 %v2703, %v2701
        %v2926 = vpack.c.b16 %v2706, %v2704
        %v2927 = vpack.c.b16 %v2707, %v2705
        %v2928 = vpack.c.b16 %v2710, %v2708
        %v2929 = vpack.c.b16 %v2711, %v2709
        %v2930 = vpack.c.b16 %v2714, %v2712
        %v2931 = vpack.c.b16 %v2715, %v2713
        %v2932 = vpack.c.b16 %v2718, %v2716
        %v2933 = vpack.c.b16 %v2719, %v2717
        %v2934 = vpack.c.b16 %v2722, %v2720
        %v2935 = vpack.c.b16 %v2723, %v2721
        %v2936 = vpack.c.b16 %v2726, %v2724
        %v2937 = vpack.c.b16 %v2727, %v2725
        %v2938 = vpack.c.b16 %v2730, %v2728
        %v2939 = vpack.c.b16 %v2731, %v2729
        %v2940 = vpack.c.b16 %v2734, %v2732
        %v2941 = vpack.c.b16 %v2735, %v2733
        %v2942 = vpack.c.b16 %v2738, %v2736
        %v2943 = vpack.c.b16 %v2739, %v2737
        %v2944 = vpack.c.b16 %v2742, %v2740
        %v2945 = vpack.c.b16 %v2743, %v2741
        %v2946 = vpack.c.b16 %v2746, %v2744
        %v2947 = vpack.c.b16 %v2747, %v2745
        %v2948 = vpack.c.b16 %v2750, %v2748
        %v2949 = vpack.c.b16 %v2751, %v2749
        %v2950 = vpack.c.b16 %v2754, %v2752
        %v2951 = vpack.c.b16 %v2755, %v2753
        %v2952 = vpack.c.b16 %v2758, %v2756
        %v2953 = vpack.c.b16 %v2759, %v2757
        %v2954 = vpack.c.b16 %v2762, %v2760
        %v2955 = vpack.c.b16 %v2763, %v2761
        %v2956 = vpack.c.b16 %v2766, %v2764
        %v2957 = vpack.c.b16 %v2767, %v2765
        %v2958 = vpack.c.b16 %v2770, %v2768
        %v2959 = vpack.c.b16 %v2771, %v2769
        %v2960 = vpack.c.b16 %v2774, %v2772
        %v2961 = vpack.c.b16 %v2775, %v2773
        %v2962 = vpack.c.b16 %v2778, %v2776
        %v2963 = vpack.c.b16 %v2779, %v2777
        %v2964 = vpack.c.b16 %v2782, %v2780
        %v2965 = vpack.c.b16 %v2783, %v2781
        %v2966 = vpack.c.b16 %v2786, %v2784
        %v2967 = vpack.c.b16 %v2787, %v2785
        %v2968 = vpack.c.b16 %v2790, %v2788
        %v2969 = vpack.c.b16 %v2791, %v2789
        %v2970 = vpack.c.b16 %v2794, %v2792
        %v2971 = vpack.c.b16 %v2795, %v2793
        %v2972 = vpack.c.b16 %v2798, %v2796
        %v2973 = vpack.c.b16 %v2799, %v2797
        %v2974 = vpack.c.b16 %v2802, %v2800
        %v2975 = vpack.c.b16 %v2803, %v2801
        %v2976 = vpack.c.b16 %v2806, %v2804
        %v2977 = vpack.c.b16 %v2807, %v2805
        %v2978 = vpack.c.b16 %v2810, %v2808
        %v2979 = vpack.c.b16 %v2811, %v2809
        %v2980 = vpack.c.b16 %v2814, %v2812
        %v2981 = vpack.c.b16 %v2815, %v2813
        %v2982 = vpack.c.b16 %v2818, %v2816
        %v2983 = vpack.c.b16 %v2819, %v2817
        %v2984 = vpack.c.b16 %v2822, %v2820
        %v2985 = vpack.c.b16 %v2823, %v2821
        %v2986 = vpack.c.b16 %v2826, %v2824
        %v2987 = vpack.c.b16 %v2827, %v2825
        %v2988 = vpack.c.b16 %v2830, %v2828
        %v2989 = vpack.c.b16 %v2831, %v2829
        %v2990 = vpack.c.b16 %v2834, %v2832
        %v2991 = vpack.c.b16 %v2835, %v2833
        %v2992 = vpack.c.b16 %v2838, %v2836
        %v2993 = vpack.c.b16 %v2839, %v2837
        %v2994 = vpack.c.b16 %v2842, %v2840
        %v2995 = vpack.c.b16 %v2843, %v2841
        %v2996 = vpack.c.b16 %v2846, %v2844
        %v2997 = vpack.c.b16 %v2847, %v2845
        %v2998 = vpack.c.b16 %v2850, %v2848
        %v2999 = vpack.c.b16 %v2851, %v2849
        %v3000 = vpack.c.b16 %v2854, %v2852
        %v3001 = vpack.c.b16 %v2855, %v2853
        %v3002 = vpack.c.b16 %v2858, %v2856
        %v3003 = vpack.c.b16 %v2859, %v2857
        %3148 = vmatpush.bf16.msra.mxu0 %v2874
        %3149 = vmatpush.bf16.msra.mxu0 %v2872
        %3150 = vmatpush.bf16.msra.mxu0 %v2870
        %3151 = vmatpush.bf16.msra.mxu0 %v2868
        %3152 = vmatpush.bf16.msra.mxu0 %v2866
        %3153 = vmatpush.bf16.msra.mxu0 %v2864
        %3154 = vmatpush.bf16.msra.mxu0 %v2862
        %3155 = vmatpush.bf16.msra.mxu0 %v2860
        %3156 = vmatmul.bf16.gmra.mxu0 %v2284
        %v3157 = vpop.f32.mrf.mxu0
        %v3158 = vadd.f32 %v2056, %v3157
        %v3159 = vpop.f32.mrf.mxu0
        %v3160 = vadd.f32 %v2056, %v3159
        %3161 = vmatmul.bf16.gmra.mxu0 %v2293
        %v3162 = vpop.f32.mrf.mxu0
        %v3163 = vadd.f32 %v2056, %v3162
        %v3164 = vpop.f32.mrf.mxu0
        %v3165 = vadd.f32 %v2056, %v3164
        %3166 = vmatmul.bf16.gmra.mxu0 %v2302
        %v3167 = vpop.f32.mrf.mxu0
        %v3168 = vadd.f32 %v2056, %v3167
        %v3169 = vpop.f32.mrf.mxu0
        %v3170 = vadd.f32 %v2056, %v3169
        %3171 = vmatmul.bf16.gmra.mxu0 %v2311
        %v3172 = vpop.f32.mrf.mxu0
        %v3173 = vadd.f32 %v2056, %v3172
        %v3174 = vpop.f32.mrf.mxu0
        %v3175 = vadd.f32 %v2056, %v3174
        %3176 = vmatmul.bf16.gmra.mxu0 %v2320
        %v3177 = vpop.f32.mrf.mxu0
        %v3178 = vadd.f32 %v2056, %v3177
        %v3179 = vpop.f32.mrf.mxu0
        %v3180 = vadd.f32 %v2056, %v3179
        %3181 = vmatmul.bf16.gmra.mxu0 %v2329
        %v3182 = vpop.f32.mrf.mxu0
        %v3183 = vadd.f32 %v2056, %v3182
        %v3184 = vpop.f32.mrf.mxu0
        %v3185 = vadd.f32 %v2056, %v3184
        %3186 = vmatmul.bf16.gmra.mxu0 %v2338
        %v3187 = vpop.f32.mrf.mxu0
        %v3188 = vadd.f32 %v2056, %v3187
        %v3189 = vpop.f32.mrf.mxu0
        %v3190 = vadd.f32 %v2056, %v3189
        %3191 = vmatmul.bf16.gmra.mxu0 %v2347
        %v3192 = vpop.f32.mrf.mxu0
        %v3193 = vadd.f32 %v2056, %v3192
        %v3194 = vpop.f32.mrf.mxu0
        %v3195 = vadd.f32 %v2056, %v3194
        %3196 = vdwg.mxu0
        %3197 = vmatpush.bf16.msra.mxu0 %v2890
        %3198 = vmatpush.bf16.msra.mxu0 %v2888
        %3199 = vmatpush.bf16.msra.mxu0 %v2886
        %3200 = vmatpush.bf16.msra.mxu0 %v2884
        %3201 = vmatpush.bf16.msra.mxu0 %v2882
        %3202 = vmatpush.bf16.msra.mxu0 %v2880
        %3203 = vmatpush.bf16.msra.mxu0 %v2878
        %3204 = vmatpush.bf16.msra.mxu0 %v2876
        %3205 = vmatmul.bf16.gmra.mxu0 %v2285
        %v3206 = vpop.f32.mrf.mxu0
        %v3207 = vadd.f32 %v3158, %v3206
        %v3208 = vpop.f32.mrf.mxu0
        %v3209 = vadd.f32 %v3160, %v3208
        %3210 = vmatmul.bf16.gmra.mxu0 %v2294
        %v3211 = vpop.f32.mrf.mxu0
        %v3212 = vadd.f32 %v3163, %v3211
        %v3213 = vpop.f32.mrf.mxu0
        %v3214 = vadd.f32 %v3165, %v3213
        %3215 = vmatmul.bf16.gmra.mxu0 %v2303
        %v3216 = vpop.f32.mrf.mxu0
        %v3217 = vadd.f32 %v3168, %v3216
        %v3218 = vpop.f32.mrf.mxu0
        %v3219 = vadd.f32 %v3170, %v3218
        %3220 = vmatmul.bf16.gmra.mxu0 %v2312
        %v3221 = vpop.f32.mrf.mxu0
        %v3222 = vadd.f32 %v3173, %v3221
        %v3223 = vpop.f32.mrf.mxu0
        %v3224 = vadd.f32 %v3175, %v3223
        %3225 = vmatmul.bf16.gmra.mxu0 %v2321
        %v3226 = vpop.f32.mrf.mxu0
        %v3227 = vadd.f32 %v3178, %v3226
        %v3228 = vpop.f32.mrf.mxu0
        %v3229 = vadd.f32 %v3180, %v3228
        %3230 = vmatmul.bf16.gmra.mxu0 %v2330
        %v3231 = vpop.f32.mrf.mxu0
        %v3232 = vadd.f32 %v3183, %v3231
        %v3233 = vpop.f32.mrf.mxu0
        %v3234 = vadd.f32 %v3185, %v3233
        %3235 = vmatmul.bf16.gmra.mxu0 %v2339
        %v3236 = vpop.f32.mrf.mxu0
        %v3237 = vadd.f32 %v3188, %v3236
        %v3238 = vpop.f32.mrf.mxu0
        %v3239 = vadd.f32 %v3190, %v3238
        %3240 = vmatmul.bf16.gmra.mxu0 %v2348
        %v3241 = vpop.f32.mrf.mxu0
        %v3242 = vadd.f32 %v3193, %v3241
        %v3243 = vpop.f32.mrf.mxu0
        %v3244 = vadd.f32 %v3195, %v3243
        %3245 = vdwg.mxu0
        %3246 = vmatpush.bf16.msra.mxu0 %v2906
        %3247 = vmatpush.bf16.msra.mxu0 %v2904
        %3248 = vmatpush.bf16.msra.mxu0 %v2902
        %3249 = vmatpush.bf16.msra.mxu0 %v2900
        %3250 = vmatpush.bf16.msra.mxu0 %v2898
        %3251 = vmatpush.bf16.msra.mxu0 %v2896
        %3252 = vmatpush.bf16.msra.mxu0 %v2894
        %3253 = vmatpush.bf16.msra.mxu0 %v2892
        %3254 = vmatmul.bf16.gmra.mxu0 %v2286
        %v3255 = vpop.f32.mrf.mxu0
        %v3256 = vadd.f32 %v3207, %v3255
        %v3257 = vpop.f32.mrf.mxu0
        %v3258 = vadd.f32 %v3209, %v3257
        %3259 = vmatmul.bf16.gmra.mxu0 %v2295
        %v3260 = vpop.f32.mrf.mxu0
        %v3261 = vadd.f32 %v3212, %v3260
        %v3262 = vpop.f32.mrf.mxu0
        %v3263 = vadd.f32 %v3214, %v3262
        %3264 = vmatmul.bf16.gmra.mxu0 %v2304
        %v3265 = vpop.f32.mrf.mxu0
        %v3266 = vadd.f32 %v3217, %v3265
        %v3267 = vpop.f32.mrf.mxu0
        %v3268 = vadd.f32 %v3219, %v3267
        %3269 = vmatmul.bf16.gmra.mxu0 %v2313
        %v3270 = vpop.f32.mrf.mxu0
        %v3271 = vadd.f32 %v3222, %v3270
        %v3272 = vpop.f32.mrf.mxu0
        %v3273 = vadd.f32 %v3224, %v3272
        %3274 = vmatmul.bf16.gmra.mxu0 %v2322
        %v3275 = vpop.f32.mrf.mxu0
        %v3276 = vadd.f32 %v3227, %v3275
        %v3277 = vpop.f32.mrf.mxu0
        %v3278 = vadd.f32 %v3229, %v3277
        %3279 = vmatmul.bf16.gmra.mxu0 %v2331
        %v3280 = vpop.f32.mrf.mxu0
        %v3281 = vadd.f32 %v3232, %v3280
        %v3282 = vpop.f32.mrf.mxu0
        %v3283 = vadd.f32 %v3234, %v3282
        %3284 = vmatmul.bf16.gmra.mxu0 %v2340
        %v3285 = vpop.f32.mrf.mxu0
        %v3286 = vadd.f32 %v3237, %v3285
        %v3287 = vpop.f32.mrf.mxu0
        %v3288 = vadd.f32 %v3239, %v3287
        %3289 = vmatmul.bf16.gmra.mxu0 %v2349
        %v3290 = vpop.f32.mrf.mxu0
        %v3291 = vadd.f32 %v3242, %v3290
        %v3292 = vpop.f32.mrf.mxu0
        %v3293 = vadd.f32 %v3244, %v3292
        %3294 = vdwg.mxu0
        %3295 = vmatpush.bf16.msra.mxu0 %v2922
        %3296 = vmatpush.bf16.msra.mxu0 %v2920
        %3297 = vmatpush.bf16.msra.mxu0 %v2918
        %3298 = vmatpush.bf16.msra.mxu0 %v2916
        %3299 = vmatpush.bf16.msra.mxu0 %v2914
        %3300 = vmatpush.bf16.msra.mxu0 %v2912
        %3301 = vmatpush.bf16.msra.mxu0 %v2910
        %3302 = vmatpush.bf16.msra.mxu0 %v2908
        %3303 = vmatmul.bf16.gmra.mxu0 %v2287
        %v3304 = vpop.f32.mrf.mxu0
        %v3305 = vadd.f32 %v3256, %v3304
        %v3306 = vpop.f32.mrf.mxu0
        %v3307 = vadd.f32 %v3258, %v3306
        %3308 = vmatmul.bf16.gmra.mxu0 %v2296
        %v3309 = vpop.f32.mrf.mxu0
        %v3310 = vadd.f32 %v3261, %v3309
        %v3311 = vpop.f32.mrf.mxu0
        %v3312 = vadd.f32 %v3263, %v3311
        %3313 = vmatmul.bf16.gmra.mxu0 %v2305
        %v3314 = vpop.f32.mrf.mxu0
        %v3315 = vadd.f32 %v3266, %v3314
        %v3316 = vpop.f32.mrf.mxu0
        %v3317 = vadd.f32 %v3268, %v3316
        %3318 = vmatmul.bf16.gmra.mxu0 %v2314
        %v3319 = vpop.f32.mrf.mxu0
        %v3320 = vadd.f32 %v3271, %v3319
        %v3321 = vpop.f32.mrf.mxu0
        %v3322 = vadd.f32 %v3273, %v3321
        %3323 = vmatmul.bf16.gmra.mxu0 %v2323
        %v3324 = vpop.f32.mrf.mxu0
        %v3325 = vadd.f32 %v3276, %v3324
        %v3326 = vpop.f32.mrf.mxu0
        %v3327 = vadd.f32 %v3278, %v3326
        %3328 = vmatmul.bf16.gmra.mxu0 %v2332
        %v3329 = vpop.f32.mrf.mxu0
        %v3330 = vadd.f32 %v3281, %v3329
        %v3331 = vpop.f32.mrf.mxu0
        %v3332 = vadd.f32 %v3283, %v3331
        %3333 = vmatmul.bf16.gmra.mxu0 %v2341
        %v3334 = vpop.f32.mrf.mxu0
        %v3335 = vadd.f32 %v3286, %v3334
        %v3336 = vpop.f32.mrf.mxu0
        %v3337 = vadd.f32 %v3288, %v3336
        %3338 = vmatmul.bf16.gmra.mxu0 %v2350
        %v3339 = vpop.f32.mrf.mxu0
        %v3340 = vadd.f32 %v3291, %v3339
        %v3341 = vpop.f32.mrf.mxu0
        %v3342 = vadd.f32 %v3293, %v3341
        %3343 = vdwg.mxu0
        %3344 = vmatpush.bf16.msra.mxu0 %v2938
        %3345 = vmatpush.bf16.msra.mxu0 %v2936
        %3346 = vmatpush.bf16.msra.mxu0 %v2934
        %3347 = vmatpush.bf16.msra.mxu0 %v2932
        %3348 = vmatpush.bf16.msra.mxu0 %v2930
        %3349 = vmatpush.bf16.msra.mxu0 %v2928
        %3350 = vmatpush.bf16.msra.mxu0 %v2926
        %3351 = vmatpush.bf16.msra.mxu0 %v2924
        %3352 = vmatmul.bf16.gmra.mxu0 %v2288
        %v3353 = vpop.f32.mrf.mxu0
        %v3354 = vadd.f32 %v3305, %v3353
        %v3355 = vpop.f32.mrf.mxu0
        %v3356 = vadd.f32 %v3307, %v3355
        %3357 = vmatmul.bf16.gmra.mxu0 %v2297
        %v3358 = vpop.f32.mrf.mxu0
        %v3359 = vadd.f32 %v3310, %v3358
        %v3360 = vpop.f32.mrf.mxu0
        %v3361 = vadd.f32 %v3312, %v3360
        %3362 = vmatmul.bf16.gmra.mxu0 %v2306
        %v3363 = vpop.f32.mrf.mxu0
        %v3364 = vadd.f32 %v3315, %v3363
        %v3365 = vpop.f32.mrf.mxu0
        %v3366 = vadd.f32 %v3317, %v3365
        %3367 = vmatmul.bf16.gmra.mxu0 %v2315
        %v3368 = vpop.f32.mrf.mxu0
        %v3369 = vadd.f32 %v3320, %v3368
        %v3370 = vpop.f32.mrf.mxu0
        %v3371 = vadd.f32 %v3322, %v3370
        %3372 = vmatmul.bf16.gmra.mxu0 %v2324
        %v3373 = vpop.f32.mrf.mxu0
        %v3374 = vadd.f32 %v3325, %v3373
        %v3375 = vpop.f32.mrf.mxu0
        %v3376 = vadd.f32 %v3327, %v3375
        %3377 = vmatmul.bf16.gmra.mxu0 %v2333
        %v3378 = vpop.f32.mrf.mxu0
        %v3379 = vadd.f32 %v3330, %v3378
        %v3380 = vpop.f32.mrf.mxu0
        %v3381 = vadd.f32 %v3332, %v3380
        %3382 = vmatmul.bf16.gmra.mxu0 %v2342
        %v3383 = vpop.f32.mrf.mxu0
        %v3384 = vadd.f32 %v3335, %v3383
        %v3385 = vpop.f32.mrf.mxu0
        %v3386 = vadd.f32 %v3337, %v3385
        %3387 = vmatmul.bf16.gmra.mxu0 %v2351
        %v3388 = vpop.f32.mrf.mxu0
        %v3389 = vadd.f32 %v3340, %v3388
        %v3390 = vpop.f32.mrf.mxu0
        %v3391 = vadd.f32 %v3342, %v3390
        %3392 = vdwg.mxu0
        %3393 = vmatpush.bf16.msra.mxu0 %v2954
        %3394 = vmatpush.bf16.msra.mxu0 %v2952
        %3395 = vmatpush.bf16.msra.mxu0 %v2950
        %3396 = vmatpush.bf16.msra.mxu0 %v2948
        %3397 = vmatpush.bf16.msra.mxu0 %v2946
        %3398 = vmatpush.bf16.msra.mxu0 %v2944
        %3399 = vmatpush.bf16.msra.mxu0 %v2942
        %3400 = vmatpush.bf16.msra.mxu0 %v2940
        %3401 = vmatmul.bf16.gmra.mxu0 %v2289
        %v3402 = vpop.f32.mrf.mxu0
        %v3403 = vadd.f32 %v3354, %v3402
        %v3404 = vpop.f32.mrf.mxu0
        %v3405 = vadd.f32 %v3356, %v3404
        %3406 = vmatmul.bf16.gmra.mxu0 %v2298
        %v3407 = vpop.f32.mrf.mxu0
        %v3408 = vadd.f32 %v3359, %v3407
        %v3409 = vpop.f32.mrf.mxu0
        %v3410 = vadd.f32 %v3361, %v3409
        %3411 = vmatmul.bf16.gmra.mxu0 %v2307
        %v3412 = vpop.f32.mrf.mxu0
        %v3413 = vadd.f32 %v3364, %v3412
        %v3414 = vpop.f32.mrf.mxu0
        %v3415 = vadd.f32 %v3366, %v3414
        %3416 = vmatmul.bf16.gmra.mxu0 %v2316
        %v3417 = vpop.f32.mrf.mxu0
        %v3418 = vadd.f32 %v3369, %v3417
        %v3419 = vpop.f32.mrf.mxu0
        %v3420 = vadd.f32 %v3371, %v3419
        %3421 = vmatmul.bf16.gmra.mxu0 %v2325
        %v3422 = vpop.f32.mrf.mxu0
        %v3423 = vadd.f32 %v3374, %v3422
        %v3424 = vpop.f32.mrf.mxu0
        %v3425 = vadd.f32 %v3376, %v3424
        %3426 = vmatmul.bf16.gmra.mxu0 %v2334
        %v3427 = vpop.f32.mrf.mxu0
        %v3428 = vadd.f32 %v3379, %v3427
        %v3429 = vpop.f32.mrf.mxu0
        %v3430 = vadd.f32 %v3381, %v3429
        %3431 = vmatmul.bf16.gmra.mxu0 %v2343
        %v3432 = vpop.f32.mrf.mxu0
        %v3433 = vadd.f32 %v3384, %v3432
        %v3434 = vpop.f32.mrf.mxu0
        %v3435 = vadd.f32 %v3386, %v3434
        %3436 = vmatmul.bf16.gmra.mxu0 %v2352
        %v3437 = vpop.f32.mrf.mxu0
        %v3438 = vadd.f32 %v3389, %v3437
        %v3439 = vpop.f32.mrf.mxu0
        %v3440 = vadd.f32 %v3391, %v3439
        %3441 = vdwg.mxu0
        %3442 = vmatpush.bf16.msra.mxu0 %v2970
        %3443 = vmatpush.bf16.msra.mxu0 %v2968
        %3444 = vmatpush.bf16.msra.mxu0 %v2966
        %3445 = vmatpush.bf16.msra.mxu0 %v2964
        %3446 = vmatpush.bf16.msra.mxu0 %v2962
        %3447 = vmatpush.bf16.msra.mxu0 %v2960
        %3448 = vmatpush.bf16.msra.mxu0 %v2958
        %3449 = vmatpush.bf16.msra.mxu0 %v2956
        %3450 = vmatmul.bf16.gmra.mxu0 %v2290
        %v3451 = vpop.f32.mrf.mxu0
        %v3452 = vadd.f32 %v3403, %v3451
        %v3453 = vpop.f32.mrf.mxu0
        %v3454 = vadd.f32 %v3405, %v3453
        %3455 = vmatmul.bf16.gmra.mxu0 %v2299
        %v3456 = vpop.f32.mrf.mxu0
        %v3457 = vadd.f32 %v3408, %v3456
        %v3458 = vpop.f32.mrf.mxu0
        %v3459 = vadd.f32 %v3410, %v3458
        %3460 = vmatmul.bf16.gmra.mxu0 %v2308
        %v3461 = vpop.f32.mrf.mxu0
        %v3462 = vadd.f32 %v3413, %v3461
        %v3463 = vpop.f32.mrf.mxu0
        %v3464 = vadd.f32 %v3415, %v3463
        %3465 = vmatmul.bf16.gmra.mxu0 %v2317
        %v3466 = vpop.f32.mrf.mxu0
        %v3467 = vadd.f32 %v3418, %v3466
        %v3468 = vpop.f32.mrf.mxu0
        %v3469 = vadd.f32 %v3420, %v3468
        %3470 = vmatmul.bf16.gmra.mxu0 %v2326
        %v3471 = vpop.f32.mrf.mxu0
        %v3472 = vadd.f32 %v3423, %v3471
        %v3473 = vpop.f32.mrf.mxu0
        %v3474 = vadd.f32 %v3425, %v3473
        %3475 = vmatmul.bf16.gmra.mxu0 %v2335
        %v3476 = vpop.f32.mrf.mxu0
        %v3477 = vadd.f32 %v3428, %v3476
        %v3478 = vpop.f32.mrf.mxu0
        %v3479 = vadd.f32 %v3430, %v3478
        %3480 = vmatmul.bf16.gmra.mxu0 %v2344
        %v3481 = vpop.f32.mrf.mxu0
        %v3482 = vadd.f32 %v3433, %v3481
        %v3483 = vpop.f32.mrf.mxu0
        %v3484 = vadd.f32 %v3435, %v3483
        %3485 = vmatmul.bf16.gmra.mxu0 %v2353
        %v3486 = vpop.f32.mrf.mxu0
        %v3487 = vadd.f32 %v3438, %v3486
        %v3488 = vpop.f32.mrf.mxu0
        %v3489 = vadd.f32 %v3440, %v3488
        %3490 = vdwg.mxu0
        %3491 = vmatpush.bf16.msra.mxu0 %v2986
        %3492 = vmatpush.bf16.msra.mxu0 %v2984
        %3493 = vmatpush.bf16.msra.mxu0 %v2982
        %3494 = vmatpush.bf16.msra.mxu0 %v2980
        %3495 = vmatpush.bf16.msra.mxu0 %v2978
        %3496 = vmatpush.bf16.msra.mxu0 %v2976
        %3497 = vmatpush.bf16.msra.mxu0 %v2974
        %3498 = vmatpush.bf16.msra.mxu0 %v2972
        %3499 = vmatmul.bf16.gmra.mxu0 %v2291
        %v3500 = vpop.f32.mrf.mxu0
        %v3501 = vadd.f32 %v3452, %v3500
        %v3502 = vpop.f32.mrf.mxu0
        %v3503 = vadd.f32 %v3454, %v3502
        %3504 = vmatmul.bf16.gmra.mxu0 %v2300
        %v3505 = vpop.f32.mrf.mxu0
        %v3506 = vadd.f32 %v3457, %v3505
        %v3507 = vpop.f32.mrf.mxu0
        %v3508 = vadd.f32 %v3459, %v3507
        %3509 = vmatmul.bf16.gmra.mxu0 %v2309
        %v3510 = vpop.f32.mrf.mxu0
        %v3511 = vadd.f32 %v3462, %v3510
        %v3512 = vpop.f32.mrf.mxu0
        %v3513 = vadd.f32 %v3464, %v3512
        %3514 = vmatmul.bf16.gmra.mxu0 %v2318
        %v3515 = vpop.f32.mrf.mxu0
        %v3516 = vadd.f32 %v3467, %v3515
        %v3517 = vpop.f32.mrf.mxu0
        %v3518 = vadd.f32 %v3469, %v3517
        %3519 = vmatmul.bf16.gmra.mxu0 %v2327
        %v3520 = vpop.f32.mrf.mxu0
        %v3521 = vadd.f32 %v3472, %v3520
        %v3522 = vpop.f32.mrf.mxu0
        %v3523 = vadd.f32 %v3474, %v3522
        %3524 = vmatmul.bf16.gmra.mxu0 %v2336
        %v3525 = vpop.f32.mrf.mxu0
        %v3526 = vadd.f32 %v3477, %v3525
        %v3527 = vpop.f32.mrf.mxu0
        %v3528 = vadd.f32 %v3479, %v3527
        %3529 = vmatmul.bf16.gmra.mxu0 %v2345
        %v3530 = vpop.f32.mrf.mxu0
        %v3531 = vadd.f32 %v3482, %v3530
        %v3532 = vpop.f32.mrf.mxu0
        %v3533 = vadd.f32 %v3484, %v3532
        %3534 = vmatmul.bf16.gmra.mxu0 %v2354
        %v3535 = vpop.f32.mrf.mxu0
        %v3536 = vadd.f32 %v3487, %v3535
        %v3537 = vpop.f32.mrf.mxu0
        %v3538 = vadd.f32 %v3489, %v3537
        %3539 = vdwg.mxu0
        %3540 = vmatpush.bf16.msra.mxu0 %v3002
        %3541 = vmatpush.bf16.msra.mxu0 %v3000
        %3542 = vmatpush.bf16.msra.mxu0 %v2998
        %3543 = vmatpush.bf16.msra.mxu0 %v2996
        %3544 = vmatpush.bf16.msra.mxu0 %v2994
        %3545 = vmatpush.bf16.msra.mxu0 %v2992
        %3546 = vmatpush.bf16.msra.mxu0 %v2990
        %3547 = vmatpush.bf16.msra.mxu0 %v2988
        %3548 = vmatmul.bf16.gmra.mxu0 %v2292
        %v3549 = vpop.f32.mrf.mxu0
        %v3550 = vadd.f32 %v3501, %v3549
        %v3551 = vpop.f32.mrf.mxu0
        %v3552 = vadd.f32 %v3503, %v3551
        %3553 = vmatmul.bf16.gmra.mxu0 %v2301
        %v3554 = vpop.f32.mrf.mxu0
        %v3555 = vadd.f32 %v3506, %v3554
        %v3556 = vpop.f32.mrf.mxu0
        %v3557 = vadd.f32 %v3508, %v3556
        %3558 = vmatmul.bf16.gmra.mxu0 %v2310
        %v3559 = vpop.f32.mrf.mxu0
        %v3560 = vadd.f32 %v3511, %v3559
        %v3561 = vpop.f32.mrf.mxu0
        %v3562 = vadd.f32 %v3513, %v3561
        %3563 = vmatmul.bf16.gmra.mxu0 %v2319
        %v3564 = vpop.f32.mrf.mxu0
        %v3565 = vadd.f32 %v3516, %v3564
        %v3566 = vpop.f32.mrf.mxu0
        %v3567 = vadd.f32 %v3518, %v3566
        %3568 = vmatmul.bf16.gmra.mxu0 %v2328
        %v3569 = vpop.f32.mrf.mxu0
        %v3570 = vadd.f32 %v3521, %v3569
        %v3571 = vpop.f32.mrf.mxu0
        %v3572 = vadd.f32 %v3523, %v3571
        %3573 = vmatmul.bf16.gmra.mxu0 %v2337
        %v3574 = vpop.f32.mrf.mxu0
        %v3575 = vadd.f32 %v3526, %v3574
        %v3576 = vpop.f32.mrf.mxu0
        %v3577 = vadd.f32 %v3528, %v3576
        %3578 = vmatmul.bf16.gmra.mxu0 %v2346
        %v3579 = vpop.f32.mrf.mxu0
        %v3580 = vadd.f32 %v3531, %v3579
        %v3581 = vpop.f32.mrf.mxu0
        %v3582 = vadd.f32 %v3533, %v3581
        %3583 = vmatmul.bf16.gmra.mxu0 %v2355
        %v3584 = vpop.f32.mrf.mxu0
        %v3585 = vadd.f32 %v3536, %v3584
        %v3586 = vpop.f32.mrf.mxu0
        %v3587 = vadd.f32 %v3538, %v3586
        %3588 = vdwg.mxu0
        %3589 = vmatpush.bf16.msra.mxu0 %v2875
        %3590 = vmatpush.bf16.msra.mxu0 %v2873
        %3591 = vmatpush.bf16.msra.mxu0 %v2871
        %3592 = vmatpush.bf16.msra.mxu0 %v2869
        %3593 = vmatpush.bf16.msra.mxu0 %v2867
        %3594 = vmatpush.bf16.msra.mxu0 %v2865
        %3595 = vmatpush.bf16.msra.mxu0 %v2863
        %3596 = vmatpush.bf16.msra.mxu0 %v2861
        %3597 = vmatmul.bf16.gmra.mxu0 %v2284
        %v3598 = vpop.f32.mrf.mxu0
        %v3599 = vadd.f32 %v2057, %v3598
        %v3600 = vpop.f32.mrf.mxu0
        %v3601 = vadd.f32 %v2057, %v3600
        %3602 = vmatmul.bf16.gmra.mxu0 %v2293
        %v3603 = vpop.f32.mrf.mxu0
        %v3604 = vadd.f32 %v2057, %v3603
        %v3605 = vpop.f32.mrf.mxu0
        %v3606 = vadd.f32 %v2057, %v3605
        %3607 = vmatmul.bf16.gmra.mxu0 %v2302
        %v3608 = vpop.f32.mrf.mxu0
        %v3609 = vadd.f32 %v2057, %v3608
        %v3610 = vpop.f32.mrf.mxu0
        %v3611 = vadd.f32 %v2057, %v3610
        %3612 = vmatmul.bf16.gmra.mxu0 %v2311
        %v3613 = vpop.f32.mrf.mxu0
        %v3614 = vadd.f32 %v2057, %v3613
        %v3615 = vpop.f32.mrf.mxu0
        %v3616 = vadd.f32 %v2057, %v3615
        %3617 = vmatmul.bf16.gmra.mxu0 %v2320
        %v3618 = vpop.f32.mrf.mxu0
        %v3619 = vadd.f32 %v2057, %v3618
        %v3620 = vpop.f32.mrf.mxu0
        %v3621 = vadd.f32 %v2057, %v3620
        %3622 = vmatmul.bf16.gmra.mxu0 %v2329
        %v3623 = vpop.f32.mrf.mxu0
        %v3624 = vadd.f32 %v2057, %v3623
        %v3625 = vpop.f32.mrf.mxu0
        %v3626 = vadd.f32 %v2057, %v3625
        %3627 = vmatmul.bf16.gmra.mxu0 %v2338
        %v3628 = vpop.f32.mrf.mxu0
        %v3629 = vadd.f32 %v2057, %v3628
        %v3630 = vpop.f32.mrf.mxu0
        %v3631 = vadd.f32 %v2057, %v3630
        %3632 = vmatmul.bf16.gmra.mxu0 %v2347
        %v3633 = vpop.f32.mrf.mxu0
        %v3634 = vadd.f32 %v2057, %v3633
        %v3635 = vpop.f32.mrf.mxu0
        %v3636 = vadd.f32 %v2057, %v3635
        %3637 = vdwg.mxu0
        %3638 = vmatpush.bf16.msra.mxu0 %v2891
        %3639 = vmatpush.bf16.msra.mxu0 %v2889
        %3640 = vmatpush.bf16.msra.mxu0 %v2887
        %3641 = vmatpush.bf16.msra.mxu0 %v2885
        %3642 = vmatpush.bf16.msra.mxu0 %v2883
        %3643 = vmatpush.bf16.msra.mxu0 %v2881
        %3644 = vmatpush.bf16.msra.mxu0 %v2879
        %3645 = vmatpush.bf16.msra.mxu0 %v2877
        %3646 = vmatmul.bf16.gmra.mxu0 %v2285
        %v3647 = vpop.f32.mrf.mxu0
        %v3648 = vadd.f32 %v3599, %v3647
        %v3649 = vpop.f32.mrf.mxu0
        %v3650 = vadd.f32 %v3601, %v3649
        %3651 = vmatmul.bf16.gmra.mxu0 %v2294
        %v3652 = vpop.f32.mrf.mxu0
        %v3653 = vadd.f32 %v3604, %v3652
        %v3654 = vpop.f32.mrf.mxu0
        %v3655 = vadd.f32 %v3606, %v3654
        %3656 = vmatmul.bf16.gmra.mxu0 %v2303
        %v3657 = vpop.f32.mrf.mxu0
        %v3658 = vadd.f32 %v3609, %v3657
        %v3659 = vpop.f32.mrf.mxu0
        %v3660 = vadd.f32 %v3611, %v3659
        %3661 = vmatmul.bf16.gmra.mxu0 %v2312
        %v3662 = vpop.f32.mrf.mxu0
        %v3663 = vadd.f32 %v3614, %v3662
        %v3664 = vpop.f32.mrf.mxu0
        %v3665 = vadd.f32 %v3616, %v3664
        %3666 = vmatmul.bf16.gmra.mxu0 %v2321
        %v3667 = vpop.f32.mrf.mxu0
        %v3668 = vadd.f32 %v3619, %v3667
        %v3669 = vpop.f32.mrf.mxu0
        %v3670 = vadd.f32 %v3621, %v3669
        %3671 = vmatmul.bf16.gmra.mxu0 %v2330
        %v3672 = vpop.f32.mrf.mxu0
        %v3673 = vadd.f32 %v3624, %v3672
        %v3674 = vpop.f32.mrf.mxu0
        %v3675 = vadd.f32 %v3626, %v3674
        %3676 = vmatmul.bf16.gmra.mxu0 %v2339
        %v3677 = vpop.f32.mrf.mxu0
        %v3678 = vadd.f32 %v3629, %v3677
        %v3679 = vpop.f32.mrf.mxu0
        %v3680 = vadd.f32 %v3631, %v3679
        %3681 = vmatmul.bf16.gmra.mxu0 %v2348
        %v3682 = vpop.f32.mrf.mxu0
        %v3683 = vadd.f32 %v3634, %v3682
        %v3684 = vpop.f32.mrf.mxu0
        %v3685 = vadd.f32 %v3636, %v3684
        %3686 = vdwg.mxu0
        %3687 = vmatpush.bf16.msra.mxu0 %v2907
        %3688 = vmatpush.bf16.msra.mxu0 %v2905
        %3689 = vmatpush.bf16.msra.mxu0 %v2903
        %3690 = vmatpush.bf16.msra.mxu0 %v2901
        %3691 = vmatpush.bf16.msra.mxu0 %v2899
        %3692 = vmatpush.bf16.msra.mxu0 %v2897
        %3693 = vmatpush.bf16.msra.mxu0 %v2895
        %3694 = vmatpush.bf16.msra.mxu0 %v2893
        %3695 = vmatmul.bf16.gmra.mxu0 %v2286
        %v3696 = vpop.f32.mrf.mxu0
        %v3697 = vadd.f32 %v3648, %v3696
        %v3698 = vpop.f32.mrf.mxu0
        %v3699 = vadd.f32 %v3650, %v3698
        %3700 = vmatmul.bf16.gmra.mxu0 %v2295
        %v3701 = vpop.f32.mrf.mxu0
        %v3702 = vadd.f32 %v3653, %v3701
        %v3703 = vpop.f32.mrf.mxu0
        %v3704 = vadd.f32 %v3655, %v3703
        %3705 = vmatmul.bf16.gmra.mxu0 %v2304
        %v3706 = vpop.f32.mrf.mxu0
        %v3707 = vadd.f32 %v3658, %v3706
        %v3708 = vpop.f32.mrf.mxu0
        %v3709 = vadd.f32 %v3660, %v3708
        %3710 = vmatmul.bf16.gmra.mxu0 %v2313
        %v3711 = vpop.f32.mrf.mxu0
        %v3712 = vadd.f32 %v3663, %v3711
        %v3713 = vpop.f32.mrf.mxu0
        %v3714 = vadd.f32 %v3665, %v3713
        %3715 = vmatmul.bf16.gmra.mxu0 %v2322
        %v3716 = vpop.f32.mrf.mxu0
        %v3717 = vadd.f32 %v3668, %v3716
        %v3718 = vpop.f32.mrf.mxu0
        %v3719 = vadd.f32 %v3670, %v3718
        %3720 = vmatmul.bf16.gmra.mxu0 %v2331
        %v3721 = vpop.f32.mrf.mxu0
        %v3722 = vadd.f32 %v3673, %v3721
        %v3723 = vpop.f32.mrf.mxu0
        %v3724 = vadd.f32 %v3675, %v3723
        %3725 = vmatmul.bf16.gmra.mxu0 %v2340
        %v3726 = vpop.f32.mrf.mxu0
        %v3727 = vadd.f32 %v3678, %v3726
        %v3728 = vpop.f32.mrf.mxu0
        %v3729 = vadd.f32 %v3680, %v3728
        %3730 = vmatmul.bf16.gmra.mxu0 %v2349
        %v3731 = vpop.f32.mrf.mxu0
        %v3732 = vadd.f32 %v3683, %v3731
        %v3733 = vpop.f32.mrf.mxu0
        %v3734 = vadd.f32 %v3685, %v3733
        %3735 = vdwg.mxu0
        %3736 = vmatpush.bf16.msra.mxu0 %v2923
        %3737 = vmatpush.bf16.msra.mxu0 %v2921
        %3738 = vmatpush.bf16.msra.mxu0 %v2919
        %3739 = vmatpush.bf16.msra.mxu0 %v2917
        %3740 = vmatpush.bf16.msra.mxu0 %v2915
        %3741 = vmatpush.bf16.msra.mxu0 %v2913
        %3742 = vmatpush.bf16.msra.mxu0 %v2911
        %3743 = vmatpush.bf16.msra.mxu0 %v2909
        %3744 = vmatmul.bf16.gmra.mxu0 %v2287
        %v3745 = vpop.f32.mrf.mxu0
        %v3746 = vadd.f32 %v3697, %v3745
        %v3747 = vpop.f32.mrf.mxu0
        %v3748 = vadd.f32 %v3699, %v3747
        %3749 = vmatmul.bf16.gmra.mxu0 %v2296
        %v3750 = vpop.f32.mrf.mxu0
        %v3751 = vadd.f32 %v3702, %v3750
        %v3752 = vpop.f32.mrf.mxu0
        %v3753 = vadd.f32 %v3704, %v3752
        %3754 = vmatmul.bf16.gmra.mxu0 %v2305
        %v3755 = vpop.f32.mrf.mxu0
        %v3756 = vadd.f32 %v3707, %v3755
        %v3757 = vpop.f32.mrf.mxu0
        %v3758 = vadd.f32 %v3709, %v3757
        %3759 = vmatmul.bf16.gmra.mxu0 %v2314
        %v3760 = vpop.f32.mrf.mxu0
        %v3761 = vadd.f32 %v3712, %v3760
        %v3762 = vpop.f32.mrf.mxu0
        %v3763 = vadd.f32 %v3714, %v3762
        %3764 = vmatmul.bf16.gmra.mxu0 %v2323
        %v3765 = vpop.f32.mrf.mxu0
        %v3766 = vadd.f32 %v3717, %v3765
        %v3767 = vpop.f32.mrf.mxu0
        %v3768 = vadd.f32 %v3719, %v3767
        %3769 = vmatmul.bf16.gmra.mxu0 %v2332
        %v3770 = vpop.f32.mrf.mxu0
        %v3771 = vadd.f32 %v3722, %v3770
        %v3772 = vpop.f32.mrf.mxu0
        %v3773 = vadd.f32 %v3724, %v3772
        %3774 = vmatmul.bf16.gmra.mxu0 %v2341
        %v3775 = vpop.f32.mrf.mxu0
        %v3776 = vadd.f32 %v3727, %v3775
        %v3777 = vpop.f32.mrf.mxu0
        %v3778 = vadd.f32 %v3729, %v3777
        %3779 = vmatmul.bf16.gmra.mxu0 %v2350
        %v3780 = vpop.f32.mrf.mxu0
        %v3781 = vadd.f32 %v3732, %v3780
        %v3782 = vpop.f32.mrf.mxu0
        %v3783 = vadd.f32 %v3734, %v3782
        %3784 = vdwg.mxu0
        %3785 = vmatpush.bf16.msra.mxu0 %v2939
        %3786 = vmatpush.bf16.msra.mxu0 %v2937
        %3787 = vmatpush.bf16.msra.mxu0 %v2935
        %3788 = vmatpush.bf16.msra.mxu0 %v2933
        %3789 = vmatpush.bf16.msra.mxu0 %v2931
        %3790 = vmatpush.bf16.msra.mxu0 %v2929
        %3791 = vmatpush.bf16.msra.mxu0 %v2927
        %3792 = vmatpush.bf16.msra.mxu0 %v2925
        %3793 = vmatmul.bf16.gmra.mxu0 %v2288
        %v3794 = vpop.f32.mrf.mxu0
        %v3795 = vadd.f32 %v3746, %v3794
        %v3796 = vpop.f32.mrf.mxu0
        %v3797 = vadd.f32 %v3748, %v3796
        %3798 = vmatmul.bf16.gmra.mxu0 %v2297
        %v3799 = vpop.f32.mrf.mxu0
        %v3800 = vadd.f32 %v3751, %v3799
        %v3801 = vpop.f32.mrf.mxu0
        %v3802 = vadd.f32 %v3753, %v3801
        %3803 = vmatmul.bf16.gmra.mxu0 %v2306
        %v3804 = vpop.f32.mrf.mxu0
        %v3805 = vadd.f32 %v3756, %v3804
        %v3806 = vpop.f32.mrf.mxu0
        %v3807 = vadd.f32 %v3758, %v3806
        %3808 = vmatmul.bf16.gmra.mxu0 %v2315
        %v3809 = vpop.f32.mrf.mxu0
        %v3810 = vadd.f32 %v3761, %v3809
        %v3811 = vpop.f32.mrf.mxu0
        %v3812 = vadd.f32 %v3763, %v3811
        %3813 = vmatmul.bf16.gmra.mxu0 %v2324
        %v3814 = vpop.f32.mrf.mxu0
        %v3815 = vadd.f32 %v3766, %v3814
        %v3816 = vpop.f32.mrf.mxu0
        %v3817 = vadd.f32 %v3768, %v3816
        %3818 = vmatmul.bf16.gmra.mxu0 %v2333
        %v3819 = vpop.f32.mrf.mxu0
        %v3820 = vadd.f32 %v3771, %v3819
        %v3821 = vpop.f32.mrf.mxu0
        %v3822 = vadd.f32 %v3773, %v3821
        %3823 = vmatmul.bf16.gmra.mxu0 %v2342
        %v3824 = vpop.f32.mrf.mxu0
        %v3825 = vadd.f32 %v3776, %v3824
        %v3826 = vpop.f32.mrf.mxu0
        %v3827 = vadd.f32 %v3778, %v3826
        %3828 = vmatmul.bf16.gmra.mxu0 %v2351
        %v3829 = vpop.f32.mrf.mxu0
        %v3830 = vadd.f32 %v3781, %v3829
        %v3831 = vpop.f32.mrf.mxu0
        %v3832 = vadd.f32 %v3783, %v3831
        %3833 = vdwg.mxu0
        %3834 = vmatpush.bf16.msra.mxu0 %v2955
        %3835 = vmatpush.bf16.msra.mxu0 %v2953
        %3836 = vmatpush.bf16.msra.mxu0 %v2951
        %3837 = vmatpush.bf16.msra.mxu0 %v2949
        %3838 = vmatpush.bf16.msra.mxu0 %v2947
        %3839 = vmatpush.bf16.msra.mxu0 %v2945
        %3840 = vmatpush.bf16.msra.mxu0 %v2943
        %3841 = vmatpush.bf16.msra.mxu0 %v2941
        %3842 = vmatmul.bf16.gmra.mxu0 %v2289
        %v3843 = vpop.f32.mrf.mxu0
        %v3844 = vadd.f32 %v3795, %v3843
        %v3845 = vpop.f32.mrf.mxu0
        %v3846 = vadd.f32 %v3797, %v3845
        %3847 = vmatmul.bf16.gmra.mxu0 %v2298
        %v3848 = vpop.f32.mrf.mxu0
        %v3849 = vadd.f32 %v3800, %v3848
        %v3850 = vpop.f32.mrf.mxu0
        %v3851 = vadd.f32 %v3802, %v3850
        %3852 = vmatmul.bf16.gmra.mxu0 %v2307
        %v3853 = vpop.f32.mrf.mxu0
        %v3854 = vadd.f32 %v3805, %v3853
        %v3855 = vpop.f32.mrf.mxu0
        %v3856 = vadd.f32 %v3807, %v3855
        %3857 = vmatmul.bf16.gmra.mxu0 %v2316
        %v3858 = vpop.f32.mrf.mxu0
        %v3859 = vadd.f32 %v3810, %v3858
        %v3860 = vpop.f32.mrf.mxu0
        %v3861 = vadd.f32 %v3812, %v3860
        %3862 = vmatmul.bf16.gmra.mxu0 %v2325
        %v3863 = vpop.f32.mrf.mxu0
        %v3864 = vadd.f32 %v3815, %v3863
        %v3865 = vpop.f32.mrf.mxu0
        %v3866 = vadd.f32 %v3817, %v3865
        %3867 = vmatmul.bf16.gmra.mxu0 %v2334
        %v3868 = vpop.f32.mrf.mxu0
        %v3869 = vadd.f32 %v3820, %v3868
        %v3870 = vpop.f32.mrf.mxu0
        %v3871 = vadd.f32 %v3822, %v3870
        %3872 = vmatmul.bf16.gmra.mxu0 %v2343
        %v3873 = vpop.f32.mrf.mxu0
        %v3874 = vadd.f32 %v3825, %v3873
        %v3875 = vpop.f32.mrf.mxu0
        %v3876 = vadd.f32 %v3827, %v3875
        %3877 = vmatmul.bf16.gmra.mxu0 %v2352
        %v3878 = vpop.f32.mrf.mxu0
        %v3879 = vadd.f32 %v3830, %v3878
        %v3880 = vpop.f32.mrf.mxu0
        %v3881 = vadd.f32 %v3832, %v3880
        %3882 = vdwg.mxu0
        %3883 = vmatpush.bf16.msra.mxu0 %v2971
        %3884 = vmatpush.bf16.msra.mxu0 %v2969
        %3885 = vmatpush.bf16.msra.mxu0 %v2967
        %3886 = vmatpush.bf16.msra.mxu0 %v2965
        %3887 = vmatpush.bf16.msra.mxu0 %v2963
        %3888 = vmatpush.bf16.msra.mxu0 %v2961
        %3889 = vmatpush.bf16.msra.mxu0 %v2959
        %3890 = vmatpush.bf16.msra.mxu0 %v2957
        %3891 = vmatmul.bf16.gmra.mxu0 %v2290
        %v3892 = vpop.f32.mrf.mxu0
        %v3893 = vadd.f32 %v3844, %v3892
        %v3894 = vpop.f32.mrf.mxu0
        %v3895 = vadd.f32 %v3846, %v3894
        %3896 = vmatmul.bf16.gmra.mxu0 %v2299
        %v3897 = vpop.f32.mrf.mxu0
        %v3898 = vadd.f32 %v3849, %v3897
        %v3899 = vpop.f32.mrf.mxu0
        %v3900 = vadd.f32 %v3851, %v3899
        %3901 = vmatmul.bf16.gmra.mxu0 %v2308
        %v3902 = vpop.f32.mrf.mxu0
        %v3903 = vadd.f32 %v3854, %v3902
        %v3904 = vpop.f32.mrf.mxu0
        %v3905 = vadd.f32 %v3856, %v3904
        %3906 = vmatmul.bf16.gmra.mxu0 %v2317
        %v3907 = vpop.f32.mrf.mxu0
        %v3908 = vadd.f32 %v3859, %v3907
        %v3909 = vpop.f32.mrf.mxu0
        %v3910 = vadd.f32 %v3861, %v3909
        %3911 = vmatmul.bf16.gmra.mxu0 %v2326
        %v3912 = vpop.f32.mrf.mxu0
        %v3913 = vadd.f32 %v3864, %v3912
        %v3914 = vpop.f32.mrf.mxu0
        %v3915 = vadd.f32 %v3866, %v3914
        %3916 = vmatmul.bf16.gmra.mxu0 %v2335
        %v3917 = vpop.f32.mrf.mxu0
        %v3918 = vadd.f32 %v3869, %v3917
        %v3919 = vpop.f32.mrf.mxu0
        %v3920 = vadd.f32 %v3871, %v3919
        %3921 = vmatmul.bf16.gmra.mxu0 %v2344
        %v3922 = vpop.f32.mrf.mxu0
        %v3923 = vadd.f32 %v3874, %v3922
        %v3924 = vpop.f32.mrf.mxu0
        %v3925 = vadd.f32 %v3876, %v3924
        %3926 = vmatmul.bf16.gmra.mxu0 %v2353
        %v3927 = vpop.f32.mrf.mxu0
        %v3928 = vadd.f32 %v3879, %v3927
        %v3929 = vpop.f32.mrf.mxu0
        %v3930 = vadd.f32 %v3881, %v3929
        %3931 = vdwg.mxu0
        %3932 = vmatpush.bf16.msra.mxu0 %v2987
        %3933 = vmatpush.bf16.msra.mxu0 %v2985
        %3934 = vmatpush.bf16.msra.mxu0 %v2983
        %3935 = vmatpush.bf16.msra.mxu0 %v2981
        %3936 = vmatpush.bf16.msra.mxu0 %v2979
        %3937 = vmatpush.bf16.msra.mxu0 %v2977
        %3938 = vmatpush.bf16.msra.mxu0 %v2975
        %3939 = vmatpush.bf16.msra.mxu0 %v2973
        %3940 = vmatmul.bf16.gmra.mxu0 %v2291
        %v3941 = vpop.f32.mrf.mxu0
        %v3942 = vadd.f32 %v3893, %v3941
        %v3943 = vpop.f32.mrf.mxu0
        %v3944 = vadd.f32 %v3895, %v3943
        %3945 = vmatmul.bf16.gmra.mxu0 %v2300
        %v3946 = vpop.f32.mrf.mxu0
        %v3947 = vadd.f32 %v3898, %v3946
        %v3948 = vpop.f32.mrf.mxu0
        %v3949 = vadd.f32 %v3900, %v3948
        %3950 = vmatmul.bf16.gmra.mxu0 %v2309
        %v3951 = vpop.f32.mrf.mxu0
        %v3952 = vadd.f32 %v3903, %v3951
        %v3953 = vpop.f32.mrf.mxu0
        %v3954 = vadd.f32 %v3905, %v3953
        %3955 = vmatmul.bf16.gmra.mxu0 %v2318
        %v3956 = vpop.f32.mrf.mxu0
        %v3957 = vadd.f32 %v3908, %v3956
        %v3958 = vpop.f32.mrf.mxu0
        %v3959 = vadd.f32 %v3910, %v3958
        %3960 = vmatmul.bf16.gmra.mxu0 %v2327
        %v3961 = vpop.f32.mrf.mxu0
        %v3962 = vadd.f32 %v3913, %v3961
        %v3963 = vpop.f32.mrf.mxu0
        %v3964 = vadd.f32 %v3915, %v3963
        %3965 = vmatmul.bf16.gmra.mxu0 %v2336
        %v3966 = vpop.f32.mrf.mxu0
        %v3967 = vadd.f32 %v3918, %v3966
        %v3968 = vpop.f32.mrf.mxu0
        %v3969 = vadd.f32 %v3920, %v3968
        %3970 = vmatmul.bf16.gmra.mxu0 %v2345
        %v3971 = vpop.f32.mrf.mxu0
        %v3972 = vadd.f32 %v3923, %v3971
        %v3973 = vpop.f32.mrf.mxu0
        %v3974 = vadd.f32 %v3925, %v3973
        %3975 = vmatmul.bf16.gmra.mxu0 %v2354
        %v3976 = vpop.f32.mrf.mxu0
        %v3977 = vadd.f32 %v3928, %v3976
        %v3978 = vpop.f32.mrf.mxu0
        %v3979 = vadd.f32 %v3930, %v3978
        %3980 = vdwg.mxu0
        %3981 = vmatpush.bf16.msra.mxu0 %v3003
        %3982 = vmatpush.bf16.msra.mxu0 %v3001
        %3983 = vmatpush.bf16.msra.mxu0 %v2999
        %3984 = vmatpush.bf16.msra.mxu0 %v2997
        %3985 = vmatpush.bf16.msra.mxu0 %v2995
        %3986 = vmatpush.bf16.msra.mxu0 %v2993
        %3987 = vmatpush.bf16.msra.mxu0 %v2991
        %3988 = vmatpush.bf16.msra.mxu0 %v2989
        %3989 = vmatmul.bf16.gmra.mxu0 %v2292
        %v3990 = vpop.f32.mrf.mxu0
        %v3991 = vadd.f32 %v3942, %v3990
        %v3992 = vpop.f32.mrf.mxu0
        %v3993 = vadd.f32 %v3944, %v3992
        %3994 = vmatmul.bf16.gmra.mxu0 %v2301
        %v3995 = vpop.f32.mrf.mxu0
        %v3996 = vadd.f32 %v3947, %v3995
        %v3997 = vpop.f32.mrf.mxu0
        %v3998 = vadd.f32 %v3949, %v3997
        %3999 = vmatmul.bf16.gmra.mxu0 %v2310
        %v4000 = vpop.f32.mrf.mxu0
        %v4001 = vadd.f32 %v3952, %v4000
        %v4002 = vpop.f32.mrf.mxu0
        %v4003 = vadd.f32 %v3954, %v4002
        %4004 = vmatmul.bf16.gmra.mxu0 %v2319
        %v4005 = vpop.f32.mrf.mxu0
        %v4006 = vadd.f32 %v3957, %v4005
        %v4007 = vpop.f32.mrf.mxu0
        %v4008 = vadd.f32 %v3959, %v4007
        %4009 = vmatmul.bf16.gmra.mxu0 %v2328
        %v4010 = vpop.f32.mrf.mxu0
        %v4011 = vadd.f32 %v3962, %v4010
        %v4012 = vpop.f32.mrf.mxu0
        %v4013 = vadd.f32 %v3964, %v4012
        %4014 = vmatmul.bf16.gmra.mxu0 %v2337
        %v4015 = vpop.f32.mrf.mxu0
        %v4016 = vadd.f32 %v3967, %v4015
        %v4017 = vpop.f32.mrf.mxu0
        %v4018 = vadd.f32 %v3969, %v4017
        %4019 = vmatmul.bf16.gmra.mxu0 %v2346
        %v4020 = vpop.f32.mrf.mxu0
        %v4021 = vadd.f32 %v3972, %v4020
        %v4022 = vpop.f32.mrf.mxu0
        %v4023 = vadd.f32 %v3974, %v4022
        %4024 = vmatmul.bf16.gmra.mxu0 %v2355
        %v4025 = vpop.f32.mrf.mxu0
        %v4026 = vadd.f32 %v3977, %v4025
        %v4027 = vpop.f32.mrf.mxu0
        %v4028 = vadd.f32 %v3979, %v4027
        %4029 = vdwg.mxu0
        %v4030 = vmax.f32 %v3550, 0.0
        %v4031 = vmax.f32 %v3991, 0.0
        %v4032 = vmax.f32 %v3552, 0.0
        %v4033 = vmax.f32 %v3993, 0.0
        %v4034 = vmax.f32 %v3555, 0.0
        %v4035 = vmax.f32 %v3996, 0.0
        %v4036 = vmax.f32 %v3557, 0.0
        %v4037 = vmax.f32 %v3998, 0.0
        %v4038 = vmax.f32 %v3560, 0.0
        %v4039 = vmax.f32 %v4001, 0.0
        %v4040 = vmax.f32 %v3562, 0.0
        %v4041 = vmax.f32 %v4003, 0.0
        %v4042 = vmax.f32 %v3565, 0.0
        %v4043 = vmax.f32 %v4006, 0.0
        %v4044 = vmax.f32 %v3567, 0.0
        %v4045 = vmax.f32 %v4008, 0.0
        %v4046 = vmax.f32 %v3570, 0.0
        %v4047 = vmax.f32 %v4011, 0.0
        %v4048 = vmax.f32 %v3572, 0.0
        %v4049 = vmax.f32 %v4013, 0.0
        %v4050 = vmax.f32 %v3575, 0.0
        %v4051 = vmax.f32 %v4016, 0.0
        %v4052 = vmax.f32 %v3577, 0.0
        %v4053 = vmax.f32 %v4018, 0.0
        %v4054 = vmax.f32 %v3580, 0.0
        %v4055 = vmax.f32 %v4021, 0.0
        %v4056 = vmax.f32 %v3582, 0.0
        %v4057 = vmax.f32 %v4023, 0.0
        %v4058 = vmax.f32 %v3585, 0.0
        %v4059 = vmax.f32 %v4026, 0.0
        %v4060 = vmax.f32 %v3587, 0.0
        %v4061 = vmax.f32 %v4028, 0.0
        %v4062 = vpack.c.bf16 %v4031, %v4030
        %v4063 = vpack.c.bf16 %v4033, %v4032
        %v4064 = vpack.c.bf16 %v4035, %v4034
        %v4065 = vpack.c.bf16 %v4037, %v4036
        %v4066 = vpack.c.bf16 %v4039, %v4038
        %v4067 = vpack.c.bf16 %v4041, %v4040
        %v4068 = vpack.c.bf16 %v4043, %v4042
        %v4069 = vpack.c.bf16 %v4045, %v4044
        %v4070 = vpack.c.bf16 %v4047, %v4046
        %v4071 = vpack.c.bf16 %v4049, %v4048
        %v4072 = vpack.c.bf16 %v4051, %v4050
        %v4073 = vpack.c.bf16 %v4053, %v4052
        %v4074 = vpack.c.bf16 %v4055, %v4054
        %v4075 = vpack.c.bf16 %v4057, %v4056
        %v4076 = vpack.c.bf16 %v4059, %v4058
        %v4077 = vpack.c.bf16 %v4061, %v4060
        %4078 = vst [vmem:[#allocation3] sm:$0xff] %v4062
        %4079 = vst [vmem:[#allocation3 + $0x8] sm:$0xff] %v4063
        %4080 = vst [vmem:[#allocation3 + $0x10] sm:$0xff] %v4064
        %4081 = vst [vmem:[#allocation3 + $0x18] sm:$0xff] %v4065
        %4082 = vst [vmem:[#allocation3 + $0x20] sm:$0xff] %v4066
        %4083 = vst [vmem:[#allocation3 + $0x28] sm:$0xff] %v4067
        %4084 = vst [vmem:[#allocation3 + $0x30] sm:$0xff] %v4068
        %4085 = vst [vmem:[#allocation3 + $0x38] sm:$0xff] %v4069
        %4086 = vst [vmem:[#allocation3 + $0x40] sm:$0xff] %v4070
        %4087 = vst [vmem:[#allocation3 + $0x48] sm:$0xff] %v4071
        %4088 = vst [vmem:[#allocation3 + $0x50] sm:$0xff] %v4072
        %4089 = vst [vmem:[#allocation3 + $0x58] sm:$0xff] %v4073
        %4090 = vst [vmem:[#allocation3 + $0x60] sm:$0xff] %v4074
        %4091 = vst [vmem:[#allocation3 + $0x68] sm:$0xff] %v4075
        %4092 = vst [vmem:[#allocation3 + $0x70] sm:$0xff] %v4076
        %4093 = vst [vmem:[#allocation3 + $0x78] sm:$0xff] %v4077
        %v4094 = vadd.f32 %v4030, %v4032
        %v4095 = vadd.f32 %v4094, %v4034
        %v4096 = vadd.f32 %v4095, %v4036
        %v4097 = vadd.f32 %v4096, %v4038
        %v4098 = vadd.f32 %v4097, %v4040
        %v4099 = vadd.f32 %v4098, %v4042
        %v4100 = vadd.f32 %v4099, %v4044
        %v4101 = vrot.slane %v4100, 4
        %v4102 = vadd.f32 %v4100, %v4101
        %v4103 = vrot.slane %v4102, 2
        %v4104 = vadd.f32 %v4102, %v4103
        %v4105 = vrot.slane %v4104, 1
        %v4106 = vadd.f32 %v4104, %v4105
        %v4107 = vadd.f32 %v4031, %v4033
        %v4108 = vadd.f32 %v4107, %v4035
        %v4109 = vadd.f32 %v4108, %v4037
        %v4110 = vadd.f32 %v4109, %v4039
        %v4111 = vadd.f32 %v4110, %v4041
        %v4112 = vadd.f32 %v4111, %v4043
        %v4113 = vadd.f32 %v4112, %v4045
        %v4114 = vrot.slane %v4113, 4
        %v4115 = vadd.f32 %v4113, %v4114
        %v4116 = vrot.slane %v4115, 2
        %v4117 = vadd.f32 %v4115, %v4116
        %v4118 = vrot.slane %v4117, 1
        %v4119 = vadd.f32 %v4117, %v4118
        %v4120 = vadd.f32 %v4046, %v4048
        %v4121 = vadd.f32 %v4120, %v4050
        %v4122 = vadd.f32 %v4121, %v4052
        %v4123 = vadd.f32 %v4122, %v4054
        %v4124 = vadd.f32 %v4123, %v4056
        %v4125 = vadd.f32 %v4124, %v4058
        %v4126 = vadd.f32 %v4125, %v4060
        %v4127 = vrot.slane %v4126, 4
        %v4128 = vadd.f32 %v4126, %v4127
        %v4129 = vrot.slane %v4128, 2
        %v4130 = vadd.f32 %v4128, %v4129
        %v4131 = vrot.slane %v4130, 1
        %v4132 = vadd.f32 %v4130, %v4131
        %v4133 = vadd.f32 %v4047, %v4049
        %v4134 = vadd.f32 %v4133, %v4051
        %v4135 = vadd.f32 %v4134, %v4053
        %v4136 = vadd.f32 %v4135, %v4055
        %v4137 = vadd.f32 %v4136, %v4057
        %v4138 = vadd.f32 %v4137, %v4059
        %v4139 = vadd.f32 %v4138, %v4061
        %v4140 = vrot.slane %v4139, 4
        %v4141 = vadd.f32 %v4139, %v4140
        %v4142 = vrot.slane %v4141, 2
        %v4143 = vadd.f32 %v4141, %v4142
        %v4144 = vrot.slane %v4143, 1
        %v4145 = vadd.f32 %v4143, %v4144
        %s4146 = scalar_lea.vmem %s376, 80
        %v4147 = vld [vmem:[%s4146] sm:$0xf]
        %v4148 = vld [vmem:[%s4146 + $0x8] sm:$0xf]
        %v4149 = vld [vmem:[%s4146 + $0x10] sm:$0xf]
        %v4150 = vld [vmem:[%s4146 + $0x18] sm:$0xf]
        %v4151 = vld [vmem:[%s4146 + $0x20] sm:$0xf]
        %v4152 = vld [vmem:[%s4146 + $0x28] sm:$0xf]
        %v4153 = vld [vmem:[%s4146 + $0x30] sm:$0xf]
        %v4154 = vld [vmem:[%s4146 + $0x38] sm:$0xf]
        %4155 = vst [vmem:[#allocation2] sm:$0xf] %v4147
        %4156 = vst [vmem:[#allocation2 + $0x24] sm:$0xf] %v4148
        %4157 = vst [vmem:[#allocation2 + $0x48] sm:$0xf] %v4149
        %4158 = vst [vmem:[#allocation2 + $0x6c] sm:$0xf] %v4150
        %4159 = vst [vmem:[#allocation2 + $0x90] sm:$0xf] %v4151
        %4160 = vst [vmem:[#allocation2 + $0xb4] sm:$0xf] %v4152
        %4161 = vst [vmem:[#allocation2 + $0xd8] sm:$0xf] %v4153
        %4162 = vst [vmem:[#allocation2 + $0xfc] sm:$0xf] %v4154
        %v4163 = vld [vmem:[%s4146] sm:$0xf]
        %v4164 = vld [vmem:[%s4146 + $0x4] sm:$0x1]
        %v4165 = vld [vmem:[%s4146 + $0x8] sm:$0xf]
        %v4166 = vld [vmem:[%s4146 + $0xc] sm:$0x1]
        %v4167 = vld [vmem:[%s4146 + $0x10] sm:$0xf]
        %v4168 = vld [vmem:[%s4146 + $0x14] sm:$0x1]
        %v4169 = vld [vmem:[%s4146 + $0x18] sm:$0xf]
        %v4170 = vld [vmem:[%s4146 + $0x1c] sm:$0x1]
        %v4171 = vld [vmem:[%s4146 + $0x20] sm:$0xf]
        %v4172 = vld [vmem:[%s4146 + $0x24] sm:$0x1]
        %v4173 = vld [vmem:[%s4146 + $0x28] sm:$0xf]
        %v4174 = vld [vmem:[%s4146 + $0x2c] sm:$0x1]
        %v4175 = vld [vmem:[%s4146 + $0x30] sm:$0xf]
        %v4176 = vld [vmem:[%s4146 + $0x34] sm:$0x1]
        %v4177 = vld [vmem:[%s4146 + $0x38] sm:$0xf]
        %v4178 = vld [vmem:[%s4146 + $0x3c] sm:$0x1]
        %v4180 = vshrl.u32 %v4163, 16
        %v4182 = vrot.slane %v4180, 4
        %v4183 = vshll.u32 %v4163, 16
        %v4185 = vrot.slane %v4183, 5
        %v4186 = vor.u32 %v4182, %v4185
        %v4187 = vrot.slane %v4186, 4
        %v4189 = vshll.u32 %v4164, 16
        %v4191 = vrot.slane %v4189, 5
        %v4192 = vsel %vm413, %v4187, %v4191
        %v4194 = vshrl.u32 %v4165, 16
        %v4196 = vrot.slane %v4194, 4
        %v4197 = vshll.u32 %v4165, 16
        %v4199 = vrot.slane %v4197, 5
        %v4200 = vor.u32 %v4196, %v4199
        %v4201 = vrot.slane %v4200, 4
        %v4203 = vshll.u32 %v4166, 16
        %v4205 = vrot.slane %v4203, 5
        %v4206 = vsel %vm413, %v4201, %v4205
        %v4208 = vshrl.u32 %v4167, 16
        %v4210 = vrot.slane %v4208, 4
        %v4211 = vshll.u32 %v4167, 16
        %v4213 = vrot.slane %v4211, 5
        %v4214 = vor.u32 %v4210, %v4213
        %v4215 = vrot.slane %v4214, 4
        %v4217 = vshll.u32 %v4168, 16
        %v4219 = vrot.slane %v4217, 5
        %v4220 = vsel %vm413, %v4215, %v4219
        %v4222 = vshrl.u32 %v4169, 16
        %v4224 = vrot.slane %v4222, 4
        %v4225 = vshll.u32 %v4169, 16
        %v4227 = vrot.slane %v4225, 5
        %v4228 = vor.u32 %v4224, %v4227
        %v4229 = vrot.slane %v4228, 4
        %v4231 = vshll.u32 %v4170, 16
        %v4233 = vrot.slane %v4231, 5
        %v4234 = vsel %vm413, %v4229, %v4233
        %v4236 = vshrl.u32 %v4171, 16
        %v4238 = vrot.slane %v4236, 4
        %v4239 = vshll.u32 %v4171, 16
        %v4241 = vrot.slane %v4239, 5
        %v4242 = vor.u32 %v4238, %v4241
        %v4243 = vrot.slane %v4242, 4
        %v4245 = vshll.u32 %v4172, 16
        %v4247 = vrot.slane %v4245, 5
        %v4248 = vsel %vm413, %v4243, %v4247
        %v4250 = vshrl.u32 %v4173, 16
        %v4252 = vrot.slane %v4250, 4
        %v4253 = vshll.u32 %v4173, 16
        %v4255 = vrot.slane %v4253, 5
        %v4256 = vor.u32 %v4252, %v4255
        %v4257 = vrot.slane %v4256, 4
        %v4259 = vshll.u32 %v4174, 16
        %v4261 = vrot.slane %v4259, 5
        %v4262 = vsel %vm413, %v4257, %v4261
        %v4264 = vshrl.u32 %v4175, 16
        %v4266 = vrot.slane %v4264, 4
        %v4267 = vshll.u32 %v4175, 16
        %v4269 = vrot.slane %v4267, 5
        %v4270 = vor.u32 %v4266, %v4269
        %v4271 = vrot.slane %v4270, 4
        %v4273 = vshll.u32 %v4176, 16
        %v4275 = vrot.slane %v4273, 5
        %v4276 = vsel %vm413, %v4271, %v4275
        %v4278 = vshrl.u32 %v4177, 16
        %v4280 = vrot.slane %v4278, 4
        %v4281 = vshll.u32 %v4177, 16
        %v4283 = vrot.slane %v4281, 5
        %v4284 = vor.u32 %v4280, %v4283
        %v4285 = vrot.slane %v4284, 4
        %v4287 = vshll.u32 %v4178, 16
        %v4289 = vrot.slane %v4287, 5
        %v4290 = vsel %vm413, %v4285, %v4289
        %4299 = vst [vmem:[#allocation2 + $0x4] sm:$0xf] %v4192
        %4300 = vst [vmem:[#allocation2 + $0x28] sm:$0xf] %v4206
        %4301 = vst [vmem:[#allocation2 + $0x4c] sm:$0xf] %v4220
        %4302 = vst [vmem:[#allocation2 + $0x70] sm:$0xf] %v4234
        %4303 = vst [vmem:[#allocation2 + $0x94] sm:$0xf] %v4248
        %4304 = vst [vmem:[#allocation2 + $0xb8] sm:$0xf] %v4262
        %4305 = vst [vmem:[#allocation2 + $0xdc] sm:$0xf] %v4276
        %4306 = vst [vmem:[#allocation2 + $0x100] sm:$0xf] %v4290
        %v4307 = vld [vmem:[%s4146] sm:$0xe]
        %v4308 = vld [vmem:[%s4146 + $0x4] sm:$0x1]
        %v4309 = vld [vmem:[%s4146 + $0x8] sm:$0xe]
        %v4310 = vld [vmem:[%s4146 + $0xc] sm:$0x1]
        %v4311 = vld [vmem:[%s4146 + $0x10] sm:$0xe]
        %v4312 = vld [vmem:[%s4146 + $0x14] sm:$0x1]
        %v4313 = vld [vmem:[%s4146 + $0x18] sm:$0xe]
        %v4314 = vld [vmem:[%s4146 + $0x1c] sm:$0x1]
        %v4315 = vld [vmem:[%s4146 + $0x20] sm:$0xe]
        %v4316 = vld [vmem:[%s4146 + $0x24] sm:$0x1]
        %v4317 = vld [vmem:[%s4146 + $0x28] sm:$0xe]
        %v4318 = vld [vmem:[%s4146 + $0x2c] sm:$0x1]
        %v4319 = vld [vmem:[%s4146 + $0x30] sm:$0xe]
        %v4320 = vld [vmem:[%s4146 + $0x34] sm:$0x1]
        %v4321 = vld [vmem:[%s4146 + $0x38] sm:$0xe]
        %v4322 = vld [vmem:[%s4146 + $0x3c] sm:$0x1]
        %v4339 = vrot.slane %v4307, 5
        %v4340 = vrot.slane %v4339, 4
        %v4341 = vrot.slane %v4308, 5
        %v4342 = vsel %vm576, %v4340, %v4341
        %v4343 = vrot.slane %v4309, 5
        %v4344 = vrot.slane %v4343, 4
        %v4345 = vrot.slane %v4310, 5
        %v4346 = vsel %vm576, %v4344, %v4345
        %v4347 = vrot.slane %v4311, 5
        %v4348 = vrot.slane %v4347, 4
        %v4349 = vrot.slane %v4312, 5
        %v4350 = vsel %vm576, %v4348, %v4349
        %v4351 = vrot.slane %v4313, 5
        %v4352 = vrot.slane %v4351, 4
        %v4353 = vrot.slane %v4314, 5
        %v4354 = vsel %vm576, %v4352, %v4353
        %v4355 = vrot.slane %v4315, 5
        %v4356 = vrot.slane %v4355, 4
        %v4357 = vrot.slane %v4316, 5
        %v4358 = vsel %vm576, %v4356, %v4357
        %v4359 = vrot.slane %v4317, 5
        %v4360 = vrot.slane %v4359, 4
        %v4361 = vrot.slane %v4318, 5
        %v4362 = vsel %vm576, %v4360, %v4361
        %v4363 = vrot.slane %v4319, 5
        %v4364 = vrot.slane %v4363, 4
        %v4365 = vrot.slane %v4320, 5
        %v4366 = vsel %vm576, %v4364, %v4365
        %v4367 = vrot.slane %v4321, 5
        %v4368 = vrot.slane %v4367, 4
        %v4369 = vrot.slane %v4322, 5
        %v4370 = vsel %vm576, %v4368, %v4369
        %4379 = vst [vmem:[#allocation2 + $0x8] sm:$0xf] %v4342
        %4380 = vst [vmem:[#allocation2 + $0x2c] sm:$0xf] %v4346
        %4381 = vst [vmem:[#allocation2 + $0x50] sm:$0xf] %v4350
        %4382 = vst [vmem:[#allocation2 + $0x74] sm:$0xf] %v4354
        %4383 = vst [vmem:[#allocation2 + $0x98] sm:$0xf] %v4358
        %4384 = vst [vmem:[#allocation2 + $0xbc] sm:$0xf] %v4362
        %4385 = vst [vmem:[#allocation2 + $0xe0] sm:$0xf] %v4366
        %4386 = vst [vmem:[#allocation2 + $0x104] sm:$0xf] %v4370
        %s4387 = scalar_lea.vmem %s376, 88
        %v4388 = vld [vmem:[%s4387] sm:$0xf]
        %v4389 = vld [vmem:[%s4387 + $0x8] sm:$0xf]
        %v4390 = vld [vmem:[%s4387 + $0x10] sm:$0xf]
        %v4391 = vld [vmem:[%s4387 + $0x18] sm:$0xf]
        %v4392 = vld [vmem:[%s4387 + $0x20] sm:$0xf]
        %v4393 = vld [vmem:[%s4387 + $0x28] sm:$0xf]
        %v4394 = vld [vmem:[%s4387 + $0x30] sm:$0xf]
        %v4395 = vld [vmem:[%s4387 + $0x38] sm:$0xf]
        %4396 = vst [vmem:[#allocation2 + $0xc] sm:$0xf] %v4388
        %4397 = vst [vmem:[#allocation2 + $0x30] sm:$0xf] %v4389
        %4398 = vst [vmem:[#allocation2 + $0x54] sm:$0xf] %v4390
        %4399 = vst [vmem:[#allocation2 + $0x78] sm:$0xf] %v4391
        %4400 = vst [vmem:[#allocation2 + $0x9c] sm:$0xf] %v4392
        %4401 = vst [vmem:[#allocation2 + $0xc0] sm:$0xf] %v4393
        %4402 = vst [vmem:[#allocation2 + $0xe4] sm:$0xf] %v4394
        %4403 = vst [vmem:[#allocation2 + $0x108] sm:$0xf] %v4395
        %v4404 = vld [vmem:[%s4387] sm:$0xf]
        %v4405 = vld [vmem:[%s4387 + $0x4] sm:$0x1]
        %v4406 = vld [vmem:[%s4387 + $0x8] sm:$0xf]
        %v4407 = vld [vmem:[%s4387 + $0xc] sm:$0x1]
        %v4408 = vld [vmem:[%s4387 + $0x10] sm:$0xf]
        %v4409 = vld [vmem:[%s4387 + $0x14] sm:$0x1]
        %v4410 = vld [vmem:[%s4387 + $0x18] sm:$0xf]
        %v4411 = vld [vmem:[%s4387 + $0x1c] sm:$0x1]
        %v4412 = vld [vmem:[%s4387 + $0x20] sm:$0xf]
        %v4413 = vld [vmem:[%s4387 + $0x24] sm:$0x1]
        %v4414 = vld [vmem:[%s4387 + $0x28] sm:$0xf]
        %v4415 = vld [vmem:[%s4387 + $0x2c] sm:$0x1]
        %v4416 = vld [vmem:[%s4387 + $0x30] sm:$0xf]
        %v4417 = vld [vmem:[%s4387 + $0x34] sm:$0x1]
        %v4418 = vld [vmem:[%s4387 + $0x38] sm:$0xf]
        %v4419 = vld [vmem:[%s4387 + $0x3c] sm:$0x1]
        %v4421 = vshrl.u32 %v4404, 16
        %v4423 = vrot.slane %v4421, 4
        %v4424 = vshll.u32 %v4404, 16
        %v4426 = vrot.slane %v4424, 5
        %v4427 = vor.u32 %v4423, %v4426
        %v4428 = vrot.slane %v4427, 4
        %v4430 = vshll.u32 %v4405, 16
        %v4432 = vrot.slane %v4430, 5
        %v4433 = vsel %vm413, %v4428, %v4432
        %v4435 = vshrl.u32 %v4406, 16
        %v4437 = vrot.slane %v4435, 4
        %v4438 = vshll.u32 %v4406, 16
        %v4440 = vrot.slane %v4438, 5
        %v4441 = vor.u32 %v4437, %v4440
        %v4442 = vrot.slane %v4441, 4
        %v4444 = vshll.u32 %v4407, 16
        %v4446 = vrot.slane %v4444, 5
        %v4447 = vsel %vm413, %v4442, %v4446
        %v4449 = vshrl.u32 %v4408, 16
        %v4451 = vrot.slane %v4449, 4
        %v4452 = vshll.u32 %v4408, 16
        %v4454 = vrot.slane %v4452, 5
        %v4455 = vor.u32 %v4451, %v4454
        %v4456 = vrot.slane %v4455, 4
        %v4458 = vshll.u32 %v4409, 16
        %v4460 = vrot.slane %v4458, 5
        %v4461 = vsel %vm413, %v4456, %v4460
        %v4463 = vshrl.u32 %v4410, 16
        %v4465 = vrot.slane %v4463, 4
        %v4466 = vshll.u32 %v4410, 16
        %v4468 = vrot.slane %v4466, 5
        %v4469 = vor.u32 %v4465, %v4468
        %v4470 = vrot.slane %v4469, 4
        %v4472 = vshll.u32 %v4411, 16
        %v4474 = vrot.slane %v4472, 5
        %v4475 = vsel %vm413, %v4470, %v4474
        %v4477 = vshrl.u32 %v4412, 16
        %v4479 = vrot.slane %v4477, 4
        %v4480 = vshll.u32 %v4412, 16
        %v4482 = vrot.slane %v4480, 5
        %v4483 = vor.u32 %v4479, %v4482
        %v4484 = vrot.slane %v4483, 4
        %v4486 = vshll.u32 %v4413, 16
        %v4488 = vrot.slane %v4486, 5
        %v4489 = vsel %vm413, %v4484, %v4488
        %v4491 = vshrl.u32 %v4414, 16
        %v4493 = vrot.slane %v4491, 4
        %v4494 = vshll.u32 %v4414, 16
        %v4496 = vrot.slane %v4494, 5
        %v4497 = vor.u32 %v4493, %v4496
        %v4498 = vrot.slane %v4497, 4
        %v4500 = vshll.u32 %v4415, 16
        %v4502 = vrot.slane %v4500, 5
        %v4503 = vsel %vm413, %v4498, %v4502
        %v4505 = vshrl.u32 %v4416, 16
        %v4507 = vrot.slane %v4505, 4
        %v4508 = vshll.u32 %v4416, 16
        %v4510 = vrot.slane %v4508, 5
        %v4511 = vor.u32 %v4507, %v4510
        %v4512 = vrot.slane %v4511, 4
        %v4514 = vshll.u32 %v4417, 16
        %v4516 = vrot.slane %v4514, 5
        %v4517 = vsel %vm413, %v4512, %v4516
        %v4519 = vshrl.u32 %v4418, 16
        %v4521 = vrot.slane %v4519, 4
        %v4522 = vshll.u32 %v4418, 16
        %v4524 = vrot.slane %v4522, 5
        %v4525 = vor.u32 %v4521, %v4524
        %v4526 = vrot.slane %v4525, 4
        %v4528 = vshll.u32 %v4419, 16
        %v4530 = vrot.slane %v4528, 5
        %v4531 = vsel %vm413, %v4526, %v4530
        %4540 = vst [vmem:[#allocation2 + $0x10] sm:$0xf] %v4433
        %4541 = vst [vmem:[#allocation2 + $0x34] sm:$0xf] %v4447
        %4542 = vst [vmem:[#allocation2 + $0x58] sm:$0xf] %v4461
        %4543 = vst [vmem:[#allocation2 + $0x7c] sm:$0xf] %v4475
        %4544 = vst [vmem:[#allocation2 + $0xa0] sm:$0xf] %v4489
        %4545 = vst [vmem:[#allocation2 + $0xc4] sm:$0xf] %v4503
        %4546 = vst [vmem:[#allocation2 + $0xe8] sm:$0xf] %v4517
        %4547 = vst [vmem:[#allocation2 + $0x10c] sm:$0xf] %v4531
        %v4548 = vld [vmem:[%s4387] sm:$0xe]
        %v4549 = vld [vmem:[%s4387 + $0x4] sm:$0x1]
        %v4550 = vld [vmem:[%s4387 + $0x8] sm:$0xe]
        %v4551 = vld [vmem:[%s4387 + $0xc] sm:$0x1]
        %v4552 = vld [vmem:[%s4387 + $0x10] sm:$0xe]
        %v4553 = vld [vmem:[%s4387 + $0x14] sm:$0x1]
        %v4554 = vld [vmem:[%s4387 + $0x18] sm:$0xe]
        %v4555 = vld [vmem:[%s4387 + $0x1c] sm:$0x1]
        %v4556 = vld [vmem:[%s4387 + $0x20] sm:$0xe]
        %v4557 = vld [vmem:[%s4387 + $0x24] sm:$0x1]
        %v4558 = vld [vmem:[%s4387 + $0x28] sm:$0xe]
        %v4559 = vld [vmem:[%s4387 + $0x2c] sm:$0x1]
        %v4560 = vld [vmem:[%s4387 + $0x30] sm:$0xe]
        %v4561 = vld [vmem:[%s4387 + $0x34] sm:$0x1]
        %v4562 = vld [vmem:[%s4387 + $0x38] sm:$0xe]
        %v4563 = vld [vmem:[%s4387 + $0x3c] sm:$0x1]
        %v4580 = vrot.slane %v4548, 5
        %v4581 = vrot.slane %v4580, 4
        %v4582 = vrot.slane %v4549, 5
        %v4583 = vsel %vm576, %v4581, %v4582
        %v4584 = vrot.slane %v4550, 5
        %v4585 = vrot.slane %v4584, 4
        %v4586 = vrot.slane %v4551, 5
        %v4587 = vsel %vm576, %v4585, %v4586
        %v4588 = vrot.slane %v4552, 5
        %v4589 = vrot.slane %v4588, 4
        %v4590 = vrot.slane %v4553, 5
        %v4591 = vsel %vm576, %v4589, %v4590
        %v4592 = vrot.slane %v4554, 5
        %v4593 = vrot.slane %v4592, 4
        %v4594 = vrot.slane %v4555, 5
        %v4595 = vsel %vm576, %v4593, %v4594
        %v4596 = vrot.slane %v4556, 5
        %v4597 = vrot.slane %v4596, 4
        %v4598 = vrot.slane %v4557, 5
        %v4599 = vsel %vm576, %v4597, %v4598
        %v4600 = vrot.slane %v4558, 5
        %v4601 = vrot.slane %v4600, 4
        %v4602 = vrot.slane %v4559, 5
        %v4603 = vsel %vm576, %v4601, %v4602
        %v4604 = vrot.slane %v4560, 5
        %v4605 = vrot.slane %v4604, 4
        %v4606 = vrot.slane %v4561, 5
        %v4607 = vsel %vm576, %v4605, %v4606
        %v4608 = vrot.slane %v4562, 5
        %v4609 = vrot.slane %v4608, 4
        %v4610 = vrot.slane %v4563, 5
        %v4611 = vsel %vm576, %v4609, %v4610
        %4620 = vst [vmem:[#allocation2 + $0x14] sm:$0xf] %v4583
        %4621 = vst [vmem:[#allocation2 + $0x38] sm:$0xf] %v4587
        %4622 = vst [vmem:[#allocation2 + $0x5c] sm:$0xf] %v4591
        %4623 = vst [vmem:[#allocation2 + $0x80] sm:$0xf] %v4595
        %4624 = vst [vmem:[#allocation2 + $0xa4] sm:$0xf] %v4599
        %4625 = vst [vmem:[#allocation2 + $0xc8] sm:$0xf] %v4603
        %4626 = vst [vmem:[#allocation2 + $0xec] sm:$0xf] %v4607
        %4627 = vst [vmem:[#allocation2 + $0x110] sm:$0xf] %v4611
        %s4628 = scalar_lea.vmem %s376, 96
        %v4629 = vld [vmem:[%s4628] sm:$0xf]
        %v4630 = vld [vmem:[%s4628 + $0x8] sm:$0xf]
        %v4631 = vld [vmem:[%s4628 + $0x10] sm:$0xf]
        %v4632 = vld [vmem:[%s4628 + $0x18] sm:$0xf]
        %v4633 = vld [vmem:[%s4628 + $0x20] sm:$0xf]
        %v4634 = vld [vmem:[%s4628 + $0x28] sm:$0xf]
        %v4635 = vld [vmem:[%s4628 + $0x30] sm:$0xf]
        %v4636 = vld [vmem:[%s4628 + $0x38] sm:$0xf]
        %4637 = vst [vmem:[#allocation2 + $0x18] sm:$0xf] %v4629
        %4638 = vst [vmem:[#allocation2 + $0x3c] sm:$0xf] %v4630
        %4639 = vst [vmem:[#allocation2 + $0x60] sm:$0xf] %v4631
        %4640 = vst [vmem:[#allocation2 + $0x84] sm:$0xf] %v4632
        %4641 = vst [vmem:[#allocation2 + $0xa8] sm:$0xf] %v4633
        %4642 = vst [vmem:[#allocation2 + $0xcc] sm:$0xf] %v4634
        %4643 = vst [vmem:[#allocation2 + $0xf0] sm:$0xf] %v4635
        %4644 = vst [vmem:[#allocation2 + $0x114] sm:$0xf] %v4636
        %v4645 = vld [vmem:[%s4628] sm:$0xf]
        %v4646 = vld [vmem:[%s4628 + $0x4] sm:$0x1]
        %v4647 = vld [vmem:[%s4628 + $0x8] sm:$0xf]
        %v4648 = vld [vmem:[%s4628 + $0xc] sm:$0x1]
        %v4649 = vld [vmem:[%s4628 + $0x10] sm:$0xf]
        %v4650 = vld [vmem:[%s4628 + $0x14] sm:$0x1]
        %v4651 = vld [vmem:[%s4628 + $0x18] sm:$0xf]
        %v4652 = vld [vmem:[%s4628 + $0x1c] sm:$0x1]
        %v4653 = vld [vmem:[%s4628 + $0x20] sm:$0xf]
        %v4654 = vld [vmem:[%s4628 + $0x24] sm:$0x1]
        %v4655 = vld [vmem:[%s4628 + $0x28] sm:$0xf]
        %v4656 = vld [vmem:[%s4628 + $0x2c] sm:$0x1]
        %v4657 = vld [vmem:[%s4628 + $0x30] sm:$0xf]
        %v4658 = vld [vmem:[%s4628 + $0x34] sm:$0x1]
        %v4659 = vld [vmem:[%s4628 + $0x38] sm:$0xf]
        %v4660 = vld [vmem:[%s4628 + $0x3c] sm:$0x1]
        %v4662 = vshrl.u32 %v4645, 16
        %v4664 = vrot.slane %v4662, 4
        %v4665 = vshll.u32 %v4645, 16
        %v4667 = vrot.slane %v4665, 5
        %v4668 = vor.u32 %v4664, %v4667
        %v4669 = vrot.slane %v4668, 4
        %v4671 = vshll.u32 %v4646, 16
        %v4673 = vrot.slane %v4671, 5
        %v4674 = vsel %vm413, %v4669, %v4673
        %v4676 = vshrl.u32 %v4647, 16
        %v4678 = vrot.slane %v4676, 4
        %v4679 = vshll.u32 %v4647, 16
        %v4681 = vrot.slane %v4679, 5
        %v4682 = vor.u32 %v4678, %v4681
        %v4683 = vrot.slane %v4682, 4
        %v4685 = vshll.u32 %v4648, 16
        %v4687 = vrot.slane %v4685, 5
        %v4688 = vsel %vm413, %v4683, %v4687
        %v4690 = vshrl.u32 %v4649, 16
        %v4692 = vrot.slane %v4690, 4
        %v4693 = vshll.u32 %v4649, 16
        %v4695 = vrot.slane %v4693, 5
        %v4696 = vor.u32 %v4692, %v4695
        %v4697 = vrot.slane %v4696, 4
        %v4699 = vshll.u32 %v4650, 16
        %v4701 = vrot.slane %v4699, 5
        %v4702 = vsel %vm413, %v4697, %v4701
        %v4704 = vshrl.u32 %v4651, 16
        %v4706 = vrot.slane %v4704, 4
        %v4707 = vshll.u32 %v4651, 16
        %v4709 = vrot.slane %v4707, 5
        %v4710 = vor.u32 %v4706, %v4709
        %v4711 = vrot.slane %v4710, 4
        %v4713 = vshll.u32 %v4652, 16
        %v4715 = vrot.slane %v4713, 5
        %v4716 = vsel %vm413, %v4711, %v4715
        %v4718 = vshrl.u32 %v4653, 16
        %v4720 = vrot.slane %v4718, 4
        %v4721 = vshll.u32 %v4653, 16
        %v4723 = vrot.slane %v4721, 5
        %v4724 = vor.u32 %v4720, %v4723
        %v4725 = vrot.slane %v4724, 4
        %v4727 = vshll.u32 %v4654, 16
        %v4729 = vrot.slane %v4727, 5
        %v4730 = vsel %vm413, %v4725, %v4729
        %v4732 = vshrl.u32 %v4655, 16
        %v4734 = vrot.slane %v4732, 4
        %v4735 = vshll.u32 %v4655, 16
        %v4737 = vrot.slane %v4735, 5
        %v4738 = vor.u32 %v4734, %v4737
        %v4739 = vrot.slane %v4738, 4
        %v4741 = vshll.u32 %v4656, 16
        %v4743 = vrot.slane %v4741, 5
        %v4744 = vsel %vm413, %v4739, %v4743
        %v4746 = vshrl.u32 %v4657, 16
        %v4748 = vrot.slane %v4746, 4
        %v4749 = vshll.u32 %v4657, 16
        %v4751 = vrot.slane %v4749, 5
        %v4752 = vor.u32 %v4748, %v4751
        %v4753 = vrot.slane %v4752, 4
        %v4755 = vshll.u32 %v4658, 16
        %v4757 = vrot.slane %v4755, 5
        %v4758 = vsel %vm413, %v4753, %v4757
        %v4760 = vshrl.u32 %v4659, 16
        %v4762 = vrot.slane %v4760, 4
        %v4763 = vshll.u32 %v4659, 16
        %v4765 = vrot.slane %v4763, 5
        %v4766 = vor.u32 %v4762, %v4765
        %v4767 = vrot.slane %v4766, 4
        %v4769 = vshll.u32 %v4660, 16
        %v4771 = vrot.slane %v4769, 5
        %v4772 = vsel %vm413, %v4767, %v4771
        %4781 = vst [vmem:[#allocation2 + $0x1c] sm:$0xf] %v4674
        %4782 = vst [vmem:[#allocation2 + $0x40] sm:$0xf] %v4688
        %4783 = vst [vmem:[#allocation2 + $0x64] sm:$0xf] %v4702
        %4784 = vst [vmem:[#allocation2 + $0x88] sm:$0xf] %v4716
        %4785 = vst [vmem:[#allocation2 + $0xac] sm:$0xf] %v4730
        %4786 = vst [vmem:[#allocation2 + $0xd0] sm:$0xf] %v4744
        %4787 = vst [vmem:[#allocation2 + $0xf4] sm:$0xf] %v4758
        %4788 = vst [vmem:[#allocation2 + $0x118] sm:$0xf] %v4772
        %v4789 = vld [vmem:[%s4628] sm:$0xe]
        %v4790 = vld [vmem:[%s4628 + $0x4] sm:$0x1]
        %v4791 = vld [vmem:[%s4628 + $0x8] sm:$0xe]
        %v4792 = vld [vmem:[%s4628 + $0xc] sm:$0x1]
        %v4793 = vld [vmem:[%s4628 + $0x10] sm:$0xe]
        %v4794 = vld [vmem:[%s4628 + $0x14] sm:$0x1]
        %v4795 = vld [vmem:[%s4628 + $0x18] sm:$0xe]
        %v4796 = vld [vmem:[%s4628 + $0x1c] sm:$0x1]
        %v4797 = vld [vmem:[%s4628 + $0x20] sm:$0xe]
        %v4798 = vld [vmem:[%s4628 + $0x24] sm:$0x1]
        %v4799 = vld [vmem:[%s4628 + $0x28] sm:$0xe]
        %v4800 = vld [vmem:[%s4628 + $0x2c] sm:$0x1]
        %v4801 = vld [vmem:[%s4628 + $0x30] sm:$0xe]
        %v4802 = vld [vmem:[%s4628 + $0x34] sm:$0x1]
        %v4803 = vld [vmem:[%s4628 + $0x38] sm:$0xe]
        %v4804 = vld [vmem:[%s4628 + $0x3c] sm:$0x1]
        %v4821 = vrot.slane %v4789, 5
        %v4822 = vrot.slane %v4821, 4
        %v4823 = vrot.slane %v4790, 5
        %v4824 = vsel %vm576, %v4822, %v4823
        %v4825 = vrot.slane %v4791, 5
        %v4826 = vrot.slane %v4825, 4
        %v4827 = vrot.slane %v4792, 5
        %v4828 = vsel %vm576, %v4826, %v4827
        %v4829 = vrot.slane %v4793, 5
        %v4830 = vrot.slane %v4829, 4
        %v4831 = vrot.slane %v4794, 5
        %v4832 = vsel %vm576, %v4830, %v4831
        %v4833 = vrot.slane %v4795, 5
        %v4834 = vrot.slane %v4833, 4
        %v4835 = vrot.slane %v4796, 5
        %v4836 = vsel %vm576, %v4834, %v4835
        %v4837 = vrot.slane %v4797, 5
        %v4838 = vrot.slane %v4837, 4
        %v4839 = vrot.slane %v4798, 5
        %v4840 = vsel %vm576, %v4838, %v4839
        %v4841 = vrot.slane %v4799, 5
        %v4842 = vrot.slane %v4841, 4
        %v4843 = vrot.slane %v4800, 5
        %v4844 = vsel %vm576, %v4842, %v4843
        %v4845 = vrot.slane %v4801, 5
        %v4846 = vrot.slane %v4845, 4
        %v4847 = vrot.slane %v4802, 5
        %v4848 = vsel %vm576, %v4846, %v4847
        %v4849 = vrot.slane %v4803, 5
        %v4850 = vrot.slane %v4849, 4
        %v4851 = vrot.slane %v4804, 5
        %v4852 = vsel %vm576, %v4850, %v4851
        %4861 = vst [vmem:[#allocation2 + $0x20] sm:$0xf] %v4824
        %4862 = vst [vmem:[#allocation2 + $0x44] sm:$0xf] %v4828
        %4863 = vst [vmem:[#allocation2 + $0x68] sm:$0xf] %v4832
        %4864 = vst [vmem:[#allocation2 + $0x8c] sm:$0xf] %v4836
        %4865 = vst [vmem:[#allocation2 + $0xb0] sm:$0xf] %v4840
        %4866 = vst [vmem:[#allocation2 + $0xd4] sm:$0xf] %v4844
        %4867 = vst [vmem:[#allocation2 + $0xf8] sm:$0xf] %v4848
        %4868 = vst [vmem:[#allocation2 + $0x11c] sm:$0xf] %v4852
        %s4869 = scalar_lea.vmem %s376, 240
        %v4870 = vld [vmem:[%s4869] sm:$0xf]
        %v4871 = vld [vmem:[%s4869 + $0x8] sm:$0xf]
        %v4872 = vld [vmem:[%s4869 + $0x10] sm:$0xf]
        %v4873 = vld [vmem:[%s4869 + $0x18] sm:$0xf]
        %v4874 = vld [vmem:[%s4869 + $0x20] sm:$0xf]
        %v4875 = vld [vmem:[%s4869 + $0x28] sm:$0xf]
        %v4876 = vld [vmem:[%s4869 + $0x30] sm:$0xf]
        %v4877 = vld [vmem:[%s4869 + $0x38] sm:$0xf]
        %4878 = vst [vmem:[#allocation2 + $0x120] sm:$0xf] %v4870
        %4879 = vst [vmem:[#allocation2 + $0x144] sm:$0xf] %v4871
        %4880 = vst [vmem:[#allocation2 + $0x168] sm:$0xf] %v4872
        %4881 = vst [vmem:[#allocation2 + $0x18c] sm:$0xf] %v4873
        %4882 = vst [vmem:[#allocation2 + $0x1b0] sm:$0xf] %v4874
        %4883 = vst [vmem:[#allocation2 + $0x1d4] sm:$0xf] %v4875
        %4884 = vst [vmem:[#allocation2 + $0x1f8] sm:$0xf] %v4876
        %4885 = vst [vmem:[#allocation2 + $0x21c] sm:$0xf] %v4877
        %v4886 = vld [vmem:[%s4869] sm:$0xf]
        %v4887 = vld [vmem:[%s4869 + $0x4] sm:$0x1]
        %v4888 = vld [vmem:[%s4869 + $0x8] sm:$0xf]
        %v4889 = vld [vmem:[%s4869 + $0xc] sm:$0x1]
        %v4890 = vld [vmem:[%s4869 + $0x10] sm:$0xf]
        %v4891 = vld [vmem:[%s4869 + $0x14] sm:$0x1]
        %v4892 = vld [vmem:[%s4869 + $0x18] sm:$0xf]
        %v4893 = vld [vmem:[%s4869 + $0x1c] sm:$0x1]
        %v4894 = vld [vmem:[%s4869 + $0x20] sm:$0xf]
        %v4895 = vld [vmem:[%s4869 + $0x24] sm:$0x1]
        %v4896 = vld [vmem:[%s4869 + $0x28] sm:$0xf]
        %v4897 = vld [vmem:[%s4869 + $0x2c] sm:$0x1]
        %v4898 = vld [vmem:[%s4869 + $0x30] sm:$0xf]
        %v4899 = vld [vmem:[%s4869 + $0x34] sm:$0x1]
        %v4900 = vld [vmem:[%s4869 + $0x38] sm:$0xf]
        %v4901 = vld [vmem:[%s4869 + $0x3c] sm:$0x1]
        %v4903 = vshrl.u32 %v4886, 16
        %v4905 = vrot.slane %v4903, 4
        %v4906 = vshll.u32 %v4886, 16
        %v4908 = vrot.slane %v4906, 5
        %v4909 = vor.u32 %v4905, %v4908
        %v4910 = vrot.slane %v4909, 4
        %v4912 = vshll.u32 %v4887, 16
        %v4914 = vrot.slane %v4912, 5
        %v4915 = vsel %vm413, %v4910, %v4914
        %v4917 = vshrl.u32 %v4888, 16
        %v4919 = vrot.slane %v4917, 4
        %v4920 = vshll.u32 %v4888, 16
        %v4922 = vrot.slane %v4920, 5
        %v4923 = vor.u32 %v4919, %v4922
        %v4924 = vrot.slane %v4923, 4
        %v4926 = vshll.u32 %v4889, 16
        %v4928 = vrot.slane %v4926, 5
        %v4929 = vsel %vm413, %v4924, %v4928
        %v4931 = vshrl.u32 %v4890, 16
        %v4933 = vrot.slane %v4931, 4
        %v4934 = vshll.u32 %v4890, 16
        %v4936 = vrot.slane %v4934, 5
        %v4937 = vor.u32 %v4933, %v4936
        %v4938 = vrot.slane %v4937, 4
        %v4940 = vshll.u32 %v4891, 16
        %v4942 = vrot.slane %v4940, 5
        %v4943 = vsel %vm413, %v4938, %v4942
        %v4945 = vshrl.u32 %v4892, 16
        %v4947 = vrot.slane %v4945, 4
        %v4948 = vshll.u32 %v4892, 16
        %v4950 = vrot.slane %v4948, 5
        %v4951 = vor.u32 %v4947, %v4950
        %v4952 = vrot.slane %v4951, 4
        %v4954 = vshll.u32 %v4893, 16
        %v4956 = vrot.slane %v4954, 5
        %v4957 = vsel %vm413, %v4952, %v4956
        %v4959 = vshrl.u32 %v4894, 16
        %v4961 = vrot.slane %v4959, 4
        %v4962 = vshll.u32 %v4894, 16
        %v4964 = vrot.slane %v4962, 5
        %v4965 = vor.u32 %v4961, %v4964
        %v4966 = vrot.slane %v4965, 4
        %v4968 = vshll.u32 %v4895, 16
        %v4970 = vrot.slane %v4968, 5
        %v4971 = vsel %vm413, %v4966, %v4970
        %v4973 = vshrl.u32 %v4896, 16
        %v4975 = vrot.slane %v4973, 4
        %v4976 = vshll.u32 %v4896, 16
        %v4978 = vrot.slane %v4976, 5
        %v4979 = vor.u32 %v4975, %v4978
        %v4980 = vrot.slane %v4979, 4
        %v4982 = vshll.u32 %v4897, 16
        %v4984 = vrot.slane %v4982, 5
        %v4985 = vsel %vm413, %v4980, %v4984
        %v4987 = vshrl.u32 %v4898, 16
        %v4989 = vrot.slane %v4987, 4
        %v4990 = vshll.u32 %v4898, 16
        %v4992 = vrot.slane %v4990, 5
        %v4993 = vor.u32 %v4989, %v4992
        %v4994 = vrot.slane %v4993, 4
        %v4996 = vshll.u32 %v4899, 16
        %v4998 = vrot.slane %v4996, 5
        %v4999 = vsel %vm413, %v4994, %v4998
        %v5001 = vshrl.u32 %v4900, 16
        %v5003 = vrot.slane %v5001, 4
        %v5004 = vshll.u32 %v4900, 16
        %v5006 = vrot.slane %v5004, 5
        %v5007 = vor.u32 %v5003, %v5006
        %v5008 = vrot.slane %v5007, 4
        %v5010 = vshll.u32 %v4901, 16
        %v5012 = vrot.slane %v5010, 5
        %v5013 = vsel %vm413, %v5008, %v5012
        %5022 = vst [vmem:[#allocation2 + $0x124] sm:$0xf] %v4915
        %5023 = vst [vmem:[#allocation2 + $0x148] sm:$0xf] %v4929
        %5024 = vst [vmem:[#allocation2 + $0x16c] sm:$0xf] %v4943
        %5025 = vst [vmem:[#allocation2 + $0x190] sm:$0xf] %v4957
        %5026 = vst [vmem:[#allocation2 + $0x1b4] sm:$0xf] %v4971
        %5027 = vst [vmem:[#allocation2 + $0x1d8] sm:$0xf] %v4985
        %5028 = vst [vmem:[#allocation2 + $0x1fc] sm:$0xf] %v4999
        %5029 = vst [vmem:[#allocation2 + $0x220] sm:$0xf] %v5013
        %v5030 = vld [vmem:[%s4869] sm:$0xe]
        %v5031 = vld [vmem:[%s4869 + $0x4] sm:$0x1]
        %v5032 = vld [vmem:[%s4869 + $0x8] sm:$0xe]
        %v5033 = vld [vmem:[%s4869 + $0xc] sm:$0x1]
        %v5034 = vld [vmem:[%s4869 + $0x10] sm:$0xe]
        %v5035 = vld [vmem:[%s4869 + $0x14] sm:$0x1]
        %v5036 = vld [vmem:[%s4869 + $0x18] sm:$0xe]
        %v5037 = vld [vmem:[%s4869 + $0x1c] sm:$0x1]
        %v5038 = vld [vmem:[%s4869 + $0x20] sm:$0xe]
        %v5039 = vld [vmem:[%s4869 + $0x24] sm:$0x1]
        %v5040 = vld [vmem:[%s4869 + $0x28] sm:$0xe]
        %v5041 = vld [vmem:[%s4869 + $0x2c] sm:$0x1]
        %v5042 = vld [vmem:[%s4869 + $0x30] sm:$0xe]
        %v5043 = vld [vmem:[%s4869 + $0x34] sm:$0x1]
        %v5044 = vld [vmem:[%s4869 + $0x38] sm:$0xe]
        %v5045 = vld [vmem:[%s4869 + $0x3c] sm:$0x1]
        %v5062 = vrot.slane %v5030, 5
        %v5063 = vrot.slane %v5062, 4
        %v5064 = vrot.slane %v5031, 5
        %v5065 = vsel %vm576, %v5063, %v5064
        %v5066 = vrot.slane %v5032, 5
        %v5067 = vrot.slane %v5066, 4
        %v5068 = vrot.slane %v5033, 5
        %v5069 = vsel %vm576, %v5067, %v5068
        %v5070 = vrot.slane %v5034, 5
        %v5071 = vrot.slane %v5070, 4
        %v5072 = vrot.slane %v5035, 5
        %v5073 = vsel %vm576, %v5071, %v5072
        %v5074 = vrot.slane %v5036, 5
        %v5075 = vrot.slane %v5074, 4
        %v5076 = vrot.slane %v5037, 5
        %v5077 = vsel %vm576, %v5075, %v5076
        %v5078 = vrot.slane %v5038, 5
        %v5079 = vrot.slane %v5078, 4
        %v5080 = vrot.slane %v5039, 5
        %v5081 = vsel %vm576, %v5079, %v5080
        %v5082 = vrot.slane %v5040, 5
        %v5083 = vrot.slane %v5082, 4
        %v5084 = vrot.slane %v5041, 5
        %v5085 = vsel %vm576, %v5083, %v5084
        %v5086 = vrot.slane %v5042, 5
        %v5087 = vrot.slane %v5086, 4
        %v5088 = vrot.slane %v5043, 5
        %v5089 = vsel %vm576, %v5087, %v5088
        %v5090 = vrot.slane %v5044, 5
        %v5091 = vrot.slane %v5090, 4
        %v5092 = vrot.slane %v5045, 5
        %v5093 = vsel %vm576, %v5091, %v5092
        %5102 = vst [vmem:[#allocation2 + $0x128] sm:$0xf] %v5065
        %5103 = vst [vmem:[#allocation2 + $0x14c] sm:$0xf] %v5069
        %5104 = vst [vmem:[#allocation2 + $0x170] sm:$0xf] %v5073
        %5105 = vst [vmem:[#allocation2 + $0x194] sm:$0xf] %v5077
        %5106 = vst [vmem:[#allocation2 + $0x1b8] sm:$0xf] %v5081
        %5107 = vst [vmem:[#allocation2 + $0x1dc] sm:$0xf] %v5085
        %5108 = vst [vmem:[#allocation2 + $0x200] sm:$0xf] %v5089
        %5109 = vst [vmem:[#allocation2 + $0x224] sm:$0xf] %v5093
        %s5110 = scalar_lea.vmem %s376, 248
        %v5111 = vld [vmem:[%s5110] sm:$0xf]
        %v5112 = vld [vmem:[%s5110 + $0x8] sm:$0xf]
        %v5113 = vld [vmem:[%s5110 + $0x10] sm:$0xf]
        %v5114 = vld [vmem:[%s5110 + $0x18] sm:$0xf]
        %v5115 = vld [vmem:[%s5110 + $0x20] sm:$0xf]
        %v5116 = vld [vmem:[%s5110 + $0x28] sm:$0xf]
        %v5117 = vld [vmem:[%s5110 + $0x30] sm:$0xf]
        %v5118 = vld [vmem:[%s5110 + $0x38] sm:$0xf]
        %5119 = vst [vmem:[#allocation2 + $0x12c] sm:$0xf] %v5111
        %5120 = vst [vmem:[#allocation2 + $0x150] sm:$0xf] %v5112
        %5121 = vst [vmem:[#allocation2 + $0x174] sm:$0xf] %v5113
        %5122 = vst [vmem:[#allocation2 + $0x198] sm:$0xf] %v5114
        %5123 = vst [vmem:[#allocation2 + $0x1bc] sm:$0xf] %v5115
        %5124 = vst [vmem:[#allocation2 + $0x1e0] sm:$0xf] %v5116
        %5125 = vst [vmem:[#allocation2 + $0x204] sm:$0xf] %v5117
        %5126 = vst [vmem:[#allocation2 + $0x228] sm:$0xf] %v5118
        %v5127 = vld [vmem:[%s5110] sm:$0xf]
        %v5128 = vld [vmem:[%s5110 + $0x4] sm:$0x1]
        %v5129 = vld [vmem:[%s5110 + $0x8] sm:$0xf]
        %v5130 = vld [vmem:[%s5110 + $0xc] sm:$0x1]
        %v5131 = vld [vmem:[%s5110 + $0x10] sm:$0xf]
        %v5132 = vld [vmem:[%s5110 + $0x14] sm:$0x1]
        %v5133 = vld [vmem:[%s5110 + $0x18] sm:$0xf]
        %v5134 = vld [vmem:[%s5110 + $0x1c] sm:$0x1]
        %v5135 = vld [vmem:[%s5110 + $0x20] sm:$0xf]
        %v5136 = vld [vmem:[%s5110 + $0x24] sm:$0x1]
        %v5137 = vld [vmem:[%s5110 + $0x28] sm:$0xf]
        %v5138 = vld [vmem:[%s5110 + $0x2c] sm:$0x1]
        %v5139 = vld [vmem:[%s5110 + $0x30] sm:$0xf]
        %v5140 = vld [vmem:[%s5110 + $0x34] sm:$0x1]
        %v5141 = vld [vmem:[%s5110 + $0x38] sm:$0xf]
        %v5142 = vld [vmem:[%s5110 + $0x3c] sm:$0x1]
        %v5144 = vshrl.u32 %v5127, 16
        %v5146 = vrot.slane %v5144, 4
        %v5147 = vshll.u32 %v5127, 16
        %v5149 = vrot.slane %v5147, 5
        %v5150 = vor.u32 %v5146, %v5149
        %v5151 = vrot.slane %v5150, 4
        %v5153 = vshll.u32 %v5128, 16
        %v5155 = vrot.slane %v5153, 5
        %v5156 = vsel %vm413, %v5151, %v5155
        %v5158 = vshrl.u32 %v5129, 16
        %v5160 = vrot.slane %v5158, 4
        %v5161 = vshll.u32 %v5129, 16
        %v5163 = vrot.slane %v5161, 5
        %v5164 = vor.u32 %v5160, %v5163
        %v5165 = vrot.slane %v5164, 4
        %v5167 = vshll.u32 %v5130, 16
        %v5169 = vrot.slane %v5167, 5
        %v5170 = vsel %vm413, %v5165, %v5169
        %v5172 = vshrl.u32 %v5131, 16
        %v5174 = vrot.slane %v5172, 4
        %v5175 = vshll.u32 %v5131, 16
        %v5177 = vrot.slane %v5175, 5
        %v5178 = vor.u32 %v5174, %v5177
        %v5179 = vrot.slane %v5178, 4
        %v5181 = vshll.u32 %v5132, 16
        %v5183 = vrot.slane %v5181, 5
        %v5184 = vsel %vm413, %v5179, %v5183
        %v5186 = vshrl.u32 %v5133, 16
        %v5188 = vrot.slane %v5186, 4
        %v5189 = vshll.u32 %v5133, 16
        %v5191 = vrot.slane %v5189, 5
        %v5192 = vor.u32 %v5188, %v5191
        %v5193 = vrot.slane %v5192, 4
        %v5195 = vshll.u32 %v5134, 16
        %v5197 = vrot.slane %v5195, 5
        %v5198 = vsel %vm413, %v5193, %v5197
        %v5200 = vshrl.u32 %v5135, 16
        %v5202 = vrot.slane %v5200, 4
        %v5203 = vshll.u32 %v5135, 16
        %v5205 = vrot.slane %v5203, 5
        %v5206 = vor.u32 %v5202, %v5205
        %v5207 = vrot.slane %v5206, 4
        %v5209 = vshll.u32 %v5136, 16
        %v5211 = vrot.slane %v5209, 5
        %v5212 = vsel %vm413, %v5207, %v5211
        %v5214 = vshrl.u32 %v5137, 16
        %v5216 = vrot.slane %v5214, 4
        %v5217 = vshll.u32 %v5137, 16
        %v5219 = vrot.slane %v5217, 5
        %v5220 = vor.u32 %v5216, %v5219
        %v5221 = vrot.slane %v5220, 4
        %v5223 = vshll.u32 %v5138, 16
        %v5225 = vrot.slane %v5223, 5
        %v5226 = vsel %vm413, %v5221, %v5225
        %v5228 = vshrl.u32 %v5139, 16
        %v5230 = vrot.slane %v5228, 4
        %v5231 = vshll.u32 %v5139, 16
        %v5233 = vrot.slane %v5231, 5
        %v5234 = vor.u32 %v5230, %v5233
        %v5235 = vrot.slane %v5234, 4
        %v5237 = vshll.u32 %v5140, 16
        %v5239 = vrot.slane %v5237, 5
        %v5240 = vsel %vm413, %v5235, %v5239
        %v5242 = vshrl.u32 %v5141, 16
        %v5244 = vrot.slane %v5242, 4
        %v5245 = vshll.u32 %v5141, 16
        %v5247 = vrot.slane %v5245, 5
        %v5248 = vor.u32 %v5244, %v5247
        %v5249 = vrot.slane %v5248, 4
        %v5251 = vshll.u32 %v5142, 16
        %v5253 = vrot.slane %v5251, 5
        %v5254 = vsel %vm413, %v5249, %v5253
        %5263 = vst [vmem:[#allocation2 + $0x130] sm:$0xf] %v5156
        %5264 = vst [vmem:[#allocation2 + $0x154] sm:$0xf] %v5170
        %5265 = vst [vmem:[#allocation2 + $0x178] sm:$0xf] %v5184
        %5266 = vst [vmem:[#allocation2 + $0x19c] sm:$0xf] %v5198
        %5267 = vst [vmem:[#allocation2 + $0x1c0] sm:$0xf] %v5212
        %5268 = vst [vmem:[#allocation2 + $0x1e4] sm:$0xf] %v5226
        %5269 = vst [vmem:[#allocation2 + $0x208] sm:$0xf] %v5240
        %5270 = vst [vmem:[#allocation2 + $0x22c] sm:$0xf] %v5254
        %v5271 = vld [vmem:[%s5110] sm:$0xe]
        %v5272 = vld [vmem:[%s5110 + $0x4] sm:$0x1]
        %v5273 = vld [vmem:[%s5110 + $0x8] sm:$0xe]
        %v5274 = vld [vmem:[%s5110 + $0xc] sm:$0x1]
        %v5275 = vld [vmem:[%s5110 + $0x10] sm:$0xe]
        %v5276 = vld [vmem:[%s5110 + $0x14] sm:$0x1]
        %v5277 = vld [vmem:[%s5110 + $0x18] sm:$0xe]
        %v5278 = vld [vmem:[%s5110 + $0x1c] sm:$0x1]
        %v5279 = vld [vmem:[%s5110 + $0x20] sm:$0xe]
        %v5280 = vld [vmem:[%s5110 + $0x24] sm:$0x1]
        %v5281 = vld [vmem:[%s5110 + $0x28] sm:$0xe]
        %v5282 = vld [vmem:[%s5110 + $0x2c] sm:$0x1]
        %v5283 = vld [vmem:[%s5110 + $0x30] sm:$0xe]
        %v5284 = vld [vmem:[%s5110 + $0x34] sm:$0x1]
        %v5285 = vld [vmem:[%s5110 + $0x38] sm:$0xe]
        %v5286 = vld [vmem:[%s5110 + $0x3c] sm:$0x1]
        %v5303 = vrot.slane %v5271, 5
        %v5304 = vrot.slane %v5303, 4
        %v5305 = vrot.slane %v5272, 5
        %v5306 = vsel %vm576, %v5304, %v5305
        %v5307 = vrot.slane %v5273, 5
        %v5308 = vrot.slane %v5307, 4
        %v5309 = vrot.slane %v5274, 5
        %v5310 = vsel %vm576, %v5308, %v5309
        %v5311 = vrot.slane %v5275, 5
        %v5312 = vrot.slane %v5311, 4
        %v5313 = vrot.slane %v5276, 5
        %v5314 = vsel %vm576, %v5312, %v5313
        %v5315 = vrot.slane %v5277, 5
        %v5316 = vrot.slane %v5315, 4
        %v5317 = vrot.slane %v5278, 5
        %v5318 = vsel %vm576, %v5316, %v5317
        %v5319 = vrot.slane %v5279, 5
        %v5320 = vrot.slane %v5319, 4
        %v5321 = vrot.slane %v5280, 5
        %v5322 = vsel %vm576, %v5320, %v5321
        %v5323 = vrot.slane %v5281, 5
        %v5324 = vrot.slane %v5323, 4
        %v5325 = vrot.slane %v5282, 5
        %v5326 = vsel %vm576, %v5324, %v5325
        %v5327 = vrot.slane %v5283, 5
        %v5328 = vrot.slane %v5327, 4
        %v5329 = vrot.slane %v5284, 5
        %v5330 = vsel %vm576, %v5328, %v5329
        %v5331 = vrot.slane %v5285, 5
        %v5332 = vrot.slane %v5331, 4
        %v5333 = vrot.slane %v5286, 5
        %v5334 = vsel %vm576, %v5332, %v5333
        %5343 = vst [vmem:[#allocation2 + $0x134] sm:$0xf] %v5306
        %5344 = vst [vmem:[#allocation2 + $0x158] sm:$0xf] %v5310
        %5345 = vst [vmem:[#allocation2 + $0x17c] sm:$0xf] %v5314
        %5346 = vst [vmem:[#allocation2 + $0x1a0] sm:$0xf] %v5318
        %5347 = vst [vmem:[#allocation2 + $0x1c4] sm:$0xf] %v5322
        %5348 = vst [vmem:[#allocation2 + $0x1e8] sm:$0xf] %v5326
        %5349 = vst [vmem:[#allocation2 + $0x20c] sm:$0xf] %v5330
        %5350 = vst [vmem:[#allocation2 + $0x230] sm:$0xf] %v5334
        %s5351 = scalar_lea.vmem %s376, 256
        %v5352 = vld [vmem:[%s5351] sm:$0xf]
        %v5353 = vld [vmem:[%s5351 + $0x8] sm:$0xf]
        %v5354 = vld [vmem:[%s5351 + $0x10] sm:$0xf]
        %v5355 = vld [vmem:[%s5351 + $0x18] sm:$0xf]
        %v5356 = vld [vmem:[%s5351 + $0x20] sm:$0xf]
        %v5357 = vld [vmem:[%s5351 + $0x28] sm:$0xf]
        %v5358 = vld [vmem:[%s5351 + $0x30] sm:$0xf]
        %v5359 = vld [vmem:[%s5351 + $0x38] sm:$0xf]
        %5360 = vst [vmem:[#allocation2 + $0x138] sm:$0xf] %v5352
        %5361 = vst [vmem:[#allocation2 + $0x15c] sm:$0xf] %v5353
        %5362 = vst [vmem:[#allocation2 + $0x180] sm:$0xf] %v5354
        %5363 = vst [vmem:[#allocation2 + $0x1a4] sm:$0xf] %v5355
        %5364 = vst [vmem:[#allocation2 + $0x1c8] sm:$0xf] %v5356
        %5365 = vst [vmem:[#allocation2 + $0x1ec] sm:$0xf] %v5357
        %5366 = vst [vmem:[#allocation2 + $0x210] sm:$0xf] %v5358
        %5367 = vst [vmem:[#allocation2 + $0x234] sm:$0xf] %v5359
        %v5368 = vld [vmem:[%s5351] sm:$0xf]
        %v5369 = vld [vmem:[%s5351 + $0x4] sm:$0x1]
        %v5370 = vld [vmem:[%s5351 + $0x8] sm:$0xf]
        %v5371 = vld [vmem:[%s5351 + $0xc] sm:$0x1]
        %v5372 = vld [vmem:[%s5351 + $0x10] sm:$0xf]
        %v5373 = vld [vmem:[%s5351 + $0x14] sm:$0x1]
        %v5374 = vld [vmem:[%s5351 + $0x18] sm:$0xf]
        %v5375 = vld [vmem:[%s5351 + $0x1c] sm:$0x1]
        %v5376 = vld [vmem:[%s5351 + $0x20] sm:$0xf]
        %v5377 = vld [vmem:[%s5351 + $0x24] sm:$0x1]
        %v5378 = vld [vmem:[%s5351 + $0x28] sm:$0xf]
        %v5379 = vld [vmem:[%s5351 + $0x2c] sm:$0x1]
        %v5380 = vld [vmem:[%s5351 + $0x30] sm:$0xf]
        %v5381 = vld [vmem:[%s5351 + $0x34] sm:$0x1]
        %v5382 = vld [vmem:[%s5351 + $0x38] sm:$0xf]
        %v5383 = vld [vmem:[%s5351 + $0x3c] sm:$0x1]
        %v5385 = vshrl.u32 %v5368, 16
        %v5387 = vrot.slane %v5385, 4
        %v5388 = vshll.u32 %v5368, 16
        %v5390 = vrot.slane %v5388, 5
        %v5391 = vor.u32 %v5387, %v5390
        %v5392 = vrot.slane %v5391, 4
        %v5394 = vshll.u32 %v5369, 16
        %v5396 = vrot.slane %v5394, 5
        %v5397 = vsel %vm413, %v5392, %v5396
        %v5399 = vshrl.u32 %v5370, 16
        %v5401 = vrot.slane %v5399, 4
        %v5402 = vshll.u32 %v5370, 16
        %v5404 = vrot.slane %v5402, 5
        %v5405 = vor.u32 %v5401, %v5404
        %v5406 = vrot.slane %v5405, 4
        %v5408 = vshll.u32 %v5371, 16
        %v5410 = vrot.slane %v5408, 5
        %v5411 = vsel %vm413, %v5406, %v5410
        %v5413 = vshrl.u32 %v5372, 16
        %v5415 = vrot.slane %v5413, 4
        %v5416 = vshll.u32 %v5372, 16
        %v5418 = vrot.slane %v5416, 5
        %v5419 = vor.u32 %v5415, %v5418
        %v5420 = vrot.slane %v5419, 4
        %v5422 = vshll.u32 %v5373, 16
        %v5424 = vrot.slane %v5422, 5
        %v5425 = vsel %vm413, %v5420, %v5424
        %v5427 = vshrl.u32 %v5374, 16
        %v5429 = vrot.slane %v5427, 4
        %v5430 = vshll.u32 %v5374, 16
        %v5432 = vrot.slane %v5430, 5
        %v5433 = vor.u32 %v5429, %v5432
        %v5434 = vrot.slane %v5433, 4
        %v5436 = vshll.u32 %v5375, 16
        %v5438 = vrot.slane %v5436, 5
        %v5439 = vsel %vm413, %v5434, %v5438
        %v5441 = vshrl.u32 %v5376, 16
        %v5443 = vrot.slane %v5441, 4
        %v5444 = vshll.u32 %v5376, 16
        %v5446 = vrot.slane %v5444, 5
        %v5447 = vor.u32 %v5443, %v5446
        %v5448 = vrot.slane %v5447, 4
        %v5450 = vshll.u32 %v5377, 16
        %v5452 = vrot.slane %v5450, 5
        %v5453 = vsel %vm413, %v5448, %v5452
        %v5455 = vshrl.u32 %v5378, 16
        %v5457 = vrot.slane %v5455, 4
        %v5458 = vshll.u32 %v5378, 16
        %v5460 = vrot.slane %v5458, 5
        %v5461 = vor.u32 %v5457, %v5460
        %v5462 = vrot.slane %v5461, 4
        %v5464 = vshll.u32 %v5379, 16
        %v5466 = vrot.slane %v5464, 5
        %v5467 = vsel %vm413, %v5462, %v5466
        %v5469 = vshrl.u32 %v5380, 16
        %v5471 = vrot.slane %v5469, 4
        %v5472 = vshll.u32 %v5380, 16
        %v5474 = vrot.slane %v5472, 5
        %v5475 = vor.u32 %v5471, %v5474
        %v5476 = vrot.slane %v5475, 4
        %v5478 = vshll.u32 %v5381, 16
        %v5480 = vrot.slane %v5478, 5
        %v5481 = vsel %vm413, %v5476, %v5480
        %v5483 = vshrl.u32 %v5382, 16
        %v5485 = vrot.slane %v5483, 4
        %v5486 = vshll.u32 %v5382, 16
        %v5488 = vrot.slane %v5486, 5
        %v5489 = vor.u32 %v5485, %v5488
        %v5490 = vrot.slane %v5489, 4
        %v5492 = vshll.u32 %v5383, 16
        %v5494 = vrot.slane %v5492, 5
        %v5495 = vsel %vm413, %v5490, %v5494
        %5504 = vst [vmem:[#allocation2 + $0x13c] sm:$0xf] %v5397
        %5505 = vst [vmem:[#allocation2 + $0x160] sm:$0xf] %v5411
        %5506 = vst [vmem:[#allocation2 + $0x184] sm:$0xf] %v5425
        %5507 = vst [vmem:[#allocation2 + $0x1a8] sm:$0xf] %v5439
        %5508 = vst [vmem:[#allocation2 + $0x1cc] sm:$0xf] %v5453
        %5509 = vst [vmem:[#allocation2 + $0x1f0] sm:$0xf] %v5467
        %5510 = vst [vmem:[#allocation2 + $0x214] sm:$0xf] %v5481
        %5511 = vst [vmem:[#allocation2 + $0x238] sm:$0xf] %v5495
        %v5512 = vld [vmem:[%s5351] sm:$0xe]
        %v5513 = vld [vmem:[%s5351 + $0x4] sm:$0x1]
        %v5514 = vld [vmem:[%s5351 + $0x8] sm:$0xe]
        %v5515 = vld [vmem:[%s5351 + $0xc] sm:$0x1]
        %v5516 = vld [vmem:[%s5351 + $0x10] sm:$0xe]
        %v5517 = vld [vmem:[%s5351 + $0x14] sm:$0x1]
        %v5518 = vld [vmem:[%s5351 + $0x18] sm:$0xe]
        %v5519 = vld [vmem:[%s5351 + $0x1c] sm:$0x1]
        %v5520 = vld [vmem:[%s5351 + $0x20] sm:$0xe]
        %v5521 = vld [vmem:[%s5351 + $0x24] sm:$0x1]
        %v5522 = vld [vmem:[%s5351 + $0x28] sm:$0xe]
        %v5523 = vld [vmem:[%s5351 + $0x2c] sm:$0x1]
        %v5524 = vld [vmem:[%s5351 + $0x30] sm:$0xe]
        %v5525 = vld [vmem:[%s5351 + $0x34] sm:$0x1]
        %v5526 = vld [vmem:[%s5351 + $0x38] sm:$0xe]
        %v5527 = vld [vmem:[%s5351 + $0x3c] sm:$0x1]
        %v5544 = vrot.slane %v5512, 5
        %v5545 = vrot.slane %v5544, 4
        %v5546 = vrot.slane %v5513, 5
        %v5547 = vsel %vm576, %v5545, %v5546
        %v5548 = vrot.slane %v5514, 5
        %v5549 = vrot.slane %v5548, 4
        %v5550 = vrot.slane %v5515, 5
        %v5551 = vsel %vm576, %v5549, %v5550
        %v5552 = vrot.slane %v5516, 5
        %v5553 = vrot.slane %v5552, 4
        %v5554 = vrot.slane %v5517, 5
        %v5555 = vsel %vm576, %v5553, %v5554
        %v5556 = vrot.slane %v5518, 5
        %v5557 = vrot.slane %v5556, 4
        %v5558 = vrot.slane %v5519, 5
        %v5559 = vsel %vm576, %v5557, %v5558
        %v5560 = vrot.slane %v5520, 5
        %v5561 = vrot.slane %v5560, 4
        %v5562 = vrot.slane %v5521, 5
        %v5563 = vsel %vm576, %v5561, %v5562
        %v5564 = vrot.slane %v5522, 5
        %v5565 = vrot.slane %v5564, 4
        %v5566 = vrot.slane %v5523, 5
        %v5567 = vsel %vm576, %v5565, %v5566
        %v5568 = vrot.slane %v5524, 5
        %v5569 = vrot.slane %v5568, 4
        %v5570 = vrot.slane %v5525, 5
        %v5571 = vsel %vm576, %v5569, %v5570
        %v5572 = vrot.slane %v5526, 5
        %v5573 = vrot.slane %v5572, 4
        %v5574 = vrot.slane %v5527, 5
        %v5575 = vsel %vm576, %v5573, %v5574
        %5584 = vst [vmem:[#allocation2 + $0x140] sm:$0xf] %v5547
        %5585 = vst [vmem:[#allocation2 + $0x164] sm:$0xf] %v5551
        %5586 = vst [vmem:[#allocation2 + $0x188] sm:$0xf] %v5555
        %5587 = vst [vmem:[#allocation2 + $0x1ac] sm:$0xf] %v5559
        %5588 = vst [vmem:[#allocation2 + $0x1d0] sm:$0xf] %v5563
        %5589 = vst [vmem:[#allocation2 + $0x1f4] sm:$0xf] %v5567
        %5590 = vst [vmem:[#allocation2 + $0x218] sm:$0xf] %v5571
        %5591 = vst [vmem:[#allocation2 + $0x23c] sm:$0xf] %v5575
        %v5592 = vld [vmem:[#allocation2] sm:$0xff]
        %v5593 = vld [vmem:[#allocation2 + $0x8] sm:$0xff]
        %v5594 = vld [vmem:[#allocation2 + $0x10] sm:$0xff]
        %v5595 = vld [vmem:[#allocation2 + $0x18] sm:$0xff]
        %v5596 = vld [vmem:[#allocation2 + $0x20] sm:$0xf]
        %v5597 = vld [vmem:[#allocation2 + $0x24] sm:$0xff]
        %v5598 = vld [vmem:[#allocation2 + $0x2c] sm:$0xff]
        %v5599 = vld [vmem:[#allocation2 + $0x34] sm:$0xff]
        %v5600 = vld [vmem:[#allocation2 + $0x3c] sm:$0xff]
        %v5601 = vld [vmem:[#allocation2 + $0x44] sm:$0xf]
        %v5602 = vld [vmem:[#allocation2 + $0x48] sm:$0xff]
        %v5603 = vld [vmem:[#allocation2 + $0x50] sm:$0xff]
        %v5604 = vld [vmem:[#allocation2 + $0x58] sm:$0xff]
        %v5605 = vld [vmem:[#allocation2 + $0x60] sm:$0xff]
        %v5606 = vld [vmem:[#allocation2 + $0x68] sm:$0xf]
        %v5607 = vld [vmem:[#allocation2 + $0x6c] sm:$0xff]
        %v5608 = vld [vmem:[#allocation2 + $0x74] sm:$0xff]
        %v5609 = vld [vmem:[#allocation2 + $0x7c] sm:$0xff]
        %v5610 = vld [vmem:[#allocation2 + $0x84] sm:$0xff]
        %v5611 = vld [vmem:[#allocation2 + $0x8c] sm:$0xf]
        %v5612 = vld [vmem:[#allocation2 + $0x90] sm:$0xff]
        %v5613 = vld [vmem:[#allocation2 + $0x98] sm:$0xff]
        %v5614 = vld [vmem:[#allocation2 + $0xa0] sm:$0xff]
        %v5615 = vld [vmem:[#allocation2 + $0xa8] sm:$0xff]
        %v5616 = vld [vmem:[#allocation2 + $0xb0] sm:$0xf]
        %v5617 = vld [vmem:[#allocation2 + $0xb4] sm:$0xff]
        %v5618 = vld [vmem:[#allocation2 + $0xbc] sm:$0xff]
        %v5619 = vld [vmem:[#allocation2 + $0xc4] sm:$0xff]
        %v5620 = vld [vmem:[#allocation2 + $0xcc] sm:$0xff]
        %v5621 = vld [vmem:[#allocation2 + $0xd4] sm:$0xf]
        %v5622 = vld [vmem:[#allocation2 + $0xd8] sm:$0xff]
        %v5623 = vld [vmem:[#allocation2 + $0xe0] sm:$0xff]
        %v5624 = vld [vmem:[#allocation2 + $0xe8] sm:$0xff]
        %v5625 = vld [vmem:[#allocation2 + $0xf0] sm:$0xff]
        %v5626 = vld [vmem:[#allocation2 + $0xf8] sm:$0xf]
        %v5627 = vld [vmem:[#allocation2 + $0xfc] sm:$0xff]
        %v5628 = vld [vmem:[#allocation2 + $0x104] sm:$0xff]
        %v5629 = vld [vmem:[#allocation2 + $0x10c] sm:$0xff]
        %v5630 = vld [vmem:[#allocation2 + $0x114] sm:$0xff]
        %v5631 = vld [vmem:[#allocation2 + $0x11c] sm:$0xf]
        %v5632 = vld [vmem:[#allocation2 + $0x120] sm:$0xff]
        %v5633 = vld [vmem:[#allocation2 + $0x128] sm:$0xff]
        %v5634 = vld [vmem:[#allocation2 + $0x130] sm:$0xff]
        %v5635 = vld [vmem:[#allocation2 + $0x138] sm:$0xff]
        %v5636 = vld [vmem:[#allocation2 + $0x140] sm:$0xf]
        %v5637 = vld [vmem:[#allocation2 + $0x144] sm:$0xff]
        %v5638 = vld [vmem:[#allocation2 + $0x14c] sm:$0xff]
        %v5639 = vld [vmem:[#allocation2 + $0x154] sm:$0xff]
        %v5640 = vld [vmem:[#allocation2 + $0x15c] sm:$0xff]
        %v5641 = vld [vmem:[#allocation2 + $0x164] sm:$0xf]
        %v5642 = vld [vmem:[#allocation2 + $0x168] sm:$0xff]
        %v5643 = vld [vmem:[#allocation2 + $0x170] sm:$0xff]
        %v5644 = vld [vmem:[#allocation2 + $0x178] sm:$0xff]
        %v5645 = vld [vmem:[#allocation2 + $0x180] sm:$0xff]
        %v5646 = vld [vmem:[#allocation2 + $0x188] sm:$0xf]
        %v5647 = vld [vmem:[#allocation2 + $0x18c] sm:$0xff]
        %v5648 = vld [vmem:[#allocation2 + $0x194] sm:$0xff]
        %v5649 = vld [vmem:[#allocation2 + $0x19c] sm:$0xff]
        %v5650 = vld [vmem:[#allocation2 + $0x1a4] sm:$0xff]
        %v5651 = vld [vmem:[#allocation2 + $0x1ac] sm:$0xf]
        %v5652 = vld [vmem:[#allocation2 + $0x1b0] sm:$0xff]
        %v5653 = vld [vmem:[#allocation2 + $0x1b8] sm:$0xff]
        %v5654 = vld [vmem:[#allocation2 + $0x1c0] sm:$0xff]
        %v5655 = vld [vmem:[#allocation2 + $0x1c8] sm:$0xff]
        %v5656 = vld [vmem:[#allocation2 + $0x1d0] sm:$0xf]
        %v5657 = vld [vmem:[#allocation2 + $0x1d4] sm:$0xff]
        %v5658 = vld [vmem:[#allocation2 + $0x1dc] sm:$0xff]
        %v5659 = vld [vmem:[#allocation2 + $0x1e4] sm:$0xff]
        %v5660 = vld [vmem:[#allocation2 + $0x1ec] sm:$0xff]
        %v5661 = vld [vmem:[#allocation2 + $0x1f4] sm:$0xf]
        %v5662 = vld [vmem:[#allocation2 + $0x1f8] sm:$0xff]
        %v5663 = vld [vmem:[#allocation2 + $0x200] sm:$0xff]
        %v5664 = vld [vmem:[#allocation2 + $0x208] sm:$0xff]
        %v5665 = vld [vmem:[#allocation2 + $0x210] sm:$0xff]
        %v5666 = vld [vmem:[#allocation2 + $0x218] sm:$0xf]
        %v5667 = vld [vmem:[#allocation2 + $0x21c] sm:$0xff]
        %v5668 = vld [vmem:[#allocation2 + $0x224] sm:$0xff]
        %v5669 = vld [vmem:[#allocation2 + $0x22c] sm:$0xff]
        %v5670 = vld [vmem:[#allocation2 + $0x234] sm:$0xff]
        %v5671 = vld [vmem:[#allocation2 + $0x23c] sm:$0xf]
        %s5672 = scalar_lea.vmem [#allocation4], 1152
        %v5673 = vld [vmem:[%s5672] sm:$0xff]
        %v5674 = vld [vmem:[%s5672 + $0x8] sm:$0xff]
        %v5675 = vld [vmem:[%s5672 + $0x10] sm:$0xff]
        %v5676 = vld [vmem:[%s5672 + $0x18] sm:$0xff]
        %v5677 = vld [vmem:[%s5672 + $0x20] sm:$0xff]
        %v5678 = vld [vmem:[%s5672 + $0x28] sm:$0xff]
        %v5679 = vld [vmem:[%s5672 + $0x30] sm:$0xff]
        %v5680 = vld [vmem:[%s5672 + $0x38] sm:$0xff]
        %v5681 = vld [vmem:[%s5672 + $0x40] sm:$0xff]
        %v5682 = vld [vmem:[%s5672 + $0x48] sm:$0xff]
        %v5683 = vld [vmem:[%s5672 + $0x50] sm:$0xff]
        %v5684 = vld [vmem:[%s5672 + $0x58] sm:$0xff]
        %v5685 = vld [vmem:[%s5672 + $0x60] sm:$0xff]
        %v5686 = vld [vmem:[%s5672 + $0x68] sm:$0xff]
        %v5687 = vld [vmem:[%s5672 + $0x70] sm:$0xff]
        %v5688 = vld [vmem:[%s5672 + $0x78] sm:$0xff]
        %v5689 = vld [vmem:[%s5672 + $0x80] sm:$0xff]
        %v5690 = vld [vmem:[%s5672 + $0x88] sm:$0xff]
        %v5691 = vld [vmem:[%s5672 + $0x90] sm:$0xff]
        %v5692 = vld [vmem:[%s5672 + $0x98] sm:$0xff]
        %v5693 = vld [vmem:[%s5672 + $0xa0] sm:$0xff]
        %v5694 = vld [vmem:[%s5672 + $0xa8] sm:$0xff]
        %v5695 = vld [vmem:[%s5672 + $0xb0] sm:$0xff]
        %v5696 = vld [vmem:[%s5672 + $0xb8] sm:$0xff]
        %v5697 = vld [vmem:[%s5672 + $0xc0] sm:$0xff]
        %v5698 = vld [vmem:[%s5672 + $0xc8] sm:$0xff]
        %v5699 = vld [vmem:[%s5672 + $0xd0] sm:$0xff]
        %v5700 = vld [vmem:[%s5672 + $0xd8] sm:$0xff]
        %v5701 = vld [vmem:[%s5672 + $0xe0] sm:$0xff]
        %v5702 = vld [vmem:[%s5672 + $0xe8] sm:$0xff]
        %v5703 = vld [vmem:[%s5672 + $0xf0] sm:$0xff]
        %v5704 = vld [vmem:[%s5672 + $0xf8] sm:$0xff]
        %v5705 = vld [vmem:[%s5672 + $0x100] sm:$0xff]
        %v5706 = vld [vmem:[%s5672 + $0x108] sm:$0xff]
        %v5707 = vld [vmem:[%s5672 + $0x110] sm:$0xff]
        %v5708 = vld [vmem:[%s5672 + $0x118] sm:$0xff]
        %v5709 = vld [vmem:[%s5672 + $0x120] sm:$0xff]
        %v5710 = vld [vmem:[%s5672 + $0x128] sm:$0xff]
        %v5711 = vld [vmem:[%s5672 + $0x130] sm:$0xff]
        %v5712 = vld [vmem:[%s5672 + $0x138] sm:$0xff]
        %v5713 = vld [vmem:[%s5672 + $0x140] sm:$0xff]
        %v5714 = vld [vmem:[%s5672 + $0x148] sm:$0xff]
        %v5715 = vld [vmem:[%s5672 + $0x150] sm:$0xff]
        %v5716 = vld [vmem:[%s5672 + $0x158] sm:$0xff]
        %v5717 = vld [vmem:[%s5672 + $0x160] sm:$0xff]
        %v5718 = vld [vmem:[%s5672 + $0x168] sm:$0xff]
        %v5719 = vld [vmem:[%s5672 + $0x170] sm:$0xff]
        %v5720 = vld [vmem:[%s5672 + $0x178] sm:$0xff]
        %v5721 = vld [vmem:[%s5672 + $0x180] sm:$0xff]
        %v5722 = vld [vmem:[%s5672 + $0x188] sm:$0xff]
        %v5723 = vld [vmem:[%s5672 + $0x190] sm:$0xff]
        %v5724 = vld [vmem:[%s5672 + $0x198] sm:$0xff]
        %v5725 = vld [vmem:[%s5672 + $0x1a0] sm:$0xff]
        %v5726 = vld [vmem:[%s5672 + $0x1a8] sm:$0xff]
        %v5727 = vld [vmem:[%s5672 + $0x1b0] sm:$0xff]
        %v5728 = vld [vmem:[%s5672 + $0x1b8] sm:$0xff]
        %v5729 = vld [vmem:[%s5672 + $0x1c0] sm:$0xff]
        %v5730 = vld [vmem:[%s5672 + $0x1c8] sm:$0xff]
        %v5731 = vld [vmem:[%s5672 + $0x1d0] sm:$0xff]
        %v5732 = vld [vmem:[%s5672 + $0x1d8] sm:$0xff]
        %v5733 = vld [vmem:[%s5672 + $0x1e0] sm:$0xff]
        %v5734 = vld [vmem:[%s5672 + $0x1e8] sm:$0xff]
        %v5735 = vld [vmem:[%s5672 + $0x1f0] sm:$0xff]
        %v5736 = vld [vmem:[%s5672 + $0x1f8] sm:$0xff]
        %v5737 = vld [vmem:[%s5672 + $0x200] sm:$0xff]
        %v5738 = vld [vmem:[%s5672 + $0x208] sm:$0xff]
        %v5739 = vld [vmem:[%s5672 + $0x210] sm:$0xff]
        %v5740 = vld [vmem:[%s5672 + $0x218] sm:$0xff]
        %v5741 = vld [vmem:[%s5672 + $0x220] sm:$0xff]
        %v5742 = vld [vmem:[%s5672 + $0x228] sm:$0xff]
        %v5743 = vld [vmem:[%s5672 + $0x230] sm:$0xff]
        %v5744 = vld [vmem:[%s5672 + $0x238] sm:$0xff]
        %v5745 = vld [vmem:[%s5672 + $0x240] sm:$0xff]
        %v5746 = vld [vmem:[%s5672 + $0x248] sm:$0xff]
        %v5747 = vld [vmem:[%s5672 + $0x250] sm:$0xff]
        %v5748 = vld [vmem:[%s5672 + $0x258] sm:$0xff]
        %v5749 = vld [vmem:[%s5672 + $0x260] sm:$0xff]
        %v5750 = vld [vmem:[%s5672 + $0x268] sm:$0xff]
        %v5751 = vld [vmem:[%s5672 + $0x270] sm:$0xff]
        %v5752 = vld [vmem:[%s5672 + $0x278] sm:$0xff]
        %v5753 = vld [vmem:[%s5672 + $0x280] sm:$0xff]
        %v5754 = vld [vmem:[%s5672 + $0x288] sm:$0xff]
        %v5755 = vld [vmem:[%s5672 + $0x290] sm:$0xff]
        %v5756 = vld [vmem:[%s5672 + $0x298] sm:$0xff]
        %v5757 = vld [vmem:[%s5672 + $0x2a0] sm:$0xff]
        %v5758 = vld [vmem:[%s5672 + $0x2a8] sm:$0xff]
        %v5759 = vld [vmem:[%s5672 + $0x2b0] sm:$0xff]
        %v5760 = vld [vmem:[%s5672 + $0x2b8] sm:$0xff]
        %v5761 = vld [vmem:[%s5672 + $0x2c0] sm:$0xff]
        %v5762 = vld [vmem:[%s5672 + $0x2c8] sm:$0xff]
        %v5763 = vld [vmem:[%s5672 + $0x2d0] sm:$0xff]
        %v5764 = vld [vmem:[%s5672 + $0x2d8] sm:$0xff]
        %v5765 = vld [vmem:[%s5672 + $0x2e0] sm:$0xff]
        %v5766 = vld [vmem:[%s5672 + $0x2e8] sm:$0xff]
        %v5767 = vld [vmem:[%s5672 + $0x2f0] sm:$0xff]
        %v5768 = vld [vmem:[%s5672 + $0x2f8] sm:$0xff]
        %v5769 = vld [vmem:[%s5672 + $0x300] sm:$0xff]
        %v5770 = vld [vmem:[%s5672 + $0x308] sm:$0xff]
        %v5771 = vld [vmem:[%s5672 + $0x310] sm:$0xff]
        %v5772 = vld [vmem:[%s5672 + $0x318] sm:$0xff]
        %v5773 = vld [vmem:[%s5672 + $0x320] sm:$0xff]
        %v5774 = vld [vmem:[%s5672 + $0x328] sm:$0xff]
        %v5775 = vld [vmem:[%s5672 + $0x330] sm:$0xff]
        %v5776 = vld [vmem:[%s5672 + $0x338] sm:$0xff]
        %v5777 = vld [vmem:[%s5672 + $0x340] sm:$0xff]
        %v5778 = vld [vmem:[%s5672 + $0x348] sm:$0xff]
        %v5779 = vld [vmem:[%s5672 + $0x350] sm:$0xff]
        %v5780 = vld [vmem:[%s5672 + $0x358] sm:$0xff]
        %v5781 = vld [vmem:[%s5672 + $0x360] sm:$0xff]
        %v5782 = vld [vmem:[%s5672 + $0x368] sm:$0xff]
        %v5783 = vld [vmem:[%s5672 + $0x370] sm:$0xff]
        %v5784 = vld [vmem:[%s5672 + $0x378] sm:$0xff]
        %v5785 = vld [vmem:[%s5672 + $0x380] sm:$0xff]
        %v5786 = vld [vmem:[%s5672 + $0x388] sm:$0xff]
        %v5787 = vld [vmem:[%s5672 + $0x390] sm:$0xff]
        %v5788 = vld [vmem:[%s5672 + $0x398] sm:$0xff]
        %v5789 = vld [vmem:[%s5672 + $0x3a0] sm:$0xff]
        %v5790 = vld [vmem:[%s5672 + $0x3a8] sm:$0xff]
        %v5791 = vld [vmem:[%s5672 + $0x3b0] sm:$0xff]
        %v5792 = vld [vmem:[%s5672 + $0x3b8] sm:$0xff]
        %v5793 = vld [vmem:[%s5672 + $0x3c0] sm:$0xff]
        %v5794 = vld [vmem:[%s5672 + $0x3c8] sm:$0xff]
        %v5795 = vld [vmem:[%s5672 + $0x3d0] sm:$0xff]
        %v5796 = vld [vmem:[%s5672 + $0x3d8] sm:$0xff]
        %v5797 = vld [vmem:[%s5672 + $0x3e0] sm:$0xff]
        %v5798 = vld [vmem:[%s5672 + $0x3e8] sm:$0xff]
        %v5799 = vld [vmem:[%s5672 + $0x3f0] sm:$0xff]
        %v5800 = vld [vmem:[%s5672 + $0x3f8] sm:$0xff]
        %v5801 = vld [vmem:[%s5672 + $0x400] sm:$0xff]
        %v5802 = vld [vmem:[%s5672 + $0x408] sm:$0xff]
        %v5803 = vld [vmem:[%s5672 + $0x410] sm:$0xff]
        %v5804 = vld [vmem:[%s5672 + $0x418] sm:$0xff]
        %v5805 = vld [vmem:[%s5672 + $0x420] sm:$0xff]
        %v5806 = vld [vmem:[%s5672 + $0x428] sm:$0xff]
        %v5807 = vld [vmem:[%s5672 + $0x430] sm:$0xff]
        %v5808 = vld [vmem:[%s5672 + $0x438] sm:$0xff]
        %v5809 = vld [vmem:[%s5672 + $0x440] sm:$0xff]
        %v5810 = vld [vmem:[%s5672 + $0x448] sm:$0xff]
        %v5811 = vld [vmem:[%s5672 + $0x450] sm:$0xff]
        %v5812 = vld [vmem:[%s5672 + $0x458] sm:$0xff]
        %v5813 = vld [vmem:[%s5672 + $0x460] sm:$0xff]
        %v5814 = vld [vmem:[%s5672 + $0x468] sm:$0xff]
        %v5815 = vld [vmem:[%s5672 + $0x470] sm:$0xff]
        %v5816 = vld [vmem:[%s5672 + $0x478] sm:$0xff]
        %s5817 = scalar_lea.vmem [#allocation7], 2
        %v5818 = vld [vmem:[%s5817] sm:$0x3]
        %v5820 = vperm.slane %v5818, 0
        %v5821 = vperm.slane %v5818, 1
        %v5904 = vunpack.c.l.b16 %v5592
        %v5905 = vunpack.c.h.b16 %v5592
        %v5906 = vunpack.c.l.b16 %v5593
        %v5907 = vunpack.c.h.b16 %v5593
        %v5908 = vunpack.c.l.b16 %v5594
        %v5909 = vunpack.c.h.b16 %v5594
        %v5910 = vunpack.c.l.b16 %v5595
        %v5911 = vunpack.c.h.b16 %v5595
        %v5912 = vunpack.c.l.b16 %v5596
        %v5913 = vunpack.c.l.b16 %v5597
        %v5914 = vunpack.c.h.b16 %v5597
        %v5915 = vunpack.c.l.b16 %v5598
        %v5916 = vunpack.c.h.b16 %v5598
        %v5917 = vunpack.c.l.b16 %v5599
        %v5918 = vunpack.c.h.b16 %v5599
        %v5919 = vunpack.c.l.b16 %v5600
        %v5920 = vunpack.c.h.b16 %v5600
        %v5921 = vunpack.c.l.b16 %v5601
        %v5922 = vunpack.c.l.b16 %v5602
        %v5923 = vunpack.c.h.b16 %v5602
        %v5924 = vunpack.c.l.b16 %v5603
        %v5925 = vunpack.c.h.b16 %v5603
        %v5926 = vunpack.c.l.b16 %v5604
        %v5927 = vunpack.c.h.b16 %v5604
        %v5928 = vunpack.c.l.b16 %v5605
        %v5929 = vunpack.c.h.b16 %v5605
        %v5930 = vunpack.c.l.b16 %v5606
        %v5931 = vunpack.c.l.b16 %v5607
        %v5932 = vunpack.c.h.b16 %v5607
        %v5933 = vunpack.c.l.b16 %v5608
        %v5934 = vunpack.c.h.b16 %v5608
        %v5935 = vunpack.c.l.b16 %v5609
        %v5936 = vunpack.c.h.b16 %v5609
        %v5937 = vunpack.c.l.b16 %v5610
        %v5938 = vunpack.c.h.b16 %v5610
        %v5939 = vunpack.c.l.b16 %v5611
        %v5940 = vunpack.c.l.b16 %v5612
        %v5941 = vunpack.c.h.b16 %v5612
        %v5942 = vunpack.c.l.b16 %v5613
        %v5943 = vunpack.c.h.b16 %v5613
        %v5944 = vunpack.c.l.b16 %v5614
        %v5945 = vunpack.c.h.b16 %v5614
        %v5946 = vunpack.c.l.b16 %v5615
        %v5947 = vunpack.c.h.b16 %v5615
        %v5948 = vunpack.c.l.b16 %v5616
        %v5949 = vunpack.c.l.b16 %v5617
        %v5950 = vunpack.c.h.b16 %v5617
        %v5951 = vunpack.c.l.b16 %v5618
        %v5952 = vunpack.c.h.b16 %v5618
        %v5953 = vunpack.c.l.b16 %v5619
        %v5954 = vunpack.c.h.b16 %v5619
        %v5955 = vunpack.c.l.b16 %v5620
        %v5956 = vunpack.c.h.b16 %v5620
        %v5957 = vunpack.c.l.b16 %v5621
        %v5958 = vunpack.c.l.b16 %v5622
        %v5959 = vunpack.c.h.b16 %v5622
        %v5960 = vunpack.c.l.b16 %v5623
        %v5961 = vunpack.c.h.b16 %v5623
        %v5962 = vunpack.c.l.b16 %v5624
        %v5963 = vunpack.c.h.b16 %v5624
        %v5964 = vunpack.c.l.b16 %v5625
        %v5965 = vunpack.c.h.b16 %v5625
        %v5966 = vunpack.c.l.b16 %v5626
        %v5967 = vunpack.c.l.b16 %v5627
        %v5968 = vunpack.c.h.b16 %v5627
        %v5969 = vunpack.c.l.b16 %v5628
        %v5970 = vunpack.c.h.b16 %v5628
        %v5971 = vunpack.c.l.b16 %v5629
        %v5972 = vunpack.c.h.b16 %v5629
        %v5973 = vunpack.c.l.b16 %v5630
        %v5974 = vunpack.c.h.b16 %v5630
        %v5975 = vunpack.c.l.b16 %v5631
        %v5976 = vunpack.c.l.b16 %v5632
        %v5977 = vunpack.c.h.b16 %v5632
        %v5978 = vunpack.c.l.b16 %v5633
        %v5979 = vunpack.c.h.b16 %v5633
        %v5980 = vunpack.c.l.b16 %v5634
        %v5981 = vunpack.c.h.b16 %v5634
        %v5982 = vunpack.c.l.b16 %v5635
        %v5983 = vunpack.c.h.b16 %v5635
        %v5984 = vunpack.c.l.b16 %v5636
        %v5985 = vunpack.c.l.b16 %v5637
        %v5986 = vunpack.c.h.b16 %v5637
        %v5987 = vunpack.c.l.b16 %v5638
        %v5988 = vunpack.c.h.b16 %v5638
        %v5989 = vunpack.c.l.b16 %v5639
        %v5990 = vunpack.c.h.b16 %v5639
        %v5991 = vunpack.c.l.b16 %v5640
        %v5992 = vunpack.c.h.b16 %v5640
        %v5993 = vunpack.c.l.b16 %v5641
        %v5994 = vunpack.c.l.b16 %v5642
        %v5995 = vunpack.c.h.b16 %v5642
        %v5996 = vunpack.c.l.b16 %v5643
        %v5997 = vunpack.c.h.b16 %v5643
        %v5998 = vunpack.c.l.b16 %v5644
        %v5999 = vunpack.c.h.b16 %v5644
        %v6000 = vunpack.c.l.b16 %v5645
        %v6001 = vunpack.c.h.b16 %v5645
        %v6002 = vunpack.c.l.b16 %v5646
        %v6003 = vunpack.c.l.b16 %v5647
        %v6004 = vunpack.c.h.b16 %v5647
        %v6005 = vunpack.c.l.b16 %v5648
        %v6006 = vunpack.c.h.b16 %v5648
        %v6007 = vunpack.c.l.b16 %v5649
        %v6008 = vunpack.c.h.b16 %v5649
        %v6009 = vunpack.c.l.b16 %v5650
        %v6010 = vunpack.c.h.b16 %v5650
        %v6011 = vunpack.c.l.b16 %v5651
        %v6012 = vunpack.c.l.b16 %v5652
        %v6013 = vunpack.c.h.b16 %v5652
        %v6014 = vunpack.c.l.b16 %v5653
        %v6015 = vunpack.c.h.b16 %v5653
        %v6016 = vunpack.c.l.b16 %v5654
        %v6017 = vunpack.c.h.b16 %v5654
        %v6018 = vunpack.c.l.b16 %v5655
        %v6019 = vunpack.c.h.b16 %v5655
        %v6020 = vunpack.c.l.b16 %v5656
        %v6021 = vunpack.c.l.b16 %v5657
        %v6022 = vunpack.c.h.b16 %v5657
        %v6023 = vunpack.c.l.b16 %v5658
        %v6024 = vunpack.c.h.b16 %v5658
        %v6025 = vunpack.c.l.b16 %v5659
        %v6026 = vunpack.c.h.b16 %v5659
        %v6027 = vunpack.c.l.b16 %v5660
        %v6028 = vunpack.c.h.b16 %v5660
        %v6029 = vunpack.c.l.b16 %v5661
        %v6030 = vunpack.c.l.b16 %v5662
        %v6031 = vunpack.c.h.b16 %v5662
        %v6032 = vunpack.c.l.b16 %v5663
        %v6033 = vunpack.c.h.b16 %v5663
        %v6034 = vunpack.c.l.b16 %v5664
        %v6035 = vunpack.c.h.b16 %v5664
        %v6036 = vunpack.c.l.b16 %v5665
        %v6037 = vunpack.c.h.b16 %v5665
        %v6038 = vunpack.c.l.b16 %v5666
        %v6039 = vunpack.c.l.b16 %v5667
        %v6040 = vunpack.c.h.b16 %v5667
        %v6041 = vunpack.c.l.b16 %v5668
        %v6042 = vunpack.c.h.b16 %v5668
        %v6043 = vunpack.c.l.b16 %v5669
        %v6044 = vunpack.c.h.b16 %v5669
        %v6045 = vunpack.c.l.b16 %v5670
        %v6046 = vunpack.c.h.b16 %v5670
        %v6047 = vunpack.c.l.b16 %v5671
        %v6048 = vpack.c.b16 %v5913, %v5904
        %v6049 = vpack.c.b16 %v5914, %v5905
        %v6050 = vpack.c.b16 %v5915, %v5906
        %v6051 = vpack.c.b16 %v5916, %v5907
        %v6052 = vpack.c.b16 %v5917, %v5908
        %v6053 = vpack.c.b16 %v5918, %v5909
        %v6054 = vpack.c.b16 %v5919, %v5910
        %v6055 = vpack.c.b16 %v5920, %v5911
        %v6056 = vpack.c.b16 %v5921, %v5912
        %v6057 = vpack.c.b16 %v5931, %v5922
        %v6058 = vpack.c.b16 %v5932, %v5923
        %v6059 = vpack.c.b16 %v5933, %v5924
        %v6060 = vpack.c.b16 %v5934, %v5925
        %v6061 = vpack.c.b16 %v5935, %v5926
        %v6062 = vpack.c.b16 %v5936, %v5927
        %v6063 = vpack.c.b16 %v5937, %v5928
        %v6064 = vpack.c.b16 %v5938, %v5929
        %v6065 = vpack.c.b16 %v5939, %v5930
        %v6066 = vpack.c.b16 %v5949, %v5940
        %v6067 = vpack.c.b16 %v5950, %v5941
        %v6068 = vpack.c.b16 %v5951, %v5942
        %v6069 = vpack.c.b16 %v5952, %v5943
        %v6070 = vpack.c.b16 %v5953, %v5944
        %v6071 = vpack.c.b16 %v5954, %v5945
        %v6072 = vpack.c.b16 %v5955, %v5946
        %v6073 = vpack.c.b16 %v5956, %v5947
        %v6074 = vpack.c.b16 %v5957, %v5948
        %v6075 = vpack.c.b16 %v5967, %v5958
        %v6076 = vpack.c.b16 %v5968, %v5959
        %v6077 = vpack.c.b16 %v5969, %v5960
        %v6078 = vpack.c.b16 %v5970, %v5961
        %v6079 = vpack.c.b16 %v5971, %v5962
        %v6080 = vpack.c.b16 %v5972, %v5963
        %v6081 = vpack.c.b16 %v5973, %v5964
        %v6082 = vpack.c.b16 %v5974, %v5965
        %v6083 = vpack.c.b16 %v5975, %v5966
        %v6084 = vpack.c.b16 %v5985, %v5976
        %v6085 = vpack.c.b16 %v5986, %v5977
        %v6086 = vpack.c.b16 %v5987, %v5978
        %v6087 = vpack.c.b16 %v5988, %v5979
        %v6088 = vpack.c.b16 %v5989, %v5980
        %v6089 = vpack.c.b16 %v5990, %v5981
        %v6090 = vpack.c.b16 %v5991, %v5982
        %v6091 = vpack.c.b16 %v5992, %v5983
        %v6092 = vpack.c.b16 %v5993, %v5984
        %v6093 = vpack.c.b16 %v6003, %v5994
        %v6094 = vpack.c.b16 %v6004, %v5995
        %v6095 = vpack.c.b16 %v6005, %v5996
        %v6096 = vpack.c.b16 %v6006, %v5997
        %v6097 = vpack.c.b16 %v6007, %v5998
        %v6098 = vpack.c.b16 %v6008, %v5999
        %v6099 = vpack.c.b16 %v6009, %v6000
        %v6100 = vpack.c.b16 %v6010, %v6001
        %v6101 = vpack.c.b16 %v6011, %v6002
        %v6102 = vpack.c.b16 %v6021, %v6012
        %v6103 = vpack.c.b16 %v6022, %v6013
        %v6104 = vpack.c.b16 %v6023, %v6014
        %v6105 = vpack.c.b16 %v6024, %v6015
        %v6106 = vpack.c.b16 %v6025, %v6016
        %v6107 = vpack.c.b16 %v6026, %v6017
        %v6108 = vpack.c.b16 %v6027, %v6018
        %v6109 = vpack.c.b16 %v6028, %v6019
        %v6110 = vpack.c.b16 %v6029, %v6020
        %v6111 = vpack.c.b16 %v6039, %v6030
        %v6112 = vpack.c.b16 %v6040, %v6031
        %v6113 = vpack.c.b16 %v6041, %v6032
        %v6114 = vpack.c.b16 %v6042, %v6033
        %v6115 = vpack.c.b16 %v6043, %v6034
        %v6116 = vpack.c.b16 %v6044, %v6035
        %v6117 = vpack.c.b16 %v6045, %v6036
        %v6118 = vpack.c.b16 %v6046, %v6037
        %v6119 = vpack.c.b16 %v6047, %v6038
        %v6336 = vunpack.c.l.b16 %v5673
        %v6337 = vunpack.c.h.b16 %v5673
        %v6338 = vunpack.c.l.b16 %v5674
        %v6339 = vunpack.c.h.b16 %v5674
        %v6340 = vunpack.c.l.b16 %v5675
        %v6341 = vunpack.c.h.b16 %v5675
        %v6342 = vunpack.c.l.b16 %v5676
        %v6343 = vunpack.c.h.b16 %v5676
        %v6344 = vunpack.c.l.b16 %v5677
        %v6345 = vunpack.c.h.b16 %v5677
        %v6346 = vunpack.c.l.b16 %v5678
        %v6347 = vunpack.c.h.b16 %v5678
        %v6348 = vunpack.c.l.b16 %v5679
        %v6349 = vunpack.c.h.b16 %v5679
        %v6350 = vunpack.c.l.b16 %v5680
        %v6351 = vunpack.c.h.b16 %v5680
        %v6352 = vunpack.c.l.b16 %v5681
        %v6353 = vunpack.c.h.b16 %v5681
        %v6354 = vunpack.c.l.b16 %v5682
        %v6355 = vunpack.c.h.b16 %v5682
        %v6356 = vunpack.c.l.b16 %v5683
        %v6357 = vunpack.c.h.b16 %v5683
        %v6358 = vunpack.c.l.b16 %v5684
        %v6359 = vunpack.c.h.b16 %v5684
        %v6360 = vunpack.c.l.b16 %v5685
        %v6361 = vunpack.c.h.b16 %v5685
        %v6362 = vunpack.c.l.b16 %v5686
        %v6363 = vunpack.c.h.b16 %v5686
        %v6364 = vunpack.c.l.b16 %v5687
        %v6365 = vunpack.c.h.b16 %v5687
        %v6366 = vunpack.c.l.b16 %v5688
        %v6367 = vunpack.c.h.b16 %v5688
        %v6368 = vunpack.c.l.b16 %v5689
        %v6369 = vunpack.c.h.b16 %v5689
        %v6370 = vunpack.c.l.b16 %v5690
        %v6371 = vunpack.c.h.b16 %v5690
        %v6372 = vunpack.c.l.b16 %v5691
        %v6373 = vunpack.c.h.b16 %v5691
        %v6374 = vunpack.c.l.b16 %v5692
        %v6375 = vunpack.c.h.b16 %v5692
        %v6376 = vunpack.c.l.b16 %v5693
        %v6377 = vunpack.c.h.b16 %v5693
        %v6378 = vunpack.c.l.b16 %v5694
        %v6379 = vunpack.c.h.b16 %v5694
        %v6380 = vunpack.c.l.b16 %v5695
        %v6381 = vunpack.c.h.b16 %v5695
        %v6382 = vunpack.c.l.b16 %v5696
        %v6383 = vunpack.c.h.b16 %v5696
        %v6384 = vunpack.c.l.b16 %v5697
        %v6385 = vunpack.c.h.b16 %v5697
        %v6386 = vunpack.c.l.b16 %v5698
        %v6387 = vunpack.c.h.b16 %v5698
        %v6388 = vunpack.c.l.b16 %v5699
        %v6389 = vunpack.c.h.b16 %v5699
        %v6390 = vunpack.c.l.b16 %v5700
        %v6391 = vunpack.c.h.b16 %v5700
        %v6392 = vunpack.c.l.b16 %v5701
        %v6393 = vunpack.c.h.b16 %v5701
        %v6394 = vunpack.c.l.b16 %v5702
        %v6395 = vunpack.c.h.b16 %v5702
        %v6396 = vunpack.c.l.b16 %v5703
        %v6397 = vunpack.c.h.b16 %v5703
        %v6398 = vunpack.c.l.b16 %v5704
        %v6399 = vunpack.c.h.b16 %v5704
        %v6400 = vunpack.c.l.b16 %v5705
        %v6401 = vunpack.c.h.b16 %v5705
        %v6402 = vunpack.c.l.b16 %v5706
        %v6403 = vunpack.c.h.b16 %v5706
        %v6404 = vunpack.c.l.b16 %v5707
        %v6405 = vunpack.c.h.b16 %v5707
        %v6406 = vunpack.c.l.b16 %v5708
        %v6407 = vunpack.c.h.b16 %v5708
        %v6408 = vunpack.c.l.b16 %v5709
        %v6409 = vunpack.c.h.b16 %v5709
        %v6410 = vunpack.c.l.b16 %v5710
        %v6411 = vunpack.c.h.b16 %v5710
        %v6412 = vunpack.c.l.b16 %v5711
        %v6413 = vunpack.c.h.b16 %v5711
        %v6414 = vunpack.c.l.b16 %v5712
        %v6415 = vunpack.c.h.b16 %v5712
        %v6416 = vunpack.c.l.b16 %v5713
        %v6417 = vunpack.c.h.b16 %v5713
        %v6418 = vunpack.c.l.b16 %v5714
        %v6419 = vunpack.c.h.b16 %v5714
        %v6420 = vunpack.c.l.b16 %v5715
        %v6421 = vunpack.c.h.b16 %v5715
        %v6422 = vunpack.c.l.b16 %v5716
        %v6423 = vunpack.c.h.b16 %v5716
        %v6424 = vunpack.c.l.b16 %v5717
        %v6425 = vunpack.c.h.b16 %v5717
        %v6426 = vunpack.c.l.b16 %v5718
        %v6427 = vunpack.c.h.b16 %v5718
        %v6428 = vunpack.c.l.b16 %v5719
        %v6429 = vunpack.c.h.b16 %v5719
        %v6430 = vunpack.c.l.b16 %v5720
        %v6431 = vunpack.c.h.b16 %v5720
        %v6432 = vunpack.c.l.b16 %v5721
        %v6433 = vunpack.c.h.b16 %v5721
        %v6434 = vunpack.c.l.b16 %v5722
        %v6435 = vunpack.c.h.b16 %v5722
        %v6436 = vunpack.c.l.b16 %v5723
        %v6437 = vunpack.c.h.b16 %v5723
        %v6438 = vunpack.c.l.b16 %v5724
        %v6439 = vunpack.c.h.b16 %v5724
        %v6440 = vunpack.c.l.b16 %v5725
        %v6441 = vunpack.c.h.b16 %v5725
        %v6442 = vunpack.c.l.b16 %v5726
        %v6443 = vunpack.c.h.b16 %v5726
        %v6444 = vunpack.c.l.b16 %v5727
        %v6445 = vunpack.c.h.b16 %v5727
        %v6446 = vunpack.c.l.b16 %v5728
        %v6447 = vunpack.c.h.b16 %v5728
        %v6448 = vunpack.c.l.b16 %v5729
        %v6449 = vunpack.c.h.b16 %v5729
        %v6450 = vunpack.c.l.b16 %v5730
        %v6451 = vunpack.c.h.b16 %v5730
        %v6452 = vunpack.c.l.b16 %v5731
        %v6453 = vunpack.c.h.b16 %v5731
        %v6454 = vunpack.c.l.b16 %v5732
        %v6455 = vunpack.c.h.b16 %v5732
        %v6456 = vunpack.c.l.b16 %v5733
        %v6457 = vunpack.c.h.b16 %v5733
        %v6458 = vunpack.c.l.b16 %v5734
        %v6459 = vunpack.c.h.b16 %v5734
        %v6460 = vunpack.c.l.b16 %v5735
        %v6461 = vunpack.c.h.b16 %v5735
        %v6462 = vunpack.c.l.b16 %v5736
        %v6463 = vunpack.c.h.b16 %v5736
        %v6464 = vunpack.c.l.b16 %v5737
        %v6465 = vunpack.c.h.b16 %v5737
        %v6466 = vunpack.c.l.b16 %v5738
        %v6467 = vunpack.c.h.b16 %v5738
        %v6468 = vunpack.c.l.b16 %v5739
        %v6469 = vunpack.c.h.b16 %v5739
        %v6470 = vunpack.c.l.b16 %v5740
        %v6471 = vunpack.c.h.b16 %v5740
        %v6472 = vunpack.c.l.b16 %v5741
        %v6473 = vunpack.c.h.b16 %v5741
        %v6474 = vunpack.c.l.b16 %v5742
        %v6475 = vunpack.c.h.b16 %v5742
        %v6476 = vunpack.c.l.b16 %v5743
        %v6477 = vunpack.c.h.b16 %v5743
        %v6478 = vunpack.c.l.b16 %v5744
        %v6479 = vunpack.c.h.b16 %v5744
        %v6480 = vunpack.c.l.b16 %v5745
        %v6481 = vunpack.c.h.b16 %v5745
        %v6482 = vunpack.c.l.b16 %v5746
        %v6483 = vunpack.c.h.b16 %v5746
        %v6484 = vunpack.c.l.b16 %v5747
        %v6485 = vunpack.c.h.b16 %v5747
        %v6486 = vunpack.c.l.b16 %v5748
        %v6487 = vunpack.c.h.b16 %v5748
        %v6488 = vunpack.c.l.b16 %v5749
        %v6489 = vunpack.c.h.b16 %v5749
        %v6490 = vunpack.c.l.b16 %v5750
        %v6491 = vunpack.c.h.b16 %v5750
        %v6492 = vunpack.c.l.b16 %v5751
        %v6493 = vunpack.c.h.b16 %v5751
        %v6494 = vunpack.c.l.b16 %v5752
        %v6495 = vunpack.c.h.b16 %v5752
        %v6496 = vunpack.c.l.b16 %v5753
        %v6497 = vunpack.c.h.b16 %v5753
        %v6498 = vunpack.c.l.b16 %v5754
        %v6499 = vunpack.c.h.b16 %v5754
        %v6500 = vunpack.c.l.b16 %v5755
        %v6501 = vunpack.c.h.b16 %v5755
        %v6502 = vunpack.c.l.b16 %v5756
        %v6503 = vunpack.c.h.b16 %v5756
        %v6504 = vunpack.c.l.b16 %v5757
        %v6505 = vunpack.c.h.b16 %v5757
        %v6506 = vunpack.c.l.b16 %v5758
        %v6507 = vunpack.c.h.b16 %v5758
        %v6508 = vunpack.c.l.b16 %v5759
        %v6509 = vunpack.c.h.b16 %v5759
        %v6510 = vunpack.c.l.b16 %v5760
        %v6511 = vunpack.c.h.b16 %v5760
        %v6512 = vunpack.c.l.b16 %v5761
        %v6513 = vunpack.c.h.b16 %v5761
        %v6514 = vunpack.c.l.b16 %v5762
        %v6515 = vunpack.c.h.b16 %v5762
        %v6516 = vunpack.c.l.b16 %v5763
        %v6517 = vunpack.c.h.b16 %v5763
        %v6518 = vunpack.c.l.b16 %v5764
        %v6519 = vunpack.c.h.b16 %v5764
        %v6520 = vunpack.c.l.b16 %v5765
        %v6521 = vunpack.c.h.b16 %v5765
        %v6522 = vunpack.c.l.b16 %v5766
        %v6523 = vunpack.c.h.b16 %v5766
        %v6524 = vunpack.c.l.b16 %v5767
        %v6525 = vunpack.c.h.b16 %v5767
        %v6526 = vunpack.c.l.b16 %v5768
        %v6527 = vunpack.c.h.b16 %v5768
        %v6528 = vunpack.c.l.b16 %v5769
        %v6529 = vunpack.c.h.b16 %v5769
        %v6530 = vunpack.c.l.b16 %v5770
        %v6531 = vunpack.c.h.b16 %v5770
        %v6532 = vunpack.c.l.b16 %v5771
        %v6533 = vunpack.c.h.b16 %v5771
        %v6534 = vunpack.c.l.b16 %v5772
        %v6535 = vunpack.c.h.b16 %v5772
        %v6536 = vunpack.c.l.b16 %v5773
        %v6537 = vunpack.c.h.b16 %v5773
        %v6538 = vunpack.c.l.b16 %v5774
        %v6539 = vunpack.c.h.b16 %v5774
        %v6540 = vunpack.c.l.b16 %v5775
        %v6541 = vunpack.c.h.b16 %v5775
        %v6542 = vunpack.c.l.b16 %v5776
        %v6543 = vunpack.c.h.b16 %v5776
        %v6544 = vunpack.c.l.b16 %v5777
        %v6545 = vunpack.c.h.b16 %v5777
        %v6546 = vunpack.c.l.b16 %v5778
        %v6547 = vunpack.c.h.b16 %v5778
        %v6548 = vunpack.c.l.b16 %v5779
        %v6549 = vunpack.c.h.b16 %v5779
        %v6550 = vunpack.c.l.b16 %v5780
        %v6551 = vunpack.c.h.b16 %v5780
        %v6552 = vunpack.c.l.b16 %v5781
        %v6553 = vunpack.c.h.b16 %v5781
        %v6554 = vunpack.c.l.b16 %v5782
        %v6555 = vunpack.c.h.b16 %v5782
        %v6556 = vunpack.c.l.b16 %v5783
        %v6557 = vunpack.c.h.b16 %v5783
        %v6558 = vunpack.c.l.b16 %v5784
        %v6559 = vunpack.c.h.b16 %v5784
        %v6560 = vunpack.c.l.b16 %v5785
        %v6561 = vunpack.c.h.b16 %v5785
        %v6562 = vunpack.c.l.b16 %v5786
        %v6563 = vunpack.c.h.b16 %v5786
        %v6564 = vunpack.c.l.b16 %v5787
        %v6565 = vunpack.c.h.b16 %v5787
        %v6566 = vunpack.c.l.b16 %v5788
        %v6567 = vunpack.c.h.b16 %v5788
        %v6568 = vunpack.c.l.b16 %v5789
        %v6569 = vunpack.c.h.b16 %v5789
        %v6570 = vunpack.c.l.b16 %v5790
        %v6571 = vunpack.c.h.b16 %v5790
        %v6572 = vunpack.c.l.b16 %v5791
        %v6573 = vunpack.c.h.b16 %v5791
        %v6574 = vunpack.c.l.b16 %v5792
        %v6575 = vunpack.c.h.b16 %v5792
        %v6576 = vunpack.c.l.b16 %v5793
        %v6577 = vunpack.c.h.b16 %v5793
        %v6578 = vunpack.c.l.b16 %v5794
        %v6579 = vunpack.c.h.b16 %v5794
        %v6580 = vunpack.c.l.b16 %v5795
        %v6581 = vunpack.c.h.b16 %v5795
        %v6582 = vunpack.c.l.b16 %v5796
        %v6583 = vunpack.c.h.b16 %v5796
        %v6584 = vunpack.c.l.b16 %v5797
        %v6585 = vunpack.c.h.b16 %v5797
        %v6586 = vunpack.c.l.b16 %v5798
        %v6587 = vunpack.c.h.b16 %v5798
        %v6588 = vunpack.c.l.b16 %v5799
        %v6589 = vunpack.c.h.b16 %v5799
        %v6590 = vunpack.c.l.b16 %v5800
        %v6591 = vunpack.c.h.b16 %v5800
        %v6592 = vunpack.c.l.b16 %v5801
        %v6593 = vunpack.c.h.b16 %v5801
        %v6594 = vunpack.c.l.b16 %v5802
        %v6595 = vunpack.c.h.b16 %v5802
        %v6596 = vunpack.c.l.b16 %v5803
        %v6597 = vunpack.c.h.b16 %v5803
        %v6598 = vunpack.c.l.b16 %v5804
        %v6599 = vunpack.c.h.b16 %v5804
        %v6600 = vunpack.c.l.b16 %v5805
        %v6601 = vunpack.c.h.b16 %v5805
        %v6602 = vunpack.c.l.b16 %v5806
        %v6603 = vunpack.c.h.b16 %v5806
        %v6604 = vunpack.c.l.b16 %v5807
        %v6605 = vunpack.c.h.b16 %v5807
        %v6606 = vunpack.c.l.b16 %v5808
        %v6607 = vunpack.c.h.b16 %v5808
        %v6608 = vunpack.c.l.b16 %v5809
        %v6609 = vunpack.c.h.b16 %v5809
        %v6610 = vunpack.c.l.b16 %v5810
        %v6611 = vunpack.c.h.b16 %v5810
        %v6612 = vunpack.c.l.b16 %v5811
        %v6613 = vunpack.c.h.b16 %v5811
        %v6614 = vunpack.c.l.b16 %v5812
        %v6615 = vunpack.c.h.b16 %v5812
        %v6616 = vunpack.c.l.b16 %v5813
        %v6617 = vunpack.c.h.b16 %v5813
        %v6618 = vunpack.c.l.b16 %v5814
        %v6619 = vunpack.c.h.b16 %v5814
        %v6620 = vunpack.c.l.b16 %v5815
        %v6621 = vunpack.c.h.b16 %v5815
        %v6622 = vunpack.c.l.b16 %v5816
        %v6623 = vunpack.c.h.b16 %v5816
        %v6624 = vpack.c.b16 %v6338, %v6336
        %v6625 = vpack.c.b16 %v6339, %v6337
        %v6626 = vpack.c.b16 %v6342, %v6340
        %v6627 = vpack.c.b16 %v6343, %v6341
        %v6628 = vpack.c.b16 %v6346, %v6344
        %v6629 = vpack.c.b16 %v6347, %v6345
        %v6630 = vpack.c.b16 %v6350, %v6348
        %v6631 = vpack.c.b16 %v6351, %v6349
        %v6632 = vpack.c.b16 %v6354, %v6352
        %v6633 = vpack.c.b16 %v6355, %v6353
        %v6634 = vpack.c.b16 %v6358, %v6356
        %v6635 = vpack.c.b16 %v6359, %v6357
        %v6636 = vpack.c.b16 %v6362, %v6360
        %v6637 = vpack.c.b16 %v6363, %v6361
        %v6638 = vpack.c.b16 %v6366, %v6364
        %v6639 = vpack.c.b16 %v6367, %v6365
        %v6640 = vpack.c.b16 %v6370, %v6368
        %v6641 = vpack.c.b16 %v6371, %v6369
        %v6642 = vpack.c.b16 %v6374, %v6372
        %v6643 = vpack.c.b16 %v6375, %v6373
        %v6644 = vpack.c.b16 %v6378, %v6376
        %v6645 = vpack.c.b16 %v6379, %v6377
        %v6646 = vpack.c.b16 %v6382, %v6380
        %v6647 = vpack.c.b16 %v6383, %v6381
        %v6648 = vpack.c.b16 %v6386, %v6384
        %v6649 = vpack.c.b16 %v6387, %v6385
        %v6650 = vpack.c.b16 %v6390, %v6388
        %v6651 = vpack.c.b16 %v6391, %v6389
        %v6652 = vpack.c.b16 %v6394, %v6392
        %v6653 = vpack.c.b16 %v6395, %v6393
        %v6654 = vpack.c.b16 %v6398, %v6396
        %v6655 = vpack.c.b16 %v6399, %v6397
        %v6656 = vpack.c.b16 %v6402, %v6400
        %v6657 = vpack.c.b16 %v6403, %v6401
        %v6658 = vpack.c.b16 %v6406, %v6404
        %v6659 = vpack.c.b16 %v6407, %v6405
        %v6660 = vpack.c.b16 %v6410, %v6408
        %v6661 = vpack.c.b16 %v6411, %v6409
        %v6662 = vpack.c.b16 %v6414, %v6412
        %v6663 = vpack.c.b16 %v6415, %v6413
        %v6664 = vpack.c.b16 %v6418, %v6416
        %v6665 = vpack.c.b16 %v6419, %v6417
        %v6666 = vpack.c.b16 %v6422, %v6420
        %v6667 = vpack.c.b16 %v6423, %v6421
        %v6668 = vpack.c.b16 %v6426, %v6424
        %v6669 = vpack.c.b16 %v6427, %v6425
        %v6670 = vpack.c.b16 %v6430, %v6428
        %v6671 = vpack.c.b16 %v6431, %v6429
        %v6672 = vpack.c.b16 %v6434, %v6432
        %v6673 = vpack.c.b16 %v6435, %v6433
        %v6674 = vpack.c.b16 %v6438, %v6436
        %v6675 = vpack.c.b16 %v6439, %v6437
        %v6676 = vpack.c.b16 %v6442, %v6440
        %v6677 = vpack.c.b16 %v6443, %v6441
        %v6678 = vpack.c.b16 %v6446, %v6444
        %v6679 = vpack.c.b16 %v6447, %v6445
        %v6680 = vpack.c.b16 %v6450, %v6448
        %v6681 = vpack.c.b16 %v6451, %v6449
        %v6682 = vpack.c.b16 %v6454, %v6452
        %v6683 = vpack.c.b16 %v6455, %v6453
        %v6684 = vpack.c.b16 %v6458, %v6456
        %v6685 = vpack.c.b16 %v6459, %v6457
        %v6686 = vpack.c.b16 %v6462, %v6460
        %v6687 = vpack.c.b16 %v6463, %v6461
        %v6688 = vpack.c.b16 %v6466, %v6464
        %v6689 = vpack.c.b16 %v6467, %v6465
        %v6690 = vpack.c.b16 %v6470, %v6468
        %v6691 = vpack.c.b16 %v6471, %v6469
        %v6692 = vpack.c.b16 %v6474, %v6472
        %v6693 = vpack.c.b16 %v6475, %v6473
        %v6694 = vpack.c.b16 %v6478, %v6476
        %v6695 = vpack.c.b16 %v6479, %v6477
        %v6696 = vpack.c.b16 %v6482, %v6480
        %v6697 = vpack.c.b16 %v6483, %v6481
        %v6698 = vpack.c.b16 %v6486, %v6484
        %v6699 = vpack.c.b16 %v6487, %v6485
        %v6700 = vpack.c.b16 %v6490, %v6488
        %v6701 = vpack.c.b16 %v6491, %v6489
        %v6702 = vpack.c.b16 %v6494, %v6492
        %v6703 = vpack.c.b16 %v6495, %v6493
        %v6704 = vpack.c.b16 %v6498, %v6496
        %v6705 = vpack.c.b16 %v6499, %v6497
        %v6706 = vpack.c.b16 %v6502, %v6500
        %v6707 = vpack.c.b16 %v6503, %v6501
        %v6708 = vpack.c.b16 %v6506, %v6504
        %v6709 = vpack.c.b16 %v6507, %v6505
        %v6710 = vpack.c.b16 %v6510, %v6508
        %v6711 = vpack.c.b16 %v6511, %v6509
        %v6712 = vpack.c.b16 %v6514, %v6512
        %v6713 = vpack.c.b16 %v6515, %v6513
        %v6714 = vpack.c.b16 %v6518, %v6516
        %v6715 = vpack.c.b16 %v6519, %v6517
        %v6716 = vpack.c.b16 %v6522, %v6520
        %v6717 = vpack.c.b16 %v6523, %v6521
        %v6718 = vpack.c.b16 %v6526, %v6524
        %v6719 = vpack.c.b16 %v6527, %v6525
        %v6720 = vpack.c.b16 %v6530, %v6528
        %v6721 = vpack.c.b16 %v6531, %v6529
        %v6722 = vpack.c.b16 %v6534, %v6532
        %v6723 = vpack.c.b16 %v6535, %v6533
        %v6724 = vpack.c.b16 %v6538, %v6536
        %v6725 = vpack.c.b16 %v6539, %v6537
        %v6726 = vpack.c.b16 %v6542, %v6540
        %v6727 = vpack.c.b16 %v6543, %v6541
        %v6728 = vpack.c.b16 %v6546, %v6544
        %v6729 = vpack.c.b16 %v6547, %v6545
        %v6730 = vpack.c.b16 %v6550, %v6548
        %v6731 = vpack.c.b16 %v6551, %v6549
        %v6732 = vpack.c.b16 %v6554, %v6552
        %v6733 = vpack.c.b16 %v6555, %v6553
        %v6734 = vpack.c.b16 %v6558, %v6556
        %v6735 = vpack.c.b16 %v6559, %v6557
        %v6736 = vpack.c.b16 %v6562, %v6560
        %v6737 = vpack.c.b16 %v6563, %v6561
        %v6738 = vpack.c.b16 %v6566, %v6564
        %v6739 = vpack.c.b16 %v6567, %v6565
        %v6740 = vpack.c.b16 %v6570, %v6568
        %v6741 = vpack.c.b16 %v6571, %v6569
        %v6742 = vpack.c.b16 %v6574, %v6572
        %v6743 = vpack.c.b16 %v6575, %v6573
        %v6744 = vpack.c.b16 %v6578, %v6576
        %v6745 = vpack.c.b16 %v6579, %v6577
        %v6746 = vpack.c.b16 %v6582, %v6580
        %v6747 = vpack.c.b16 %v6583, %v6581
        %v6748 = vpack.c.b16 %v6586, %v6584
        %v6749 = vpack.c.b16 %v6587, %v6585
        %v6750 = vpack.c.b16 %v6590, %v6588
        %v6751 = vpack.c.b16 %v6591, %v6589
        %v6752 = vpack.c.b16 %v6594, %v6592
        %v6753 = vpack.c.b16 %v6595, %v6593
        %v6754 = vpack.c.b16 %v6598, %v6596
        %v6755 = vpack.c.b16 %v6599, %v6597
        %v6756 = vpack.c.b16 %v6602, %v6600
        %v6757 = vpack.c.b16 %v6603, %v6601
        %v6758 = vpack.c.b16 %v6606, %v6604
        %v6759 = vpack.c.b16 %v6607, %v6605
        %v6760 = vpack.c.b16 %v6610, %v6608
        %v6761 = vpack.c.b16 %v6611, %v6609
        %v6762 = vpack.c.b16 %v6614, %v6612
        %v6763 = vpack.c.b16 %v6615, %v6613
        %v6764 = vpack.c.b16 %v6618, %v6616
        %v6765 = vpack.c.b16 %v6619, %v6617
        %v6766 = vpack.c.b16 %v6622, %v6620
        %v6767 = vpack.c.b16 %v6623, %v6621
        %6912 = vmatpush.bf16.msra.mxu0 %v6638
        %6913 = vmatpush.bf16.msra.mxu0 %v6636
        %6914 = vmatpush.bf16.msra.mxu0 %v6634
        %6915 = vmatpush.bf16.msra.mxu0 %v6632
        %6916 = vmatpush.bf16.msra.mxu0 %v6630
        %6917 = vmatpush.bf16.msra.mxu0 %v6628
        %6918 = vmatpush.bf16.msra.mxu0 %v6626
        %6919 = vmatpush.bf16.msra.mxu0 %v6624
        %6920 = vmatmul.bf16.gmra.mxu0 %v6048
        %v6921 = vpop.f32.mrf.mxu0
        %v6922 = vadd.f32 %v5820, %v6921
        %v6923 = vpop.f32.mrf.mxu0
        %v6924 = vadd.f32 %v5820, %v6923
        %6925 = vmatmul.bf16.gmra.mxu0 %v6057
        %v6926 = vpop.f32.mrf.mxu0
        %v6927 = vadd.f32 %v5820, %v6926
        %v6928 = vpop.f32.mrf.mxu0
        %v6929 = vadd.f32 %v5820, %v6928
        %6930 = vmatmul.bf16.gmra.mxu0 %v6066
        %v6931 = vpop.f32.mrf.mxu0
        %v6932 = vadd.f32 %v5820, %v6931
        %v6933 = vpop.f32.mrf.mxu0
        %v6934 = vadd.f32 %v5820, %v6933
        %6935 = vmatmul.bf16.gmra.mxu0 %v6075
        %v6936 = vpop.f32.mrf.mxu0
        %v6937 = vadd.f32 %v5820, %v6936
        %v6938 = vpop.f32.mrf.mxu0
        %v6939 = vadd.f32 %v5820, %v6938
        %6940 = vmatmul.bf16.gmra.mxu0 %v6084
        %v6941 = vpop.f32.mrf.mxu0
        %v6942 = vadd.f32 %v5820, %v6941
        %v6943 = vpop.f32.mrf.mxu0
        %v6944 = vadd.f32 %v5820, %v6943
        %6945 = vmatmul.bf16.gmra.mxu0 %v6093
        %v6946 = vpop.f32.mrf.mxu0
        %v6947 = vadd.f32 %v5820, %v6946
        %v6948 = vpop.f32.mrf.mxu0
        %v6949 = vadd.f32 %v5820, %v6948
        %6950 = vmatmul.bf16.gmra.mxu0 %v6102
        %v6951 = vpop.f32.mrf.mxu0
        %v6952 = vadd.f32 %v5820, %v6951
        %v6953 = vpop.f32.mrf.mxu0
        %v6954 = vadd.f32 %v5820, %v6953
        %6955 = vmatmul.bf16.gmra.mxu0 %v6111
        %v6956 = vpop.f32.mrf.mxu0
        %v6957 = vadd.f32 %v5820, %v6956
        %v6958 = vpop.f32.mrf.mxu0
        %v6959 = vadd.f32 %v5820, %v6958
        %6960 = vdwg.mxu0
        %6961 = vmatpush.bf16.msra.mxu0 %v6654
        %6962 = vmatpush.bf16.msra.mxu0 %v6652
        %6963 = vmatpush.bf16.msra.mxu0 %v6650
        %6964 = vmatpush.bf16.msra.mxu0 %v6648
        %6965 = vmatpush.bf16.msra.mxu0 %v6646
        %6966 = vmatpush.bf16.msra.mxu0 %v6644
        %6967 = vmatpush.bf16.msra.mxu0 %v6642
        %6968 = vmatpush.bf16.msra.mxu0 %v6640
        %6969 = vmatmul.bf16.gmra.mxu0 %v6049
        %v6970 = vpop.f32.mrf.mxu0
        %v6971 = vadd.f32 %v6922, %v6970
        %v6972 = vpop.f32.mrf.mxu0
        %v6973 = vadd.f32 %v6924, %v6972
        %6974 = vmatmul.bf16.gmra.mxu0 %v6058
        %v6975 = vpop.f32.mrf.mxu0
        %v6976 = vadd.f32 %v6927, %v6975
        %v6977 = vpop.f32.mrf.mxu0
        %v6978 = vadd.f32 %v6929, %v6977
        %6979 = vmatmul.bf16.gmra.mxu0 %v6067
        %v6980 = vpop.f32.mrf.mxu0
        %v6981 = vadd.f32 %v6932, %v6980
        %v6982 = vpop.f32.mrf.mxu0
        %v6983 = vadd.f32 %v6934, %v6982
        %6984 = vmatmul.bf16.gmra.mxu0 %v6076
        %v6985 = vpop.f32.mrf.mxu0
        %v6986 = vadd.f32 %v6937, %v6985
        %v6987 = vpop.f32.mrf.mxu0
        %v6988 = vadd.f32 %v6939, %v6987
        %6989 = vmatmul.bf16.gmra.mxu0 %v6085
        %v6990 = vpop.f32.mrf.mxu0
        %v6991 = vadd.f32 %v6942, %v6990
        %v6992 = vpop.f32.mrf.mxu0
        %v6993 = vadd.f32 %v6944, %v6992
        %6994 = vmatmul.bf16.gmra.mxu0 %v6094
        %v6995 = vpop.f32.mrf.mxu0
        %v6996 = vadd.f32 %v6947, %v6995
        %v6997 = vpop.f32.mrf.mxu0
        %v6998 = vadd.f32 %v6949, %v6997
        %6999 = vmatmul.bf16.gmra.mxu0 %v6103
        %v7000 = vpop.f32.mrf.mxu0
        %v7001 = vadd.f32 %v6952, %v7000
        %v7002 = vpop.f32.mrf.mxu0
        %v7003 = vadd.f32 %v6954, %v7002
        %7004 = vmatmul.bf16.gmra.mxu0 %v6112
        %v7005 = vpop.f32.mrf.mxu0
        %v7006 = vadd.f32 %v6957, %v7005
        %v7007 = vpop.f32.mrf.mxu0
        %v7008 = vadd.f32 %v6959, %v7007
        %7009 = vdwg.mxu0
        %7010 = vmatpush.bf16.msra.mxu0 %v6670
        %7011 = vmatpush.bf16.msra.mxu0 %v6668
        %7012 = vmatpush.bf16.msra.mxu0 %v6666
        %7013 = vmatpush.bf16.msra.mxu0 %v6664
        %7014 = vmatpush.bf16.msra.mxu0 %v6662
        %7015 = vmatpush.bf16.msra.mxu0 %v6660
        %7016 = vmatpush.bf16.msra.mxu0 %v6658
        %7017 = vmatpush.bf16.msra.mxu0 %v6656
        %7018 = vmatmul.bf16.gmra.mxu0 %v6050
        %v7019 = vpop.f32.mrf.mxu0
        %v7020 = vadd.f32 %v6971, %v7019
        %v7021 = vpop.f32.mrf.mxu0
        %v7022 = vadd.f32 %v6973, %v7021
        %7023 = vmatmul.bf16.gmra.mxu0 %v6059
        %v7024 = vpop.f32.mrf.mxu0
        %v7025 = vadd.f32 %v6976, %v7024
        %v7026 = vpop.f32.mrf.mxu0
        %v7027 = vadd.f32 %v6978, %v7026
        %7028 = vmatmul.bf16.gmra.mxu0 %v6068
        %v7029 = vpop.f32.mrf.mxu0
        %v7030 = vadd.f32 %v6981, %v7029
        %v7031 = vpop.f32.mrf.mxu0
        %v7032 = vadd.f32 %v6983, %v7031
        %7033 = vmatmul.bf16.gmra.mxu0 %v6077
        %v7034 = vpop.f32.mrf.mxu0
        %v7035 = vadd.f32 %v6986, %v7034
        %v7036 = vpop.f32.mrf.mxu0
        %v7037 = vadd.f32 %v6988, %v7036
        %7038 = vmatmul.bf16.gmra.mxu0 %v6086
        %v7039 = vpop.f32.mrf.mxu0
        %v7040 = vadd.f32 %v6991, %v7039
        %v7041 = vpop.f32.mrf.mxu0
        %v7042 = vadd.f32 %v6993, %v7041
        %7043 = vmatmul.bf16.gmra.mxu0 %v6095
        %v7044 = vpop.f32.mrf.mxu0
        %v7045 = vadd.f32 %v6996, %v7044
        %v7046 = vpop.f32.mrf.mxu0
        %v7047 = vadd.f32 %v6998, %v7046
        %7048 = vmatmul.bf16.gmra.mxu0 %v6104
        %v7049 = vpop.f32.mrf.mxu0
        %v7050 = vadd.f32 %v7001, %v7049
        %v7051 = vpop.f32.mrf.mxu0
        %v7052 = vadd.f32 %v7003, %v7051
        %7053 = vmatmul.bf16.gmra.mxu0 %v6113
        %v7054 = vpop.f32.mrf.mxu0
        %v7055 = vadd.f32 %v7006, %v7054
        %v7056 = vpop.f32.mrf.mxu0
        %v7057 = vadd.f32 %v7008, %v7056
        %7058 = vdwg.mxu0
        %7059 = vmatpush.bf16.msra.mxu0 %v6686
        %7060 = vmatpush.bf16.msra.mxu0 %v6684
        %7061 = vmatpush.bf16.msra.mxu0 %v6682
        %7062 = vmatpush.bf16.msra.mxu0 %v6680
        %7063 = vmatpush.bf16.msra.mxu0 %v6678
        %7064 = vmatpush.bf16.msra.mxu0 %v6676
        %7065 = vmatpush.bf16.msra.mxu0 %v6674
        %7066 = vmatpush.bf16.msra.mxu0 %v6672
        %7067 = vmatmul.bf16.gmra.mxu0 %v6051
        %v7068 = vpop.f32.mrf.mxu0
        %v7069 = vadd.f32 %v7020, %v7068
        %v7070 = vpop.f32.mrf.mxu0
        %v7071 = vadd.f32 %v7022, %v7070
        %7072 = vmatmul.bf16.gmra.mxu0 %v6060
        %v7073 = vpop.f32.mrf.mxu0
        %v7074 = vadd.f32 %v7025, %v7073
        %v7075 = vpop.f32.mrf.mxu0
        %v7076 = vadd.f32 %v7027, %v7075
        %7077 = vmatmul.bf16.gmra.mxu0 %v6069
        %v7078 = vpop.f32.mrf.mxu0
        %v7079 = vadd.f32 %v7030, %v7078
        %v7080 = vpop.f32.mrf.mxu0
        %v7081 = vadd.f32 %v7032, %v7080
        %7082 = vmatmul.bf16.gmra.mxu0 %v6078
        %v7083 = vpop.f32.mrf.mxu0
        %v7084 = vadd.f32 %v7035, %v7083
        %v7085 = vpop.f32.mrf.mxu0
        %v7086 = vadd.f32 %v7037, %v7085
        %7087 = vmatmul.bf16.gmra.mxu0 %v6087
        %v7088 = vpop.f32.mrf.mxu0
        %v7089 = vadd.f32 %v7040, %v7088
        %v7090 = vpop.f32.mrf.mxu0
        %v7091 = vadd.f32 %v7042, %v7090
        %7092 = vmatmul.bf16.gmra.mxu0 %v6096
        %v7093 = vpop.f32.mrf.mxu0
        %v7094 = vadd.f32 %v7045, %v7093
        %v7095 = vpop.f32.mrf.mxu0
        %v7096 = vadd.f32 %v7047, %v7095
        %7097 = vmatmul.bf16.gmra.mxu0 %v6105
        %v7098 = vpop.f32.mrf.mxu0
        %v7099 = vadd.f32 %v7050, %v7098
        %v7100 = vpop.f32.mrf.mxu0
        %v7101 = vadd.f32 %v7052, %v7100
        %7102 = vmatmul.bf16.gmra.mxu0 %v6114
        %v7103 = vpop.f32.mrf.mxu0
        %v7104 = vadd.f32 %v7055, %v7103
        %v7105 = vpop.f32.mrf.mxu0
        %v7106 = vadd.f32 %v7057, %v7105
        %7107 = vdwg.mxu0
        %7108 = vmatpush.bf16.msra.mxu0 %v6702
        %7109 = vmatpush.bf16.msra.mxu0 %v6700
        %7110 = vmatpush.bf16.msra.mxu0 %v6698
        %7111 = vmatpush.bf16.msra.mxu0 %v6696
        %7112 = vmatpush.bf16.msra.mxu0 %v6694
        %7113 = vmatpush.bf16.msra.mxu0 %v6692
        %7114 = vmatpush.bf16.msra.mxu0 %v6690
        %7115 = vmatpush.bf16.msra.mxu0 %v6688
        %7116 = vmatmul.bf16.gmra.mxu0 %v6052
        %v7117 = vpop.f32.mrf.mxu0
        %v7118 = vadd.f32 %v7069, %v7117
        %v7119 = vpop.f32.mrf.mxu0
        %v7120 = vadd.f32 %v7071, %v7119
        %7121 = vmatmul.bf16.gmra.mxu0 %v6061
        %v7122 = vpop.f32.mrf.mxu0
        %v7123 = vadd.f32 %v7074, %v7122
        %v7124 = vpop.f32.mrf.mxu0
        %v7125 = vadd.f32 %v7076, %v7124
        %7126 = vmatmul.bf16.gmra.mxu0 %v6070
        %v7127 = vpop.f32.mrf.mxu0
        %v7128 = vadd.f32 %v7079, %v7127
        %v7129 = vpop.f32.mrf.mxu0
        %v7130 = vadd.f32 %v7081, %v7129
        %7131 = vmatmul.bf16.gmra.mxu0 %v6079
        %v7132 = vpop.f32.mrf.mxu0
        %v7133 = vadd.f32 %v7084, %v7132
        %v7134 = vpop.f32.mrf.mxu0
        %v7135 = vadd.f32 %v7086, %v7134
        %7136 = vmatmul.bf16.gmra.mxu0 %v6088
        %v7137 = vpop.f32.mrf.mxu0
        %v7138 = vadd.f32 %v7089, %v7137
        %v7139 = vpop.f32.mrf.mxu0
        %v7140 = vadd.f32 %v7091, %v7139
        %7141 = vmatmul.bf16.gmra.mxu0 %v6097
        %v7142 = vpop.f32.mrf.mxu0
        %v7143 = vadd.f32 %v7094, %v7142
        %v7144 = vpop.f32.mrf.mxu0
        %v7145 = vadd.f32 %v7096, %v7144
        %7146 = vmatmul.bf16.gmra.mxu0 %v6106
        %v7147 = vpop.f32.mrf.mxu0
        %v7148 = vadd.f32 %v7099, %v7147
        %v7149 = vpop.f32.mrf.mxu0
        %v7150 = vadd.f32 %v7101, %v7149
        %7151 = vmatmul.bf16.gmra.mxu0 %v6115
        %v7152 = vpop.f32.mrf.mxu0
        %v7153 = vadd.f32 %v7104, %v7152
        %v7154 = vpop.f32.mrf.mxu0
        %v7155 = vadd.f32 %v7106, %v7154
        %7156 = vdwg.mxu0
        %7157 = vmatpush.bf16.msra.mxu0 %v6718
        %7158 = vmatpush.bf16.msra.mxu0 %v6716
        %7159 = vmatpush.bf16.msra.mxu0 %v6714
        %7160 = vmatpush.bf16.msra.mxu0 %v6712
        %7161 = vmatpush.bf16.msra.mxu0 %v6710
        %7162 = vmatpush.bf16.msra.mxu0 %v6708
        %7163 = vmatpush.bf16.msra.mxu0 %v6706
        %7164 = vmatpush.bf16.msra.mxu0 %v6704
        %7165 = vmatmul.bf16.gmra.mxu0 %v6053
        %v7166 = vpop.f32.mrf.mxu0
        %v7167 = vadd.f32 %v7118, %v7166
        %v7168 = vpop.f32.mrf.mxu0
        %v7169 = vadd.f32 %v7120, %v7168
        %7170 = vmatmul.bf16.gmra.mxu0 %v6062
        %v7171 = vpop.f32.mrf.mxu0
        %v7172 = vadd.f32 %v7123, %v7171
        %v7173 = vpop.f32.mrf.mxu0
        %v7174 = vadd.f32 %v7125, %v7173
        %7175 = vmatmul.bf16.gmra.mxu0 %v6071
        %v7176 = vpop.f32.mrf.mxu0
        %v7177 = vadd.f32 %v7128, %v7176
        %v7178 = vpop.f32.mrf.mxu0
        %v7179 = vadd.f32 %v7130, %v7178
        %7180 = vmatmul.bf16.gmra.mxu0 %v6080
        %v7181 = vpop.f32.mrf.mxu0
        %v7182 = vadd.f32 %v7133, %v7181
        %v7183 = vpop.f32.mrf.mxu0
        %v7184 = vadd.f32 %v7135, %v7183
        %7185 = vmatmul.bf16.gmra.mxu0 %v6089
        %v7186 = vpop.f32.mrf.mxu0
        %v7187 = vadd.f32 %v7138, %v7186
        %v7188 = vpop.f32.mrf.mxu0
        %v7189 = vadd.f32 %v7140, %v7188
        %7190 = vmatmul.bf16.gmra.mxu0 %v6098
        %v7191 = vpop.f32.mrf.mxu0
        %v7192 = vadd.f32 %v7143, %v7191
        %v7193 = vpop.f32.mrf.mxu0
        %v7194 = vadd.f32 %v7145, %v7193
        %7195 = vmatmul.bf16.gmra.mxu0 %v6107
        %v7196 = vpop.f32.mrf.mxu0
        %v7197 = vadd.f32 %v7148, %v7196
        %v7198 = vpop.f32.mrf.mxu0
        %v7199 = vadd.f32 %v7150, %v7198
        %7200 = vmatmul.bf16.gmra.mxu0 %v6116
        %v7201 = vpop.f32.mrf.mxu0
        %v7202 = vadd.f32 %v7153, %v7201
        %v7203 = vpop.f32.mrf.mxu0
        %v7204 = vadd.f32 %v7155, %v7203
        %7205 = vdwg.mxu0
        %7206 = vmatpush.bf16.msra.mxu0 %v6734
        %7207 = vmatpush.bf16.msra.mxu0 %v6732
        %7208 = vmatpush.bf16.msra.mxu0 %v6730
        %7209 = vmatpush.bf16.msra.mxu0 %v6728
        %7210 = vmatpush.bf16.msra.mxu0 %v6726
        %7211 = vmatpush.bf16.msra.mxu0 %v6724
        %7212 = vmatpush.bf16.msra.mxu0 %v6722
        %7213 = vmatpush.bf16.msra.mxu0 %v6720
        %7214 = vmatmul.bf16.gmra.mxu0 %v6054
        %v7215 = vpop.f32.mrf.mxu0
        %v7216 = vadd.f32 %v7167, %v7215
        %v7217 = vpop.f32.mrf.mxu0
        %v7218 = vadd.f32 %v7169, %v7217
        %7219 = vmatmul.bf16.gmra.mxu0 %v6063
        %v7220 = vpop.f32.mrf.mxu0
        %v7221 = vadd.f32 %v7172, %v7220
        %v7222 = vpop.f32.mrf.mxu0
        %v7223 = vadd.f32 %v7174, %v7222
        %7224 = vmatmul.bf16.gmra.mxu0 %v6072
        %v7225 = vpop.f32.mrf.mxu0
        %v7226 = vadd.f32 %v7177, %v7225
        %v7227 = vpop.f32.mrf.mxu0
        %v7228 = vadd.f32 %v7179, %v7227
        %7229 = vmatmul.bf16.gmra.mxu0 %v6081
        %v7230 = vpop.f32.mrf.mxu0
        %v7231 = vadd.f32 %v7182, %v7230
        %v7232 = vpop.f32.mrf.mxu0
        %v7233 = vadd.f32 %v7184, %v7232
        %7234 = vmatmul.bf16.gmra.mxu0 %v6090
        %v7235 = vpop.f32.mrf.mxu0
        %v7236 = vadd.f32 %v7187, %v7235
        %v7237 = vpop.f32.mrf.mxu0
        %v7238 = vadd.f32 %v7189, %v7237
        %7239 = vmatmul.bf16.gmra.mxu0 %v6099
        %v7240 = vpop.f32.mrf.mxu0
        %v7241 = vadd.f32 %v7192, %v7240
        %v7242 = vpop.f32.mrf.mxu0
        %v7243 = vadd.f32 %v7194, %v7242
        %7244 = vmatmul.bf16.gmra.mxu0 %v6108
        %v7245 = vpop.f32.mrf.mxu0
        %v7246 = vadd.f32 %v7197, %v7245
        %v7247 = vpop.f32.mrf.mxu0
        %v7248 = vadd.f32 %v7199, %v7247
        %7249 = vmatmul.bf16.gmra.mxu0 %v6117
        %v7250 = vpop.f32.mrf.mxu0
        %v7251 = vadd.f32 %v7202, %v7250
        %v7252 = vpop.f32.mrf.mxu0
        %v7253 = vadd.f32 %v7204, %v7252
        %7254 = vdwg.mxu0
        %7255 = vmatpush.bf16.msra.mxu0 %v6750
        %7256 = vmatpush.bf16.msra.mxu0 %v6748
        %7257 = vmatpush.bf16.msra.mxu0 %v6746
        %7258 = vmatpush.bf16.msra.mxu0 %v6744
        %7259 = vmatpush.bf16.msra.mxu0 %v6742
        %7260 = vmatpush.bf16.msra.mxu0 %v6740
        %7261 = vmatpush.bf16.msra.mxu0 %v6738
        %7262 = vmatpush.bf16.msra.mxu0 %v6736
        %7263 = vmatmul.bf16.gmra.mxu0 %v6055
        %v7264 = vpop.f32.mrf.mxu0
        %v7265 = vadd.f32 %v7216, %v7264
        %v7266 = vpop.f32.mrf.mxu0
        %v7267 = vadd.f32 %v7218, %v7266
        %7268 = vmatmul.bf16.gmra.mxu0 %v6064
        %v7269 = vpop.f32.mrf.mxu0
        %v7270 = vadd.f32 %v7221, %v7269
        %v7271 = vpop.f32.mrf.mxu0
        %v7272 = vadd.f32 %v7223, %v7271
        %7273 = vmatmul.bf16.gmra.mxu0 %v6073
        %v7274 = vpop.f32.mrf.mxu0
        %v7275 = vadd.f32 %v7226, %v7274
        %v7276 = vpop.f32.mrf.mxu0
        %v7277 = vadd.f32 %v7228, %v7276
        %7278 = vmatmul.bf16.gmra.mxu0 %v6082
        %v7279 = vpop.f32.mrf.mxu0
        %v7280 = vadd.f32 %v7231, %v7279
        %v7281 = vpop.f32.mrf.mxu0
        %v7282 = vadd.f32 %v7233, %v7281
        %7283 = vmatmul.bf16.gmra.mxu0 %v6091
        %v7284 = vpop.f32.mrf.mxu0
        %v7285 = vadd.f32 %v7236, %v7284
        %v7286 = vpop.f32.mrf.mxu0
        %v7287 = vadd.f32 %v7238, %v7286
        %7288 = vmatmul.bf16.gmra.mxu0 %v6100
        %v7289 = vpop.f32.mrf.mxu0
        %v7290 = vadd.f32 %v7241, %v7289
        %v7291 = vpop.f32.mrf.mxu0
        %v7292 = vadd.f32 %v7243, %v7291
        %7293 = vmatmul.bf16.gmra.mxu0 %v6109
        %v7294 = vpop.f32.mrf.mxu0
        %v7295 = vadd.f32 %v7246, %v7294
        %v7296 = vpop.f32.mrf.mxu0
        %v7297 = vadd.f32 %v7248, %v7296
        %7298 = vmatmul.bf16.gmra.mxu0 %v6118
        %v7299 = vpop.f32.mrf.mxu0
        %v7300 = vadd.f32 %v7251, %v7299
        %v7301 = vpop.f32.mrf.mxu0
        %v7302 = vadd.f32 %v7253, %v7301
        %7303 = vdwg.mxu0
        %7304 = vmatpush.bf16.msra.mxu0 %v6766
        %7305 = vmatpush.bf16.msra.mxu0 %v6764
        %7306 = vmatpush.bf16.msra.mxu0 %v6762
        %7307 = vmatpush.bf16.msra.mxu0 %v6760
        %7308 = vmatpush.bf16.msra.mxu0 %v6758
        %7309 = vmatpush.bf16.msra.mxu0 %v6756
        %7310 = vmatpush.bf16.msra.mxu0 %v6754
        %7311 = vmatpush.bf16.msra.mxu0 %v6752
        %7312 = vmatmul.bf16.gmra.mxu0 %v6056
        %v7313 = vpop.f32.mrf.mxu0
        %v7314 = vadd.f32 %v7265, %v7313
        %v7315 = vpop.f32.mrf.mxu0
        %v7316 = vadd.f32 %v7267, %v7315
        %7317 = vmatmul.bf16.gmra.mxu0 %v6065
        %v7318 = vpop.f32.mrf.mxu0
        %v7319 = vadd.f32 %v7270, %v7318
        %v7320 = vpop.f32.mrf.mxu0
        %v7321 = vadd.f32 %v7272, %v7320
        %7322 = vmatmul.bf16.gmra.mxu0 %v6074
        %v7323 = vpop.f32.mrf.mxu0
        %v7324 = vadd.f32 %v7275, %v7323
        %v7325 = vpop.f32.mrf.mxu0
        %v7326 = vadd.f32 %v7277, %v7325
        %7327 = vmatmul.bf16.gmra.mxu0 %v6083
        %v7328 = vpop.f32.mrf.mxu0
        %v7329 = vadd.f32 %v7280, %v7328
        %v7330 = vpop.f32.mrf.mxu0
        %v7331 = vadd.f32 %v7282, %v7330
        %7332 = vmatmul.bf16.gmra.mxu0 %v6092
        %v7333 = vpop.f32.mrf.mxu0
        %v7334 = vadd.f32 %v7285, %v7333
        %v7335 = vpop.f32.mrf.mxu0
        %v7336 = vadd.f32 %v7287, %v7335
        %7337 = vmatmul.bf16.gmra.mxu0 %v6101
        %v7338 = vpop.f32.mrf.mxu0
        %v7339 = vadd.f32 %v7290, %v7338
        %v7340 = vpop.f32.mrf.mxu0
        %v7341 = vadd.f32 %v7292, %v7340
        %7342 = vmatmul.bf16.gmra.mxu0 %v6110
        %v7343 = vpop.f32.mrf.mxu0
        %v7344 = vadd.f32 %v7295, %v7343
        %v7345 = vpop.f32.mrf.mxu0
        %v7346 = vadd.f32 %v7297, %v7345
        %7347 = vmatmul.bf16.gmra.mxu0 %v6119
        %v7348 = vpop.f32.mrf.mxu0
        %v7349 = vadd.f32 %v7300, %v7348
        %v7350 = vpop.f32.mrf.mxu0
        %v7351 = vadd.f32 %v7302, %v7350
        %7352 = vdwg.mxu0
        %7353 = vmatpush.bf16.msra.mxu0 %v6639
        %7354 = vmatpush.bf16.msra.mxu0 %v6637
        %7355 = vmatpush.bf16.msra.mxu0 %v6635
        %7356 = vmatpush.bf16.msra.mxu0 %v6633
        %7357 = vmatpush.bf16.msra.mxu0 %v6631
        %7358 = vmatpush.bf16.msra.mxu0 %v6629
        %7359 = vmatpush.bf16.msra.mxu0 %v6627
        %7360 = vmatpush.bf16.msra.mxu0 %v6625
        %7361 = vmatmul.bf16.gmra.mxu0 %v6048
        %v7362 = vpop.f32.mrf.mxu0
        %v7363 = vadd.f32 %v5821, %v7362
        %v7364 = vpop.f32.mrf.mxu0
        %v7365 = vadd.f32 %v5821, %v7364
        %7366 = vmatmul.bf16.gmra.mxu0 %v6057
        %v7367 = vpop.f32.mrf.mxu0
        %v7368 = vadd.f32 %v5821, %v7367
        %v7369 = vpop.f32.mrf.mxu0
        %v7370 = vadd.f32 %v5821, %v7369
        %7371 = vmatmul.bf16.gmra.mxu0 %v6066
        %v7372 = vpop.f32.mrf.mxu0
        %v7373 = vadd.f32 %v5821, %v7372
        %v7374 = vpop.f32.mrf.mxu0
        %v7375 = vadd.f32 %v5821, %v7374
        %7376 = vmatmul.bf16.gmra.mxu0 %v6075
        %v7377 = vpop.f32.mrf.mxu0
        %v7378 = vadd.f32 %v5821, %v7377
        %v7379 = vpop.f32.mrf.mxu0
        %v7380 = vadd.f32 %v5821, %v7379
        %7381 = vmatmul.bf16.gmra.mxu0 %v6084
        %v7382 = vpop.f32.mrf.mxu0
        %v7383 = vadd.f32 %v5821, %v7382
        %v7384 = vpop.f32.mrf.mxu0
        %v7385 = vadd.f32 %v5821, %v7384
        %7386 = vmatmul.bf16.gmra.mxu0 %v6093
        %v7387 = vpop.f32.mrf.mxu0
        %v7388 = vadd.f32 %v5821, %v7387
        %v7389 = vpop.f32.mrf.mxu0
        %v7390 = vadd.f32 %v5821, %v7389
        %7391 = vmatmul.bf16.gmra.mxu0 %v6102
        %v7392 = vpop.f32.mrf.mxu0
        %v7393 = vadd.f32 %v5821, %v7392
        %v7394 = vpop.f32.mrf.mxu0
        %v7395 = vadd.f32 %v5821, %v7394
        %7396 = vmatmul.bf16.gmra.mxu0 %v6111
        %v7397 = vpop.f32.mrf.mxu0
        %v7398 = vadd.f32 %v5821, %v7397
        %v7399 = vpop.f32.mrf.mxu0
        %v7400 = vadd.f32 %v5821, %v7399
        %7401 = vdwg.mxu0
        %7402 = vmatpush.bf16.msra.mxu0 %v6655
        %7403 = vmatpush.bf16.msra.mxu0 %v6653
        %7404 = vmatpush.bf16.msra.mxu0 %v6651
        %7405 = vmatpush.bf16.msra.mxu0 %v6649
        %7406 = vmatpush.bf16.msra.mxu0 %v6647
        %7407 = vmatpush.bf16.msra.mxu0 %v6645
        %7408 = vmatpush.bf16.msra.mxu0 %v6643
        %7409 = vmatpush.bf16.msra.mxu0 %v6641
        %7410 = vmatmul.bf16.gmra.mxu0 %v6049
        %v7411 = vpop.f32.mrf.mxu0
        %v7412 = vadd.f32 %v7363, %v7411
        %v7413 = vpop.f32.mrf.mxu0
        %v7414 = vadd.f32 %v7365, %v7413
        %7415 = vmatmul.bf16.gmra.mxu0 %v6058
        %v7416 = vpop.f32.mrf.mxu0
        %v7417 = vadd.f32 %v7368, %v7416
        %v7418 = vpop.f32.mrf.mxu0
        %v7419 = vadd.f32 %v7370, %v7418
        %7420 = vmatmul.bf16.gmra.mxu0 %v6067
        %v7421 = vpop.f32.mrf.mxu0
        %v7422 = vadd.f32 %v7373, %v7421
        %v7423 = vpop.f32.mrf.mxu0
        %v7424 = vadd.f32 %v7375, %v7423
        %7425 = vmatmul.bf16.gmra.mxu0 %v6076
        %v7426 = vpop.f32.mrf.mxu0
        %v7427 = vadd.f32 %v7378, %v7426
        %v7428 = vpop.f32.mrf.mxu0
        %v7429 = vadd.f32 %v7380, %v7428
        %7430 = vmatmul.bf16.gmra.mxu0 %v6085
        %v7431 = vpop.f32.mrf.mxu0
        %v7432 = vadd.f32 %v7383, %v7431
        %v7433 = vpop.f32.mrf.mxu0
        %v7434 = vadd.f32 %v7385, %v7433
        %7435 = vmatmul.bf16.gmra.mxu0 %v6094
        %v7436 = vpop.f32.mrf.mxu0
        %v7437 = vadd.f32 %v7388, %v7436
        %v7438 = vpop.f32.mrf.mxu0
        %v7439 = vadd.f32 %v7390, %v7438
        %7440 = vmatmul.bf16.gmra.mxu0 %v6103
        %v7441 = vpop.f32.mrf.mxu0
        %v7442 = vadd.f32 %v7393, %v7441
        %v7443 = vpop.f32.mrf.mxu0
        %v7444 = vadd.f32 %v7395, %v7443
        %7445 = vmatmul.bf16.gmra.mxu0 %v6112
        %v7446 = vpop.f32.mrf.mxu0
        %v7447 = vadd.f32 %v7398, %v7446
        %v7448 = vpop.f32.mrf.mxu0
        %v7449 = vadd.f32 %v7400, %v7448
        %7450 = vdwg.mxu0
        %7451 = vmatpush.bf16.msra.mxu0 %v6671
        %7452 = vmatpush.bf16.msra.mxu0 %v6669
        %7453 = vmatpush.bf16.msra.mxu0 %v6667
        %7454 = vmatpush.bf16.msra.mxu0 %v6665
        %7455 = vmatpush.bf16.msra.mxu0 %v6663
        %7456 = vmatpush.bf16.msra.mxu0 %v6661
        %7457 = vmatpush.bf16.msra.mxu0 %v6659
        %7458 = vmatpush.bf16.msra.mxu0 %v6657
        %7459 = vmatmul.bf16.gmra.mxu0 %v6050
        %v7460 = vpop.f32.mrf.mxu0
        %v7461 = vadd.f32 %v7412, %v7460
        %v7462 = vpop.f32.mrf.mxu0
        %v7463 = vadd.f32 %v7414, %v7462
        %7464 = vmatmul.bf16.gmra.mxu0 %v6059
        %v7465 = vpop.f32.mrf.mxu0
        %v7466 = vadd.f32 %v7417, %v7465
        %v7467 = vpop.f32.mrf.mxu0
        %v7468 = vadd.f32 %v7419, %v7467
        %7469 = vmatmul.bf16.gmra.mxu0 %v6068
        %v7470 = vpop.f32.mrf.mxu0
        %v7471 = vadd.f32 %v7422, %v7470
        %v7472 = vpop.f32.mrf.mxu0
        %v7473 = vadd.f32 %v7424, %v7472
        %7474 = vmatmul.bf16.gmra.mxu0 %v6077
        %v7475 = vpop.f32.mrf.mxu0
        %v7476 = vadd.f32 %v7427, %v7475
        %v7477 = vpop.f32.mrf.mxu0
        %v7478 = vadd.f32 %v7429, %v7477
        %7479 = vmatmul.bf16.gmra.mxu0 %v6086
        %v7480 = vpop.f32.mrf.mxu0
        %v7481 = vadd.f32 %v7432, %v7480
        %v7482 = vpop.f32.mrf.mxu0
        %v7483 = vadd.f32 %v7434, %v7482
        %7484 = vmatmul.bf16.gmra.mxu0 %v6095
        %v7485 = vpop.f32.mrf.mxu0
        %v7486 = vadd.f32 %v7437, %v7485
        %v7487 = vpop.f32.mrf.mxu0
        %v7488 = vadd.f32 %v7439, %v7487
        %7489 = vmatmul.bf16.gmra.mxu0 %v6104
        %v7490 = vpop.f32.mrf.mxu0
        %v7491 = vadd.f32 %v7442, %v7490
        %v7492 = vpop.f32.mrf.mxu0
        %v7493 = vadd.f32 %v7444, %v7492
        %7494 = vmatmul.bf16.gmra.mxu0 %v6113
        %v7495 = vpop.f32.mrf.mxu0
        %v7496 = vadd.f32 %v7447, %v7495
        %v7497 = vpop.f32.mrf.mxu0
        %v7498 = vadd.f32 %v7449, %v7497
        %7499 = vdwg.mxu0
        %7500 = vmatpush.bf16.msra.mxu0 %v6687
        %7501 = vmatpush.bf16.msra.mxu0 %v6685
        %7502 = vmatpush.bf16.msra.mxu0 %v6683
        %7503 = vmatpush.bf16.msra.mxu0 %v6681
        %7504 = vmatpush.bf16.msra.mxu0 %v6679
        %7505 = vmatpush.bf16.msra.mxu0 %v6677
        %7506 = vmatpush.bf16.msra.mxu0 %v6675
        %7507 = vmatpush.bf16.msra.mxu0 %v6673
        %7508 = vmatmul.bf16.gmra.mxu0 %v6051
        %v7509 = vpop.f32.mrf.mxu0
        %v7510 = vadd.f32 %v7461, %v7509
        %v7511 = vpop.f32.mrf.mxu0
        %v7512 = vadd.f32 %v7463, %v7511
        %7513 = vmatmul.bf16.gmra.mxu0 %v6060
        %v7514 = vpop.f32.mrf.mxu0
        %v7515 = vadd.f32 %v7466, %v7514
        %v7516 = vpop.f32.mrf.mxu0
        %v7517 = vadd.f32 %v7468, %v7516
        %7518 = vmatmul.bf16.gmra.mxu0 %v6069
        %v7519 = vpop.f32.mrf.mxu0
        %v7520 = vadd.f32 %v7471, %v7519
        %v7521 = vpop.f32.mrf.mxu0
        %v7522 = vadd.f32 %v7473, %v7521
        %7523 = vmatmul.bf16.gmra.mxu0 %v6078
        %v7524 = vpop.f32.mrf.mxu0
        %v7525 = vadd.f32 %v7476, %v7524
        %v7526 = vpop.f32.mrf.mxu0
        %v7527 = vadd.f32 %v7478, %v7526
        %7528 = vmatmul.bf16.gmra.mxu0 %v6087
        %v7529 = vpop.f32.mrf.mxu0
        %v7530 = vadd.f32 %v7481, %v7529
        %v7531 = vpop.f32.mrf.mxu0
        %v7532 = vadd.f32 %v7483, %v7531
        %7533 = vmatmul.bf16.gmra.mxu0 %v6096
        %v7534 = vpop.f32.mrf.mxu0
        %v7535 = vadd.f32 %v7486, %v7534
        %v7536 = vpop.f32.mrf.mxu0
        %v7537 = vadd.f32 %v7488, %v7536
        %7538 = vmatmul.bf16.gmra.mxu0 %v6105
        %v7539 = vpop.f32.mrf.mxu0
        %v7540 = vadd.f32 %v7491, %v7539
        %v7541 = vpop.f32.mrf.mxu0
        %v7542 = vadd.f32 %v7493, %v7541
        %7543 = vmatmul.bf16.gmra.mxu0 %v6114
        %v7544 = vpop.f32.mrf.mxu0
        %v7545 = vadd.f32 %v7496, %v7544
        %v7546 = vpop.f32.mrf.mxu0
        %v7547 = vadd.f32 %v7498, %v7546
        %7548 = vdwg.mxu0
        %7549 = vmatpush.bf16.msra.mxu0 %v6703
        %7550 = vmatpush.bf16.msra.mxu0 %v6701
        %7551 = vmatpush.bf16.msra.mxu0 %v6699
        %7552 = vmatpush.bf16.msra.mxu0 %v6697
        %7553 = vmatpush.bf16.msra.mxu0 %v6695
        %7554 = vmatpush.bf16.msra.mxu0 %v6693
        %7555 = vmatpush.bf16.msra.mxu0 %v6691
        %7556 = vmatpush.bf16.msra.mxu0 %v6689
        %7557 = vmatmul.bf16.gmra.mxu0 %v6052
        %v7558 = vpop.f32.mrf.mxu0
        %v7559 = vadd.f32 %v7510, %v7558
        %v7560 = vpop.f32.mrf.mxu0
        %v7561 = vadd.f32 %v7512, %v7560
        %7562 = vmatmul.bf16.gmra.mxu0 %v6061
        %v7563 = vpop.f32.mrf.mxu0
        %v7564 = vadd.f32 %v7515, %v7563
        %v7565 = vpop.f32.mrf.mxu0
        %v7566 = vadd.f32 %v7517, %v7565
        %7567 = vmatmul.bf16.gmra.mxu0 %v6070
        %v7568 = vpop.f32.mrf.mxu0
        %v7569 = vadd.f32 %v7520, %v7568
        %v7570 = vpop.f32.mrf.mxu0
        %v7571 = vadd.f32 %v7522, %v7570
        %7572 = vmatmul.bf16.gmra.mxu0 %v6079
        %v7573 = vpop.f32.mrf.mxu0
        %v7574 = vadd.f32 %v7525, %v7573
        %v7575 = vpop.f32.mrf.mxu0
        %v7576 = vadd.f32 %v7527, %v7575
        %7577 = vmatmul.bf16.gmra.mxu0 %v6088
        %v7578 = vpop.f32.mrf.mxu0
        %v7579 = vadd.f32 %v7530, %v7578
        %v7580 = vpop.f32.mrf.mxu0
        %v7581 = vadd.f32 %v7532, %v7580
        %7582 = vmatmul.bf16.gmra.mxu0 %v6097
        %v7583 = vpop.f32.mrf.mxu0
        %v7584 = vadd.f32 %v7535, %v7583
        %v7585 = vpop.f32.mrf.mxu0
        %v7586 = vadd.f32 %v7537, %v7585
        %7587 = vmatmul.bf16.gmra.mxu0 %v6106
        %v7588 = vpop.f32.mrf.mxu0
        %v7589 = vadd.f32 %v7540, %v7588
        %v7590 = vpop.f32.mrf.mxu0
        %v7591 = vadd.f32 %v7542, %v7590
        %7592 = vmatmul.bf16.gmra.mxu0 %v6115
        %v7593 = vpop.f32.mrf.mxu0
        %v7594 = vadd.f32 %v7545, %v7593
        %v7595 = vpop.f32.mrf.mxu0
        %v7596 = vadd.f32 %v7547, %v7595
        %7597 = vdwg.mxu0
        %7598 = vmatpush.bf16.msra.mxu0 %v6719
        %7599 = vmatpush.bf16.msra.mxu0 %v6717
        %7600 = vmatpush.bf16.msra.mxu0 %v6715
        %7601 = vmatpush.bf16.msra.mxu0 %v6713
        %7602 = vmatpush.bf16.msra.mxu0 %v6711
        %7603 = vmatpush.bf16.msra.mxu0 %v6709
        %7604 = vmatpush.bf16.msra.mxu0 %v6707
        %7605 = vmatpush.bf16.msra.mxu0 %v6705
        %7606 = vmatmul.bf16.gmra.mxu0 %v6053
        %v7607 = vpop.f32.mrf.mxu0
        %v7608 = vadd.f32 %v7559, %v7607
        %v7609 = vpop.f32.mrf.mxu0
        %v7610 = vadd.f32 %v7561, %v7609
        %7611 = vmatmul.bf16.gmra.mxu0 %v6062
        %v7612 = vpop.f32.mrf.mxu0
        %v7613 = vadd.f32 %v7564, %v7612
        %v7614 = vpop.f32.mrf.mxu0
        %v7615 = vadd.f32 %v7566, %v7614
        %7616 = vmatmul.bf16.gmra.mxu0 %v6071
        %v7617 = vpop.f32.mrf.mxu0
        %v7618 = vadd.f32 %v7569, %v7617
        %v7619 = vpop.f32.mrf.mxu0
        %v7620 = vadd.f32 %v7571, %v7619
        %7621 = vmatmul.bf16.gmra.mxu0 %v6080
        %v7622 = vpop.f32.mrf.mxu0
        %v7623 = vadd.f32 %v7574, %v7622
        %v7624 = vpop.f32.mrf.mxu0
        %v7625 = vadd.f32 %v7576, %v7624
        %7626 = vmatmul.bf16.gmra.mxu0 %v6089
        %v7627 = vpop.f32.mrf.mxu0
        %v7628 = vadd.f32 %v7579, %v7627
        %v7629 = vpop.f32.mrf.mxu0
        %v7630 = vadd.f32 %v7581, %v7629
        %7631 = vmatmul.bf16.gmra.mxu0 %v6098
        %v7632 = vpop.f32.mrf.mxu0
        %v7633 = vadd.f32 %v7584, %v7632
        %v7634 = vpop.f32.mrf.mxu0
        %v7635 = vadd.f32 %v7586, %v7634
        %7636 = vmatmul.bf16.gmra.mxu0 %v6107
        %v7637 = vpop.f32.mrf.mxu0
        %v7638 = vadd.f32 %v7589, %v7637
        %v7639 = vpop.f32.mrf.mxu0
        %v7640 = vadd.f32 %v7591, %v7639
        %7641 = vmatmul.bf16.gmra.mxu0 %v6116
        %v7642 = vpop.f32.mrf.mxu0
        %v7643 = vadd.f32 %v7594, %v7642
        %v7644 = vpop.f32.mrf.mxu0
        %v7645 = vadd.f32 %v7596, %v7644
        %7646 = vdwg.mxu0
        %7647 = vmatpush.bf16.msra.mxu0 %v6735
        %7648 = vmatpush.bf16.msra.mxu0 %v6733
        %7649 = vmatpush.bf16.msra.mxu0 %v6731
        %7650 = vmatpush.bf16.msra.mxu0 %v6729
        %7651 = vmatpush.bf16.msra.mxu0 %v6727
        %7652 = vmatpush.bf16.msra.mxu0 %v6725
        %7653 = vmatpush.bf16.msra.mxu0 %v6723
        %7654 = vmatpush.bf16.msra.mxu0 %v6721
        %7655 = vmatmul.bf16.gmra.mxu0 %v6054
        %v7656 = vpop.f32.mrf.mxu0
        %v7657 = vadd.f32 %v7608, %v7656
        %v7658 = vpop.f32.mrf.mxu0
        %v7659 = vadd.f32 %v7610, %v7658
        %7660 = vmatmul.bf16.gmra.mxu0 %v6063
        %v7661 = vpop.f32.mrf.mxu0
        %v7662 = vadd.f32 %v7613, %v7661
        %v7663 = vpop.f32.mrf.mxu0
        %v7664 = vadd.f32 %v7615, %v7663
        %7665 = vmatmul.bf16.gmra.mxu0 %v6072
        %v7666 = vpop.f32.mrf.mxu0
        %v7667 = vadd.f32 %v7618, %v7666
        %v7668 = vpop.f32.mrf.mxu0
        %v7669 = vadd.f32 %v7620, %v7668
        %7670 = vmatmul.bf16.gmra.mxu0 %v6081
        %v7671 = vpop.f32.mrf.mxu0
        %v7672 = vadd.f32 %v7623, %v7671
        %v7673 = vpop.f32.mrf.mxu0
        %v7674 = vadd.f32 %v7625, %v7673
        %7675 = vmatmul.bf16.gmra.mxu0 %v6090
        %v7676 = vpop.f32.mrf.mxu0
        %v7677 = vadd.f32 %v7628, %v7676
        %v7678 = vpop.f32.mrf.mxu0
        %v7679 = vadd.f32 %v7630, %v7678
        %7680 = vmatmul.bf16.gmra.mxu0 %v6099
        %v7681 = vpop.f32.mrf.mxu0
        %v7682 = vadd.f32 %v7633, %v7681
        %v7683 = vpop.f32.mrf.mxu0
        %v7684 = vadd.f32 %v7635, %v7683
        %7685 = vmatmul.bf16.gmra.mxu0 %v6108
        %v7686 = vpop.f32.mrf.mxu0
        %v7687 = vadd.f32 %v7638, %v7686
        %v7688 = vpop.f32.mrf.mxu0
        %v7689 = vadd.f32 %v7640, %v7688
        %7690 = vmatmul.bf16.gmra.mxu0 %v6117
        %v7691 = vpop.f32.mrf.mxu0
        %v7692 = vadd.f32 %v7643, %v7691
        %v7693 = vpop.f32.mrf.mxu0
        %v7694 = vadd.f32 %v7645, %v7693
        %7695 = vdwg.mxu0
        %7696 = vmatpush.bf16.msra.mxu0 %v6751
        %7697 = vmatpush.bf16.msra.mxu0 %v6749
        %7698 = vmatpush.bf16.msra.mxu0 %v6747
        %7699 = vmatpush.bf16.msra.mxu0 %v6745
        %7700 = vmatpush.bf16.msra.mxu0 %v6743
        %7701 = vmatpush.bf16.msra.mxu0 %v6741
        %7702 = vmatpush.bf16.msra.mxu0 %v6739
        %7703 = vmatpush.bf16.msra.mxu0 %v6737
        %7704 = vmatmul.bf16.gmra.mxu0 %v6055
        %v7705 = vpop.f32.mrf.mxu0
        %v7706 = vadd.f32 %v7657, %v7705
        %v7707 = vpop.f32.mrf.mxu0
        %v7708 = vadd.f32 %v7659, %v7707
        %7709 = vmatmul.bf16.gmra.mxu0 %v6064
        %v7710 = vpop.f32.mrf.mxu0
        %v7711 = vadd.f32 %v7662, %v7710
        %v7712 = vpop.f32.mrf.mxu0
        %v7713 = vadd.f32 %v7664, %v7712
        %7714 = vmatmul.bf16.gmra.mxu0 %v6073
        %v7715 = vpop.f32.mrf.mxu0
        %v7716 = vadd.f32 %v7667, %v7715
        %v7717 = vpop.f32.mrf.mxu0
        %v7718 = vadd.f32 %v7669, %v7717
        %7719 = vmatmul.bf16.gmra.mxu0 %v6082
        %v7720 = vpop.f32.mrf.mxu0
        %v7721 = vadd.f32 %v7672, %v7720
        %v7722 = vpop.f32.mrf.mxu0
        %v7723 = vadd.f32 %v7674, %v7722
        %7724 = vmatmul.bf16.gmra.mxu0 %v6091
        %v7725 = vpop.f32.mrf.mxu0
        %v7726 = vadd.f32 %v7677, %v7725
        %v7727 = vpop.f32.mrf.mxu0
        %v7728 = vadd.f32 %v7679, %v7727
        %7729 = vmatmul.bf16.gmra.mxu0 %v6100
        %v7730 = vpop.f32.mrf.mxu0
        %v7731 = vadd.f32 %v7682, %v7730
        %v7732 = vpop.f32.mrf.mxu0
        %v7733 = vadd.f32 %v7684, %v7732
        %7734 = vmatmul.bf16.gmra.mxu0 %v6109
        %v7735 = vpop.f32.mrf.mxu0
        %v7736 = vadd.f32 %v7687, %v7735
        %v7737 = vpop.f32.mrf.mxu0
        %v7738 = vadd.f32 %v7689, %v7737
        %7739 = vmatmul.bf16.gmra.mxu0 %v6118
        %v7740 = vpop.f32.mrf.mxu0
        %v7741 = vadd.f32 %v7692, %v7740
        %v7742 = vpop.f32.mrf.mxu0
        %v7743 = vadd.f32 %v7694, %v7742
        %7744 = vdwg.mxu0
        %7745 = vmatpush.bf16.msra.mxu0 %v6767
        %7746 = vmatpush.bf16.msra.mxu0 %v6765
        %7747 = vmatpush.bf16.msra.mxu0 %v6763
        %7748 = vmatpush.bf16.msra.mxu0 %v6761
        %7749 = vmatpush.bf16.msra.mxu0 %v6759
        %7750 = vmatpush.bf16.msra.mxu0 %v6757
        %7751 = vmatpush.bf16.msra.mxu0 %v6755
        %7752 = vmatpush.bf16.msra.mxu0 %v6753
        %7753 = vmatmul.bf16.gmra.mxu0 %v6056
        %v7754 = vpop.f32.mrf.mxu0
        %v7755 = vadd.f32 %v7706, %v7754
        %v7756 = vpop.f32.mrf.mxu0
        %v7757 = vadd.f32 %v7708, %v7756
        %7758 = vmatmul.bf16.gmra.mxu0 %v6065
        %v7759 = vpop.f32.mrf.mxu0
        %v7760 = vadd.f32 %v7711, %v7759
        %v7761 = vpop.f32.mrf.mxu0
        %v7762 = vadd.f32 %v7713, %v7761
        %7763 = vmatmul.bf16.gmra.mxu0 %v6074
        %v7764 = vpop.f32.mrf.mxu0
        %v7765 = vadd.f32 %v7716, %v7764
        %v7766 = vpop.f32.mrf.mxu0
        %v7767 = vadd.f32 %v7718, %v7766
        %7768 = vmatmul.bf16.gmra.mxu0 %v6083
        %v7769 = vpop.f32.mrf.mxu0
        %v7770 = vadd.f32 %v7721, %v7769
        %v7771 = vpop.f32.mrf.mxu0
        %v7772 = vadd.f32 %v7723, %v7771
        %7773 = vmatmul.bf16.gmra.mxu0 %v6092
        %v7774 = vpop.f32.mrf.mxu0
        %v7775 = vadd.f32 %v7726, %v7774
        %v7776 = vpop.f32.mrf.mxu0
        %v7777 = vadd.f32 %v7728, %v7776
        %7778 = vmatmul.bf16.gmra.mxu0 %v6101
        %v7779 = vpop.f32.mrf.mxu0
        %v7780 = vadd.f32 %v7731, %v7779
        %v7781 = vpop.f32.mrf.mxu0
        %v7782 = vadd.f32 %v7733, %v7781
        %7783 = vmatmul.bf16.gmra.mxu0 %v6110
        %v7784 = vpop.f32.mrf.mxu0
        %v7785 = vadd.f32 %v7736, %v7784
        %v7786 = vpop.f32.mrf.mxu0
        %v7787 = vadd.f32 %v7738, %v7786
        %7788 = vmatmul.bf16.gmra.mxu0 %v6119
        %v7789 = vpop.f32.mrf.mxu0
        %v7790 = vadd.f32 %v7741, %v7789
        %v7791 = vpop.f32.mrf.mxu0
        %v7792 = vadd.f32 %v7743, %v7791
        %7793 = vdwg.mxu0
        %v7794 = vmax.f32 %v7314, 0.0
        %v7795 = vmax.f32 %v7755, 0.0
        %v7796 = vmax.f32 %v7316, 0.0
        %v7797 = vmax.f32 %v7757, 0.0
        %v7798 = vmax.f32 %v7319, 0.0
        %v7799 = vmax.f32 %v7760, 0.0
        %v7800 = vmax.f32 %v7321, 0.0
        %v7801 = vmax.f32 %v7762, 0.0
        %v7802 = vmax.f32 %v7324, 0.0
        %v7803 = vmax.f32 %v7765, 0.0
        %v7804 = vmax.f32 %v7326, 0.0
        %v7805 = vmax.f32 %v7767, 0.0
        %v7806 = vmax.f32 %v7329, 0.0
        %v7807 = vmax.f32 %v7770, 0.0
        %v7808 = vmax.f32 %v7331, 0.0
        %v7809 = vmax.f32 %v7772, 0.0
        %v7810 = vmax.f32 %v7334, 0.0
        %v7811 = vmax.f32 %v7775, 0.0
        %v7812 = vmax.f32 %v7336, 0.0
        %v7813 = vmax.f32 %v7777, 0.0
        %v7814 = vmax.f32 %v7339, 0.0
        %v7815 = vmax.f32 %v7780, 0.0
        %v7816 = vmax.f32 %v7341, 0.0
        %v7817 = vmax.f32 %v7782, 0.0
        %v7818 = vmax.f32 %v7344, 0.0
        %v7819 = vmax.f32 %v7785, 0.0
        %v7820 = vmax.f32 %v7346, 0.0
        %v7821 = vmax.f32 %v7787, 0.0
        %v7822 = vmax.f32 %v7349, 0.0
        %v7823 = vmax.f32 %v7790, 0.0
        %v7824 = vmax.f32 %v7351, 0.0
        %v7825 = vmax.f32 %v7792, 0.0
        %v7826 = vpack.c.bf16 %v7795, %v7794
        %v7827 = vpack.c.bf16 %v7797, %v7796
        %v7828 = vpack.c.bf16 %v7799, %v7798
        %v7829 = vpack.c.bf16 %v7801, %v7800
        %v7830 = vpack.c.bf16 %v7803, %v7802
        %v7831 = vpack.c.bf16 %v7805, %v7804
        %v7832 = vpack.c.bf16 %v7807, %v7806
        %v7833 = vpack.c.bf16 %v7809, %v7808
        %v7834 = vpack.c.bf16 %v7811, %v7810
        %v7835 = vpack.c.bf16 %v7813, %v7812
        %v7836 = vpack.c.bf16 %v7815, %v7814
        %v7837 = vpack.c.bf16 %v7817, %v7816
        %v7838 = vpack.c.bf16 %v7819, %v7818
        %v7839 = vpack.c.bf16 %v7821, %v7820
        %v7840 = vpack.c.bf16 %v7823, %v7822
        %v7841 = vpack.c.bf16 %v7825, %v7824
        %s7842 = scalar_lea.vmem [#allocation3], 128
        %7843 = vst [vmem:[%s7842] sm:$0xff] %v7826
        %7844 = vst [vmem:[%s7842 + $0x8] sm:$0xff] %v7827
        %7845 = vst [vmem:[%s7842 + $0x10] sm:$0xff] %v7828
        %7846 = vst [vmem:[%s7842 + $0x18] sm:$0xff] %v7829
        %7847 = vst [vmem:[%s7842 + $0x20] sm:$0xff] %v7830
        %7848 = vst [vmem:[%s7842 + $0x28] sm:$0xff] %v7831
        %7849 = vst [vmem:[%s7842 + $0x30] sm:$0xff] %v7832
        %7850 = vst [vmem:[%s7842 + $0x38] sm:$0xff] %v7833
        %7851 = vst [vmem:[%s7842 + $0x40] sm:$0xff] %v7834
        %7852 = vst [vmem:[%s7842 + $0x48] sm:$0xff] %v7835
        %7853 = vst [vmem:[%s7842 + $0x50] sm:$0xff] %v7836
        %7854 = vst [vmem:[%s7842 + $0x58] sm:$0xff] %v7837
        %7855 = vst [vmem:[%s7842 + $0x60] sm:$0xff] %v7838
        %7856 = vst [vmem:[%s7842 + $0x68] sm:$0xff] %v7839
        %7857 = vst [vmem:[%s7842 + $0x70] sm:$0xff] %v7840
        %7858 = vst [vmem:[%s7842 + $0x78] sm:$0xff] %v7841
        %v7859 = vadd.f32 %v7794, %v7796
        %v7860 = vadd.f32 %v7859, %v7798
        %v7861 = vadd.f32 %v7860, %v7800
        %v7862 = vadd.f32 %v7861, %v7802
        %v7863 = vadd.f32 %v7862, %v7804
        %v7864 = vadd.f32 %v7863, %v7806
        %v7865 = vadd.f32 %v7864, %v7808
        %v7866 = vrot.slane %v7865, 4
        %v7867 = vadd.f32 %v7865, %v7866
        %v7868 = vrot.slane %v7867, 2
        %v7869 = vadd.f32 %v7867, %v7868
        %v7870 = vrot.slane %v7869, 1
        %v7871 = vadd.f32 %v7869, %v7870
        %v7872 = vadd.f32 %v7795, %v7797
        %v7873 = vadd.f32 %v7872, %v7799
        %v7874 = vadd.f32 %v7873, %v7801
        %v7875 = vadd.f32 %v7874, %v7803
        %v7876 = vadd.f32 %v7875, %v7805
        %v7877 = vadd.f32 %v7876, %v7807
        %v7878 = vadd.f32 %v7877, %v7809
        %v7879 = vrot.slane %v7878, 4
        %v7880 = vadd.f32 %v7878, %v7879
        %v7881 = vrot.slane %v7880, 2
        %v7882 = vadd.f32 %v7880, %v7881
        %v7883 = vrot.slane %v7882, 1
        %v7884 = vadd.f32 %v7882, %v7883
        %v7885 = vadd.f32 %v7810, %v7812
        %v7886 = vadd.f32 %v7885, %v7814
        %v7887 = vadd.f32 %v7886, %v7816
        %v7888 = vadd.f32 %v7887, %v7818
        %v7889 = vadd.f32 %v7888, %v7820
        %v7890 = vadd.f32 %v7889, %v7822
        %v7891 = vadd.f32 %v7890, %v7824
        %v7892 = vrot.slane %v7891, 4
        %v7893 = vadd.f32 %v7891, %v7892
        %v7894 = vrot.slane %v7893, 2
        %v7895 = vadd.f32 %v7893, %v7894
        %v7896 = vrot.slane %v7895, 1
        %v7897 = vadd.f32 %v7895, %v7896
        %v7898 = vadd.f32 %v7811, %v7813
        %v7899 = vadd.f32 %v7898, %v7815
        %v7900 = vadd.f32 %v7899, %v7817
        %v7901 = vadd.f32 %v7900, %v7819
        %v7902 = vadd.f32 %v7901, %v7821
        %v7903 = vadd.f32 %v7902, %v7823
        %v7904 = vadd.f32 %v7903, %v7825
        %v7905 = vrot.slane %v7904, 4
        %v7906 = vadd.f32 %v7904, %v7905
        %v7907 = vrot.slane %v7906, 2
        %v7908 = vadd.f32 %v7906, %v7907
        %v7909 = vrot.slane %v7908, 1
        %v7910 = vadd.f32 %v7908, %v7909
        %v7911 = vadd.f32 %v4106, %v7871
        %v7912 = vadd.f32 %v4119, %v7884
        %v7913 = vadd.f32 %v4132, %v7897
        %v7914 = vadd.f32 %v4145, %v7910
        %v7915 = vmul.f32 %v7911, 0.015625
        %v7916 = vmul.f32 %v7912, 0.015625
        %v7917 = vmul.f32 %v7913, 0.015625
        %v7918 = vmul.f32 %v7914, 0.015625
        %v7919 = vpack.c.bf16 %v7915, %v7915
        %v7920 = vpack.c.bf16 %v7916, %v7916
        %v7921 = vpack.c.bf16 %v7917, %v7917
        %v7922 = vpack.c.bf16 %v7918, %v7918
        %v7923 = vld [vmem:[#allocation9] sm:$0xf]
        %v7924 = vld [vmem:[#allocation9 + $0x4] sm:$0xf]
        %v7925 = vld [vmem:[#allocation9 + $0x8] sm:$0xf]
        %v7926 = vld [vmem:[#allocation9 + $0xc] sm:$0xf]
        %v7927 = vld [vmem:[#allocation9 + $0x10] sm:$0xf]
        %v7928 = vld [vmem:[#allocation9 + $0x14] sm:$0xf]
        %v7929 = vld [vmem:[#allocation9 + $0x18] sm:$0xf]
        %v7930 = vld [vmem:[#allocation9 + $0x1c] sm:$0xf]
        %v7931 = vld [vmem:[#allocation9 + $0x20] sm:$0xf]
        %v7932 = vld [vmem:[#allocation9 + $0x24] sm:$0xf]
        %v7933 = vld [vmem:[#allocation9 + $0x28] sm:$0xf]
        %v7934 = vld [vmem:[#allocation9 + $0x2c] sm:$0xf]
        %v7935 = vld [vmem:[#allocation9 + $0x30] sm:$0xf]
        %v7936 = vld [vmem:[#allocation9 + $0x34] sm:$0xf]
        %v7937 = vld [vmem:[#allocation9 + $0x38] sm:$0xf]
        %v7938 = vld [vmem:[#allocation9 + $0x3c] sm:$0xf]
        %v7939 = vld [vmem:[#allocation9 + $0x40] sm:$0xf]
        %v7940 = vld [vmem:[#allocation9 + $0x44] sm:$0xf]
        %v7941 = vld [vmem:[#allocation9 + $0x48] sm:$0xf]
        %v7942 = vld [vmem:[#allocation9 + $0x4c] sm:$0xf]
        %v7943 = vld [vmem:[#allocation9 + $0x50] sm:$0xf]
        %v7944 = vld [vmem:[#allocation9 + $0x54] sm:$0xf]
        %v7945 = vld [vmem:[#allocation9 + $0x58] sm:$0xf]
        %v7946 = vld [vmem:[#allocation9 + $0x5c] sm:$0xf]
        %v7947 = vld [vmem:[#allocation9 + $0x60] sm:$0xf]
        %v7948 = vld [vmem:[#allocation9 + $0x64] sm:$0xf]
        %v7949 = vld [vmem:[#allocation9 + $0x68] sm:$0xf]
        %v7950 = vld [vmem:[#allocation9 + $0x6c] sm:$0xf]
        %v7951 = vld [vmem:[#allocation9 + $0x70] sm:$0xf]
        %v7952 = vld [vmem:[#allocation9 + $0x74] sm:$0xf]
        %v7953 = vld [vmem:[#allocation9 + $0x78] sm:$0xf]
        %v7954 = vld [vmem:[#allocation9 + $0x7c] sm:$0xf]
        %v7955 = vld [vmem:[#allocation10] sm:$0x1]
        %v7957 = vperm.slane %v7955, 0
        %v7963 = vunpack.c.l.b16 %v7919
        %v7964 = vunpack.c.l.b16 %v7920
        %v7965 = vunpack.c.l.b16 %v7921
        %v7966 = vunpack.c.l.b16 %v7922
        %vm7967 = vcmask 1041409
        %v7968 = vsel %vm7967, %v7965, %v7963
        %v7969 = vsel %vm7967, %v7966, %v7964
        %v7970 = vpack.c.b16 %v7968, %v7968
        %v7971 = vpack.c.b16 %v7969, %v7969
        %v8006 = vunpack.c.l.b16 %v7923
        %v8007 = vunpack.c.l.b16 %v7924
        %v8008 = vunpack.c.l.b16 %v7925
        %v8009 = vunpack.c.l.b16 %v7926
        %v8010 = vunpack.c.l.b16 %v7927
        %v8011 = vunpack.c.l.b16 %v7928
        %v8012 = vunpack.c.l.b16 %v7929
        %v8013 = vunpack.c.l.b16 %v7930
        %v8014 = vunpack.c.l.b16 %v7931
        %v8015 = vunpack.c.l.b16 %v7932
        %v8016 = vunpack.c.l.b16 %v7933
        %v8017 = vunpack.c.l.b16 %v7934
        %v8018 = vunpack.c.l.b16 %v7935
        %v8019 = vunpack.c.l.b16 %v7936
        %v8020 = vunpack.c.l.b16 %v7937
        %v8021 = vunpack.c.l.b16 %v7938
        %v8022 = vunpack.c.l.b16 %v7939
        %v8023 = vunpack.c.l.b16 %v7940
        %v8024 = vunpack.c.l.b16 %v7941
        %v8025 = vunpack.c.l.b16 %v7942
        %v8026 = vunpack.c.l.b16 %v7943
        %v8027 = vunpack.c.l.b16 %v7944
        %v8028 = vunpack.c.l.b16 %v7945
        %v8029 = vunpack.c.l.b16 %v7946
        %v8030 = vunpack.c.l.b16 %v7947
        %v8031 = vunpack.c.l.b16 %v7948
        %v8032 = vunpack.c.l.b16 %v7949
        %v8033 = vunpack.c.l.b16 %v7950
        %v8034 = vunpack.c.l.b16 %v7951
        %v8035 = vunpack.c.l.b16 %v7952
        %v8036 = vunpack.c.l.b16 %v7953
        %v8037 = vunpack.c.l.b16 %v7954
        %v8038 = vpack.c.b16 %v8007, %v8006
        %v8039 = vpack.c.b16 %v8009, %v8008
        %v8040 = vpack.c.b16 %v8011, %v8010
        %v8041 = vpack.c.b16 %v8013, %v8012
        %v8042 = vpack.c.b16 %v8015, %v8014
        %v8043 = vpack.c.b16 %v8017, %v8016
        %v8044 = vpack.c.b16 %v8019, %v8018
        %v8045 = vpack.c.b16 %v8021, %v8020
        %v8046 = vpack.c.b16 %v8023, %v8022
        %v8047 = vpack.c.b16 %v8025, %v8024
        %v8048 = vpack.c.b16 %v8027, %v8026
        %v8049 = vpack.c.b16 %v8029, %v8028
        %v8050 = vpack.c.b16 %v8031, %v8030
        %v8051 = vpack.c.b16 %v8033, %v8032
        %v8052 = vpack.c.b16 %v8035, %v8034
        %v8053 = vpack.c.b16 %v8037, %v8036
        %8070 = vmatpush.bf16.msra.mxu0 %v8045
        %8071 = vmatpush.bf16.msra.mxu0 %v8044
        %8072 = vmatpush.bf16.msra.mxu0 %v8043
        %8073 = vmatpush.bf16.msra.mxu0 %v8042
        %8074 = vmatpush.bf16.msra.mxu0 %v8041
        %8075 = vmatpush.bf16.msra.mxu0 %v8040
        %8076 = vmatpush.bf16.msra.mxu0 %v8039
        %8077 = vmatpush.bf16.msra.mxu0 %v8038
        %8078 = vmatmul.bf16.gmra.mxu0 %v7970
        %v8079 = vpop.f32.mrf.mxu0
        %v8080 = vadd.f32 %v7957, %v8079
        %v8081 = vpop.f32.mrf.mxu0
        %8082 = vdwg.mxu0
        %8083 = vmatpush.bf16.msra.mxu0 %v8053
        %8084 = vmatpush.bf16.msra.mxu0 %v8052
        %8085 = vmatpush.bf16.msra.mxu0 %v8051
        %8086 = vmatpush.bf16.msra.mxu0 %v8050
        %8087 = vmatpush.bf16.msra.mxu0 %v8049
        %8088 = vmatpush.bf16.msra.mxu0 %v8048
        %8089 = vmatpush.bf16.msra.mxu0 %v8047
        %8090 = vmatpush.bf16.msra.mxu0 %v8046
        %8091 = vmatmul.bf16.gmra.mxu0 %v7971
        %v8092 = vpop.f32.mrf.mxu0
        %v8093 = vadd.f32 %v8080, %v8092
        %v8094 = vpop.f32.mrf.mxu0
        %8095 = vdwg.mxu0
        %v8096 = vmax.f32 %v8093, 0.0
        %v8097 = vpack.c.bf16 %v8096, %v8096
        %v8098 = vld [vmem:[#allocation12] sm:$0xff]
        %v8099 = vld [vmem:[#allocation12 + $0x8] sm:$0xff]
        %v8100 = vld [vmem:[#allocation12 + $0x10] sm:$0xff]
        %v8101 = vld [vmem:[#allocation12 + $0x18] sm:$0xff]
        %v8102 = vld [vmem:[#allocation12 + $0x20] sm:$0xff]
        %v8103 = vld [vmem:[#allocation12 + $0x28] sm:$0xff]
        %v8104 = vld [vmem:[#allocation12 + $0x30] sm:$0xff]
        %v8105 = vld [vmem:[#allocation12 + $0x38] sm:$0xff]
        %v8106 = vld [vmem:[#allocation12 + $0x40] sm:$0xff]
        %v8107 = vld [vmem:[#allocation12 + $0x48] sm:$0xff]
        %v8108 = vld [vmem:[#allocation12 + $0x50] sm:$0xff]
        %v8109 = vld [vmem:[#allocation12 + $0x58] sm:$0xff]
        %v8110 = vld [vmem:[#allocation12 + $0x60] sm:$0xff]
        %v8111 = vld [vmem:[#allocation12 + $0x68] sm:$0xff]
        %v8112 = vld [vmem:[#allocation12 + $0x70] sm:$0xff]
        %v8113 = vld [vmem:[#allocation12 + $0x78] sm:$0xff]
        %v8114 = vld [vmem:[#allocation12 + $0x80] sm:$0xff]
        %v8115 = vld [vmem:[#allocation12 + $0x88] sm:$0xff]
        %v8116 = vld [vmem:[#allocation12 + $0x90] sm:$0xff]
        %v8117 = vld [vmem:[#allocation12 + $0x98] sm:$0xff]
        %v8118 = vld [vmem:[#allocation12 + $0xa0] sm:$0xff]
        %v8119 = vld [vmem:[#allocation12 + $0xa8] sm:$0xff]
        %v8120 = vld [vmem:[#allocation12 + $0xb0] sm:$0xff]
        %v8121 = vld [vmem:[#allocation12 + $0xb8] sm:$0xff]
        %v8122 = vld [vmem:[#allocation12 + $0xc0] sm:$0xff]
        %v8123 = vld [vmem:[#allocation12 + $0xc8] sm:$0xff]
        %v8124 = vld [vmem:[#allocation12 + $0xd0] sm:$0xff]
        %v8125 = vld [vmem:[#allocation12 + $0xd8] sm:$0xff]
        %v8126 = vld [vmem:[#allocation12 + $0xe0] sm:$0xff]
        %v8127 = vld [vmem:[#allocation12 + $0xe8] sm:$0xff]
        %v8128 = vld [vmem:[#allocation12 + $0xf0] sm:$0xff]
        %v8129 = vld [vmem:[#allocation12 + $0xf8] sm:$0xff]
        %v8130 = vld [vmem:[#allocation13] sm:$0xf]
        %v8132 = vperm.slane %v8130, 0
        %v8133 = vperm.slane %v8130, 1
        %v8134 = vperm.slane %v8130, 2
        %v8135 = vperm.slane %v8130, 3
        %v8172 = vunpack.c.l.b16 %v8098
        %v8173 = vunpack.c.h.b16 %v8098
        %v8174 = vunpack.c.l.b16 %v8099
        %v8175 = vunpack.c.h.b16 %v8099
        %v8176 = vunpack.c.l.b16 %v8100
        %v8177 = vunpack.c.h.b16 %v8100
        %v8178 = vunpack.c.l.b16 %v8101
        %v8179 = vunpack.c.h.b16 %v8101
        %v8180 = vunpack.c.l.b16 %v8102
        %v8181 = vunpack.c.h.b16 %v8102
        %v8182 = vunpack.c.l.b16 %v8103
        %v8183 = vunpack.c.h.b16 %v8103
        %v8184 = vunpack.c.l.b16 %v8104
        %v8185 = vunpack.c.h.b16 %v8104
        %v8186 = vunpack.c.l.b16 %v8105
        %v8187 = vunpack.c.h.b16 %v8105
        %v8188 = vunpack.c.l.b16 %v8106
        %v8189 = vunpack.c.h.b16 %v8106
        %v8190 = vunpack.c.l.b16 %v8107
        %v8191 = vunpack.c.h.b16 %v8107
        %v8192 = vunpack.c.l.b16 %v8108
        %v8193 = vunpack.c.h.b16 %v8108
        %v8194 = vunpack.c.l.b16 %v8109
        %v8195 = vunpack.c.h.b16 %v8109
        %v8196 = vunpack.c.l.b16 %v8110
        %v8197 = vunpack.c.h.b16 %v8110
        %v8198 = vunpack.c.l.b16 %v8111
        %v8199 = vunpack.c.h.b16 %v8111
        %v8200 = vunpack.c.l.b16 %v8112
        %v8201 = vunpack.c.h.b16 %v8112
        %v8202 = vunpack.c.l.b16 %v8113
        %v8203 = vunpack.c.h.b16 %v8113
        %v8204 = vunpack.c.l.b16 %v8114
        %v8205 = vunpack.c.h.b16 %v8114
        %v8206 = vunpack.c.l.b16 %v8115
        %v8207 = vunpack.c.h.b16 %v8115
        %v8208 = vunpack.c.l.b16 %v8116
        %v8209 = vunpack.c.h.b16 %v8116
        %v8210 = vunpack.c.l.b16 %v8117
        %v8211 = vunpack.c.h.b16 %v8117
        %v8212 = vunpack.c.l.b16 %v8118
        %v8213 = vunpack.c.h.b16 %v8118
        %v8214 = vunpack.c.l.b16 %v8119
        %v8215 = vunpack.c.h.b16 %v8119
        %v8216 = vunpack.c.l.b16 %v8120
        %v8217 = vunpack.c.h.b16 %v8120
        %v8218 = vunpack.c.l.b16 %v8121
        %v8219 = vunpack.c.h.b16 %v8121
        %v8220 = vunpack.c.l.b16 %v8122
        %v8221 = vunpack.c.h.b16 %v8122
        %v8222 = vunpack.c.l.b16 %v8123
        %v8223 = vunpack.c.h.b16 %v8123
        %v8224 = vunpack.c.l.b16 %v8124
        %v8225 = vunpack.c.h.b16 %v8124
        %v8226 = vunpack.c.l.b16 %v8125
        %v8227 = vunpack.c.h.b16 %v8125
        %v8228 = vunpack.c.l.b16 %v8126
        %v8229 = vunpack.c.h.b16 %v8126
        %v8230 = vunpack.c.l.b16 %v8127
        %v8231 = vunpack.c.h.b16 %v8127
        %v8232 = vunpack.c.l.b16 %v8128
        %v8233 = vunpack.c.h.b16 %v8128
        %v8234 = vunpack.c.l.b16 %v8129
        %v8235 = vunpack.c.h.b16 %v8129
        %v8236 = vpack.c.b16 %v8176, %v8172
        %v8237 = vpack.c.b16 %v8177, %v8173
        %v8238 = vpack.c.b16 %v8178, %v8174
        %v8239 = vpack.c.b16 %v8179, %v8175
        %v8240 = vpack.c.b16 %v8184, %v8180
        %v8241 = vpack.c.b16 %v8185, %v8181
        %v8242 = vpack.c.b16 %v8186, %v8182
        %v8243 = vpack.c.b16 %v8187, %v8183
        %v8244 = vpack.c.b16 %v8192, %v8188
        %v8245 = vpack.c.b16 %v8193, %v8189
        %v8246 = vpack.c.b16 %v8194, %v8190
        %v8247 = vpack.c.b16 %v8195, %v8191
        %v8248 = vpack.c.b16 %v8200, %v8196
        %v8249 = vpack.c.b16 %v8201, %v8197
        %v8250 = vpack.c.b16 %v8202, %v8198
        %v8251 = vpack.c.b16 %v8203, %v8199
        %v8252 = vpack.c.b16 %v8208, %v8204
        %v8253 = vpack.c.b16 %v8209, %v8205
        %v8254 = vpack.c.b16 %v8210, %v8206
        %v8255 = vpack.c.b16 %v8211, %v8207
        %v8256 = vpack.c.b16 %v8216, %v8212
        %v8257 = vpack.c.b16 %v8217, %v8213
        %v8258 = vpack.c.b16 %v8218, %v8214
        %v8259 = vpack.c.b16 %v8219, %v8215
        %v8260 = vpack.c.b16 %v8224, %v8220
        %v8261 = vpack.c.b16 %v8225, %v8221
        %v8262 = vpack.c.b16 %v8226, %v8222
        %v8263 = vpack.c.b16 %v8227, %v8223
        %v8264 = vpack.c.b16 %v8232, %v8228
        %v8265 = vpack.c.b16 %v8233, %v8229
        %v8266 = vpack.c.b16 %v8234, %v8230
        %v8267 = vpack.c.b16 %v8235, %v8231
        %8300 = vmatpush.bf16.msra.mxu0 %v8264
        %8301 = vmatpush.bf16.msra.mxu0 %v8260
        %8302 = vmatpush.bf16.msra.mxu0 %v8256
        %8303 = vmatpush.bf16.msra.mxu0 %v8252
        %8304 = vmatpush.bf16.msra.mxu0 %v8248
        %8305 = vmatpush.bf16.msra.mxu0 %v8244
        %8306 = vmatpush.bf16.msra.mxu0 %v8240
        %8307 = vmatpush.bf16.msra.mxu0 %v8236
        %8308 = vmatmul.bf16.gmra.mxu0 %v8097
        %v8309 = vpop.f32.mrf.mxu0
        %v8310 = vadd.f32 %v8132, %v8309
        %v8311 = vpop.f32.mrf.mxu0
        %8312 = vdwg.mxu0
        %8313 = vmatpush.bf16.msra.mxu0 %v8265
        %8314 = vmatpush.bf16.msra.mxu0 %v8261
        %8315 = vmatpush.bf16.msra.mxu0 %v8257
        %8316 = vmatpush.bf16.msra.mxu0 %v8253
        %8317 = vmatpush.bf16.msra.mxu0 %v8249
        %8318 = vmatpush.bf16.msra.mxu0 %v8245
        %8319 = vmatpush.bf16.msra.mxu0 %v8241
        %8320 = vmatpush.bf16.msra.mxu0 %v8237
        %8321 = vmatmul.bf16.gmra.mxu0 %v8097
        %v8322 = vpop.f32.mrf.mxu0
        %v8323 = vadd.f32 %v8133, %v8322
        %v8324 = vpop.f32.mrf.mxu0
        %8325 = vdwg.mxu0
        %8326 = vmatpush.bf16.msra.mxu0 %v8266
        %8327 = vmatpush.bf16.msra.mxu0 %v8262
        %8328 = vmatpush.bf16.msra.mxu0 %v8258
        %8329 = vmatpush.bf16.msra.mxu0 %v8254
        %8330 = vmatpush.bf16.msra.mxu0 %v8250
        %8331 = vmatpush.bf16.msra.mxu0 %v8246
        %8332 = vmatpush.bf16.msra.mxu0 %v8242
        %8333 = vmatpush.bf16.msra.mxu0 %v8238
        %8334 = vmatmul.bf16.gmra.mxu0 %v8097
        %v8335 = vpop.f32.mrf.mxu0
        %v8336 = vadd.f32 %v8134, %v8335
        %v8337 = vpop.f32.mrf.mxu0
        %8338 = vdwg.mxu0
        %8339 = vmatpush.bf16.msra.mxu0 %v8267
        %8340 = vmatpush.bf16.msra.mxu0 %v8263
        %8341 = vmatpush.bf16.msra.mxu0 %v8259
        %8342 = vmatpush.bf16.msra.mxu0 %v8255
        %8343 = vmatpush.bf16.msra.mxu0 %v8251
        %8344 = vmatpush.bf16.msra.mxu0 %v8247
        %8345 = vmatpush.bf16.msra.mxu0 %v8243
        %8346 = vmatpush.bf16.msra.mxu0 %v8239
        %8347 = vmatmul.bf16.gmra.mxu0 %v8097
        %v8348 = vpop.f32.mrf.mxu0
        %v8349 = vadd.f32 %v8135, %v8348
        %v8350 = vpop.f32.mrf.mxu0
        %8351 = vdwg.mxu0
        %v8352 = vmax.f32 %v8310, %v8336
        %v8353 = vmax.f32 %v8323, %v8349
        %v8354 = vsub.f32 %v8310, %v8352
        %v8355 = vsub.f32 %v8323, %v8353
        %v8356 = vmul.f32 %v8354, 1.442695
        %v8357 = vpow.pop %v8356
        %v8358 = vmul.f32 %v8355, 1.442695
        %v8359 = vpow.pop %v8358
        %v8360 = vsub.f32 %v8336, %v8352
        %v8361 = vsub.f32 %v8349, %v8353
        %v8362 = vmul.f32 %v8360, 1.442695
        %v8363 = vpow.pop %v8362
        %v8364 = vmul.f32 %v8361, 1.442695
        %v8365 = vpow.pop %v8364
        %v8366 = vadd.f32 %v8357, %v8363
        %v8367 = vadd.f32 %v8359, %v8365
        %v8368 = vrcp.pop %v8366
        %v8369 = vrcp.pop %v8367
        %v8370 = vmul.f32 %v8357, %v8368
        %v8371 = vmul.f32 %v8359, %v8369
        %v8372 = vmul.f32 %v8363, %v8368
        %v8373 = vmul.f32 %v8365, %v8369
        %v8374 = vld [vmem:[#allocation3] sm:$0xff]
        %v8375 = vld [vmem:[#allocation3 + $0x8] sm:$0xff]
        %v8376 = vld [vmem:[#allocation3 + $0x10] sm:$0xff]
        %v8377 = vld [vmem:[#allocation3 + $0x18] sm:$0xff]
        %v8378 = vld [vmem:[#allocation3 + $0x20] sm:$0xff]
        %v8379 = vld [vmem:[#allocation3 + $0x28] sm:$0xff]
        %v8380 = vld [vmem:[#allocation3 + $0x30] sm:$0xff]
        %v8381 = vld [vmem:[#allocation3 + $0x38] sm:$0xff]
        %v8382 = vunpack.c.l.bf16 %v8374
        %v8383 = vunpack.c.h.bf16 %v8374
        %v8384 = vunpack.c.l.bf16 %v8375
        %v8385 = vunpack.c.h.bf16 %v8375
        %v8386 = vunpack.c.l.bf16 %v8376
        %v8387 = vunpack.c.h.bf16 %v8376
        %v8388 = vunpack.c.l.bf16 %v8377
        %v8389 = vunpack.c.h.bf16 %v8377
        %v8390 = vunpack.c.l.bf16 %v8378
        %v8391 = vunpack.c.h.bf16 %v8378
        %v8392 = vunpack.c.l.bf16 %v8379
        %v8393 = vunpack.c.h.bf16 %v8379
        %v8394 = vunpack.c.l.bf16 %v8380
        %v8395 = vunpack.c.h.bf16 %v8380
        %v8396 = vunpack.c.l.bf16 %v8381
        %v8397 = vunpack.c.h.bf16 %v8381
        %v8398 = vperm.slane %v8370, 0
        %v8399 = vperm.slane %v8371, 0
        %v8400 = vmul.f32 %v8398, %v8382
        %v8401 = vmul.f32 %v8399, %v8383
        %v8402 = vmul.f32 %v8398, %v8384
        %v8403 = vmul.f32 %v8399, %v8385
        %v8404 = vmul.f32 %v8398, %v8386
        %v8405 = vmul.f32 %v8399, %v8387
        %v8406 = vmul.f32 %v8398, %v8388
        %v8407 = vmul.f32 %v8399, %v8389
        %v8408 = vmul.f32 %v8398, %v8390
        %v8409 = vmul.f32 %v8399, %v8391
        %v8410 = vmul.f32 %v8398, %v8392
        %v8411 = vmul.f32 %v8399, %v8393
        %v8412 = vmul.f32 %v8398, %v8394
        %v8413 = vmul.f32 %v8399, %v8395
        %v8414 = vmul.f32 %v8398, %v8396
        %v8415 = vmul.f32 %v8399, %v8397
        %v8416 = vld [vmem:[%s7842] sm:$0xff]
        %v8417 = vld [vmem:[%s7842 + $0x8] sm:$0xff]
        %v8418 = vld [vmem:[%s7842 + $0x10] sm:$0xff]
        %v8419 = vld [vmem:[%s7842 + $0x18] sm:$0xff]
        %v8420 = vld [vmem:[%s7842 + $0x20] sm:$0xff]
        %v8421 = vld [vmem:[%s7842 + $0x28] sm:$0xff]
        %v8422 = vld [vmem:[%s7842 + $0x30] sm:$0xff]
        %v8423 = vld [vmem:[%s7842 + $0x38] sm:$0xff]
        %v8424 = vunpack.c.l.bf16 %v8416
        %v8425 = vunpack.c.h.bf16 %v8416
        %v8426 = vunpack.c.l.bf16 %v8417
        %v8427 = vunpack.c.h.bf16 %v8417
        %v8428 = vunpack.c.l.bf16 %v8418
        %v8429 = vunpack.c.h.bf16 %v8418
        %v8430 = vunpack.c.l.bf16 %v8419
        %v8431 = vunpack.c.h.bf16 %v8419
        %v8432 = vunpack.c.l.bf16 %v8420
        %v8433 = vunpack.c.h.bf16 %v8420
        %v8434 = vunpack.c.l.bf16 %v8421
        %v8435 = vunpack.c.h.bf16 %v8421
        %v8436 = vunpack.c.l.bf16 %v8422
        %v8437 = vunpack.c.h.bf16 %v8422
        %v8438 = vunpack.c.l.bf16 %v8423
        %v8439 = vunpack.c.h.bf16 %v8423
        %v8440 = vperm.slane %v8372, 0
        %v8441 = vperm.slane %v8373, 0
        %v8442 = vmul.f32 %v8440, %v8424
        %v8443 = vmul.f32 %v8441, %v8425
        %v8444 = vmul.f32 %v8440, %v8426
        %v8445 = vmul.f32 %v8441, %v8427
        %v8446 = vmul.f32 %v8440, %v8428
        %v8447 = vmul.f32 %v8441, %v8429
        %v8448 = vmul.f32 %v8440, %v8430
        %v8449 = vmul.f32 %v8441, %v8431
        %v8450 = vmul.f32 %v8440, %v8432
        %v8451 = vmul.f32 %v8441, %v8433
        %v8452 = vmul.f32 %v8440, %v8434
        %v8453 = vmul.f32 %v8441, %v8435
        %v8454 = vmul.f32 %v8440, %v8436
        %v8455 = vmul.f32 %v8441, %v8437
        %v8456 = vmul.f32 %v8440, %v8438
        %v8457 = vmul.f32 %v8441, %v8439
        %v8458 = vadd.f32 %v8400, %v8442
        %v8459 = vadd.f32 %v8401, %v8443
        %v8460 = vadd.f32 %v8402, %v8444
        %v8461 = vadd.f32 %v8403, %v8445
        %v8462 = vadd.f32 %v8404, %v8446
        %v8463 = vadd.f32 %v8405, %v8447
        %v8464 = vadd.f32 %v8406, %v8448
        %v8465 = vadd.f32 %v8407, %v8449
        %v8466 = vadd.f32 %v8408, %v8450
        %v8467 = vadd.f32 %v8409, %v8451
        %v8468 = vadd.f32 %v8410, %v8452
        %v8469 = vadd.f32 %v8411, %v8453
        %v8470 = vadd.f32 %v8412, %v8454
        %v8471 = vadd.f32 %v8413, %v8455
        %v8472 = vadd.f32 %v8414, %v8456
        %v8473 = vadd.f32 %v8415, %v8457
        %v8474 = vpack.c.bf16 %v8459, %v8458
        %v8475 = vpack.c.bf16 %v8461, %v8460
        %v8476 = vpack.c.bf16 %v8463, %v8462
        %v8477 = vpack.c.bf16 %v8465, %v8464
        %v8478 = vpack.c.bf16 %v8467, %v8466
        %v8479 = vpack.c.bf16 %v8469, %v8468
        %v8480 = vpack.c.bf16 %v8471, %v8470
        %v8481 = vpack.c.bf16 %v8473, %v8472
        %8482 = vst [vmem:[%s370] sm:$0xff] %v8474
        %8483 = vst [vmem:[%s370 + $0x8] sm:$0xff] %v8475
        %8484 = vst [vmem:[%s370 + $0x10] sm:$0xff] %v8476
        %8485 = vst [vmem:[%s370 + $0x18] sm:$0xff] %v8477
        %8486 = vst [vmem:[%s370 + $0x20] sm:$0xff] %v8478
        %8487 = vst [vmem:[%s370 + $0x28] sm:$0xff] %v8479
        %8488 = vst [vmem:[%s370 + $0x30] sm:$0xff] %v8480
        %8489 = vst [vmem:[%s370 + $0x38] sm:$0xff] %v8481
        %v8490 = vld [vmem:[#allocation3 + $0x40] sm:$0xff]
        %v8491 = vld [vmem:[#allocation3 + $0x48] sm:$0xff]
        %v8492 = vld [vmem:[#allocation3 + $0x50] sm:$0xff]
        %v8493 = vld [vmem:[#allocation3 + $0x58] sm:$0xff]
        %v8494 = vld [vmem:[#allocation3 + $0x60] sm:$0xff]
        %v8495 = vld [vmem:[#allocation3 + $0x68] sm:$0xff]
        %v8496 = vld [vmem:[#allocation3 + $0x70] sm:$0xff]
        %v8497 = vld [vmem:[#allocation3 + $0x78] sm:$0xff]
        %v8498 = vunpack.c.l.bf16 %v8490
        %v8499 = vunpack.c.h.bf16 %v8490
        %v8500 = vunpack.c.l.bf16 %v8491
        %v8501 = vunpack.c.h.bf16 %v8491
        %v8502 = vunpack.c.l.bf16 %v8492
        %v8503 = vunpack.c.h.bf16 %v8492
        %v8504 = vunpack.c.l.bf16 %v8493
        %v8505 = vunpack.c.h.bf16 %v8493
        %v8506 = vunpack.c.l.bf16 %v8494
        %v8507 = vunpack.c.h.bf16 %v8494
        %v8508 = vunpack.c.l.bf16 %v8495
        %v8509 = vunpack.c.h.bf16 %v8495
        %v8510 = vunpack.c.l.bf16 %v8496
        %v8511 = vunpack.c.h.bf16 %v8496
        %v8512 = vunpack.c.l.bf16 %v8497
        %v8513 = vunpack.c.h.bf16 %v8497
        %v8514 = vperm.slane %v8370, 1
        %v8515 = vperm.slane %v8371, 1
        %v8516 = vmul.f32 %v8514, %v8498
        %v8517 = vmul.f32 %v8515, %v8499
        %v8518 = vmul.f32 %v8514, %v8500
        %v8519 = vmul.f32 %v8515, %v8501
        %v8520 = vmul.f32 %v8514, %v8502
        %v8521 = vmul.f32 %v8515, %v8503
        %v8522 = vmul.f32 %v8514, %v8504
        %v8523 = vmul.f32 %v8515, %v8505
        %v8524 = vmul.f32 %v8514, %v8506
        %v8525 = vmul.f32 %v8515, %v8507
        %v8526 = vmul.f32 %v8514, %v8508
        %v8527 = vmul.f32 %v8515, %v8509
        %v8528 = vmul.f32 %v8514, %v8510
        %v8529 = vmul.f32 %v8515, %v8511
        %v8530 = vmul.f32 %v8514, %v8512
        %v8531 = vmul.f32 %v8515, %v8513
        %v8532 = vld [vmem:[%s7842 + $0x40] sm:$0xff]
        %v8533 = vld [vmem:[%s7842 + $0x48] sm:$0xff]
        %v8534 = vld [vmem:[%s7842 + $0x50] sm:$0xff]
        %v8535 = vld [vmem:[%s7842 + $0x58] sm:$0xff]
        %v8536 = vld [vmem:[%s7842 + $0x60] sm:$0xff]
        %v8537 = vld [vmem:[%s7842 + $0x68] sm:$0xff]
        %v8538 = vld [vmem:[%s7842 + $0x70] sm:$0xff]
        %v8539 = vld [vmem:[%s7842 + $0x78] sm:$0xff]
        %v8540 = vunpack.c.l.bf16 %v8532
        %v8541 = vunpack.c.h.bf16 %v8532
        %v8542 = vunpack.c.l.bf16 %v8533
        %v8543 = vunpack.c.h.bf16 %v8533
        %v8544 = vunpack.c.l.bf16 %v8534
        %v8545 = vunpack.c.h.bf16 %v8534
        %v8546 = vunpack.c.l.bf16 %v8535
        %v8547 = vunpack.c.h.bf16 %v8535
        %v8548 = vunpack.c.l.bf16 %v8536
        %v8549 = vunpack.c.h.bf16 %v8536
        %v8550 = vunpack.c.l.bf16 %v8537
        %v8551 = vunpack.c.h.bf16 %v8537
        %v8552 = vunpack.c.l.bf16 %v8538
        %v8553 = vunpack.c.h.bf16 %v8538
        %v8554 = vunpack.c.l.bf16 %v8539
        %v8555 = vunpack.c.h.bf16 %v8539
        %v8556 = vperm.slane %v8372, 1
        %v8557 = vperm.slane %v8373, 1
        %v8558 = vmul.f32 %v8556, %v8540
        %v8559 = vmul.f32 %v8557, %v8541
        %v8560 = vmul.f32 %v8556, %v8542
        %v8561 = vmul.f32 %v8557, %v8543
        %v8562 = vmul.f32 %v8556, %v8544
        %v8563 = vmul.f32 %v8557, %v8545
        %v8564 = vmul.f32 %v8556, %v8546
        %v8565 = vmul.f32 %v8557, %v8547
        %v8566 = vmul.f32 %v8556, %v8548
        %v8567 = vmul.f32 %v8557, %v8549
        %v8568 = vmul.f32 %v8556, %v8550
        %v8569 = vmul.f32 %v8557, %v8551
        %v8570 = vmul.f32 %v8556, %v8552
        %v8571 = vmul.f32 %v8557, %v8553
        %v8572 = vmul.f32 %v8556, %v8554
        %v8573 = vmul.f32 %v8557, %v8555
        %v8574 = vadd.f32 %v8516, %v8558
        %v8575 = vadd.f32 %v8517, %v8559
        %v8576 = vadd.f32 %v8518, %v8560
        %v8577 = vadd.f32 %v8519, %v8561
        %v8578 = vadd.f32 %v8520, %v8562
        %v8579 = vadd.f32 %v8521, %v8563
        %v8580 = vadd.f32 %v8522, %v8564
        %v8581 = vadd.f32 %v8523, %v8565
        %v8582 = vadd.f32 %v8524, %v8566
        %v8583 = vadd.f32 %v8525, %v8567
        %v8584 = vadd.f32 %v8526, %v8568
        %v8585 = vadd.f32 %v8527, %v8569
        %v8586 = vadd.f32 %v8528, %v8570
        %v8587 = vadd.f32 %v8529, %v8571
        %v8588 = vadd.f32 %v8530, %v8572
        %v8589 = vadd.f32 %v8531, %v8573
        %v8590 = vpack.c.bf16 %v8575, %v8574
        %v8591 = vpack.c.bf16 %v8577, %v8576
        %v8592 = vpack.c.bf16 %v8579, %v8578
        %v8593 = vpack.c.bf16 %v8581, %v8580
        %v8594 = vpack.c.bf16 %v8583, %v8582
        %v8595 = vpack.c.bf16 %v8585, %v8584
        %v8596 = vpack.c.bf16 %v8587, %v8586
        %v8597 = vpack.c.bf16 %v8589, %v8588
        %s8598 = scalar_lea.vmem %s370, 64 [#allocation15]
        %8599 = vst [vmem:[%s8598] sm:$0xff] %v8590
        %8600 = vst [vmem:[%s8598 + $0x8] sm:$0xff] %v8591
        %8601 = vst [vmem:[%s8598 + $0x10] sm:$0xff] %v8592
        %8602 = vst [vmem:[%s8598 + $0x18] sm:$0xff] %v8593
        %8603 = vst [vmem:[%s8598 + $0x20] sm:$0xff] %v8594
        %8604 = vst [vmem:[%s8598 + $0x28] sm:$0xff] %v8595
        %8605 = vst [vmem:[%s8598 + $0x30] sm:$0xff] %v8596
        %8606 = vst [vmem:[%s8598 + $0x38] sm:$0xff] %v8597
        %s8607 = sand.u32 %s185, 1
        %s8608 = scalar_lea.sflag [#allocation6], %s8607
        %s8609 = sand.u32 %s185, 1
        %s8610 = smul.addr %s8609, 128
        %s8611 = scalar_lea.vmem [#allocation15], %s8610
        // Predicated region
        $region73: #{tpu_custom_call.1} parent=47 // pred_check
          %p8612 = pneg %p195
        $region74: #{tpu_custom_call.1} parent=47 // pred_check_branch
          %8614 = sbr.rel (%p8612) target = $region76
        $region75: #{tpu_custom_call.1} parent=47 // pred_region
          %s8615 = smul.u32 2, %s25
          %8617 = vsyncadd %s8608, 0
          %s8618 = smul.addr %s8615, 16
          %s8619 = smul.addr %s8618, 4
          %s8620 = scalar_lea.hbm %s7, %s8619
          %s8621 = sshll.u32 %s8611, 4
          %s8622 = int_to_ptr.vmem [resolvable:$true] %s8621
          %s8623 = sshll.u32 %s8620, 4
          %s8624 = int_to_ptr.hbm [resolvable:$true] %s8623
          %8629 = dma.vmem_to_hbm [thread:$0]  %s8622, 2048, %s8624, %s8608, 128, 128, 8
        $region76: #{tpu_custom_call.1} parent=47 // pred_fallthru
          _
      $region48: #{tpu_custom_call.1} parent=5 // pred_fallthru
        _
      %p8630 = scmp.le.s32.totalorder 2, %s20
      // Predicated region
      $region77: #{tpu_custom_call.1} parent=5 // pred_check
        %p8631 = pneg %p8630
      $region78: #{tpu_custom_call.1} parent=5 // pred_check_branch
        %8633 = sbr.rel (%p8631) target = $region80
      $region79: #{tpu_custom_call.1} parent=5 // pred_region
        %s8634 = ssub.s32 %s20, 2
        // Predicated region
        $region81: #{tpu_custom_call.1} parent=79 // pred_check
          %p8635 = pneg %p201
        $region82: #{tpu_custom_call.1} parent=79 // pred_check_branch
          %8637 = sbr.rel (%p8635) target = $region84
        $region83: #{tpu_custom_call.1} parent=79 // pred_region
          %s8638 = sand.u32 %s186, 1
          %s8639 = scalar_lea.sflag [#allocation6], %s8638
          %s8640 = sand.u32 %s186, 1
          %s8641 = smul.addr %s8640, 128
          %s8642 = scalar_lea.vmem [#allocation15], %s8641
          %8644 = dma.done %s8639, 2048
        $region84: #{tpu_custom_call.1} parent=79 // pred_fallthru
          _
      $region80: #{tpu_custom_call.1} parent=5 // pred_fallthru
        _
    $region6: #{tpu_custom_call.1} parent=1 // loop_footer
      %s24 = sadd.s32 1, %s20
    $region7: #{tpu_custom_call.1} parent=1 // loop_footer_branch
      %19 = sbr.rel target = $region3
    $region8: #{tpu_custom_call.1} parent=1 // loop_exit
      _
    %8645 = vsyncpa [#allocation5], 1
    %s8646 = scalar_lea.sflag [#allocation5], 1
    %8647 = vsyncpa %s8646, 1
    %8648 = vsyncpa [#allocation8], 1
    %8649 = vsyncpa [#allocation11], 1
    %8650 = vsyncpa [#allocation14], 1
    %8651 = vsyncpa [#allocation6], 1
    %s8652 = scalar_lea.sflag [#allocation6], 1
    %8653 = vsyncpa %s8652, 1

</llo_original>
